<compile_context>
chip_gen: v5e
topology: v5e:2x2
jax: 0.10.0
libtpu: 0.0.40
codegen_flags: <defaults>
</compile_context>

<pallas_src>
import functools
import math

import jax
import jax.numpy as jnp
from jax.experimental import pallas as pl
from jax.experimental.pallas import tpu as pltpu

# -------------------------- model hyper-parameters (small) --------------------------
spec_channels = 64
segment_size = 4                     # in latent frames
inter_channels = 32
hidden_channels = 32
filter_channels = 64
n_heads = 2
n_layers = 2
kernel_size = 3
p_dropout = 0.0
resblock = "1"
resblock_kernel_sizes = [3]
resblock_dilation_sizes = [[1, 3, 5]]
upsample_rates = [4, 4]
upsample_initial_channel = 32
upsample_kernel_sizes = [8, 8]
spk_embed_dim = 4
gin_channels = 16
sr = 16000
PHONE_EMB_DIM = 768                  # TextEncoderV2 embedding_dim
N_FLOWS = 4
WN_ENC_Q_LAYERS = 16
WN_FLOW_LAYERS = 3
WN_KERNEL = 5
LRELU_SLOPE = 0.1
upp = math.prod(upsample_rates)
num_upsamples = len(upsample_rates)
num_kernels = len(resblock_kernel_sizes)

_VMEM = pl.BlockSpec(memory_space=pltpu.MemorySpace.VMEM)


# ============================ helpers (usable inside kernels) ========================
def _act(y, act, slope):
    if act == 'relu':
        return jnp.maximum(y, 0.0)
    if act == 'leaky':
        return jnp.where(y >= 0, y, slope * y)
    if act == 'tanh':
        return jnp.tanh(y)
    return y


def leaky(x, slope):
    return jnp.where(x >= 0, x, slope * x)


def seq_mask_cl(lengths, max_len):
    """(B,) -> (B, T, 1) float mask (channels-last)."""
    return (jnp.arange(max_len)[None, :] < lengths[:, None]).astype(jnp.float32)[:, :, None]


def _pad_time(x, padl, padr):
    """Zero-pad the time axis of a (B, T, C) value on the resident VMEM tile."""
    parts = []
    if padl:
        parts.append(jnp.zeros((x.shape[0], padl, x.shape[2]), x.dtype))
    parts.append(x)
    if padr:
        parts.append(jnp.zeros((x.shape[0], padr, x.shape[2]), x.dtype))
    return jnp.concatenate(parts, axis=1) if len(parts) > 1 else x


def _tap_patches(xp, ksz, dil, t_out):
    """im2col on the resident tile: (B, Tp, C) -> (B, t_out, ksz*C) (fused-tap matmul)."""
    if ksz == 1:
        return xp[:, :t_out, :]
    return jnp.concatenate([xp[:, k * dil:k * dil + t_out, :] for k in range(ksz)], axis=-1)


def _layer_norm(x, g, b, eps=1e-5):
    m = jnp.mean(x, axis=-1, keepdims=True)
    d = x - m
    v = jnp.mean(d * d, axis=-1, keepdims=True)
    return d * jax.lax.rsqrt(v + eps) * g + b


# ================================ Pallas kernels =====================================
def _mm_kernel(a_ref, b_ref, bias_ref, o_ref, *, act, slope):
    y = jnp.dot(a_ref[...].astype(jnp.bfloat16), b_ref[...].astype(jnp.bfloat16),
                preferred_element_type=jnp.float32) + bias_ref[...]
    o_ref[...] = _act(y, act, slope).astype(o_ref.dtype)


def pallas_matmul(a, b, bias=None, act='none', slope=0.0, out_dtype=jnp.float32):
    """(M, K) @ (K, N) + bias, fused activation.  b is a pre-laid-out bf16 weight."""
    M, K = a.shape
    K2, N = b.shape
    assert K == K2
    if bias is None:
        bias = jnp.zeros((N,), jnp.float32)
    bias2 = bias.astype(jnp.float32).reshape(1, N)
    kern = functools.partial(_mm_kernel, act=act, slope=slope)
    est = 4 * (M * K + K * N + M * N)                    # f32 upper bound
    if est <= (8 << 20):                                 # single resident block
        return pl.pallas_call(
            kern, out_shape=jax.ShapeDtypeStruct((M, N), out_dtype),
            in_specs=[_VMEM, _VMEM, _VMEM], out_specs=_VMEM)(a, b, bias2)
    # Large-M fallback: pad M to a tile multiple, M-tiled "parallel" grid (v7x VMEM safe).
    tm = 256
    Mp = pl.cdiv(M, tm) * tm
    ap = jnp.pad(a, ((0, Mp - M), (0, 0))) if Mp != M else a
    out = pl.pallas_call(
        kern, out_shape=jax.ShapeDtypeStruct((Mp, N), out_dtype),
        grid=(Mp // tm,),
        in_specs=[pl.BlockSpec((tm, K), lambda i: (i, 0)),
                  pl.BlockSpec((K, N), lambda i: (0, 0)),
                  pl.BlockSpec((1, N), lambda i: (0, 0))],
        out_specs=pl.BlockSpec((tm, N), lambda i: (i, 0)),
        compiler_params=pltpu.CompilerParams(dimension_semantics=("parallel",)),
    )(ap, b, bias2)
    return out[:M]


def _convk_kernel(x_ref, w_ref, b_ref, o_ref, *, ksz, dil, padl, padr,
                  pre_act, pre_slope, act, slope):
    """Stride-1 dilated conv: in-VMEM pad, one pre-activation pass, fused-tap matmul."""
    x = x_ref[...].astype(jnp.float32)
    if pre_act == 'leaky':
        x = leaky(x, pre_slope)
    B, T, C = x.shape
    t_out = T + padl + padr - dil * (ksz - 1)
    xp = _pad_time(x, padl, padr)
    pat = _tap_patches(xp, ksz, dil, t_out)                               # (B, t_out, ksz*C)
    y = jnp.dot(pat.reshape(B * t_out, ksz * C).astype(jnp.bfloat16), w_ref[...],
                preferred_element_type=jnp.float32) + b_ref[...]
    o_ref[...] = _act(y, act, slope).reshape(B, t_out, -1).astype(o_ref.dtype)


def conv1d_cl(x, p, *, dilation=1, padding=0, pre_act='none', pre_slope=0.0,
              act='none', slope=0.0, out_dtype=jnp.float32):
    """Conv1d on channels-last x: (B, T, Cin) -> (B, Tout, Cout).
    p['w'] is (Cin, Cout) for 1x1 convs, (K, Cin, Cout) otherwise (bf16)."""
    B, T, Cin = x.shape
    w, b = p['w'], p['b']
    if w.ndim == 2:                                       # ---- 1x1 fast path ----
        if pre_act == 'leaky':
            x = leaky(x, pre_slope)
        if Cin == 1:                                      # outer product -> elementwise
            y = x.astype(jnp.float32) * w.astype(jnp.float32).reshape(1, 1, -1) \
                + b.reshape(1, 1, -1)
            return _act(y, act, slope).astype(out_dtype)
        y = pallas_matmul(x.reshape(B * T, Cin), w, b, act=act, slope=slope,
                          out_dtype=out_dtype)
        return y.reshape(B, T, -1)
    K, _, Cout = w.shape
    padl, padr = padding if isinstance(padding, tuple) else (padding, padding)
    Tout = T + padl + padr - dilation * (K - 1)
    kern = functools.partial(_convk_kernel, ksz=K, dil=dilation, padl=padl, padr=padr,
                             pre_act=pre_act, pre_slope=pre_slope, act=act, slope=slope)
    return pl.pallas_call(
        kern, out_shape=jax.ShapeDtypeStruct((B, Tout, Cout), out_dtype),
        in_specs=[_VMEM] * 3, out_specs=_VMEM,
    )(x, w.reshape(K * Cin, Cout), b.reshape(1, Cout))


def _convT_poly_kernel(x_ref, w_ref, b_ref, o_ref, *, n_phase, n_taps, off_bases,
                       halo_l, halo_r, pre_slope):
    """Polyphase transposed conv: per-phase fused-tap matmuls, phase-major output lanes."""
    x = leaky(x_ref[...].astype(jnp.float32), pre_slope)
    B, T, C = x.shape
    xp = _pad_time(x, halo_l, halo_r)
    bias = b_ref[...]                                                     # (1, Cout)
    outs = []
    for r in range(n_phase):
        ob = off_bases[r]
        pat = jnp.concatenate(
            [xp[:, halo_l + ob + j: halo_l + ob + j + T, :] for j in range(n_taps)],
            axis=-1)                                                      # (B, T, n_taps*C)
        y = jnp.dot(pat.reshape(B * T, n_taps * C).astype(jnp.bfloat16), w_ref[r],
                    preferred_element_type=jnp.float32) + bias
        outs.append(y.reshape(B, T, -1))
    o_ref[...] = jnp.concatenate(outs, axis=-1).astype(o_ref.dtype)       # (B, T, s*Cout)


def conv_transpose1d_cl(x, p, *, stride, padding, kernel, pre_slope=LRELU_SLOPE,
                        out_dtype=jnp.bfloat16):
    """torch ConvTranspose1d via polyphase decomposition (no structural zeros)."""
    B, T, Cin = x.shape
    s, K, pd = stride, kernel, padding
    # polyphase layout assumes K % s == 0 and K - 2p == s (holds for this config)
    pad_eq = K - 1 - pd
    n_taps = K // s
    off_bases = tuple(-((pad_eq - r) // s) for r in range(s))
    halo_l = max(0, -min(off_bases))
    halo_r = max(0, max(off_bases) + n_taps - 1)
    Cout = p['w'].shape[-1]
    kern = functools.partial(_convT_poly_kernel, n_phase=s, n_taps=n_taps,
                             off_bases=off_bases, halo_l=halo_l, halo_r=halo_r,
                             pre_slope=pre_slope)
    out = pl.pallas_call(
        kern, out_shape=jax.ShapeDtypeStruct((B, T, s * Cout), out_dtype),
        in_specs=[_VMEM] * 3, out_specs=_VMEM,
    )(x, p['w'], p['b'].reshape(1, Cout))
    return out.reshape(B, T * s, Cout)                    # free phase interleave


def conv1d_strided_cl(x, p, *, stride, padding):
    """Strided conv (only noise_convs[0], Cin=1); tiny im2col + fused matmul."""
    B, T, Cin = x.shape
    w = p['w']                                            # (K, Cin, Cout)
    K, _, Cout = w.shape
    xp = jnp.pad(x, ((0, 0), (padding, padding), (0, 0)))
    Tp = T + 2 * padding
    Tout = (Tp - K) // stride + 1
    idx = jnp.arange(Tout)[:, None] * stride + jnp.arange(K)[None, :]
    patches = xp[:, idx, :].reshape(B * Tout, K * Cin)
    y = pallas_matmul(patches, w.reshape(K * Cin, Cout), p['b'], out_dtype=jnp.bfloat16)
    return y.reshape(B, Tout, Cout)


def _resblock_kernel(x_ref, src_ref, w1_ref, b1_ref, w2_ref, b2_ref, o_ref,
                     *, ksz, dils, slope):
    """Whole ResBlock1 (NSF noise add + 3 dilations x 2 convs + residuals) in one kernel."""
    x = x_ref[...].astype(jnp.float32) + src_ref[...].astype(jnp.float32)
    B, T, C = x.shape

    def conv(inp, w, b, dd):
        pad = (ksz * dd - dd) // 2
        xp = _pad_time(leaky(inp, slope), pad, pad)
        pat = _tap_patches(xp, ksz, dd, T)
        y = jnp.dot(pat.reshape(B * T, ksz * C).astype(jnp.bfloat16), w,
                    preferred_element_type=jnp.float32) + b
        return y.reshape(B, T, C)

    for idx, d in enumerate(dils):
        xt = conv(x, w1_ref[idx], b1_ref[idx], d)
        xt = conv(xt, w2_ref[idx], b2_ref[idx], 1)
        x = x + xt
    o_ref[...] = x.astype(o_ref.dtype)


def resblock_fused(p, x, src, ksz, dils):
    B, T, C = x.shape
    kern = functools.partial(_resblock_kernel, ksz=ksz, dils=tuple(dils), slope=LRELU_SLOPE)
    return pl.pallas_call(
        kern, out_shape=jax.ShapeDtypeStruct((B, T, C), jnp.bfloat16),
        in_specs=[_VMEM] * 6, out_specs=_VMEM,
    )(x, src, p['w1'], p['b1'], p['w2'], p['b2'])


def _wn_compute(x, mask, g, in_w_ref, in_b_ref, rs_w_ref, rs_b_ref, cw_ref, cb_ref,
                *, n_lay, ksz):
    """WaveNet stack on the resident tile.  fori_loop over layers; fused-tap dilated conv
    (dilation_rate=1 in this model) -> tanh*sigmoid gate -> res/skip 1x1."""
    B, T, H = x.shape
    pad = (ksz - 1) // 2
    zpad = jnp.zeros((B, pad, H), jnp.float32)
    g_bf = g.astype(jnp.bfloat16)

    def body(i, carry):
        xc, skip = carry
        xp = jnp.concatenate([zpad, xc, zpad], axis=1)
        pat = _tap_patches(xp, ksz, 1, T)                                 # (B, T, ksz*H)
        x_in = jnp.dot(pat.reshape(B * T, ksz * H).astype(jnp.bfloat16), in_w_ref[i],
                       preferred_element_type=jnp.float32).reshape(B, T, 2 * H)
        gcond = (jnp.dot(g_bf, cw_ref[i], preferred_element_type=jnp.float32)
                 + cb_ref[i]).reshape(B, 1, 2 * H)
        x_in = x_in + in_b_ref[i] + gcond
        gate = jnp.tanh(x_in[..., :H]) * jax.nn.sigmoid(x_in[..., H:])
        rs = (jnp.dot(gate.reshape(B * T, H).astype(jnp.bfloat16), rs_w_ref[i],
                      preferred_element_type=jnp.float32) + rs_b_ref[i]
              ).reshape(B, T, 2 * H)
        xc = (xc + rs[..., :H]) * mask      # last layer: res half is zero-padded -> no-op
        skip = skip + rs[..., H:]
        return xc, skip

    _, skip = jax.lax.fori_loop(0, n_lay, body, (x, jnp.zeros_like(x)))
    return skip * mask


def _post_enc_kernel(y_ref, m_ref, g_ref, prew_ref, preb_ref,
                     inw_ref, inb_ref, rsw_ref, rsb_ref, cw_ref, cb_ref,
                     pw_ref, pb_ref, o_ref, *, n_lay, ksz, hidden):
    """PosteriorEncoder: pre 1x1 + 16-layer WN + proj 1x1 fused."""
    B, T, _ = y_ref.shape
    mask = m_ref[...]
    x = (jnp.dot(y_ref[...].reshape(B * T, -1).astype(jnp.bfloat16), prew_ref[...],
                 preferred_element_type=jnp.float32) + preb_ref[...]
         ).reshape(B, T, hidden) * mask
    skip = _wn_compute(x, mask, g_ref[...].astype(jnp.float32),
                       inw_ref, inb_ref, rsw_ref, rsb_ref, cw_ref, cb_ref,
                       n_lay=n_lay, ksz=ksz)
    stats = (jnp.dot(skip.reshape(B * T, hidden).astype(jnp.bfloat16), pw_ref[...],
                     preferred_element_type=jnp.float32) + pb_ref[...]
             ).reshape(B, T, -1) * mask
    o_ref[...] = stats


def _flow_layer_kernel(x_ref, m_ref, g_ref, prew_ref, preb_ref,
                       inw_ref, inb_ref, rsw_ref, rsb_ref, cw_ref, cb_ref,
                       postw_ref, postb_ref, o_ref, *, n_lay, ksz, hidden, half):
    """ResidualCouplingLayer (mean_only): pre 1x1 + 3-layer WN + post 1x1 + update fused."""
    B, T, _ = x_ref.shape
    mask = m_ref[...]
    xin = x_ref[...].astype(jnp.float32)
    x0, x1 = xin[..., :half], xin[..., half:]
    h = (jnp.dot(x0.reshape(B * T, half).astype(jnp.bfloat16), prew_ref[...],
                 preferred_element_type=jnp.float32) + preb_ref[...]
         ).reshape(B, T, hidden) * mask
    h = _wn_compute(h, mask, g_ref[...].astype(jnp.float32),
                    inw_ref, inb_ref, rsw_ref, rsb_ref, cw_ref, cb_ref,
                    n_lay=n_lay, ksz=ksz)
    mstat = (jnp.dot(h.reshape(B * T, hidden).astype(jnp.bfloat16), postw_ref[...],
                     preferred_element_type=jnp.float32) + postb_ref[...]
             ).reshape(B, T, half) * mask
    x1n = mstat + x1 * mask
    o_ref[...] = jnp.concatenate([x0, x1n], axis=-1)


def _enc_layer_kernel(x_ref, m_ref, km_ref,
                      qkvw_ref, qkvb_ref, ow_ref, ob_ref, n1g_ref, n1b_ref,
                      c1w_ref, c1b_ref, c2w_ref, c2b_ref, n2g_ref, n2b_ref,
                      o_ref, *, nheads, ksz):
    """One full transformer-encoder layer (attn + LN1 + FFN + LN2) fused."""
    B, T, H = x_ref.shape
    Dh = H // nheads
    scale = 1.0 / math.sqrt(Dh)
    x = x_ref[...].astype(jnp.float32)
    mask = m_ref[...]                                     # (B, T, 1)
    km = km_ref[...]                                      # (B, 1, T)

    # ---- multi-head self-attention ----
    qkv = (jnp.dot(x.reshape(B * T, H).astype(jnp.bfloat16), qkvw_ref[...],
                   preferred_element_type=jnp.float32) + qkvb_ref[...]).reshape(B, T, 3 * H)
    q, k, v = qkv[..., :H], qkv[..., H:2 * H], qkv[..., 2 * H:]
    heads = []
    for h in range(nheads):
        qh = q[..., h * Dh:(h + 1) * Dh].astype(jnp.bfloat16)
        kh = k[..., h * Dh:(h + 1) * Dh].astype(jnp.bfloat16)
        vh = v[..., h * Dh:(h + 1) * Dh].astype(jnp.bfloat16)
        s = jnp.einsum('bqd,bkd->bqk', qh, kh, preferred_element_type=jnp.float32) * scale
        s = jnp.where(km > 0, s, jnp.float32(-1e4))       # key-padding mask
        s = s - jnp.max(s, axis=-1, keepdims=True)
        p = jnp.exp(s)
        p = p * pl.reciprocal(jnp.sum(p, axis=-1, keepdims=True), approx=True)
        heads.append(jnp.einsum('bqk,bkd->bqd', p.astype(jnp.bfloat16), vh,
                                preferred_element_type=jnp.float32))
    att = jnp.concatenate(heads, axis=-1)                 # (B, T, H) head-merged
    y = (jnp.dot(att.reshape(B * T, H).astype(jnp.bfloat16), ow_ref[...],
                 preferred_element_type=jnp.float32) + ob_ref[...]).reshape(B, T, H)
    x = _layer_norm(x + y, n1g_ref[...], n1b_ref[...])

    # ---- FFN: conv3 -> relu -> conv3 (masked), fused ----
    padl, padr = (ksz - 1) // 2, ksz // 2

    def ffn_conv(inp, w_ref, b_ref):
        xp = _pad_time(inp, padl, padr)
        pat = _tap_patches(xp, ksz, 1, T)
        return (jnp.dot(pat.reshape(B * T, -1).astype(jnp.bfloat16), w_ref[...],
                        preferred_element_type=jnp.float32) + b_ref[...])

    h1 = jnp.maximum(ffn_conv(x * mask, c1w_ref, c1b_ref), 0.0).reshape(B, T, -1)
    y = ffn_conv(h1 * mask, c2w_ref, c2b_ref).reshape(B, T, H) * mask
    x = _layer_norm(x + y, n2g_ref[...], n2b_ref[...])
    o_ref[...] = x.astype(o_ref.dtype)


# ================================ neural-net modules =================================
def attention_encoder(p, x, x_mask):
    km = jnp.transpose(x_mask, (0, 2, 1))                 # (B, 1, T) key-padding mask
    x = x * x_mask
    B, T, H = x.shape
    kern = functools.partial(_enc_layer_kernel, nheads=n_heads, ksz=kernel_size)
    for lp in p['layers']:
        x = pl.pallas_call(
            kern, out_shape=jax.ShapeDtypeStruct((B, T, H), jnp.float32),
            in_specs=[_VMEM] * 15, out_specs=_VMEM,
        )(x, x_mask, km,
          lp['qkv_w'], lp['qkv_b'], lp['o_w'], lp['o_b'],
          lp['norm1_g'], lp['norm1_b'],
          lp['c1_w'], lp['c1_b'], lp['c2_w'], lp['c2_b'],
          lp['norm2_g'], lp['norm2_b'])
    return x * x_mask


def text_encoder(p, phone, pitch, lengths):
    B, T, _ = phone.shape
    x = pallas_matmul(phone.reshape(B * T, PHONE_EMB_DIM),
                      p['emb_phone_w'], p['emb_phone_b']).reshape(B, T, hidden_channels)
    x = x + p['emb_pitch'][pitch]
    x = x * math.sqrt(hidden_channels)
    x = leaky(x, 0.1)
    x_mask = seq_mask_cl(lengths, T)
    x = attention_encoder(p['encoder'], x, x_mask)
    stats = conv1d_cl(x, p['proj']) * x_mask
    m, logs = jnp.split(stats, 2, axis=-1)
    return m, logs, x_mask


def posterior_encoder(p, y_cl, y_lengths, g, noise_key):
    B, T, _ = y_cl.shape
    y_mask = seq_mask_cl(y_lengths, T)
    kern = functools.partial(_post_enc_kernel, n_lay=WN_ENC_Q_LAYERS, ksz=WN_KERNEL,
                             hidden=hidden_channels)
    wn = p['wn']
    stats = pl.pallas_call(
        kern, out_shape=jax.ShapeDtypeStruct((B, T, 2 * inter_channels), jnp.float32),
        in_specs=[_VMEM] * 13, out_specs=_VMEM,
    )(y_cl, y_mask, g,
      p['pre']['w'], p['pre']['b'].reshape(1, -1),
      wn['in_w'], wn['in_b'], wn['rs_w'], wn['rs_b'], wn['cond_w'], wn['cond_b'],
      p['proj']['w'], p['proj']['b'].reshape(1, -1))
    m, logs = jnp.split(stats, 2, axis=-1)
    z = (m + jax.random.normal(noise_key, m.shape) * jnp.exp(logs)) * y_mask
    return z, m, logs, y_mask


def flow_forward(p, x, x_mask, g):
    half = inter_channels // 2
    kern = functools.partial(_flow_layer_kernel, n_lay=WN_FLOW_LAYERS, ksz=WN_KERNEL,
                             hidden=hidden_channels, half=half)
    for lp in p['layers']:
        wn = lp['wn']
        x = pl.pallas_call(
            kern, out_shape=jax.ShapeDtypeStruct(x.shape, jnp.float32),
            in_specs=[_VMEM] * 13, out_specs=_VMEM,
        )(x, x_mask, g,
          lp['pre']['w'], lp['pre']['b'].reshape(1, -1),
          wn['in_w'], wn['in_b'], wn['rs_w'], wn['rs_b'], wn['cond_w'], wn['cond_b'],
          lp['post']['w'], lp['post']['b'].reshape(1, -1))
        # TODO(synk): this channel flip could be folded into the next layer's `pre`
        # weights at init; kept as a tiny XLA pass for clarity.
        x = jnp.flip(x, axis=-1)
    return x


def slice_segments_t(x, ids_str, seg):
    def take(xb, i):
        return jax.lax.dynamic_slice_in_dim(xb, i, seg, axis=0)
    return jax.vmap(take)(x, ids_str)


def rand_slice_segments_t(x, x_lengths, seg, key):
    b = x.shape[0]
    ids_str_max = x_lengths - seg + 1
    ids_str = (jax.random.uniform(key, (b,)) * ids_str_max).astype(jnp.int32)
    return slice_segments_t(x, ids_str, seg), ids_str


def sine_source(p, f0_frame, noise_key):
    """SourceModuleHnNSF with harmonic_num=0.  f0_frame: (B, T_frames) in Hz."""
    f0 = jnp.repeat(f0_frame, upp, axis=1)[:, :, None]    # nearest upsample -> (B, T*upp, 1)
    sine_amp, noise_std = 0.1, 0.003
    rad = f0 / float(sr)
    phase = jnp.cumsum(rad, axis=1)
    sine = sine_amp * jnp.sin(2.0 * jnp.pi * phase)
    uv = (f0 > 0.0).astype(jnp.float32)
    noise_amp = uv * noise_std + (1.0 - uv) * sine_amp / 3.0
    noise = noise_amp * jax.random.normal(noise_key, sine.shape)
    sine = sine * uv + noise
    merged = jnp.tanh(sine * p['lin_w'][0, 0] + p['lin_b'][0])
    return merged                                         # (B, T*upp, 1) f32


def generator_nsf(p, x, f0, g, noise_key):
    """x: (B, seg, inter) channels-last; f0: (B, seg); g: (B, gin)."""
    har = sine_source(p['m_source'], f0, noise_key)
    x = conv1d_cl(x, p['conv_pre'], padding=3, out_dtype=jnp.bfloat16)
    cond = pallas_matmul(g, p['cond']['w'], p['cond']['b'], out_dtype=jnp.bfloat16)
    x = x + cond[:, None, :]
    for i in range(num_upsamples):
        u, k = upsample_rates[i], upsample_kernel_sizes[i]
        x = conv_transpose1d_cl(x, p['ups'][i], stride=u, padding=(k - u) // 2, kernel=k,
                                pre_slope=LRELU_SLOPE, out_dtype=jnp.bfloat16)
        if i + 1 < num_upsamples:
            sf0 = math.prod(upsample_rates[i + 1:])
            xs_src = conv1d_strided_cl(har, p['noise_convs'][i], stride=sf0, padding=sf0 // 2)
        else:
            xs_src = conv1d_cl(har, p['noise_convs'][i], out_dtype=jnp.bfloat16)
        xs = None
        for j in range(num_kernels):
            rb = resblock_fused(p['resblocks'][i * num_kernels + j], x, xs_src,
                                resblock_kernel_sizes[j], resblock_dilation_sizes[j])
            xs = rb if xs is None else xs + rb
        x = xs if num_kernels == 1 else xs * (1.0 / num_kernels)
    x = conv1d_cl(x, p['conv_post'], padding=3, pre_act='leaky', pre_slope=0.01,
                  act='tanh', out_dtype=jnp.float32)
    return jnp.transpose(x, (0, 2, 1))                    # (B, 1, seg*upp)


# ================================ full forward =======================================
def synthesizer_forward(params, phone, phone_lengths, pitch, pitchf, y, y_lengths, ds,
                        key_post, key_slice, key_sine):
    g = params['emb_g'][ds]                               # (B, gin)
    m_p, logs_p, x_mask = text_encoder(params['enc_p'], phone, pitch, phone_lengths)
    y_cl = jnp.transpose(y, (0, 2, 1))                    # NCW -> (B, T, spec)
    z, m_q, logs_q, y_mask = posterior_encoder(params['enc_q'], y_cl, y_lengths, g, key_post)
    z_p = flow_forward(params['flow'], z, y_mask, g)
    z_slice, ids_slice = rand_slice_segments_t(z, y_lengths, segment_size, key_slice)
    pitchf_slice = slice_segments_t(pitchf, ids_slice, segment_size)
    o = generator_nsf(params['dec'], z_slice, pitchf_slice, g, key_sine)
    to_ncw = lambda t: jnp.transpose(t, (0, 2, 1))
    return (o, ids_slice, to_ncw(x_mask), to_ncw(y_mask),
            (to_ncw(z), to_ncw(z_p), to_ncw(m_p), to_ncw(logs_p),
             to_ncw(m_q), to_ncw(logs_q)))


# ================================ parameter init =====================================
class PRNG:
    def __init__(self, key):
        self._key = key
        self._n = 0

    def next(self):
        self._n += 1
        return jax.random.fold_in(self._key, self._n)


def _norm(rng, shape, scale):
    return scale * jax.random.normal(rng.next(), shape, dtype=jnp.float32)


def _conv_param(rng, cin, cout, k, bias=True, zero=False):
    """Kernel-ready weight layout: (Cin, Cout) for 1x1, (K, Cin, Cout) otherwise (bf16)."""
    scale = 1.0 / math.sqrt(cin * k)
    if zero:
        w = jnp.zeros((cout, cin, k), jnp.float32)
        b = jnp.zeros((cout,), jnp.float32)
    else:
        w = _norm(rng, (cout, cin, k), scale)
        b = _norm(rng, (cout,), scale) if bias else jnp.zeros((cout,), jnp.float32)
    wk = jnp.transpose(w[:, :, 0], (1, 0)) if k == 1 else jnp.transpose(w, (2, 1, 0))
    return {'w': wk.astype(jnp.bfloat16), 'b': b.astype(jnp.float32)}


def _convT_param(rng, cin, cout, k, stride, padding):
    """torch ConvTranspose1d weight (Cin, Cout, K) pre-converted to polyphase layout
    (s, n_taps*Cin, Cout); requires k % s == 0 and k - 2p == s (true for this config)."""
    assert k % stride == 0 and k - 2 * padding == stride
    scale = 1.0 / math.sqrt(cin * k)
    w = _norm(rng, (cin, cout, k), scale)
    b = _norm(rng, (cout,), scale)
    wk = jnp.flip(w, axis=2)                              # equivalent stride-1 conv taps
    pad_eq = k - 1 - padding
    n_taps = k // stride
    phases = []
    for r in range(stride):
        k0 = (pad_eq - r) % stride
        phases.append(jnp.concatenate([wk[:, :, k0 + j * stride] for j in range(n_taps)],
                                      axis=0))            # (n_taps*Cin, Cout)
    return {'w': jnp.stack(phases).astype(jnp.bfloat16), 'b': b.astype(jnp.float32)}


def _resblock_param(rng, ch, ksz, dils):
    c1 = [_conv_param(rng, ch, ch, ksz) for _ in dils]
    c2 = [_conv_param(rng, ch, ch, ksz) for _ in dils]
    return {
        'w1': jnp.stack([cp['w'].reshape(ksz * ch, ch) for cp in c1]),
        'b1': jnp.stack([cp['b'].reshape(1, ch) for cp in c1]),
        'w2': jnp.stack([cp['w'].reshape(ksz * ch, ch) for cp in c2]),
        'b2': jnp.stack([cp['b'].reshape(1, ch) for cp in c2]),
    }


def _wn_init(rng, hidden, ksz, n_lay, gin):
    in_w, in_b, rs_w, rs_b = [], [], [], []
    s_in = 1.0 / math.sqrt(hidden * ksz)
    s_rs = 1.0 / math.sqrt(hidden)
    for i in range(n_lay):
        w = _norm(rng, (2 * hidden, hidden, ksz), s_in)
        in_w.append(jnp.transpose(w, (2, 1, 0)).reshape(ksz * hidden, 2 * hidden))
        in_b.append(_norm(rng, (2 * hidden,), s_in))
        cout = 2 * hidden if i < n_lay - 1 else hidden
        w = _norm(rng, (cout, hidden, 1), s_rs)
        b = _norm(rng, (cout,), s_rs)
        wr = jnp.transpose(w[:, :, 0], (1, 0))
        if cout == hidden:                                # last layer: skip half only
            wr = jnp.concatenate([jnp.zeros((hidden, hidden), jnp.float32), wr], axis=1)
            b = jnp.concatenate([jnp.zeros((hidden,), jnp.float32), b])
        rs_w.append(wr)
        rs_b.append(b)
    s_c = 1.0 / math.sqrt(gin)
    cw = _norm(rng, (2 * hidden * n_lay, gin, 1), s_c)
    cb = _norm(rng, (2 * hidden * n_lay,), s_c)
    cond_w = jnp.transpose(jnp.transpose(cw[:, :, 0], (1, 0)).reshape(gin, n_lay, 2 * hidden),
                           (1, 0, 2))
    return {
        'in_w': jnp.stack(in_w).astype(jnp.bfloat16),                        # (L, ksz*H, 2H)
        'in_b': jnp.stack(in_b).reshape(n_lay, 1, 2 * hidden).astype(jnp.float32),
        'rs_w': jnp.stack(rs_w).astype(jnp.bfloat16),                        # (L, H, 2H)
        'rs_b': jnp.stack(rs_b).reshape(n_lay, 1, 2 * hidden).astype(jnp.float32),
        'cond_w': cond_w.astype(jnp.bfloat16),                               # (L, gin, 2H)
        'cond_b': cb.reshape(n_lay, 1, 2 * hidden).astype(jnp.float32),
    }


def make_params(key):
    rng = PRNG(key)
    P = {}
    P['emb_g'] = 0.1 * jax.random.normal(rng.next(), (spk_embed_dim, gin_channels),
                                         dtype=jnp.float32)

    # enc_p : TextEncoderV2
    enc_p = {
        'emb_phone_w': ((1.0 / math.sqrt(PHONE_EMB_DIM)) *
                        jax.random.normal(rng.next(), (PHONE_EMB_DIM, hidden_channels),
                                          dtype=jnp.float32)).astype(jnp.bfloat16),
        'emb_phone_b': jnp.zeros((hidden_channels,), jnp.float32),
        'emb_pitch': 0.1 * jax.random.normal(rng.next(), (256, hidden_channels),
                                             dtype=jnp.float32),
        'proj': _conv_param(rng, hidden_channels, 2 * inter_channels, 1),
    }
    layers = []
    for _ in range(n_layers):
        q = _conv_param(rng, hidden_channels, hidden_channels, 1)
        k = _conv_param(rng, hidden_channels, hidden_channels, 1)
        v = _conv_param(rng, hidden_channels, hidden_channels, 1)
        o = _conv_param(rng, hidden_channels, hidden_channels, 1)
        c1 = _conv_param(rng, hidden_channels, filter_channels, kernel_size)
        c2 = _conv_param(rng, filter_channels, hidden_channels, kernel_size)
        layers.append({
            'qkv_w': jnp.concatenate([q['w'], k['w'], v['w']], axis=1),      # (H, 3H)
            'qkv_b': jnp.concatenate([q['b'], k['b'], v['b']]).reshape(1, -1),
            'o_w': o['w'], 'o_b': o['b'].reshape(1, -1),
            'norm1_g': jnp.ones((1, hidden_channels), jnp.float32),
            'norm1_b': jnp.zeros((1, hidden_channels), jnp.float32),
            'c1_w': c1['w'].reshape(kernel_size * hidden_channels, filter_channels),
            'c1_b': c1['b'].reshape(1, -1),
            'c2_w': c2['w'].reshape(kernel_size * filter_channels, hidden_channels),
            'c2_b': c2['b'].reshape(1, -1),
            'norm2_g': jnp.ones((1, hidden_channels), jnp.float32),
            'norm2_b': jnp.zeros((1, hidden_channels), jnp.float32),
        })
    enc_p['encoder'] = {'layers': layers}
    P['enc_p'] = enc_p

    # enc_q : PosteriorEncoder
    P['enc_q'] = {
        'pre': _conv_param(rng, spec_channels, hidden_channels, 1),
        'wn': _wn_init(rng, hidden_channels, WN_KERNEL, WN_ENC_Q_LAYERS, gin_channels),
        'proj': _conv_param(rng, hidden_channels, 2 * inter_channels, 1),
    }

    # flow : ResidualCouplingBlock (4 coupling layers; post conv zero-init like VITS)
    half = inter_channels // 2
    P['flow'] = {'layers': [{
        'pre': _conv_param(rng, half, hidden_channels, 1),
        'wn': _wn_init(rng, hidden_channels, WN_KERNEL, WN_FLOW_LAYERS, gin_channels),
        'post': _conv_param(rng, hidden_channels, half, 1, zero=True),
    } for _ in range(N_FLOWS)]}

    # dec : GeneratorNSF
    dec = {
        'm_source': {'lin_w': 0.5 * jax.random.normal(rng.next(), (1, 1), dtype=jnp.float32),
                     'lin_b': jnp.zeros((1,), jnp.float32)},
        'conv_pre': _conv_param(rng, inter_channels, upsample_initial_channel, 7),
        'cond': _conv_param(rng, gin_channels, upsample_initial_channel, 1),
    }
    ups, ncs, rbs = [], [], []
    for i, (u, k) in enumerate(zip(upsample_rates, upsample_kernel_sizes)):
        cin = upsample_initial_channel // (2 ** i)
        cout = upsample_initial_channel // (2 ** (i + 1))
        ups.append(_convT_param(rng, cin, cout, k, u, (k - u) // 2))
        if i + 1 < num_upsamples:
            sf0 = math.prod(upsample_rates[i + 1:])
            ncs.append(_conv_param(rng, 1, cout, sf0 * 2))
        else:
            ncs.append(_conv_param(rng, 1, cout, 1))
        for ksz, dils in zip(resblock_kernel_sizes, resblock_dilation_sizes):
            rbs.append(_resblock_param(rng, cout, ksz, dils))
    dec['ups'] = ups
    dec['noise_convs'] = ncs
    dec['resblocks'] = rbs
    dec['conv_post'] = _conv_param(rng, upsample_initial_channel // (2 ** num_upsamples),
                                   1, 7, bias=False)
    P['dec'] = dec
    return P


# ===================================== main ==========================================
if __name__ == "__main__":
    root = jax.random.PRNGKey(0)
    pkey, dkey = jax.random.split(root)
    params = make_params(pkey)

    ks = jax.random.split(dkey, 8)
    B, T = 2, 8
    phone = jax.random.normal(ks[0], (B, T, PHONE_EMB_DIM), dtype=jnp.float32)
    phone_lengths = jnp.array([8, 6], jnp.int32)
    pitch = jax.random.randint(ks[1], (B, T), 0, 256)
    pitchf = jax.random.uniform(ks[2], (B, T), jnp.float32, 0.0, 400.0)
    y = jax.random.normal(ks[3], (B, spec_channels, T), dtype=jnp.float32)
    y_lengths = jnp.array([8, 6], jnp.int32)
    ds = jnp.array([1, 3], jnp.int32)

    fwd = jax.jit(synthesizer_forward)
    o, ids_slice, x_mask, y_mask, hidden = fwd(
        params, phone, phone_lengths, pitch, pitchf, y, y_lengths, ds,
        ks[4], ks[5], ks[6])
    jax.block_until_ready(o)

    assert o.shape == (B, 1, segment_size * upp)
    assert x_mask.shape == (B, 1, T) and y_mask.shape == (B, 1, T)
    assert hidden[0].shape == (B, inter_channels, T)
    print("KERNEL_OK")
</pallas_src>

<mosaic_0001>
module attributes {stable_mosaic.version = 11 : i64} {
  func.func @_post_enc_kernel(%arg0: memref<2x8x64xf32, #tpu.memory_space<vmem>>, %arg1: memref<2x8x1xf32, #tpu.memory_space<vmem>>, %arg2: memref<2x16xf32, #tpu.memory_space<vmem>>, %arg3: memref<64x32xbf16, #tpu.memory_space<vmem>>, %arg4: memref<1x32xf32, #tpu.memory_space<vmem>>, %arg5: memref<16x160x64xbf16, #tpu.memory_space<vmem>>, %arg6: memref<16x1x64xf32, #tpu.memory_space<vmem>>, %arg7: memref<16x32x64xbf16, #tpu.memory_space<vmem>>, %arg8: memref<16x1x64xf32, #tpu.memory_space<vmem>>, %arg9: memref<16x16x64xbf16, #tpu.memory_space<vmem>>, %arg10: memref<16x1x64xf32, #tpu.memory_space<vmem>>, %arg11: memref<32x64xbf16, #tpu.memory_space<vmem>>, %arg12: memref<1x64xf32, #tpu.memory_space<vmem>>, %arg13: memref<2x8x64xf32, #tpu.memory_space<vmem>>) attributes {dimension_semantics = [], scalar_prefetch = 0 : i64, scratch_operands = 0 : i64, tpu.core_type = #tpu.core_type<tc>} {
    %c0 = arith.constant 0 : index
    %c0_0 = arith.constant 0 : index
    %c0_1 = arith.constant 0 : index
    %0 = vector.load %arg1[%c0, %c0_0, %c0_1] : memref<2x8x1xf32, #tpu.memory_space<vmem>>, vector<2x8x1xf32>
    %c0_2 = arith.constant 0 : index
    %c0_3 = arith.constant 0 : index
    %c0_4 = arith.constant 0 : index
    %1 = vector.load %arg0[%c0_2, %c0_3, %c0_4] : memref<2x8x64xf32, #tpu.memory_space<vmem>>, vector<2x8x64xf32>
    %2 = vector.shape_cast %1 : vector<2x8x64xf32> to vector<16x64xf32>
    %3 = arith.truncf %2 : vector<16x64xf32> to vector<16x64xbf16>
    %c0_5 = arith.constant 0 : index
    %c0_6 = arith.constant 0 : index
    %4 = vector.load %arg3[%c0_5, %c0_6] : memref<64x32xbf16, #tpu.memory_space<vmem>>, vector<64x32xbf16>
    %cst = arith.constant dense<0.000000e+00> : vector<16x32xf32>
    %5 = tpu.matmul %3, %4, %cst {dimension_numbers = #tpu.dot_dimension_numbers<[1], [0], [0], [1], [0, 0, 1, 1], [], []>} : vector<16x64xbf16>, vector<64x32xbf16>, vector<16x32xf32> -> vector<16x32xf32>
    %c0_7 = arith.constant 0 : index
    %c0_8 = arith.constant 0 : index
    %6 = vector.load %arg4[%c0_7, %c0_8] : memref<1x32xf32, #tpu.memory_space<vmem>>, vector<1x32xf32>
    %7 = vector.broadcast %6 : vector<1x32xf32> to vector<16x32xf32>
    %8 = arith.addf %5, %7 : vector<16x32xf32>
    %9 = vector.shape_cast %8 : vector<16x32xf32> to vector<2x8x32xf32>
    %10 = vector.broadcast %0 : vector<2x8x1xf32> to vector<2x8x32xf32>
    %11 = arith.mulf %9, %10 : vector<2x8x32xf32>
    %c0_9 = arith.constant 0 : index
    %c0_10 = arith.constant 0 : index
    %12 = vector.load %arg2[%c0_9, %c0_10] : memref<2x16xf32, #tpu.memory_space<vmem>>, vector<2x16xf32>
    %cst_11 = arith.constant 0.000000e+00 : f32
    %13 = vector.broadcast %cst_11 : f32 to vector<2x2x32xf32>
    %14 = arith.truncf %12 : vector<2x16xf32> to vector<2x16xbf16>
    %cst_12 = arith.constant 0.000000e+00 : f32
    %15 = vector.broadcast %cst_12 : f32 to vector<2x8x32xf32>
    %c0_i32 = arith.constant 0 : i32
    %c16_i32 = arith.constant 16 : i32
    %16 = arith.addi %c0_i32, %c16_i32 : i32
    %c1_i32 = arith.constant 1 : i32
    %17:2 = scf.for %arg14 = %c0_i32 to %16 step %c1_i32 iter_args(%arg15 = %11, %arg16 = %15) -> (vector<2x8x32xf32>, vector<2x8x32xf32>)  : i32 {
      %31 = tpu.concatenate %13, %arg15, %13 in 1 : vector<2x2x32xf32>, vector<2x8x32xf32>, vector<2x2x32xf32> -> vector<2x12x32xf32>
      %32 = vector.extract_strided_slice %31 {offsets = [0, 0, 0], sizes = [2, 8, 32], strides = [1, 1, 1]} : vector<2x12x32xf32> to vector<2x8x32xf32>
      %33 = vector.extract_strided_slice %31 {offsets = [0, 1, 0], sizes = [2, 8, 32], strides = [1, 1, 1]} : vector<2x12x32xf32> to vector<2x8x32xf32>
      %34 = vector.extract_strided_slice %31 {offsets = [0, 2, 0], sizes = [2, 8, 32], strides = [1, 1, 1]} : vector<2x12x32xf32> to vector<2x8x32xf32>
      %35 = vector.extract_strided_slice %31 {offsets = [0, 3, 0], sizes = [2, 8, 32], strides = [1, 1, 1]} : vector<2x12x32xf32> to vector<2x8x32xf32>
      %36 = vector.extract_strided_slice %31 {offsets = [0, 4, 0], sizes = [2, 8, 32], strides = [1, 1, 1]} : vector<2x12x32xf32> to vector<2x8x32xf32>
      %37 = tpu.concatenate %32, %33, %34, %35, %36 in 2 : vector<2x8x32xf32>, vector<2x8x32xf32>, vector<2x8x32xf32>, vector<2x8x32xf32>, vector<2x8x32xf32> -> vector<2x8x160xf32>
      %38 = vector.shape_cast %37 : vector<2x8x160xf32> to vector<16x160xf32>
      %39 = arith.truncf %38 : vector<16x160xf32> to vector<16x160xbf16>
      %40 = arith.index_cast %arg14 : i32 to index
      %c0_22 = arith.constant 0 : index
      %c0_23 = arith.constant 0 : index
      %41 = vector.load %arg5[%40, %c0_22, %c0_23] : memref<16x160x64xbf16, #tpu.memory_space<vmem>>, vector<1x160x64xbf16>
      %42 = vector.shape_cast %41 : vector<1x160x64xbf16> to vector<160x64xbf16>
      %cst_24 = arith.constant dense<0.000000e+00> : vector<16x64xf32>
      %43 = tpu.matmul %39, %42, %cst_24 {dimension_numbers = #tpu.dot_dimension_numbers<[1], [0], [0], [1], [0, 0, 1, 1], [], []>} : vector<16x160xbf16>, vector<160x64xbf16>, vector<16x64xf32> -> vector<16x64xf32>
      %44 = vector.shape_cast %43 : vector<16x64xf32> to vector<2x8x64xf32>
      %45 = arith.index_cast %arg14 : i32 to index
      %c0_25 = arith.constant 0 : index
      %c0_26 = arith.constant 0 : index
      %46 = vector.load %arg9[%45, %c0_25, %c0_26] : memref<16x16x64xbf16, #tpu.memory_space<vmem>>, vector<1x16x64xbf16>
      %47 = vector.shape_cast %46 : vector<1x16x64xbf16> to vector<16x64xbf16>
      %cst_27 = arith.constant dense<0.000000e+00> : vector<2x64xf32>
      %48 = tpu.matmul %14, %47, %cst_27 {dimension_numbers = #tpu.dot_dimension_numbers<[1], [0], [0], [1], [0, 0, 1, 1], [], []>} : vector<2x16xbf16>, vector<16x64xbf16>, vector<2x64xf32> -> vector<2x64xf32>
      %49 = arith.index_cast %arg14 : i32 to index
      %c0_28 = arith.constant 0 : index
      %c0_29 = arith.constant 0 : index
      %50 = vector.load %arg10[%49, %c0_28, %c0_29] : memref<16x1x64xf32, #tpu.memory_space<vmem>>, vector<1x1x64xf32>
      %51 = vector.shape_cast %50 : vector<1x1x64xf32> to vector<1x64xf32>
      %52 = vector.broadcast %51 : vector<1x64xf32> to vector<2x64xf32>
      %53 = arith.addf %48, %52 : vector<2x64xf32>
      %54 = vector.shape_cast %53 : vector<2x64xf32> to vector<2x1x64xf32>
      %55 = arith.index_cast %arg14 : i32 to index
      %c0_30 = arith.constant 0 : index
      %c0_31 = arith.constant 0 : index
      %56 = vector.load %arg6[%55, %c0_30, %c0_31] : memref<16x1x64xf32, #tpu.memory_space<vmem>>, vector<1x1x64xf32>
      %57 = vector.shape_cast %56 : vector<1x1x64xf32> to vector<1x64xf32>
      %58 = vector.shape_cast %57 : vector<1x64xf32> to vector<1x1x64xf32>
      %59 = vector.broadcast %58 : vector<1x1x64xf32> to vector<2x8x64xf32>
      %60 = arith.addf %44, %59 : vector<2x8x64xf32>
      %61 = vector.broadcast %54 : vector<2x1x64xf32> to vector<2x8x64xf32>
      %62 = arith.addf %60, %61 : vector<2x8x64xf32>
      %63 = vector.extract_strided_slice %62 {offsets = [0, 0, 0], sizes = [2, 8, 32], strides = [1, 1, 1]} : vector<2x8x64xf32> to vector<2x8x32xf32>
      %64 = math.tanh %63 : vector<2x8x32xf32>
      %65 = vector.extract_strided_slice %62 {offsets = [0, 0, 32], sizes = [2, 8, 32], strides = [1, 1, 1]} : vector<2x8x64xf32> to vector<2x8x32xf32>
      %66 = arith.negf %65 : vector<2x8x32xf32>
      %67 = math.exp %66 : vector<2x8x32xf32>
      %cst_32 = arith.constant 1.000000e+00 : f32
      %68 = vector.broadcast %cst_32 : f32 to vector<2x8x32xf32>
      %69 = arith.addf %68, %67 : vector<2x8x32xf32>
      %70 = arith.divf %68, %69 : vector<2x8x32xf32>
      %71 = arith.mulf %64, %70 : vector<2x8x32xf32>
      %72 = vector.shape_cast %71 : vector<2x8x32xf32> to vector<16x32xf32>
      %73 = arith.truncf %72 : vector<16x32xf32> to vector<16x32xbf16>
      %74 = arith.index_cast %arg14 : i32 to index
      %c0_33 = arith.constant 0 : index
      %c0_34 = arith.constant 0 : index
      %75 = vector.load %arg7[%74, %c0_33, %c0_34] : memref<16x32x64xbf16, #tpu.memory_space<vmem>>, vector<1x32x64xbf16>
      %76 = vector.shape_cast %75 : vector<1x32x64xbf16> to vector<32x64xbf16>
      %cst_35 = arith.constant dense<0.000000e+00> : vector<16x64xf32>
      %77 = tpu.matmul %73, %76, %cst_35 {dimension_numbers = #tpu.dot_dimension_numbers<[1], [0], [0], [1], [0, 0, 1, 1], [], []>} : vector<16x32xbf16>, vector<32x64xbf16>, vector<16x64xf32> -> vector<16x64xf32>
      %78 = arith.index_cast %arg14 : i32 to index
      %c0_36 = arith.constant 0 : index
      %c0_37 = arith.constant 0 : index
      %79 = vector.load %arg8[%78, %c0_36, %c0_37] : memref<16x1x64xf32, #tpu.memory_space<vmem>>, vector<1x1x64xf32>
      %80 = vector.shape_cast %79 : vector<1x1x64xf32> to vector<1x64xf32>
      %81 = vector.broadcast %80 : vector<1x64xf32> to vector<16x64xf32>
      %82 = arith.addf %77, %81 : vector<16x64xf32>
      %83 = vector.shape_cast %82 : vector<16x64xf32> to vector<2x8x64xf32>
      %84 = vector.extract_strided_slice %83 {offsets = [0, 0, 0], sizes = [2, 8, 32], strides = [1, 1, 1]} : vector<2x8x64xf32> to vector<2x8x32xf32>
      %85 = arith.addf %arg15, %84 : vector<2x8x32xf32>
      %86 = vector.broadcast %0 : vector<2x8x1xf32> to vector<2x8x32xf32>
      %87 = arith.mulf %85, %86 : vector<2x8x32xf32>
      %88 = vector.extract_strided_slice %83 {offsets = [0, 0, 32], sizes = [2, 8, 32], strides = [1, 1, 1]} : vector<2x8x64xf32> to vector<2x8x32xf32>
      %89 = arith.addf %arg16, %88 : vector<2x8x32xf32>
      scf.yield %87, %89 : vector<2x8x32xf32>, vector<2x8x32xf32>
    }
    %c16_i32_13 = arith.constant 16 : i32
    %18 = vector.broadcast %0 : vector<2x8x1xf32> to vector<2x8x32xf32>
    %19 = arith.mulf %17#1, %18 : vector<2x8x32xf32>
    %20 = vector.shape_cast %19 : vector<2x8x32xf32> to vector<16x32xf32>
    %21 = arith.truncf %20 : vector<16x32xf32> to vector<16x32xbf16>
    %c0_14 = arith.constant 0 : index
    %c0_15 = arith.constant 0 : index
    %22 = vector.load %arg11[%c0_14, %c0_15] : memref<32x64xbf16, #tpu.memory_space<vmem>>, vector<32x64xbf16>
    %cst_16 = arith.constant dense<0.000000e+00> : vector<16x64xf32>
    %23 = tpu.matmul %21, %22, %cst_16 {dimension_numbers = #tpu.dot_dimension_numbers<[1], [0], [0], [1], [0, 0, 1, 1], [], []>} : vector<16x32xbf16>, vector<32x64xbf16>, vector<16x64xf32> -> vector<16x64xf32>
    %c0_17 = arith.constant 0 : index
    %c0_18 = arith.constant 0 : index
    %24 = vector.load %arg12[%c0_17, %c0_18] : memref<1x64xf32, #tpu.memory_space<vmem>>, vector<1x64xf32>
    %25 = vector.broadcast %24 : vector<1x64xf32> to vector<16x64xf32>
    %26 = arith.addf %23, %25 : vector<16x64xf32>
    %27 = vector.shape_cast %26 : vector<16x64xf32> to vector<2x8x64xf32>
    %28 = vector.broadcast %0 : vector<2x8x1xf32> to vector<2x8x64xf32>
    %29 = arith.mulf %27, %28 : vector<2x8x64xf32>
    %c0_19 = arith.constant 0 : index
    %c0_20 = arith.constant 0 : index
    %c0_21 = arith.constant 0 : index
    %30 = vector.load %arg13[%c0_19, %c0_20, %c0_21] : memref<2x8x64xf32, #tpu.memory_space<vmem>>, vector<2x8x64xf32>
    tpu.vector_store %arg13[%c0_19, %c0_20, %c0_21], %29 {strides = array<i32>} : memref<2x8x64xf32, #tpu.memory_space<vmem>>, vector<2x8x64xf32>,
    return
  }
}

module attributes {stable_mosaic.version = 11 : i64} {
  func.func @_convk_kernel(%arg0: memref<2x4x32xf32, #tpu.memory_space<vmem>>, %arg1: memref<224x32xbf16, #tpu.memory_space<vmem>>, %arg2: memref<1x32xf32, #tpu.memory_space<vmem>>, %arg3: memref<2x4x32xbf16, #tpu.memory_space<vmem>>) attributes {dimension_semantics = [], scalar_prefetch = 0 : i64, scratch_operands = 0 : i64, tpu.core_type = #tpu.core_type<tc>} {
    %c0 = arith.constant 0 : index
    %c0_0 = arith.constant 0 : index
    %c0_1 = arith.constant 0 : index
    %0 = vector.load %arg0[%c0, %c0_0, %c0_1] : memref<2x4x32xf32, #tpu.memory_space<vmem>>, vector<2x4x32xf32>
    %cst = arith.constant 0.000000e+00 : f32
    %1 = vector.broadcast %cst : f32 to vector<2x3x32xf32>
    %cst_2 = arith.constant 0.000000e+00 : f32
    %2 = vector.broadcast %cst_2 : f32 to vector<2x3x32xf32>
    %3 = tpu.concatenate %1, %0, %2 in 1 : vector<2x3x32xf32>, vector<2x4x32xf32>, vector<2x3x32xf32> -> vector<2x10x32xf32>
    %4 = vector.extract_strided_slice %3 {offsets = [0, 0, 0], sizes = [2, 4, 32], strides = [1, 1, 1]} : vector<2x10x32xf32> to vector<2x4x32xf32>
    %5 = vector.extract_strided_slice %3 {offsets = [0, 1, 0], sizes = [2, 4, 32], strides = [1, 1, 1]} : vector<2x10x32xf32> to vector<2x4x32xf32>
    %6 = vector.extract_strided_slice %3 {offsets = [0, 2, 0], sizes = [2, 4, 32], strides = [1, 1, 1]} : vector<2x10x32xf32> to vector<2x4x32xf32>
    %7 = vector.extract_strided_slice %3 {offsets = [0, 3, 0], sizes = [2, 4, 32], strides = [1, 1, 1]} : vector<2x10x32xf32> to vector<2x4x32xf32>
    %8 = vector.extract_strided_slice %3 {offsets = [0, 4, 0], sizes = [2, 4, 32], strides = [1, 1, 1]} : vector<2x10x32xf32> to vector<2x4x32xf32>
    %9 = vector.extract_strided_slice %3 {offsets = [0, 5, 0], sizes = [2, 4, 32], strides = [1, 1, 1]} : vector<2x10x32xf32> to vector<2x4x32xf32>
    %10 = vector.extract_strided_slice %3 {offsets = [0, 6, 0], sizes = [2, 4, 32], strides = [1, 1, 1]} : vector<2x10x32xf32> to vector<2x4x32xf32>
    %11 = tpu.concatenate %4, %5, %6, %7, %8, %9, %10 in 2 : vector<2x4x32xf32>, vector<2x4x32xf32>, vector<2x4x32xf32>, vector<2x4x32xf32>, vector<2x4x32xf32>, vector<2x4x32xf32>, vector<2x4x32xf32> -> vector<2x4x224xf32>
    %12 = vector.shape_cast %11 : vector<2x4x224xf32> to vector<8x224xf32>
    %13 = arith.truncf %12 : vector<8x224xf32> to vector<8x224xbf16>
    %c0_3 = arith.constant 0 : index
    %c0_4 = arith.constant 0 : index
    %14 = vector.load %arg1[%c0_3, %c0_4] : memref<224x32xbf16, #tpu.memory_space<vmem>>, vector<224x32xbf16>
    %cst_5 = arith.constant dense<0.000000e+00> : vector<8x32xf32>
    %15 = tpu.matmul %13, %14, %cst_5 {dimension_numbers = #tpu.dot_dimension_numbers<[1], [0], [0], [1], [0, 0, 1, 1], [], []>} : vector<8x224xbf16>, vector<224x32xbf16>, vector<8x32xf32> -> vector<8x32xf32>
    %c0_6 = arith.constant 0 : index
    %c0_7 = arith.constant 0 : index
    %16 = vector.load %arg2[%c0_6, %c0_7] : memref<1x32xf32, #tpu.memory_space<vmem>>, vector<1x32xf32>
    %17 = vector.broadcast %16 : vector<1x32xf32> to vector<8x32xf32>
    %18 = arith.addf %15, %17 : vector<8x32xf32>
    %19 = vector.shape_cast %18 : vector<8x32xf32> to vector<2x4x32xf32>
    %20 = arith.truncf %19 : vector<2x4x32xf32> to vector<2x4x32xbf16>
    %c0_8 = arith.constant 0 : index
    %c0_9 = arith.constant 0 : index
    %c0_10 = arith.constant 0 : index
    %21 = vector.load %arg3[%c0_8, %c0_9, %c0_10] : memref<2x4x32xbf16, #tpu.memory_space<vmem>>, vector<2x4x32xbf16>
    tpu.vector_store %arg3[%c0_8, %c0_9, %c0_10], %20 {strides = array<i32>} : memref<2x4x32xbf16, #tpu.memory_space<vmem>>, vector<2x4x32xbf16>,
    return
  }
}

module attributes {stable_mosaic.version = 11 : i64} {
  func.func @_mm_kernel(%arg0: memref<2x16xf32, #tpu.memory_space<vmem>>, %arg1: memref<16x32xbf16, #tpu.memory_space<vmem>>, %arg2: memref<1x32xf32, #tpu.memory_space<vmem>>, %arg3: memref<2x32xbf16, #tpu.memory_space<vmem>>) attributes {dimension_semantics = [], scalar_prefetch = 0 : i64, scratch_operands = 0 : i64, tpu.core_type = #tpu.core_type<tc>} {
    %c0 = arith.constant 0 : index
    %c0_0 = arith.constant 0 : index
    %0 = vector.load %arg0[%c0, %c0_0] : memref<2x16xf32, #tpu.memory_space<vmem>>, vector<2x16xf32>
    %1 = arith.truncf %0 : vector<2x16xf32> to vector<2x16xbf16>
    %c0_1 = arith.constant 0 : index
    %c0_2 = arith.constant 0 : index
    %2 = vector.load %arg1[%c0_1, %c0_2] : memref<16x32xbf16, #tpu.memory_space<vmem>>, vector<16x32xbf16>
    %cst = arith.constant dense<0.000000e+00> : vector<2x32xf32>
    %3 = tpu.matmul %1, %2, %cst {dimension_numbers = #tpu.dot_dimension_numbers<[1], [0], [0], [1], [0, 0, 1, 1], [], []>} : vector<2x16xbf16>, vector<16x32xbf16>, vector<2x32xf32> -> vector<2x32xf32>
    %c0_3 = arith.constant 0 : index
    %c0_4 = arith.constant 0 : index
    %4 = vector.load %arg2[%c0_3, %c0_4] : memref<1x32xf32, #tpu.memory_space<vmem>>, vector<1x32xf32>
    %5 = vector.broadcast %4 : vector<1x32xf32> to vector<2x32xf32>
    %6 = arith.addf %3, %5 : vector<2x32xf32>
    %7 = arith.truncf %6 : vector<2x32xf32> to vector<2x32xbf16>
    %c0_5 = arith.constant 0 : index
    %c0_6 = arith.constant 0 : index
    %8 = vector.load %arg3[%c0_5, %c0_6] : memref<2x32xbf16, #tpu.memory_space<vmem>>, vector<2x32xbf16>
    tpu.vector_store %arg3[%c0_5, %c0_6], %7 {strides = array<i32>} : memref<2x32xbf16, #tpu.memory_space<vmem>>, vector<2x32xbf16>,
    return
  }
}

module attributes {stable_mosaic.version = 11 : i64} {
  func.func @_convT_poly_kernel(%arg0: memref<2x4x32xbf16, #tpu.memory_space<vmem>>, %arg1: memref<4x64x16xbf16, #tpu.memory_space<vmem>>, %arg2: memref<1x16xf32, #tpu.memory_space<vmem>>, %arg3: memref<2x4x64xbf16, #tpu.memory_space<vmem>>) attributes {dimension_semantics = [], scalar_prefetch = 0 : i64, scratch_operands = 0 : i64, tpu.core_type = #tpu.core_type<tc>} {
    %c0 = arith.constant 0 : index
    %c0_0 = arith.constant 0 : index
    %c0_1 = arith.constant 0 : index
    %0 = vector.load %arg0[%c0, %c0_0, %c0_1] : memref<2x4x32xbf16, #tpu.memory_space<vmem>>, vector<2x4x32xbf16>
    %1 = arith.extf %0 : vector<2x4x32xbf16> to vector<2x4x32xf32>
    %cst = arith.constant 0.000000e+00 : f32
    %2 = vector.broadcast %cst : f32 to vector<2x4x32xf32>
    %3 = arith.cmpf oge, %1, %2 : vector<2x4x32xf32>
    %cst_2 = arith.constant 1.000000e-01 : f32
    %4 = vector.broadcast %cst_2 : f32 to vector<2x4x32xf32>
    %5 = arith.mulf %4, %1 : vector<2x4x32xf32>
    %6 = arith.select %3, %1, %5 : vector<2x4x32xi1>, vector<2x4x32xf32>
    %cst_3 = arith.constant 0.000000e+00 : f32
    %7 = vector.broadcast %cst_3 : f32 to vector<2x1x32xf32>
    %cst_4 = arith.constant 0.000000e+00 : f32
    %8 = vector.broadcast %cst_4 : f32 to vector<2x1x32xf32>
    %9 = tpu.concatenate %7, %6, %8 in 1 : vector<2x1x32xf32>, vector<2x4x32xf32>, vector<2x1x32xf32> -> vector<2x6x32xf32>
    %c0_5 = arith.constant 0 : index
    %c0_6 = arith.constant 0 : index
    %10 = vector.load %arg2[%c0_5, %c0_6] : memref<1x16xf32, #tpu.memory_space<vmem>>, vector<1x16xf32>
    %11 = vector.extract_strided_slice %9 {offsets = [0, 0, 0], sizes = [2, 4, 32], strides = [1, 1, 1]} : vector<2x6x32xf32> to vector<2x4x32xf32>
    %12 = vector.extract_strided_slice %9 {offsets = [0, 1, 0], sizes = [2, 4, 32], strides = [1, 1, 1]} : vector<2x6x32xf32> to vector<2x4x32xf32>
    %13 = tpu.concatenate %11, %12 in 2 : vector<2x4x32xf32>, vector<2x4x32xf32> -> vector<2x4x64xf32>
    %14 = vector.shape_cast %13 : vector<2x4x64xf32> to vector<8x64xf32>
    %15 = arith.truncf %14 : vector<8x64xf32> to vector<8x64xbf16>
    %c0_7 = arith.constant 0 : index
    %c0_8 = arith.constant 0 : index
    %c0_9 = arith.constant 0 : index
    %16 = vector.load %arg1[%c0_7, %c0_8, %c0_9] : memref<4x64x16xbf16, #tpu.memory_space<vmem>>, vector<1x64x16xbf16>
    %17 = vector.shape_cast %16 : vector<1x64x16xbf16> to vector<64x16xbf16>
    %cst_10 = arith.constant dense<0.000000e+00> : vector<8x16xf32>
    %18 = tpu.matmul %15, %17, %cst_10 {dimension_numbers = #tpu.dot_dimension_numbers<[1], [0], [0], [1], [0, 0, 1, 1], [], []>} : vector<8x64xbf16>, vector<64x16xbf16>, vector<8x16xf32> -> vector<8x16xf32>
    %19 = vector.broadcast %10 : vector<1x16xf32> to vector<8x16xf32>
    %20 = arith.addf %18, %19 : vector<8x16xf32>
    %21 = vector.shape_cast %20 : vector<8x16xf32> to vector<2x4x16xf32>
    %22 = vector.extract_strided_slice %9 {offsets = [0, 0, 0], sizes = [2, 4, 32], strides = [1, 1, 1]} : vector<2x6x32xf32> to vector<2x4x32xf32>
    %23 = vector.extract_strided_slice %9 {offsets = [0, 1, 0], sizes = [2, 4, 32], strides = [1, 1, 1]} : vector<2x6x32xf32> to vector<2x4x32xf32>
    %24 = tpu.concatenate %22, %23 in 2 : vector<2x4x32xf32>, vector<2x4x32xf32> -> vector<2x4x64xf32>
    %25 = vector.shape_cast %24 : vector<2x4x64xf32> to vector<8x64xf32>
    %26 = arith.truncf %25 : vector<8x64xf32> to vector<8x64xbf16>
    %c1 = arith.constant 1 : index
    %c0_11 = arith.constant 0 : index
    %c0_12 = arith.constant 0 : index
    %27 = vector.load %arg1[%c1, %c0_11, %c0_12] : memref<4x64x16xbf16, #tpu.memory_space<vmem>>, vector<1x64x16xbf16>
    %28 = vector.shape_cast %27 : vector<1x64x16xbf16> to vector<64x16xbf16>
    %cst_13 = arith.constant dense<0.000000e+00> : vector<8x16xf32>
    %29 = tpu.matmul %26, %28, %cst_13 {dimension_numbers = #tpu.dot_dimension_numbers<[1], [0], [0], [1], [0, 0, 1, 1], [], []>} : vector<8x64xbf16>, vector<64x16xbf16>, vector<8x16xf32> -> vector<8x16xf32>
    %30 = vector.broadcast %10 : vector<1x16xf32> to vector<8x16xf32>
    %31 = arith.addf %29, %30 : vector<8x16xf32>
    %32 = vector.shape_cast %31 : vector<8x16xf32> to vector<2x4x16xf32>
    %33 = vector.extract_strided_slice %9 {offsets = [0, 1, 0], sizes = [2, 4, 32], strides = [1, 1, 1]} : vector<2x6x32xf32> to vector<2x4x32xf32>
    %34 = vector.extract_strided_slice %9 {offsets = [0, 2, 0], sizes = [2, 4, 32], strides = [1, 1, 1]} : vector<2x6x32xf32> to vector<2x4x32xf32>
    %35 = tpu.concatenate %33, %34 in 2 : vector<2x4x32xf32>, vector<2x4x32xf32> -> vector<2x4x64xf32>
    %36 = vector.shape_cast %35 : vector<2x4x64xf32> to vector<8x64xf32>
    %37 = arith.truncf %36 : vector<8x64xf32> to vector<8x64xbf16>
    %c2 = arith.constant 2 : index
    %c0_14 = arith.constant 0 : index
    %c0_15 = arith.constant 0 : index
    %38 = vector.load %arg1[%c2, %c0_14, %c0_15] : memref<4x64x16xbf16, #tpu.memory_space<vmem>>, vector<1x64x16xbf16>
    %39 = vector.shape_cast %38 : vector<1x64x16xbf16> to vector<64x16xbf16>
    %cst_16 = arith.constant dense<0.000000e+00> : vector<8x16xf32>
    %40 = tpu.matmul %37, %39, %cst_16 {dimension_numbers = #tpu.dot_dimension_numbers<[1], [0], [0], [1], [0, 0, 1, 1], [], []>} : vector<8x64xbf16>, vector<64x16xbf16>, vector<8x16xf32> -> vector<8x16xf32>
    %41 = vector.broadcast %10 : vector<1x16xf32> to vector<8x16xf32>
    %42 = arith.addf %40, %41 : vector<8x16xf32>
    %43 = vector.shape_cast %42 : vector<8x16xf32> to vector<2x4x16xf32>
    %44 = vector.extract_strided_slice %9 {offsets = [0, 1, 0], sizes = [2, 4, 32], strides = [1, 1, 1]} : vector<2x6x32xf32> to vector<2x4x32xf32>
    %45 = vector.extract_strided_slice %9 {offsets = [0, 2, 0], sizes = [2, 4, 32], strides = [1, 1, 1]} : vector<2x6x32xf32> to vector<2x4x32xf32>
    %46 = tpu.concatenate %44, %45 in 2 : vector<2x4x32xf32>, vector<2x4x32xf32> -> vector<2x4x64xf32>
    %47 = vector.shape_cast %46 : vector<2x4x64xf32> to vector<8x64xf32>
    %48 = arith.truncf %47 : vector<8x64xf32> to vector<8x64xbf16>
    %c3 = arith.constant 3 : index
    %c0_17 = arith.constant 0 : index
    %c0_18 = arith.constant 0 : index
    %49 = vector.load %arg1[%c3, %c0_17, %c0_18] : memref<4x64x16xbf16, #tpu.memory_space<vmem>>, vector<1x64x16xbf16>
    %50 = vector.shape_cast %49 : vector<1x64x16xbf16> to vector<64x16xbf16>
    %cst_19 = arith.constant dense<0.000000e+00> : vector<8x16xf32>
    %51 = tpu.matmul %48, %50, %cst_19 {dimension_numbers = #tpu.dot_dimension_numbers<[1], [0], [0], [1], [0, 0, 1, 1], [], []>} : vector<8x64xbf16>, vector<64x16xbf16>, vector<8x16xf32> -> vector<8x16xf32>
    %52 = vector.broadcast %10 : vector<1x16xf32> to vector<8x16xf32>
    %53 = arith.addf %51, %52 : vector<8x16xf32>
    %54 = vector.shape_cast %53 : vector<8x16xf32> to vector<2x4x16xf32>
    %55 = tpu.concatenate %21, %32, %43, %54 in 2 : vector<2x4x16xf32>, vector<2x4x16xf32>, vector<2x4x16xf32>, vector<2x4x16xf32> -> vector<2x4x64xf32>
    %56 = arith.truncf %55 : vector<2x4x64xf32> to vector<2x4x64xbf16>
    %c0_20 = arith.constant 0 : index
    %c0_21 = arith.constant 0 : index
    %c0_22 = arith.constant 0 : index
    %57 = vector.load %arg3[%c0_20, %c0_21, %c0_22] : memref<2x4x64xbf16, #tpu.memory_space<vmem>>, vector<2x4x64xbf16>
    tpu.vector_store %arg3[%c0_20, %c0_21, %c0_22], %56 {strides = array<i32>} : memref<2x4x64xbf16, #tpu.memory_space<vmem>>, vector<2x4x64xbf16>,
    return
  }
}

module attributes {stable_mosaic.version = 11 : i64} {
  func.func @_mm_kernel(%arg0: memref<32x8xf32, #tpu.memory_space<vmem>>, %arg1: memref<8x16xbf16, #tpu.memory_space<vmem>>, %arg2: memref<1x16xf32, #tpu.memory_space<vmem>>, %arg3: memref<32x16xbf16, #tpu.memory_space<vmem>>) attributes {dimension_semantics = [], scalar_prefetch = 0 : i64, scratch_operands = 0 : i64, tpu.core_type = #tpu.core_type<tc>} {
    %c0 = arith.constant 0 : index
    %c0_0 = arith.constant 0 : index
    %0 = vector.load %arg0[%c0, %c0_0] : memref<32x8xf32, #tpu.memory_space<vmem>>, vector<32x8xf32>
    %1 = arith.truncf %0 : vector<32x8xf32> to vector<32x8xbf16>
    %c0_1 = arith.constant 0 : index
    %c0_2 = arith.constant 0 : index
    %2 = vector.load %arg1[%c0_1, %c0_2] : memref<8x16xbf16, #tpu.memory_space<vmem>>, vector<8x16xbf16>
    %cst = arith.constant dense<0.000000e+00> : vector<32x16xf32>
    %3 = tpu.matmul %1, %2, %cst {dimension_numbers = #tpu.dot_dimension_numbers<[1], [0], [0], [1], [0, 0, 1, 1], [], []>} : vector<32x8xbf16>, vector<8x16xbf16>, vector<32x16xf32> -> vector<32x16xf32>
    %c0_3 = arith.constant 0 : index
    %c0_4 = arith.constant 0 : index
    %4 = vector.load %arg2[%c0_3, %c0_4] : memref<1x16xf32, #tpu.memory_space<vmem>>, vector<1x16xf32>
    %5 = vector.broadcast %4 : vector<1x16xf32> to vector<32x16xf32>
    %6 = arith.addf %3, %5 : vector<32x16xf32>
    %7 = arith.truncf %6 : vector<32x16xf32> to vector<32x16xbf16>
    %c0_5 = arith.constant 0 : index
    %c0_6 = arith.constant 0 : index
    %8 = vector.load %arg3[%c0_5, %c0_6] : memref<32x16xbf16, #tpu.memory_space<vmem>>, vector<32x16xbf16>
    tpu.vector_store %arg3[%c0_5, %c0_6], %7 {strides = array<i32>} : memref<32x16xbf16, #tpu.memory_space<vmem>>, vector<32x16xbf16>,
    return
  }
}

module attributes {stable_mosaic.version = 11 : i64} {
  func.func @_resblock_kernel(%arg0: memref<2x16x16xbf16, #tpu.memory_space<vmem>>, %arg1: memref<2x16x16xbf16, #tpu.memory_space<vmem>>, %arg2: memref<3x48x16xbf16, #tpu.memory_space<vmem>>, %arg3: memref<3x1x16xf32, #tpu.memory_space<vmem>>, %arg4: memref<3x48x16xbf16, #tpu.memory_space<vmem>>, %arg5: memref<3x1x16xf32, #tpu.memory_space<vmem>>, %arg6: memref<2x16x16xbf16, #tpu.memory_space<vmem>>) attributes {dimension_semantics = [], scalar_prefetch = 0 : i64, scratch_operands = 0 : i64, tpu.core_type = #tpu.core_type<tc>} {
    %c0 = arith.constant 0 : index
    %c0_0 = arith.constant 0 : index
    %c0_1 = arith.constant 0 : index
    %0 = vector.load %arg0[%c0, %c0_0, %c0_1] : memref<2x16x16xbf16, #tpu.memory_space<vmem>>, vector<2x16x16xbf16>
    %1 = arith.extf %0 : vector<2x16x16xbf16> to vector<2x16x16xf32>
    %c0_2 = arith.constant 0 : index
    %c0_3 = arith.constant 0 : index
    %c0_4 = arith.constant 0 : index
    %2 = vector.load %arg1[%c0_2, %c0_3, %c0_4] : memref<2x16x16xbf16, #tpu.memory_space<vmem>>, vector<2x16x16xbf16>
    %3 = arith.extf %2 : vector<2x16x16xbf16> to vector<2x16x16xf32>
    %4 = arith.addf %1, %3 : vector<2x16x16xf32>
    %c0_5 = arith.constant 0 : index
    %c0_6 = arith.constant 0 : index
    %c0_7 = arith.constant 0 : index
    %5 = vector.load %arg2[%c0_5, %c0_6, %c0_7] : memref<3x48x16xbf16, #tpu.memory_space<vmem>>, vector<1x48x16xbf16>
    %6 = vector.shape_cast %5 : vector<1x48x16xbf16> to vector<48x16xbf16>
    %c0_8 = arith.constant 0 : index
    %c0_9 = arith.constant 0 : index
    %c0_10 = arith.constant 0 : index
    %7 = vector.load %arg3[%c0_8, %c0_9, %c0_10] : memref<3x1x16xf32, #tpu.memory_space<vmem>>, vector<1x1x16xf32>
    %8 = vector.shape_cast %7 : vector<1x1x16xf32> to vector<1x16xf32>
    %cst = arith.constant 0.000000e+00 : f32
    %9 = vector.broadcast %cst : f32 to vector<2x16x16xf32>
    %10 = arith.cmpf oge, %4, %9 : vector<2x16x16xf32>
    %cst_11 = arith.constant 1.000000e-01 : f32
    %11 = vector.broadcast %cst_11 : f32 to vector<2x16x16xf32>
    %12 = arith.mulf %11, %4 : vector<2x16x16xf32>
    %13 = arith.select %10, %4, %12 : vector<2x16x16xi1>, vector<2x16x16xf32>
    %cst_12 = arith.constant 0.000000e+00 : f32
    %14 = vector.broadcast %cst_12 : f32 to vector<2x1x16xf32>
    %cst_13 = arith.constant 0.000000e+00 : f32
    %15 = vector.broadcast %cst_13 : f32 to vector<2x1x16xf32>
    %16 = tpu.concatenate %14, %13, %15 in 1 : vector<2x1x16xf32>, vector<2x16x16xf32>, vector<2x1x16xf32> -> vector<2x18x16xf32>
    %17 = vector.extract_strided_slice %16 {offsets = [0, 0, 0], sizes = [2, 16, 16], strides = [1, 1, 1]} : vector<2x18x16xf32> to vector<2x16x16xf32>
    %18 = vector.extract_strided_slice %16 {offsets = [0, 1, 0], sizes = [2, 16, 16], strides = [1, 1, 1]} : vector<2x18x16xf32> to vector<2x16x16xf32>
    %19 = vector.extract_strided_slice %16 {offsets = [0, 2, 0], sizes = [2, 16, 16], strides = [1, 1, 1]} : vector<2x18x16xf32> to vector<2x16x16xf32>
    %20 = tpu.concatenate %17, %18, %19 in 2 : vector<2x16x16xf32>, vector<2x16x16xf32>, vector<2x16x16xf32> -> vector<2x16x48xf32>
    %21 = vector.shape_cast %20 : vector<2x16x48xf32> to vector<32x48xf32>
    %22 = arith.truncf %21 : vector<32x48xf32> to vector<32x48xbf16>
    %cst_14 = arith.constant dense<0.000000e+00> : vector<32x16xf32>
    %23 = tpu.matmul %22, %6, %cst_14 {dimension_numbers = #tpu.dot_dimension_numbers<[1], [0], [0], [1], [0, 0, 1, 1], [], []>} : vector<32x48xbf16>, vector<48x16xbf16>, vector<32x16xf32> -> vector<32x16xf32>
    %24 = vector.broadcast %8 : vector<1x16xf32> to vector<32x16xf32>
    %25 = arith.addf %23, %24 : vector<32x16xf32>
    %26 = vector.shape_cast %25 : vector<32x16xf32> to vector<2x16x16xf32>
    %c0_15 = arith.constant 0 : index
    %c0_16 = arith.constant 0 : index
    %c0_17 = arith.constant 0 : index
    %27 = vector.load %arg4[%c0_15, %c0_16, %c0_17] : memref<3x48x16xbf16, #tpu.memory_space<vmem>>, vector<1x48x16xbf16>
    %28 = vector.shape_cast %27 : vector<1x48x16xbf16> to vector<48x16xbf16>
    %c0_18 = arith.constant 0 : index
    %c0_19 = arith.constant 0 : index
    %c0_20 = arith.constant 0 : index
    %29 = vector.load %arg5[%c0_18, %c0_19, %c0_20] : memref<3x1x16xf32, #tpu.memory_space<vmem>>, vector<1x1x16xf32>
    %30 = vector.shape_cast %29 : vector<1x1x16xf32> to vector<1x16xf32>
    %cst_21 = arith.constant 0.000000e+00 : f32
    %31 = vector.broadcast %cst_21 : f32 to vector<2x16x16xf32>
    %32 = arith.cmpf oge, %26, %31 : vector<2x16x16xf32>
    %cst_22 = arith.constant 1.000000e-01 : f32
    %33 = vector.broadcast %cst_22 : f32 to vector<2x16x16xf32>
    %34 = arith.mulf %33, %26 : vector<2x16x16xf32>
    %35 = arith.select %32, %26, %34 : vector<2x16x16xi1>, vector<2x16x16xf32>
    %cst_23 = arith.constant 0.000000e+00 : f32
    %36 = vector.broadcast %cst_23 : f32 to vector<2x1x16xf32>
    %cst_24 = arith.constant 0.000000e+00 : f32
    %37 = vector.broadcast %cst_24 : f32 to vector<2x1x16xf32>
    %38 = tpu.concatenate %36, %35, %37 in 1 : vector<2x1x16xf32>, vector<2x16x16xf32>, vector<2x1x16xf32> -> vector<2x18x16xf32>
    %39 = vector.extract_strided_slice %38 {offsets = [0, 0, 0], sizes = [2, 16, 16], strides = [1, 1, 1]} : vector<2x18x16xf32> to vector<2x16x16xf32>
    %40 = vector.extract_strided_slice %38 {offsets = [0, 1, 0], sizes = [2, 16, 16], strides = [1, 1, 1]} : vector<2x18x16xf32> to vector<2x16x16xf32>
    %41 = vector.extract_strided_slice %38 {offsets = [0, 2, 0], sizes = [2, 16, 16], strides = [1, 1, 1]} : vector<2x18x16xf32> to vector<2x16x16xf32>
    %42 = tpu.concatenate %39, %40, %41 in 2 : vector<2x16x16xf32>, vector<2x16x16xf32>, vector<2x16x16xf32> -> vector<2x16x48xf32>
    %43 = vector.shape_cast %42 : vector<2x16x48xf32> to vector<32x48xf32>
    %44 = arith.truncf %43 : vector<32x48xf32> to vector<32x48xbf16>
    %cst_25 = arith.constant dense<0.000000e+00> : vector<32x16xf32>
    %45 = tpu.matmul %44, %28, %cst_25 {dimension_numbers = #tpu.dot_dimension_numbers<[1], [0], [0], [1], [0, 0, 1, 1], [], []>} : vector<32x48xbf16>, vector<48x16xbf16>, vector<32x16xf32> -> vector<32x16xf32>
    %46 = vector.broadcast %30 : vector<1x16xf32> to vector<32x16xf32>
    %47 = arith.addf %45, %46 : vector<32x16xf32>
    %48 = vector.shape_cast %47 : vector<32x16xf32> to vector<2x16x16xf32>
    %49 = arith.addf %4, %48 : vector<2x16x16xf32>
    %c1 = arith.constant 1 : index
    %c0_26 = arith.constant 0 : index
    %c0_27 = arith.constant 0 : index
    %50 = vector.load %arg2[%c1, %c0_26, %c0_27] : memref<3x48x16xbf16, #tpu.memory_space<vmem>>, vector<1x48x16xbf16>
    %51 = vector.shape_cast %50 : vector<1x48x16xbf16> to vector<48x16xbf16>
    %c1_28 = arith.constant 1 : index
    %c0_29 = arith.constant 0 : index
    %c0_30 = arith.constant 0 : index
    %52 = vector.load %arg3[%c1_28, %c0_29, %c0_30] : memref<3x1x16xf32, #tpu.memory_space<vmem>>, vector<1x1x16xf32>
    %53 = vector.shape_cast %52 : vector<1x1x16xf32> to vector<1x16xf32>
    %cst_31 = arith.constant 0.000000e+00 : f32
    %54 = vector.broadcast %cst_31 : f32 to vector<2x16x16xf32>
    %55 = arith.cmpf oge, %49, %54 : vector<2x16x16xf32>
    %cst_32 = arith.constant 1.000000e-01 : f32
    %56 = vector.broadcast %cst_32 : f32 to vector<2x16x16xf32>
    %57 = arith.mulf %56, %49 : vector<2x16x16xf32>
    %58 = arith.select %55, %49, %57 : vector<2x16x16xi1>, vector<2x16x16xf32>
    %cst_33 = arith.constant 0.000000e+00 : f32
    %59 = vector.broadcast %cst_33 : f32 to vector<2x3x16xf32>
    %cst_34 = arith.constant 0.000000e+00 : f32
    %60 = vector.broadcast %cst_34 : f32 to vector<2x3x16xf32>
    %61 = tpu.concatenate %59, %58, %60 in 1 : vector<2x3x16xf32>, vector<2x16x16xf32>, vector<2x3x16xf32> -> vector<2x22x16xf32>
    %62 = vector.extract_strided_slice %61 {offsets = [0, 0, 0], sizes = [2, 16, 16], strides = [1, 1, 1]} : vector<2x22x16xf32> to vector<2x16x16xf32>
    %63 = vector.extract_strided_slice %61 {offsets = [0, 3, 0], sizes = [2, 16, 16], strides = [1, 1, 1]} : vector<2x22x16xf32> to vector<2x16x16xf32>
    %64 = vector.extract_strided_slice %61 {offsets = [0, 6, 0], sizes = [2, 16, 16], strides = [1, 1, 1]} : vector<2x22x16xf32> to vector<2x16x16xf32>
    %65 = tpu.concatenate %62, %63, %64 in 2 : vector<2x16x16xf32>, vector<2x16x16xf32>, vector<2x16x16xf32> -> vector<2x16x48xf32>
    %66 = vector.shape_cast %65 : vector<2x16x48xf32> to vector<32x48xf32>
    %67 = arith.truncf %66 : vector<32x48xf32> to vector<32x48xbf16>
    %cst_35 = arith.constant dense<0.000000e+00> : vector<32x16xf32>
    %68 = tpu.matmul %67, %51, %cst_35 {dimension_numbers = #tpu.dot_dimension_numbers<[1], [0], [0], [1], [0, 0, 1, 1], [], []>} : vector<32x48xbf16>, vector<48x16xbf16>, vector<32x16xf32> -> vector<32x16xf32>
    %69 = vector.broadcast %53 : vector<1x16xf32> to vector<32x16xf32>
    %70 = arith.addf %68, %69 : vector<32x16xf32>
    %71 = vector.shape_cast %70 : vector<32x16xf32> to vector<2x16x16xf32>
    %c1_36 = arith.constant 1 : index
    %c0_37 = arith.constant 0 : index
    %c0_38 = arith.constant 0 : index
    %72 = vector.load %arg4[%c1_36, %c0_37, %c0_38] : memref<3x48x16xbf16, #tpu.memory_space<vmem>>, vector<1x48x16xbf16>
    %73 = vector.shape_cast %72 : vector<1x48x16xbf16> to vector<48x16xbf16>
    %c1_39 = arith.constant 1 : index
    %c0_40 = arith.constant 0 : index
    %c0_41 = arith.constant 0 : index
    %74 = vector.load %arg5[%c1_39, %c0_40, %c0_41] : memref<3x1x16xf32, #tpu.memory_space<vmem>>, vector<1x1x16xf32>
    %75 = vector.shape_cast %74 : vector<1x1x16xf32> to vector<1x16xf32>
    %cst_42 = arith.constant 0.000000e+00 : f32
    %76 = vector.broadcast %cst_42 : f32 to vector<2x16x16xf32>
    %77 = arith.cmpf oge, %71, %76 : vector<2x16x16xf32>
    %cst_43 = arith.constant 1.000000e-01 : f32
    %78 = vector.broadcast %cst_43 : f32 to vector<2x16x16xf32>
    %79 = arith.mulf %78, %71 : vector<2x16x16xf32>
    %80 = arith.select %77, %71, %79 : vector<2x16x16xi1>, vector<2x16x16xf32>
    %cst_44 = arith.constant 0.000000e+00 : f32
    %81 = vector.broadcast %cst_44 : f32 to vector<2x1x16xf32>
    %cst_45 = arith.constant 0.000000e+00 : f32
    %82 = vector.broadcast %cst_45 : f32 to vector<2x1x16xf32>
    %83 = tpu.concatenate %81, %80, %82 in 1 : vector<2x1x16xf32>, vector<2x16x16xf32>, vector<2x1x16xf32> -> vector<2x18x16xf32>
    %84 = vector.extract_strided_slice %83 {offsets = [0, 0, 0], sizes = [2, 16, 16], strides = [1, 1, 1]} : vector<2x18x16xf32> to vector<2x16x16xf32>
    %85 = vector.extract_strided_slice %83 {offsets = [0, 1, 0], sizes = [2, 16, 16], strides = [1, 1, 1]} : vector<2x18x16xf32> to vector<2x16x16xf32>
    %86 = vector.extract_strided_slice %83 {offsets = [0, 2, 0], sizes = [2, 16, 16], strides = [1, 1, 1]} : vector<2x18x16xf32> to vector<2x16x16xf32>
    %87 = tpu.concatenate %84, %85, %86 in 2 : vector<2x16x16xf32>, vector<2x16x16xf32>, vector<2x16x16xf32> -> vector<2x16x48xf32>
    %88 = vector.shape_cast %87 : vector<2x16x48xf32> to vector<32x48xf32>
    %89 = arith.truncf %88 : vector<32x48xf32> to vector<32x48xbf16>
    %cst_46 = arith.constant dense<0.000000e+00> : vector<32x16xf32>
    %90 = tpu.matmul %89, %73, %cst_46 {dimension_numbers = #tpu.dot_dimension_numbers<[1], [0], [0], [1], [0, 0, 1, 1], [], []>} : vector<32x48xbf16>, vector<48x16xbf16>, vector<32x16xf32> -> vector<32x16xf32>
    %91 = vector.broadcast %75 : vector<1x16xf32> to vector<32x16xf32>
    %92 = arith.addf %90, %91 : vector<32x16xf32>
    %93 = vector.shape_cast %92 : vector<32x16xf32> to vector<2x16x16xf32>
    %94 = arith.addf %49, %93 : vector<2x16x16xf32>
    %c2 = arith.constant 2 : index
    %c0_47 = arith.constant 0 : index
    %c0_48 = arith.constant 0 : index
    %95 = vector.load %arg2[%c2, %c0_47, %c0_48] : memref<3x48x16xbf16, #tpu.memory_space<vmem>>, vector<1x48x16xbf16>
    %96 = vector.shape_cast %95 : vector<1x48x16xbf16> to vector<48x16xbf16>
    %c2_49 = arith.constant 2 : index
    %c0_50 = arith.constant 0 : index
    %c0_51 = arith.constant 0 : index
    %97 = vector.load %arg3[%c2_49, %c0_50, %c0_51] : memref<3x1x16xf32, #tpu.memory_space<vmem>>, vector<1x1x16xf32>
    %98 = vector.shape_cast %97 : vector<1x1x16xf32> to vector<1x16xf32>
    %cst_52 = arith.constant 0.000000e+00 : f32
    %99 = vector.broadcast %cst_52 : f32 to vector<2x16x16xf32>
    %100 = arith.cmpf oge, %94, %99 : vector<2x16x16xf32>
    %cst_53 = arith.constant 1.000000e-01 : f32
    %101 = vector.broadcast %cst_53 : f32 to vector<2x16x16xf32>
    %102 = arith.mulf %101, %94 : vector<2x16x16xf32>
    %103 = arith.select %100, %94, %102 : vector<2x16x16xi1>, vector<2x16x16xf32>
    %cst_54 = arith.constant 0.000000e+00 : f32
    %104 = vector.broadcast %cst_54 : f32 to vector<2x5x16xf32>
    %cst_55 = arith.constant 0.000000e+00 : f32
    %105 = vector.broadcast %cst_55 : f32 to vector<2x5x16xf32>
    %106 = tpu.concatenate %104, %103, %105 in 1 : vector<2x5x16xf32>, vector<2x16x16xf32>, vector<2x5x16xf32> -> vector<2x26x16xf32>
    %107 = vector.extract_strided_slice %106 {offsets = [0, 0, 0], sizes = [2, 16, 16], strides = [1, 1, 1]} : vector<2x26x16xf32> to vector<2x16x16xf32>
    %108 = vector.extract_strided_slice %106 {offsets = [0, 5, 0], sizes = [2, 16, 16], strides = [1, 1, 1]} : vector<2x26x16xf32> to vector<2x16x16xf32>
    %109 = vector.extract_strided_slice %106 {offsets = [0, 10, 0], sizes = [2, 16, 16], strides = [1, 1, 1]} : vector<2x26x16xf32> to vector<2x16x16xf32>
    %110 = tpu.concatenate %107, %108, %109 in 2 : vector<2x16x16xf32>, vector<2x16x16xf32>, vector<2x16x16xf32> -> vector<2x16x48xf32>
    %111 = vector.shape_cast %110 : vector<2x16x48xf32> to vector<32x48xf32>
    %112 = arith.truncf %111 : vector<32x48xf32> to vector<32x48xbf16>
    %cst_56 = arith.constant dense<0.000000e+00> : vector<32x16xf32>
    %113 = tpu.matmul %112, %96, %cst_56 {dimension_numbers = #tpu.dot_dimension_numbers<[1], [0], [0], [1], [0, 0, 1, 1], [], []>} : vector<32x48xbf16>, vector<48x16xbf16>, vector<32x16xf32> -> vector<32x16xf32>
    %114 = vector.broadcast %98 : vector<1x16xf32> to vector<32x16xf32>
    %115 = arith.addf %113, %114 : vector<32x16xf32>
    %116 = vector.shape_cast %115 : vector<32x16xf32> to vector<2x16x16xf32>
    %c2_57 = arith.constant 2 : index
    %c0_58 = arith.constant 0 : index
    %c0_59 = arith.constant 0 : index
    %117 = vector.load %arg4[%c2_57, %c0_58, %c0_59] : memref<3x48x16xbf16, #tpu.memory_space<vmem>>, vector<1x48x16xbf16>
    %118 = vector.shape_cast %117 : vector<1x48x16xbf16> to vector<48x16xbf16>
    %c2_60 = arith.constant 2 : index
    %c0_61 = arith.constant 0 : index
    %c0_62 = arith.constant 0 : index
    %119 = vector.load %arg5[%c2_60, %c0_61, %c0_62] : memref<3x1x16xf32, #tpu.memory_space<vmem>>, vector<1x1x16xf32>
    %120 = vector.shape_cast %119 : vector<1x1x16xf32> to vector<1x16xf32>
    %cst_63 = arith.constant 0.000000e+00 : f32
    %121 = vector.broadcast %cst_63 : f32 to vector<2x16x16xf32>
    %122 = arith.cmpf oge, %116, %121 : vector<2x16x16xf32>
    %cst_64 = arith.constant 1.000000e-01 : f32
    %123 = vector.broadcast %cst_64 : f32 to vector<2x16x16xf32>
    %124 = arith.mulf %123, %116 : vector<2x16x16xf32>
    %125 = arith.select %122, %116, %124 : vector<2x16x16xi1>, vector<2x16x16xf32>
    %cst_65 = arith.constant 0.000000e+00 : f32
    %126 = vector.broadcast %cst_65 : f32 to vector<2x1x16xf32>
    %cst_66 = arith.constant 0.000000e+00 : f32
    %127 = vector.broadcast %cst_66 : f32 to vector<2x1x16xf32>
    %128 = tpu.concatenate %126, %125, %127 in 1 : vector<2x1x16xf32>, vector<2x16x16xf32>, vector<2x1x16xf32> -> vector<2x18x16xf32>
    %129 = vector.extract_strided_slice %128 {offsets = [0, 0, 0], sizes = [2, 16, 16], strides = [1, 1, 1]} : vector<2x18x16xf32> to vector<2x16x16xf32>
    %130 = vector.extract_strided_slice %128 {offsets = [0, 1, 0], sizes = [2, 16, 16], strides = [1, 1, 1]} : vector<2x18x16xf32> to vector<2x16x16xf32>
    %131 = vector.extract_strided_slice %128 {offsets = [0, 2, 0], sizes = [2, 16, 16], strides = [1, 1, 1]} : vector<2x18x16xf32> to vector<2x16x16xf32>
    %132 = tpu.concatenate %129, %130, %131 in 2 : vector<2x16x16xf32>, vector<2x16x16xf32>, vector<2x16x16xf32> -> vector<2x16x48xf32>
    %133 = vector.shape_cast %132 : vector<2x16x48xf32> to vector<32x48xf32>
    %134 = arith.truncf %133 : vector<32x48xf32> to vector<32x48xbf16>
    %cst_67 = arith.constant dense<0.000000e+00> : vector<32x16xf32>
    %135 = tpu.matmul %134, %118, %cst_67 {dimension_numbers = #tpu.dot_dimension_numbers<[1], [0], [0], [1], [0, 0, 1, 1], [], []>} : vector<32x48xbf16>, vector<48x16xbf16>, vector<32x16xf32> -> vector<32x16xf32>
    %136 = vector.broadcast %120 : vector<1x16xf32> to vector<32x16xf32>
    %137 = arith.addf %135, %136 : vector<32x16xf32>
    %138 = vector.shape_cast %137 : vector<32x16xf32> to vector<2x16x16xf32>
    %139 = arith.addf %94, %138 : vector<2x16x16xf32>
    %140 = arith.truncf %139 : vector<2x16x16xf32> to vector<2x16x16xbf16>
    %c0_68 = arith.constant 0 : index
    %c0_69 = arith.constant 0 : index
    %c0_70 = arith.constant 0 : index
    %141 = vector.load %arg6[%c0_68, %c0_69, %c0_70] : memref<2x16x16xbf16, #tpu.memory_space<vmem>>, vector<2x16x16xbf16>
    tpu.vector_store %arg6[%c0_68, %c0_69, %c0_70], %140 {strides = array<i32>} : memref<2x16x16xbf16, #tpu.memory_space<vmem>>, vector<2x16x16xbf16>,
    return
  }
}

module attributes {stable_mosaic.version = 11 : i64} {
  func.func @_convT_poly_kernel(%arg0: memref<2x16x16xbf16, #tpu.memory_space<vmem>>, %arg1: memref<4x32x8xbf16, #tpu.memory_space<vmem>>, %arg2: memref<1x8xf32, #tpu.memory_space<vmem>>, %arg3: memref<2x16x32xbf16, #tpu.memory_space<vmem>>) attributes {dimension_semantics = [], scalar_prefetch = 0 : i64, scratch_operands = 0 : i64, tpu.core_type = #tpu.core_type<tc>} {
    %c0 = arith.constant 0 : index
    %c0_0 = arith.constant 0 : index
    %c0_1 = arith.constant 0 : index
    %0 = vector.load %arg0[%c0, %c0_0, %c0_1] : memref<2x16x16xbf16, #tpu.memory_space<vmem>>, vector<2x16x16xbf16>
    %1 = arith.extf %0 : vector<2x16x16xbf16> to vector<2x16x16xf32>
    %cst = arith.constant 0.000000e+00 : f32
    %2 = vector.broadcast %cst : f32 to vector<2x16x16xf32>
    %3 = arith.cmpf oge, %1, %2 : vector<2x16x16xf32>
    %cst_2 = arith.constant 1.000000e-01 : f32
    %4 = vector.broadcast %cst_2 : f32 to vector<2x16x16xf32>
    %5 = arith.mulf %4, %1 : vector<2x16x16xf32>
    %6 = arith.select %3, %1, %5 : vector<2x16x16xi1>, vector<2x16x16xf32>
    %cst_3 = arith.constant 0.000000e+00 : f32
    %7 = vector.broadcast %cst_3 : f32 to vector<2x1x16xf32>
    %cst_4 = arith.constant 0.000000e+00 : f32
    %8 = vector.broadcast %cst_4 : f32 to vector<2x1x16xf32>
    %9 = tpu.concatenate %7, %6, %8 in 1 : vector<2x1x16xf32>, vector<2x16x16xf32>, vector<2x1x16xf32> -> vector<2x18x16xf32>
    %c0_5 = arith.constant 0 : index
    %c0_6 = arith.constant 0 : index
    %10 = vector.load %arg2[%c0_5, %c0_6] : memref<1x8xf32, #tpu.memory_space<vmem>>, vector<1x8xf32>
    %11 = vector.extract_strided_slice %9 {offsets = [0, 0, 0], sizes = [2, 16, 16], strides = [1, 1, 1]} : vector<2x18x16xf32> to vector<2x16x16xf32>
    %12 = vector.extract_strided_slice %9 {offsets = [0, 1, 0], sizes = [2, 16, 16], strides = [1, 1, 1]} : vector<2x18x16xf32> to vector<2x16x16xf32>
    %13 = tpu.concatenate %11, %12 in 2 : vector<2x16x16xf32>, vector<2x16x16xf32> -> vector<2x16x32xf32>
    %14 = vector.shape_cast %13 : vector<2x16x32xf32> to vector<32x32xf32>
    %15 = arith.truncf %14 : vector<32x32xf32> to vector<32x32xbf16>
    %c0_7 = arith.constant 0 : index
    %c0_8 = arith.constant 0 : index
    %c0_9 = arith.constant 0 : index
    %16 = vector.load %arg1[%c0_7, %c0_8, %c0_9] : memref<4x32x8xbf16, #tpu.memory_space<vmem>>, vector<1x32x8xbf16>
    %17 = vector.shape_cast %16 : vector<1x32x8xbf16> to vector<32x8xbf16>
    %cst_10 = arith.constant dense<0.000000e+00> : vector<32x8xf32>
    %18 = tpu.matmul %15, %17, %cst_10 {dimension_numbers = #tpu.dot_dimension_numbers<[1], [0], [0], [1], [0, 0, 1, 1], [], []>} : vector<32x32xbf16>, vector<32x8xbf16>, vector<32x8xf32> -> vector<32x8xf32>
    %19 = vector.broadcast %10 : vector<1x8xf32> to vector<32x8xf32>
    %20 = arith.addf %18, %19 : vector<32x8xf32>
    %21 = vector.shape_cast %20 : vector<32x8xf32> to vector<2x16x8xf32>
    %22 = vector.extract_strided_slice %9 {offsets = [0, 0, 0], sizes = [2, 16, 16], strides = [1, 1, 1]} : vector<2x18x16xf32> to vector<2x16x16xf32>
    %23 = vector.extract_strided_slice %9 {offsets = [0, 1, 0], sizes = [2, 16, 16], strides = [1, 1, 1]} : vector<2x18x16xf32> to vector<2x16x16xf32>
    %24 = tpu.concatenate %22, %23 in 2 : vector<2x16x16xf32>, vector<2x16x16xf32> -> vector<2x16x32xf32>
    %25 = vector.shape_cast %24 : vector<2x16x32xf32> to vector<32x32xf32>
    %26 = arith.truncf %25 : vector<32x32xf32> to vector<32x32xbf16>
    %c1 = arith.constant 1 : index
    %c0_11 = arith.constant 0 : index
    %c0_12 = arith.constant 0 : index
    %27 = vector.load %arg1[%c1, %c0_11, %c0_12] : memref<4x32x8xbf16, #tpu.memory_space<vmem>>, vector<1x32x8xbf16>
    %28 = vector.shape_cast %27 : vector<1x32x8xbf16> to vector<32x8xbf16>
    %cst_13 = arith.constant dense<0.000000e+00> : vector<32x8xf32>
    %29 = tpu.matmul %26, %28, %cst_13 {dimension_numbers = #tpu.dot_dimension_numbers<[1], [0], [0], [1], [0, 0, 1, 1], [], []>} : vector<32x32xbf16>, vector<32x8xbf16>, vector<32x8xf32> -> vector<32x8xf32>
    %30 = vector.broadcast %10 : vector<1x8xf32> to vector<32x8xf32>
    %31 = arith.addf %29, %30 : vector<32x8xf32>
    %32 = vector.shape_cast %31 : vector<32x8xf32> to vector<2x16x8xf32>
    %33 = vector.extract_strided_slice %9 {offsets = [0, 1, 0], sizes = [2, 16, 16], strides = [1, 1, 1]} : vector<2x18x16xf32> to vector<2x16x16xf32>
    %34 = vector.extract_strided_slice %9 {offsets = [0, 2, 0], sizes = [2, 16, 16], strides = [1, 1, 1]} : vector<2x18x16xf32> to vector<2x16x16xf32>
    %35 = tpu.concatenate %33, %34 in 2 : vector<2x16x16xf32>, vector<2x16x16xf32> -> vector<2x16x32xf32>
    %36 = vector.shape_cast %35 : vector<2x16x32xf32> to vector<32x32xf32>
    %37 = arith.truncf %36 : vector<32x32xf32> to vector<32x32xbf16>
    %c2 = arith.constant 2 : index
    %c0_14 = arith.constant 0 : index
    %c0_15 = arith.constant 0 : index
    %38 = vector.load %arg1[%c2, %c0_14, %c0_15] : memref<4x32x8xbf16, #tpu.memory_space<vmem>>, vector<1x32x8xbf16>
    %39 = vector.shape_cast %38 : vector<1x32x8xbf16> to vector<32x8xbf16>
    %cst_16 = arith.constant dense<0.000000e+00> : vector<32x8xf32>
    %40 = tpu.matmul %37, %39, %cst_16 {dimension_numbers = #tpu.dot_dimension_numbers<[1], [0], [0], [1], [0, 0, 1, 1], [], []>} : vector<32x32xbf16>, vector<32x8xbf16>, vector<32x8xf32> -> vector<32x8xf32>
    %41 = vector.broadcast %10 : vector<1x8xf32> to vector<32x8xf32>
    %42 = arith.addf %40, %41 : vector<32x8xf32>
    %43 = vector.shape_cast %42 : vector<32x8xf32> to vector<2x16x8xf32>
    %44 = vector.extract_strided_slice %9 {offsets = [0, 1, 0], sizes = [2, 16, 16], strides = [1, 1, 1]} : vector<2x18x16xf32> to vector<2x16x16xf32>
    %45 = vector.extract_strided_slice %9 {offsets = [0, 2, 0], sizes = [2, 16, 16], strides = [1, 1, 1]} : vector<2x18x16xf32> to vector<2x16x16xf32>
    %46 = tpu.concatenate %44, %45 in 2 : vector<2x16x16xf32>, vector<2x16x16xf32> -> vector<2x16x32xf32>
    %47 = vector.shape_cast %46 : vector<2x16x32xf32> to vector<32x32xf32>
    %48 = arith.truncf %47 : vector<32x32xf32> to vector<32x32xbf16>
    %c3 = arith.constant 3 : index
    %c0_17 = arith.constant 0 : index
    %c0_18 = arith.constant 0 : index
    %49 = vector.load %arg1[%c3, %c0_17, %c0_18] : memref<4x32x8xbf16, #tpu.memory_space<vmem>>, vector<1x32x8xbf16>
    %50 = vector.shape_cast %49 : vector<1x32x8xbf16> to vector<32x8xbf16>
    %cst_19 = arith.constant dense<0.000000e+00> : vector<32x8xf32>
    %51 = tpu.matmul %48, %50, %cst_19 {dimension_numbers = #tpu.dot_dimension_numbers<[1], [0], [0], [1], [0, 0, 1, 1], [], []>} : vector<32x32xbf16>, vector<32x8xbf16>, vector<32x8xf32> -> vector<32x8xf32>
    %52 = vector.broadcast %10 : vector<1x8xf32> to vector<32x8xf32>
    %53 = arith.addf %51, %52 : vector<32x8xf32>
    %54 = vector.shape_cast %53 : vector<32x8xf32> to vector<2x16x8xf32>
    %55 = tpu.concatenate %21, %32, %43, %54 in 2 : vector<2x16x8xf32>, vector<2x16x8xf32>, vector<2x16x8xf32>, vector<2x16x8xf32> -> vector<2x16x32xf32>
    %56 = arith.truncf %55 : vector<2x16x32xf32> to vector<2x16x32xbf16>
    %c0_20 = arith.constant 0 : index
    %c0_21 = arith.constant 0 : index
    %c0_22 = arith.constant 0 : index
    %57 = vector.load %arg3[%c0_20, %c0_21, %c0_22] : memref<2x16x32xbf16, #tpu.memory_space<vmem>>, vector<2x16x32xbf16>
    tpu.vector_store %arg3[%c0_20, %c0_21, %c0_22], %56 {strides = array<i32>} : memref<2x16x32xbf16, #tpu.memory_space<vmem>>, vector<2x16x32xbf16>,
    return
  }
}

module attributes {stable_mosaic.version = 11 : i64} {
  func.func @_resblock_kernel(%arg0: memref<2x64x8xbf16, #tpu.memory_space<vmem>>, %arg1: memref<2x64x8xbf16, #tpu.memory_space<vmem>>, %arg2: memref<3x24x8xbf16, #tpu.memory_space<vmem>>, %arg3: memref<3x1x8xf32, #tpu.memory_space<vmem>>, %arg4: memref<3x24x8xbf16, #tpu.memory_space<vmem>>, %arg5: memref<3x1x8xf32, #tpu.memory_space<vmem>>, %arg6: memref<2x64x8xbf16, #tpu.memory_space<vmem>>) attributes {dimension_semantics = [], scalar_prefetch = 0 : i64, scratch_operands = 0 : i64, tpu.core_type = #tpu.core_type<tc>} {
    %c0 = arith.constant 0 : index
    %c0_0 = arith.constant 0 : index
    %c0_1 = arith.constant 0 : index
    %0 = vector.load %arg0[%c0, %c0_0, %c0_1] : memref<2x64x8xbf16, #tpu.memory_space<vmem>>, vector<2x64x8xbf16>
    %1 = arith.extf %0 : vector<2x64x8xbf16> to vector<2x64x8xf32>
    %c0_2 = arith.constant 0 : index
    %c0_3 = arith.constant 0 : index
    %c0_4 = arith.constant 0 : index
    %2 = vector.load %arg1[%c0_2, %c0_3, %c0_4] : memref<2x64x8xbf16, #tpu.memory_space<vmem>>, vector<2x64x8xbf16>
    %3 = arith.extf %2 : vector<2x64x8xbf16> to vector<2x64x8xf32>
    %4 = arith.addf %1, %3 : vector<2x64x8xf32>
    %c0_5 = arith.constant 0 : index
    %c0_6 = arith.constant 0 : index
    %c0_7 = arith.constant 0 : index
    %5 = vector.load %arg2[%c0_5, %c0_6, %c0_7] : memref<3x24x8xbf16, #tpu.memory_space<vmem>>, vector<1x24x8xbf16>
    %6 = vector.shape_cast %5 : vector<1x24x8xbf16> to vector<24x8xbf16>
    %c0_8 = arith.constant 0 : index
    %c0_9 = arith.constant 0 : index
    %c0_10 = arith.constant 0 : index
    %7 = vector.load %arg3[%c0_8, %c0_9, %c0_10] : memref<3x1x8xf32, #tpu.memory_space<vmem>>, vector<1x1x8xf32>
    %8 = vector.shape_cast %7 : vector<1x1x8xf32> to vector<1x8xf32>
    %cst = arith.constant 0.000000e+00 : f32
    %9 = vector.broadcast %cst : f32 to vector<2x64x8xf32>
    %10 = arith.cmpf oge, %4, %9 : vector<2x64x8xf32>
    %cst_11 = arith.constant 1.000000e-01 : f32
    %11 = vector.broadcast %cst_11 : f32 to vector<2x64x8xf32>
    %12 = arith.mulf %11, %4 : vector<2x64x8xf32>
    %13 = arith.select %10, %4, %12 : vector<2x64x8xi1>, vector<2x64x8xf32>
    %cst_12 = arith.constant 0.000000e+00 : f32
    %14 = vector.broadcast %cst_12 : f32 to vector<2x1x8xf32>
    %cst_13 = arith.constant 0.000000e+00 : f32
    %15 = vector.broadcast %cst_13 : f32 to vector<2x1x8xf32>
    %16 = tpu.concatenate %14, %13, %15 in 1 : vector<2x1x8xf32>, vector<2x64x8xf32>, vector<2x1x8xf32> -> vector<2x66x8xf32>
    %17 = vector.extract_strided_slice %16 {offsets = [0, 0, 0], sizes = [2, 64, 8], strides = [1, 1, 1]} : vector<2x66x8xf32> to vector<2x64x8xf32>
    %18 = vector.extract_strided_slice %16 {offsets = [0, 1, 0], sizes = [2, 64, 8], strides = [1, 1, 1]} : vector<2x66x8xf32> to vector<2x64x8xf32>
    %19 = vector.extract_strided_slice %16 {offsets = [0, 2, 0], sizes = [2, 64, 8], strides = [1, 1, 1]} : vector<2x66x8xf32> to vector<2x64x8xf32>
    %20 = tpu.concatenate %17, %18, %19 in 2 : vector<2x64x8xf32>, vector<2x64x8xf32>, vector<2x64x8xf32> -> vector<2x64x24xf32>
    %21 = vector.shape_cast %20 : vector<2x64x24xf32> to vector<128x24xf32>
    %22 = arith.truncf %21 : vector<128x24xf32> to vector<128x24xbf16>
    %cst_14 = arith.constant dense<0.000000e+00> : vector<128x8xf32>
    %23 = tpu.matmul %22, %6, %cst_14 {dimension_numbers = #tpu.dot_dimension_numbers<[1], [0], [0], [1], [0, 0, 1, 1], [], []>} : vector<128x24xbf16>, vector<24x8xbf16>, vector<128x8xf32> -> vector<128x8xf32>
    %24 = vector.broadcast %8 : vector<1x8xf32> to vector<128x8xf32>
    %25 = arith.addf %23, %24 : vector<128x8xf32>
    %26 = vector.shape_cast %25 : vector<128x8xf32> to vector<2x64x8xf32>
    %c0_15 = arith.constant 0 : index
    %c0_16 = arith.constant 0 : index
    %c0_17 = arith.constant 0 : index
    %27 = vector.load %arg4[%c0_15, %c0_16, %c0_17] : memref<3x24x8xbf16, #tpu.memory_space<vmem>>, vector<1x24x8xbf16>
    %28 = vector.shape_cast %27 : vector<1x24x8xbf16> to vector<24x8xbf16>
    %c0_18 = arith.constant 0 : index
    %c0_19 = arith.constant 0 : index
    %c0_20 = arith.constant 0 : index
    %29 = vector.load %arg5[%c0_18, %c0_19, %c0_20] : memref<3x1x8xf32, #tpu.memory_space<vmem>>, vector<1x1x8xf32>
    %30 = vector.shape_cast %29 : vector<1x1x8xf32> to vector<1x8xf32>
    %cst_21 = arith.constant 0.000000e+00 : f32
    %31 = vector.broadcast %cst_21 : f32 to vector<2x64x8xf32>
    %32 = arith.cmpf oge, %26, %31 : vector<2x64x8xf32>
    %cst_22 = arith.constant 1.000000e-01 : f32
    %33 = vector.broadcast %cst_22 : f32 to vector<2x64x8xf32>
    %34 = arith.mulf %33, %26 : vector<2x64x8xf32>
    %35 = arith.select %32, %26, %34 : vector<2x64x8xi1>, vector<2x64x8xf32>
    %cst_23 = arith.constant 0.000000e+00 : f32
    %36 = vector.broadcast %cst_23 : f32 to vector<2x1x8xf32>
    %cst_24 = arith.constant 0.000000e+00 : f32
    %37 = vector.broadcast %cst_24 : f32 to vector<2x1x8xf32>
    %38 = tpu.concatenate %36, %35, %37 in 1 : vector<2x1x8xf32>, vector<2x64x8xf32>, vector<2x1x8xf32> -> vector<2x66x8xf32>
    %39 = vector.extract_strided_slice %38 {offsets = [0, 0, 0], sizes = [2, 64, 8], strides = [1, 1, 1]} : vector<2x66x8xf32> to vector<2x64x8xf32>
    %40 = vector.extract_strided_slice %38 {offsets = [0, 1, 0], sizes = [2, 64, 8], strides = [1, 1, 1]} : vector<2x66x8xf32> to vector<2x64x8xf32>
    %41 = vector.extract_strided_slice %38 {offsets = [0, 2, 0], sizes = [2, 64, 8], strides = [1, 1, 1]} : vector<2x66x8xf32> to vector<2x64x8xf32>
    %42 = tpu.concatenate %39, %40, %41 in 2 : vector<2x64x8xf32>, vector<2x64x8xf32>, vector<2x64x8xf32> -> vector<2x64x24xf32>
    %43 = vector.shape_cast %42 : vector<2x64x24xf32> to vector<128x24xf32>
    %44 = arith.truncf %43 : vector<128x24xf32> to vector<128x24xbf16>
    %cst_25 = arith.constant dense<0.000000e+00> : vector<128x8xf32>
    %45 = tpu.matmul %44, %28, %cst_25 {dimension_numbers = #tpu.dot_dimension_numbers<[1], [0], [0], [1], [0, 0, 1, 1], [], []>} : vector<128x24xbf16>, vector<24x8xbf16>, vector<128x8xf32> -> vector<128x8xf32>
    %46 = vector.broadcast %30 : vector<1x8xf32> to vector<128x8xf32>
    %47 = arith.addf %45, %46 : vector<128x8xf32>
    %48 = vector.shape_cast %47 : vector<128x8xf32> to vector<2x64x8xf32>
    %49 = arith.addf %4, %48 : vector<2x64x8xf32>
    %c1 = arith.constant 1 : index
    %c0_26 = arith.constant 0 : index
    %c0_27 = arith.constant 0 : index
    %50 = vector.load %arg2[%c1, %c0_26, %c0_27] : memref<3x24x8xbf16, #tpu.memory_space<vmem>>, vector<1x24x8xbf16>
    %51 = vector.shape_cast %50 : vector<1x24x8xbf16> to vector<24x8xbf16>
    %c1_28 = arith.constant 1 : index
    %c0_29 = arith.constant 0 : index
    %c0_30 = arith.constant 0 : index
    %52 = vector.load %arg3[%c1_28, %c0_29, %c0_30] : memref<3x1x8xf32, #tpu.memory_space<vmem>>, vector<1x1x8xf32>
    %53 = vector.shape_cast %52 : vector<1x1x8xf32> to vector<1x8xf32>
    %cst_31 = arith.constant 0.000000e+00 : f32
    %54 = vector.broadcast %cst_31 : f32 to vector<2x64x8xf32>
    %55 = arith.cmpf oge, %49, %54 : vector<2x64x8xf32>
    %cst_32 = arith.constant 1.000000e-01 : f32
    %56 = vector.broadcast %cst_32 : f32 to vector<2x64x8xf32>
    %57 = arith.mulf %56, %49 : vector<2x64x8xf32>
    %58 = arith.select %55, %49, %57 : vector<2x64x8xi1>, vector<2x64x8xf32>
    %cst_33 = arith.constant 0.000000e+00 : f32
    %59 = vector.broadcast %cst_33 : f32 to vector<2x3x8xf32>
    %cst_34 = arith.constant 0.000000e+00 : f32
    %60 = vector.broadcast %cst_34 : f32 to vector<2x3x8xf32>
    %61 = tpu.concatenate %59, %58, %60 in 1 : vector<2x3x8xf32>, vector<2x64x8xf32>, vector<2x3x8xf32> -> vector<2x70x8xf32>
    %62 = vector.extract_strided_slice %61 {offsets = [0, 0, 0], sizes = [2, 64, 8], strides = [1, 1, 1]} : vector<2x70x8xf32> to vector<2x64x8xf32>
    %63 = vector.extract_strided_slice %61 {offsets = [0, 3, 0], sizes = [2, 64, 8], strides = [1, 1, 1]} : vector<2x70x8xf32> to vector<2x64x8xf32>
    %64 = vector.extract_strided_slice %61 {offsets = [0, 6, 0], sizes = [2, 64, 8], strides = [1, 1, 1]} : vector<2x70x8xf32> to vector<2x64x8xf32>
    %65 = tpu.concatenate %62, %63, %64 in 2 : vector<2x64x8xf32>, vector<2x64x8xf32>, vector<2x64x8xf32> -> vector<2x64x24xf32>
    %66 = vector.shape_cast %65 : vector<2x64x24xf32> to vector<128x24xf32>
    %67 = arith.truncf %66 : vector<128x24xf32> to vector<128x24xbf16>
    %cst_35 = arith.constant dense<0.000000e+00> : vector<128x8xf32>
    %68 = tpu.matmul %67, %51, %cst_35 {dimension_numbers = #tpu.dot_dimension_numbers<[1], [0], [0], [1], [0, 0, 1, 1], [], []>} : vector<128x24xbf16>, vector<24x8xbf16>, vector<128x8xf32> -> vector<128x8xf32>
    %69 = vector.broadcast %53 : vector<1x8xf32> to vector<128x8xf32>
    %70 = arith.addf %68, %69 : vector<128x8xf32>
    %71 = vector.shape_cast %70 : vector<128x8xf32> to vector<2x64x8xf32>
    %c1_36 = arith.constant 1 : index
    %c0_37 = arith.constant 0 : index
    %c0_38 = arith.constant 0 : index
    %72 = vector.load %arg4[%c1_36, %c0_37, %c0_38] : memref<3x24x8xbf16, #tpu.memory_space<vmem>>, vector<1x24x8xbf16>
    %73 = vector.shape_cast %72 : vector<1x24x8xbf16> to vector<24x8xbf16>
    %c1_39 = arith.constant 1 : index
    %c0_40 = arith.constant 0 : index
    %c0_41 = arith.constant 0 : index
    %74 = vector.load %arg5[%c1_39, %c0_40, %c0_41] : memref<3x1x8xf32, #tpu.memory_space<vmem>>, vector<1x1x8xf32>
    %75 = vector.shape_cast %74 : vector<1x1x8xf32> to vector<1x8xf32>
    %cst_42 = arith.constant 0.000000e+00 : f32
    %76 = vector.broadcast %cst_42 : f32 to vector<2x64x8xf32>
    %77 = arith.cmpf oge, %71, %76 : vector<2x64x8xf32>
    %cst_43 = arith.constant 1.000000e-01 : f32
    %78 = vector.broadcast %cst_43 : f32 to vector<2x64x8xf32>
    %79 = arith.mulf %78, %71 : vector<2x64x8xf32>
    %80 = arith.select %77, %71, %79 : vector<2x64x8xi1>, vector<2x64x8xf32>
    %cst_44 = arith.constant 0.000000e+00 : f32
    %81 = vector.broadcast %cst_44 : f32 to vector<2x1x8xf32>
    %cst_45 = arith.constant 0.000000e+00 : f32
    %82 = vector.broadcast %cst_45 : f32 to vector<2x1x8xf32>
    %83 = tpu.concatenate %81, %80, %82 in 1 : vector<2x1x8xf32>, vector<2x64x8xf32>, vector<2x1x8xf32> -> vector<2x66x8xf32>
    %84 = vector.extract_strided_slice %83 {offsets = [0, 0, 0], sizes = [2, 64, 8], strides = [1, 1, 1]} : vector<2x66x8xf32> to vector<2x64x8xf32>
    %85 = vector.extract_strided_slice %83 {offsets = [0, 1, 0], sizes = [2, 64, 8], strides = [1, 1, 1]} : vector<2x66x8xf32> to vector<2x64x8xf32>
    %86 = vector.extract_strided_slice %83 {offsets = [0, 2, 0], sizes = [2, 64, 8], strides = [1, 1, 1]} : vector<2x66x8xf32> to vector<2x64x8xf32>
    %87 = tpu.concatenate %84, %85, %86 in 2 : vector<2x64x8xf32>, vector<2x64x8xf32>, vector<2x64x8xf32> -> vector<2x64x24xf32>
    %88 = vector.shape_cast %87 : vector<2x64x24xf32> to vector<128x24xf32>
    %89 = arith.truncf %88 : vector<128x24xf32> to vector<128x24xbf16>
    %cst_46 = arith.constant dense<0.000000e+00> : vector<128x8xf32>
    %90 = tpu.matmul %89, %73, %cst_46 {dimension_numbers = #tpu.dot_dimension_numbers<[1], [0], [0], [1], [0, 0, 1, 1], [], []>} : vector<128x24xbf16>, vector<24x8xbf16>, vector<128x8xf32> -> vector<128x8xf32>
    %91 = vector.broadcast %75 : vector<1x8xf32> to vector<128x8xf32>
    %92 = arith.addf %90, %91 : vector<128x8xf32>
    %93 = vector.shape_cast %92 : vector<128x8xf32> to vector<2x64x8xf32>
    %94 = arith.addf %49, %93 : vector<2x64x8xf32>
    %c2 = arith.constant 2 : index
    %c0_47 = arith.constant 0 : index
    %c0_48 = arith.constant 0 : index
    %95 = vector.load %arg2[%c2, %c0_47, %c0_48] : memref<3x24x8xbf16, #tpu.memory_space<vmem>>, vector<1x24x8xbf16>
    %96 = vector.shape_cast %95 : vector<1x24x8xbf16> to vector<24x8xbf16>
    %c2_49 = arith.constant 2 : index
    %c0_50 = arith.constant 0 : index
    %c0_51 = arith.constant 0 : index
    %97 = vector.load %arg3[%c2_49, %c0_50, %c0_51] : memref<3x1x8xf32, #tpu.memory_space<vmem>>, vector<1x1x8xf32>
    %98 = vector.shape_cast %97 : vector<1x1x8xf32> to vector<1x8xf32>
    %cst_52 = arith.constant 0.000000e+00 : f32
    %99 = vector.broadcast %cst_52 : f32 to vector<2x64x8xf32>
    %100 = arith.cmpf oge, %94, %99 : vector<2x64x8xf32>
    %cst_53 = arith.constant 1.000000e-01 : f32
    %101 = vector.broadcast %cst_53 : f32 to vector<2x64x8xf32>
    %102 = arith.mulf %101, %94 : vector<2x64x8xf32>
    %103 = arith.select %100, %94, %102 : vector<2x64x8xi1>, vector<2x64x8xf32>
    %cst_54 = arith.constant 0.000000e+00 : f32
    %104 = vector.broadcast %cst_54 : f32 to vector<2x5x8xf32>
    %cst_55 = arith.constant 0.000000e+00 : f32
    %105 = vector.broadcast %cst_55 : f32 to vector<2x5x8xf32>
    %106 = tpu.concatenate %104, %103, %105 in 1 : vector<2x5x8xf32>, vector<2x64x8xf32>, vector<2x5x8xf32> -> vector<2x74x8xf32>
    %107 = vector.extract_strided_slice %106 {offsets = [0, 0, 0], sizes = [2, 64, 8], strides = [1, 1, 1]} : vector<2x74x8xf32> to vector<2x64x8xf32>
    %108 = vector.extract_strided_slice %106 {offsets = [0, 5, 0], sizes = [2, 64, 8], strides = [1, 1, 1]} : vector<2x74x8xf32> to vector<2x64x8xf32>
    %109 = vector.extract_strided_slice %106 {offsets = [0, 10, 0], sizes = [2, 64, 8], strides = [1, 1, 1]} : vector<2x74x8xf32> to vector<2x64x8xf32>
    %110 = tpu.concatenate %107, %108, %109 in 2 : vector<2x64x8xf32>, vector<2x64x8xf32>, vector<2x64x8xf32> -> vector<2x64x24xf32>
    %111 = vector.shape_cast %110 : vector<2x64x24xf32> to vector<128x24xf32>
    %112 = arith.truncf %111 : vector<128x24xf32> to vector<128x24xbf16>
    %cst_56 = arith.constant dense<0.000000e+00> : vector<128x8xf32>
    %113 = tpu.matmul %112, %96, %cst_56 {dimension_numbers = #tpu.dot_dimension_numbers<[1], [0], [0], [1], [0, 0, 1, 1], [], []>} : vector<128x24xbf16>, vector<24x8xbf16>, vector<128x8xf32> -> vector<128x8xf32>
    %114 = vector.broadcast %98 : vector<1x8xf32> to vector<128x8xf32>
    %115 = arith.addf %113, %114 : vector<128x8xf32>
    %116 = vector.shape_cast %115 : vector<128x8xf32> to vector<2x64x8xf32>
    %c2_57 = arith.constant 2 : index
    %c0_58 = arith.constant 0 : index
    %c0_59 = arith.constant 0 : index
    %117 = vector.load %arg4[%c2_57, %c0_58, %c0_59] : memref<3x24x8xbf16, #tpu.memory_space<vmem>>, vector<1x24x8xbf16>
    %118 = vector.shape_cast %117 : vector<1x24x8xbf16> to vector<24x8xbf16>
    %c2_60 = arith.constant 2 : index
    %c0_61 = arith.constant 0 : index
    %c0_62 = arith.constant 0 : index
    %119 = vector.load %arg5[%c2_60, %c0_61, %c0_62] : memref<3x1x8xf32, #tpu.memory_space<vmem>>, vector<1x1x8xf32>
    %120 = vector.shape_cast %119 : vector<1x1x8xf32> to vector<1x8xf32>
    %cst_63 = arith.constant 0.000000e+00 : f32
    %121 = vector.broadcast %cst_63 : f32 to vector<2x64x8xf32>
    %122 = arith.cmpf oge, %116, %121 : vector<2x64x8xf32>
    %cst_64 = arith.constant 1.000000e-01 : f32
    %123 = vector.broadcast %cst_64 : f32 to vector<2x64x8xf32>
    %124 = arith.mulf %123, %116 : vector<2x64x8xf32>
    %125 = arith.select %122, %116, %124 : vector<2x64x8xi1>, vector<2x64x8xf32>
    %cst_65 = arith.constant 0.000000e+00 : f32
    %126 = vector.broadcast %cst_65 : f32 to vector<2x1x8xf32>
    %cst_66 = arith.constant 0.000000e+00 : f32
    %127 = vector.broadcast %cst_66 : f32 to vector<2x1x8xf32>
    %128 = tpu.concatenate %126, %125, %127 in 1 : vector<2x1x8xf32>, vector<2x64x8xf32>, vector<2x1x8xf32> -> vector<2x66x8xf32>
    %129 = vector.extract_strided_slice %128 {offsets = [0, 0, 0], sizes = [2, 64, 8], strides = [1, 1, 1]} : vector<2x66x8xf32> to vector<2x64x8xf32>
    %130 = vector.extract_strided_slice %128 {offsets = [0, 1, 0], sizes = [2, 64, 8], strides = [1, 1, 1]} : vector<2x66x8xf32> to vector<2x64x8xf32>
    %131 = vector.extract_strided_slice %128 {offsets = [0, 2, 0], sizes = [2, 64, 8], strides = [1, 1, 1]} : vector<2x66x8xf32> to vector<2x64x8xf32>
    %132 = tpu.concatenate %129, %130, %131 in 2 : vector<2x64x8xf32>, vector<2x64x8xf32>, vector<2x64x8xf32> -> vector<2x64x24xf32>
    %133 = vector.shape_cast %132 : vector<2x64x24xf32> to vector<128x24xf32>
    %134 = arith.truncf %133 : vector<128x24xf32> to vector<128x24xbf16>
    %cst_67 = arith.constant dense<0.000000e+00> : vector<128x8xf32>
    %135 = tpu.matmul %134, %118, %cst_67 {dimension_numbers = #tpu.dot_dimension_numbers<[1], [0], [0], [1], [0, 0, 1, 1], [], []>} : vector<128x24xbf16>, vector<24x8xbf16>, vector<128x8xf32> -> vector<128x8xf32>
    %136 = vector.broadcast %120 : vector<1x8xf32> to vector<128x8xf32>
    %137 = arith.addf %135, %136 : vector<128x8xf32>
    %138 = vector.shape_cast %137 : vector<128x8xf32> to vector<2x64x8xf32>
    %139 = arith.addf %94, %138 : vector<2x64x8xf32>
    %140 = arith.truncf %139 : vector<2x64x8xf32> to vector<2x64x8xbf16>
    %c0_68 = arith.constant 0 : index
    %c0_69 = arith.constant 0 : index
    %c0_70 = arith.constant 0 : index
    %141 = vector.load %arg6[%c0_68, %c0_69, %c0_70] : memref<2x64x8xbf16, #tpu.memory_space<vmem>>, vector<2x64x8xbf16>
    tpu.vector_store %arg6[%c0_68, %c0_69, %c0_70], %140 {strides = array<i32>} : memref<2x64x8xbf16, #tpu.memory_space<vmem>>, vector<2x64x8xbf16>,
    return
  }
}

module attributes {stable_mosaic.version = 11 : i64} {
  func.func @_convk_kernel(%arg0: memref<2x64x8xbf16, #tpu.memory_space<vmem>>, %arg1: memref<56x1xbf16, #tpu.memory_space<vmem>>, %arg2: memref<1x1xf32, #tpu.memory_space<vmem>>, %arg3: memref<2x64x1xf32, #tpu.memory_space<vmem>>) attributes {dimension_semantics = [], scalar_prefetch = 0 : i64, scratch_operands = 0 : i64, tpu.core_type = #tpu.core_type<tc>} {
    %c0 = arith.constant 0 : index
    %c0_0 = arith.constant 0 : index
    %c0_1 = arith.constant 0 : index
    %0 = vector.load %arg0[%c0, %c0_0, %c0_1] : memref<2x64x8xbf16, #tpu.memory_space<vmem>>, vector<2x64x8xbf16>
    %1 = arith.extf %0 : vector<2x64x8xbf16> to vector<2x64x8xf32>
    %cst = arith.constant 0.000000e+00 : f32
    %2 = vector.broadcast %cst : f32 to vector<2x64x8xf32>
    %3 = arith.cmpf oge, %1, %2 : vector<2x64x8xf32>
    %cst_2 = arith.constant 0.00999999977 : f32
    %4 = vector.broadcast %cst_2 : f32 to vector<2x64x8xf32>
    %5 = arith.mulf %4, %1 : vector<2x64x8xf32>
    %6 = arith.select %3, %1, %5 : vector<2x64x8xi1>, vector<2x64x8xf32>
    %cst_3 = arith.constant 0.000000e+00 : f32
    %7 = vector.broadcast %cst_3 : f32 to vector<2x3x8xf32>
    %cst_4 = arith.constant 0.000000e+00 : f32
    %8 = vector.broadcast %cst_4 : f32 to vector<2x3x8xf32>
    %9 = tpu.concatenate %7, %6, %8 in 1 : vector<2x3x8xf32>, vector<2x64x8xf32>, vector<2x3x8xf32> -> vector<2x70x8xf32>
    %10 = vector.extract_strided_slice %9 {offsets = [0, 0, 0], sizes = [2, 64, 8], strides = [1, 1, 1]} : vector<2x70x8xf32> to vector<2x64x8xf32>
    %11 = vector.extract_strided_slice %9 {offsets = [0, 1, 0], sizes = [2, 64, 8], strides = [1, 1, 1]} : vector<2x70x8xf32> to vector<2x64x8xf32>
    %12 = vector.extract_strided_slice %9 {offsets = [0, 2, 0], sizes = [2, 64, 8], strides = [1, 1, 1]} : vector<2x70x8xf32> to vector<2x64x8xf32>
    %13 = vector.extract_strided_slice %9 {offsets = [0, 3, 0], sizes = [2, 64, 8], strides = [1, 1, 1]} : vector<2x70x8xf32> to vector<2x64x8xf32>
    %14 = vector.extract_strided_slice %9 {offsets = [0, 4, 0], sizes = [2, 64, 8], strides = [1, 1, 1]} : vector<2x70x8xf32> to vector<2x64x8xf32>
    %15 = vector.extract_strided_slice %9 {offsets = [0, 5, 0], sizes = [2, 64, 8], strides = [1, 1, 1]} : vector<2x70x8xf32> to vector<2x64x8xf32>
    %16 = vector.extract_strided_slice %9 {offsets = [0, 6, 0], sizes = [2, 64, 8], strides = [1, 1, 1]} : vector<2x70x8xf32> to vector<2x64x8xf32>
    %17 = tpu.concatenate %10, %11, %12, %13, %14, %15, %16 in 2 : vector<2x64x8xf32>, vector<2x64x8xf32>, vector<2x64x8xf32>, vector<2x64x8xf32>, vector<2x64x8xf32>, vector<2x64x8xf32>, vector<2x64x8xf32> -> vector<2x64x56xf32>
    %18 = vector.shape_cast %17 : vector<2x64x56xf32> to vector<128x56xf32>
    %19 = arith.truncf %18 : vector<128x56xf32> to vector<128x56xbf16>
    %c0_5 = arith.constant 0 : index
    %c0_6 = arith.constant 0 : index
    %20 = vector.load %arg1[%c0_5, %c0_6] : memref<56x1xbf16, #tpu.memory_space<vmem>>, vector<56x1xbf16>
    %cst_7 = arith.constant dense<0.000000e+00> : vector<128x1xf32>
    %21 = tpu.matmul %19, %20, %cst_7 {dimension_numbers = #tpu.dot_dimension_numbers<[1], [0], [0], [1], [0, 0, 1, 1], [], []>} : vector<128x56xbf16>, vector<56x1xbf16>, vector<128x1xf32> -> vector<128x1xf32>
    %c0_8 = arith.constant 0 : index
    %c0_9 = arith.constant 0 : index
    %22 = vector.load %arg2[%c0_8, %c0_9] : memref<1x1xf32, #tpu.memory_space<vmem>>, vector<1x1xf32>
    %23 = vector.broadcast %22 : vector<1x1xf32> to vector<128x1xf32>
    %24 = arith.addf %21, %23 : vector<128x1xf32>
    %25 = math.tanh %24 : vector<128x1xf32>
    %26 = vector.shape_cast %25 : vector<128x1xf32> to vector<2x64x1xf32>
    %c0_10 = arith.constant 0 : index
    %c0_11 = arith.constant 0 : index
    %c0_12 = arith.constant 0 : index
    %27 = vector.load %arg3[%c0_10, %c0_11, %c0_12] : memref<2x64x1xf32, #tpu.memory_space<vmem>>, vector<2x64x1xf32>
    tpu.vector_store %arg3[%c0_10, %c0_11, %c0_12], %26 {strides = array<i32>} : memref<2x64x1xf32, #tpu.memory_space<vmem>>, vector<2x64x1xf32>,
    return
  }
}

module attributes {stable_mosaic.version = 11 : i64} {
  func.func @_flow_layer_kernel(%arg0: memref<2x8x32xf32, #tpu.memory_space<vmem>>, %arg1: memref<2x8x1xf32, #tpu.memory_space<vmem>>, %arg2: memref<2x16xf32, #tpu.memory_space<vmem>>, %arg3: memref<16x32xbf16, #tpu.memory_space<vmem>>, %arg4: memref<1x32xf32, #tpu.memory_space<vmem>>, %arg5: memref<3x160x64xbf16, #tpu.memory_space<vmem>>, %arg6: memref<3x1x64xf32, #tpu.memory_space<vmem>>, %arg7: memref<3x32x64xbf16, #tpu.memory_space<vmem>>, %arg8: memref<3x1x64xf32, #tpu.memory_space<vmem>>, %arg9: memref<3x16x64xbf16, #tpu.memory_space<vmem>>, %arg10: memref<3x1x64xf32, #tpu.memory_space<vmem>>, %arg11: memref<32x16xbf16, #tpu.memory_space<vmem>>, %arg12: memref<1x16xf32, #tpu.memory_space<vmem>>, %arg13: memref<2x8x32xf32, #tpu.memory_space<vmem>>) attributes {dimension_semantics = [], scalar_prefetch = 0 : i64, scratch_operands = 0 : i64, tpu.core_type = #tpu.core_type<tc>} {
    %c0 = arith.constant 0 : index
    %c0_0 = arith.constant 0 : index
    %c0_1 = arith.constant 0 : index
    %0 = vector.load %arg1[%c0, %c0_0, %c0_1] : memref<2x8x1xf32, #tpu.memory_space<vmem>>, vector<2x8x1xf32>
    %c0_2 = arith.constant 0 : index
    %c0_3 = arith.constant 0 : index
    %c0_4 = arith.constant 0 : index
    %1 = vector.load %arg0[%c0_2, %c0_3, %c0_4] : memref<2x8x32xf32, #tpu.memory_space<vmem>>, vector<2x8x32xf32>
    %2 = vector.extract_strided_slice %1 {offsets = [0, 0, 0], sizes = [2, 8, 16], strides = [1, 1, 1]} : vector<2x8x32xf32> to vector<2x8x16xf32>
    %3 = vector.extract_strided_slice %1 {offsets = [0, 0, 16], sizes = [2, 8, 16], strides = [1, 1, 1]} : vector<2x8x32xf32> to vector<2x8x16xf32>
    %4 = vector.shape_cast %2 : vector<2x8x16xf32> to vector<16x16xf32>
    %5 = arith.truncf %4 : vector<16x16xf32> to vector<16x16xbf16>
    %c0_5 = arith.constant 0 : index
    %c0_6 = arith.constant 0 : index
    %6 = vector.load %arg3[%c0_5, %c0_6] : memref<16x32xbf16, #tpu.memory_space<vmem>>, vector<16x32xbf16>
    %cst = arith.constant dense<0.000000e+00> : vector<16x32xf32>
    %7 = tpu.matmul %5, %6, %cst {dimension_numbers = #tpu.dot_dimension_numbers<[1], [0], [0], [1], [0, 0, 1, 1], [], []>} : vector<16x16xbf16>, vector<16x32xbf16>, vector<16x32xf32> -> vector<16x32xf32>
    %c0_7 = arith.constant 0 : index
    %c0_8 = arith.constant 0 : index
    %8 = vector.load %arg4[%c0_7, %c0_8] : memref<1x32xf32, #tpu.memory_space<vmem>>, vector<1x32xf32>
    %9 = vector.broadcast %8 : vector<1x32xf32> to vector<16x32xf32>
    %10 = arith.addf %7, %9 : vector<16x32xf32>
    %11 = vector.shape_cast %10 : vector<16x32xf32> to vector<2x8x32xf32>
    %12 = vector.broadcast %0 : vector<2x8x1xf32> to vector<2x8x32xf32>
    %13 = arith.mulf %11, %12 : vector<2x8x32xf32>
    %c0_9 = arith.constant 0 : index
    %c0_10 = arith.constant 0 : index
    %14 = vector.load %arg2[%c0_9, %c0_10] : memref<2x16xf32, #tpu.memory_space<vmem>>, vector<2x16xf32>
    %cst_11 = arith.constant 0.000000e+00 : f32
    %15 = vector.broadcast %cst_11 : f32 to vector<2x2x32xf32>
    %16 = arith.truncf %14 : vector<2x16xf32> to vector<2x16xbf16>
    %cst_12 = arith.constant 0.000000e+00 : f32
    %17 = vector.broadcast %cst_12 : f32 to vector<2x8x32xf32>
    %c0_i32 = arith.constant 0 : i32
    %c3_i32 = arith.constant 3 : i32
    %18 = arith.addi %c0_i32, %c3_i32 : i32
    %c1_i32 = arith.constant 1 : i32
    %19:2 = scf.for %arg14 = %c0_i32 to %18 step %c1_i32 iter_args(%arg15 = %13, %arg16 = %17) -> (vector<2x8x32xf32>, vector<2x8x32xf32>)  : i32 {
      %37 = tpu.concatenate %15, %arg15, %15 in 1 : vector<2x2x32xf32>, vector<2x8x32xf32>, vector<2x2x32xf32> -> vector<2x12x32xf32>
      %38 = vector.extract_strided_slice %37 {offsets = [0, 0, 0], sizes = [2, 8, 32], strides = [1, 1, 1]} : vector<2x12x32xf32> to vector<2x8x32xf32>
      %39 = vector.extract_strided_slice %37 {offsets = [0, 1, 0], sizes = [2, 8, 32], strides = [1, 1, 1]} : vector<2x12x32xf32> to vector<2x8x32xf32>
      %40 = vector.extract_strided_slice %37 {offsets = [0, 2, 0], sizes = [2, 8, 32], strides = [1, 1, 1]} : vector<2x12x32xf32> to vector<2x8x32xf32>
      %41 = vector.extract_strided_slice %37 {offsets = [0, 3, 0], sizes = [2, 8, 32], strides = [1, 1, 1]} : vector<2x12x32xf32> to vector<2x8x32xf32>
      %42 = vector.extract_strided_slice %37 {offsets = [0, 4, 0], sizes = [2, 8, 32], strides = [1, 1, 1]} : vector<2x12x32xf32> to vector<2x8x32xf32>
      %43 = tpu.concatenate %38, %39, %40, %41, %42 in 2 : vector<2x8x32xf32>, vector<2x8x32xf32>, vector<2x8x32xf32>, vector<2x8x32xf32>, vector<2x8x32xf32> -> vector<2x8x160xf32>
      %44 = vector.shape_cast %43 : vector<2x8x160xf32> to vector<16x160xf32>
      %45 = arith.truncf %44 : vector<16x160xf32> to vector<16x160xbf16>
      %46 = arith.index_cast %arg14 : i32 to index
      %c0_22 = arith.constant 0 : index
      %c0_23 = arith.constant 0 : index
      %47 = vector.load %arg5[%46, %c0_22, %c0_23] : memref<3x160x64xbf16, #tpu.memory_space<vmem>>, vector<1x160x64xbf16>
      %48 = vector.shape_cast %47 : vector<1x160x64xbf16> to vector<160x64xbf16>
      %cst_24 = arith.constant dense<0.000000e+00> : vector<16x64xf32>
      %49 = tpu.matmul %45, %48, %cst_24 {dimension_numbers = #tpu.dot_dimension_numbers<[1], [0], [0], [1], [0, 0, 1, 1], [], []>} : vector<16x160xbf16>, vector<160x64xbf16>, vector<16x64xf32> -> vector<16x64xf32>
      %50 = vector.shape_cast %49 : vector<16x64xf32> to vector<2x8x64xf32>
      %51 = arith.index_cast %arg14 : i32 to index
      %c0_25 = arith.constant 0 : index
      %c0_26 = arith.constant 0 : index
      %52 = vector.load %arg9[%51, %c0_25, %c0_26] : memref<3x16x64xbf16, #tpu.memory_space<vmem>>, vector<1x16x64xbf16>
      %53 = vector.shape_cast %52 : vector<1x16x64xbf16> to vector<16x64xbf16>
      %cst_27 = arith.constant dense<0.000000e+00> : vector<2x64xf32>
      %54 = tpu.matmul %16, %53, %cst_27 {dimension_numbers = #tpu.dot_dimension_numbers<[1], [0], [0], [1], [0, 0, 1, 1], [], []>} : vector<2x16xbf16>, vector<16x64xbf16>, vector<2x64xf32> -> vector<2x64xf32>
      %55 = arith.index_cast %arg14 : i32 to index
      %c0_28 = arith.constant 0 : index
      %c0_29 = arith.constant 0 : index
      %56 = vector.load %arg10[%55, %c0_28, %c0_29] : memref<3x1x64xf32, #tpu.memory_space<vmem>>, vector<1x1x64xf32>
      %57 = vector.shape_cast %56 : vector<1x1x64xf32> to vector<1x64xf32>
      %58 = vector.broadcast %57 : vector<1x64xf32> to vector<2x64xf32>
      %59 = arith.addf %54, %58 : vector<2x64xf32>
      %60 = vector.shape_cast %59 : vector<2x64xf32> to vector<2x1x64xf32>
      %61 = arith.index_cast %arg14 : i32 to index
      %c0_30 = arith.constant 0 : index
      %c0_31 = arith.constant 0 : index
      %62 = vector.load %arg6[%61, %c0_30, %c0_31] : memref<3x1x64xf32, #tpu.memory_space<vmem>>, vector<1x1x64xf32>
      %63 = vector.shape_cast %62 : vector<1x1x64xf32> to vector<1x64xf32>
      %64 = vector.shape_cast %63 : vector<1x64xf32> to vector<1x1x64xf32>
      %65 = vector.broadcast %64 : vector<1x1x64xf32> to vector<2x8x64xf32>
      %66 = arith.addf %50, %65 : vector<2x8x64xf32>
      %67 = vector.broadcast %60 : vector<2x1x64xf32> to vector<2x8x64xf32>
      %68 = arith.addf %66, %67 : vector<2x8x64xf32>
      %69 = vector.extract_strided_slice %68 {offsets = [0, 0, 0], sizes = [2, 8, 32], strides = [1, 1, 1]} : vector<2x8x64xf32> to vector<2x8x32xf32>
      %70 = math.tanh %69 : vector<2x8x32xf32>
      %71 = vector.extract_strided_slice %68 {offsets = [0, 0, 32], sizes = [2, 8, 32], strides = [1, 1, 1]} : vector<2x8x64xf32> to vector<2x8x32xf32>
      %72 = arith.negf %71 : vector<2x8x32xf32>
      %73 = math.exp %72 : vector<2x8x32xf32>
      %cst_32 = arith.constant 1.000000e+00 : f32
      %74 = vector.broadcast %cst_32 : f32 to vector<2x8x32xf32>
      %75 = arith.addf %74, %73 : vector<2x8x32xf32>
      %76 = arith.divf %74, %75 : vector<2x8x32xf32>
      %77 = arith.mulf %70, %76 : vector<2x8x32xf32>
      %78 = vector.shape_cast %77 : vector<2x8x32xf32> to vector<16x32xf32>
      %79 = arith.truncf %78 : vector<16x32xf32> to vector<16x32xbf16>
      %80 = arith.index_cast %arg14 : i32 to index
      %c0_33 = arith.constant 0 : index
      %c0_34 = arith.constant 0 : index
      %81 = vector.load %arg7[%80, %c0_33, %c0_34] : memref<3x32x64xbf16, #tpu.memory_space<vmem>>, vector<1x32x64xbf16>
      %82 = vector.shape_cast %81 : vector<1x32x64xbf16> to vector<32x64xbf16>
      %cst_35 = arith.constant dense<0.000000e+00> : vector<16x64xf32>
      %83 = tpu.matmul %79, %82, %cst_35 {dimension_numbers = #tpu.dot_dimension_numbers<[1], [0], [0], [1], [0, 0, 1, 1], [], []>} : vector<16x32xbf16>, vector<32x64xbf16>, vector<16x64xf32> -> vector<16x64xf32>
      %84 = arith.index_cast %arg14 : i32 to index
      %c0_36 = arith.constant 0 : index
      %c0_37 = arith.constant 0 : index
      %85 = vector.load %arg8[%84, %c0_36, %c0_37] : memref<3x1x64xf32, #tpu.memory_space<vmem>>, vector<1x1x64xf32>
      %86 = vector.shape_cast %85 : vector<1x1x64xf32> to vector<1x64xf32>
      %87 = vector.broadcast %86 : vector<1x64xf32> to vector<16x64xf32>
      %88 = arith.addf %83, %87 : vector<16x64xf32>
      %89 = vector.shape_cast %88 : vector<16x64xf32> to vector<2x8x64xf32>
      %90 = vector.extract_strided_slice %89 {offsets = [0, 0, 0], sizes = [2, 8, 32], strides = [1, 1, 1]} : vector<2x8x64xf32> to vector<2x8x32xf32>
      %91 = arith.addf %arg15, %90 : vector<2x8x32xf32>
      %92 = vector.broadcast %0 : vector<2x8x1xf32> to vector<2x8x32xf32>
      %93 = arith.mulf %91, %92 : vector<2x8x32xf32>
      %94 = vector.extract_strided_slice %89 {offsets = [0, 0, 32], sizes = [2, 8, 32], strides = [1, 1, 1]} : vector<2x8x64xf32> to vector<2x8x32xf32>
      %95 = arith.addf %arg16, %94 : vector<2x8x32xf32>
      scf.yield %93, %95 : vector<2x8x32xf32>, vector<2x8x32xf32>
    }
    %c3_i32_13 = arith.constant 3 : i32
    %20 = vector.broadcast %0 : vector<2x8x1xf32> to vector<2x8x32xf32>
    %21 = arith.mulf %19#1, %20 : vector<2x8x32xf32>
    %22 = vector.shape_cast %21 : vector<2x8x32xf32> to vector<16x32xf32>
    %23 = arith.truncf %22 : vector<16x32xf32> to vector<16x32xbf16>
    %c0_14 = arith.constant 0 : index
    %c0_15 = arith.constant 0 : index
    %24 = vector.load %arg11[%c0_14, %c0_15] : memref<32x16xbf16, #tpu.memory_space<vmem>>, vector<32x16xbf16>
    %cst_16 = arith.constant dense<0.000000e+00> : vector<16x16xf32>
    %25 = tpu.matmul %23, %24, %cst_16 {dimension_numbers = #tpu.dot_dimension_numbers<[1], [0], [0], [1], [0, 0, 1, 1], [], []>} : vector<16x32xbf16>, vector<32x16xbf16>, vector<16x16xf32> -> vector<16x16xf32>
    %c0_17 = arith.constant 0 : index
    %c0_18 = arith.constant 0 : index
    %26 = vector.load %arg12[%c0_17, %c0_18] : memref<1x16xf32, #tpu.memory_space<vmem>>, vector<1x16xf32>
    %27 = vector.broadcast %26 : vector<1x16xf32> to vector<16x16xf32>
    %28 = arith.addf %25, %27 : vector<16x16xf32>
    %29 = vector.shape_cast %28 : vector<16x16xf32> to vector<2x8x16xf32>
    %30 = vector.broadcast %0 : vector<2x8x1xf32> to vector<2x8x16xf32>
    %31 = arith.mulf %29, %30 : vector<2x8x16xf32>
    %32 = vector.broadcast %0 : vector<2x8x1xf32> to vector<2x8x16xf32>
    %33 = arith.mulf %3, %32 : vector<2x8x16xf32>
    %34 = arith.addf %31, %33 : vector<2x8x16xf32>
    %35 = tpu.concatenate %2, %34 in 2 : vector<2x8x16xf32>, vector<2x8x16xf32> -> vector<2x8x32xf32>
    %c0_19 = arith.constant 0 : index
    %c0_20 = arith.constant 0 : index
    %c0_21 = arith.constant 0 : index
    %36 = vector.load %arg13[%c0_19, %c0_20, %c0_21] : memref<2x8x32xf32, #tpu.memory_space<vmem>>, vector<2x8x32xf32>
    tpu.vector_store %arg13[%c0_19, %c0_20, %c0_21], %35 {strides = array<i32>} : memref<2x8x32xf32, #tpu.memory_space<vmem>>, vector<2x8x32xf32>,
    return
  }
}

module attributes {stable_mosaic.version = 11 : i64} {
  func.func @_mm_kernel(%arg0: memref<16x768xf32, #tpu.memory_space<vmem>>, %arg1: memref<768x32xbf16, #tpu.memory_space<vmem>>, %arg2: memref<1x32xf32, #tpu.memory_space<vmem>>, %arg3: memref<16x32xf32, #tpu.memory_space<vmem>>) attributes {dimension_semantics = [], scalar_prefetch = 0 : i64, scratch_operands = 0 : i64, tpu.core_type = #tpu.core_type<tc>} {
    %c0 = arith.constant 0 : index
    %c0_0 = arith.constant 0 : index
    %0 = vector.load %arg0[%c0, %c0_0] : memref<16x768xf32, #tpu.memory_space<vmem>>, vector<16x768xf32>
    %1 = arith.truncf %0 : vector<16x768xf32> to vector<16x768xbf16>
    %c0_1 = arith.constant 0 : index
    %c0_2 = arith.constant 0 : index
    %2 = vector.load %arg1[%c0_1, %c0_2] : memref<768x32xbf16, #tpu.memory_space<vmem>>, vector<768x32xbf16>
    %cst = arith.constant dense<0.000000e+00> : vector<16x32xf32>
    %3 = tpu.matmul %1, %2, %cst {dimension_numbers = #tpu.dot_dimension_numbers<[1], [0], [0], [1], [0, 0, 1, 1], [], []>} : vector<16x768xbf16>, vector<768x32xbf16>, vector<16x32xf32> -> vector<16x32xf32>
    %c0_3 = arith.constant 0 : index
    %c0_4 = arith.constant 0 : index
    %4 = vector.load %arg2[%c0_3, %c0_4] : memref<1x32xf32, #tpu.memory_space<vmem>>, vector<1x32xf32>
    %5 = vector.broadcast %4 : vector<1x32xf32> to vector<16x32xf32>
    %6 = arith.addf %3, %5 : vector<16x32xf32>
    %c0_5 = arith.constant 0 : index
    %c0_6 = arith.constant 0 : index
    %7 = vector.load %arg3[%c0_5, %c0_6] : memref<16x32xf32, #tpu.memory_space<vmem>>, vector<16x32xf32>
    tpu.vector_store %arg3[%c0_5, %c0_6], %6 {strides = array<i32>} : memref<16x32xf32, #tpu.memory_space<vmem>>, vector<16x32xf32>,
    return
  }
}

module attributes {stable_mosaic.version = 11 : i64} {
  func.func @_mm_kernel(%arg0: memref<16x32xf32, #tpu.memory_space<vmem>>, %arg1: memref<32x64xbf16, #tpu.memory_space<vmem>>, %arg2: memref<1x64xf32, #tpu.memory_space<vmem>>, %arg3: memref<16x64xf32, #tpu.memory_space<vmem>>) attributes {dimension_semantics = [], scalar_prefetch = 0 : i64, scratch_operands = 0 : i64, tpu.core_type = #tpu.core_type<tc>} {
    %c0 = arith.constant 0 : index
    %c0_0 = arith.constant 0 : index
    %0 = vector.load %arg0[%c0, %c0_0] : memref<16x32xf32, #tpu.memory_space<vmem>>, vector<16x32xf32>
    %1 = arith.truncf %0 : vector<16x32xf32> to vector<16x32xbf16>
    %c0_1 = arith.constant 0 : index
    %c0_2 = arith.constant 0 : index
    %2 = vector.load %arg1[%c0_1, %c0_2] : memref<32x64xbf16, #tpu.memory_space<vmem>>, vector<32x64xbf16>
    %cst = arith.constant dense<0.000000e+00> : vector<16x64xf32>
    %3 = tpu.matmul %1, %2, %cst {dimension_numbers = #tpu.dot_dimension_numbers<[1], [0], [0], [1], [0, 0, 1, 1], [], []>} : vector<16x32xbf16>, vector<32x64xbf16>, vector<16x64xf32> -> vector<16x64xf32>
    %c0_3 = arith.constant 0 : index
    %c0_4 = arith.constant 0 : index
    %4 = vector.load %arg2[%c0_3, %c0_4] : memref<1x64xf32, #tpu.memory_space<vmem>>, vector<1x64xf32>
    %5 = vector.broadcast %4 : vector<1x64xf32> to vector<16x64xf32>
    %6 = arith.addf %3, %5 : vector<16x64xf32>
    %c0_5 = arith.constant 0 : index
    %c0_6 = arith.constant 0 : index
    %7 = vector.load %arg3[%c0_5, %c0_6] : memref<16x64xf32, #tpu.memory_space<vmem>>, vector<16x64xf32>
    tpu.vector_store %arg3[%c0_5, %c0_6], %6 {strides = array<i32>} : memref<16x64xf32, #tpu.memory_space<vmem>>, vector<16x64xf32>,
    return
  }
}

module attributes {stable_mosaic.version = 11 : i64} {
  func.func @_enc_layer_kernel(%arg0: memref<2x8x32xf32, #tpu.memory_space<vmem>>, %arg1: memref<2x8x1xf32, #tpu.memory_space<vmem>>, %arg2: memref<2x1x8xf32, #tpu.memory_space<vmem>>, %arg3: memref<32x96xbf16, #tpu.memory_space<vmem>>, %arg4: memref<1x96xf32, #tpu.memory_space<vmem>>, %arg5: memref<32x32xbf16, #tpu.memory_space<vmem>>, %arg6: memref<1x32xf32, #tpu.memory_space<vmem>>, %arg7: memref<1x32xf32, #tpu.memory_space<vmem>>, %arg8: memref<1x32xf32, #tpu.memory_space<vmem>>, %arg9: memref<96x64xbf16, #tpu.memory_space<vmem>>, %arg10: memref<1x64xf32, #tpu.memory_space<vmem>>, %arg11: memref<192x32xbf16, #tpu.memory_space<vmem>>, %arg12: memref<1x32xf32, #tpu.memory_space<vmem>>, %arg13: memref<1x32xf32, #tpu.memory_space<vmem>>, %arg14: memref<1x32xf32, #tpu.memory_space<vmem>>, %arg15: memref<2x8x32xf32, #tpu.memory_space<vmem>>) attributes {dimension_semantics = [], scalar_prefetch = 0 : i64, scratch_operands = 0 : i64, tpu.core_type = #tpu.core_type<tc>} {
    %c0 = arith.constant 0 : index
    %c0_0 = arith.constant 0 : index
    %c0_1 = arith.constant 0 : index
    %0 = vector.load %arg0[%c0, %c0_0, %c0_1] : memref<2x8x32xf32, #tpu.memory_space<vmem>>, vector<2x8x32xf32>
    %c0_2 = arith.constant 0 : index
    %c0_3 = arith.constant 0 : index
    %c0_4 = arith.constant 0 : index
    %1 = vector.load %arg1[%c0_2, %c0_3, %c0_4] : memref<2x8x1xf32, #tpu.memory_space<vmem>>, vector<2x8x1xf32>
    %c0_5 = arith.constant 0 : index
    %c0_6 = arith.constant 0 : index
    %c0_7 = arith.constant 0 : index
    %2 = vector.load %arg2[%c0_5, %c0_6, %c0_7] : memref<2x1x8xf32, #tpu.memory_space<vmem>>, vector<2x1x8xf32>
    %3 = vector.shape_cast %0 : vector<2x8x32xf32> to vector<16x32xf32>
    %4 = arith.truncf %3 : vector<16x32xf32> to vector<16x32xbf16>
    %c0_8 = arith.constant 0 : index
    %c0_9 = arith.constant 0 : index
    %5 = vector.load %arg3[%c0_8, %c0_9] : memref<32x96xbf16, #tpu.memory_space<vmem>>, vector<32x96xbf16>
    %cst = arith.constant dense<0.000000e+00> : vector<16x96xf32>
    %6 = tpu.matmul %4, %5, %cst {dimension_numbers = #tpu.dot_dimension_numbers<[1], [0], [0], [1], [0, 0, 1, 1], [], []>} : vector<16x32xbf16>, vector<32x96xbf16>, vector<16x96xf32> -> vector<16x96xf32>
    %c0_10 = arith.constant 0 : index
    %c0_11 = arith.constant 0 : index
    %7 = vector.load %arg4[%c0_10, %c0_11] : memref<1x96xf32, #tpu.memory_space<vmem>>, vector<1x96xf32>
    %8 = vector.broadcast %7 : vector<1x96xf32> to vector<16x96xf32>
    %9 = arith.addf %6, %8 : vector<16x96xf32>
    %10 = vector.shape_cast %9 : vector<16x96xf32> to vector<2x8x96xf32>
    %11 = vector.extract_strided_slice %10 {offsets = [0, 0, 0], sizes = [2, 8, 32], strides = [1, 1, 1]} : vector<2x8x96xf32> to vector<2x8x32xf32>
    %12 = vector.extract_strided_slice %10 {offsets = [0, 0, 32], sizes = [2, 8, 32], strides = [1, 1, 1]} : vector<2x8x96xf32> to vector<2x8x32xf32>
    %13 = vector.extract_strided_slice %10 {offsets = [0, 0, 64], sizes = [2, 8, 32], strides = [1, 1, 1]} : vector<2x8x96xf32> to vector<2x8x32xf32>
    %14 = vector.extract_strided_slice %11 {offsets = [0, 0, 0], sizes = [2, 8, 16], strides = [1, 1, 1]} : vector<2x8x32xf32> to vector<2x8x16xf32>
    %15 = arith.truncf %14 : vector<2x8x16xf32> to vector<2x8x16xbf16>
    %16 = vector.extract_strided_slice %12 {offsets = [0, 0, 0], sizes = [2, 8, 16], strides = [1, 1, 1]} : vector<2x8x32xf32> to vector<2x8x16xf32>
    %17 = arith.truncf %16 : vector<2x8x16xf32> to vector<2x8x16xbf16>
    %18 = vector.extract_strided_slice %13 {offsets = [0, 0, 0], sizes = [2, 8, 16], strides = [1, 1, 1]} : vector<2x8x32xf32> to vector<2x8x16xf32>
    %19 = arith.truncf %18 : vector<2x8x16xf32> to vector<2x8x16xbf16>
    "tpu.trace_start"() <{level = 10 : i32, message = "bqd,bkd->bqk"}> : () -> ()
    %cst_12 = arith.constant dense<0.000000e+00> : vector<2x8x8xf32>
    %20 = tpu.matmul %15, %17, %cst_12 {dimension_numbers = #tpu.dot_dimension_numbers<[2], [2], [1], [1], [0, 0, 0, 1, 1, 1], [0], [0]>} : vector<2x8x16xbf16>, vector<2x8x16xbf16>, vector<2x8x8xf32> -> vector<2x8x8xf32>
    "tpu.trace_stop"() : () -> ()
    %cst_13 = arith.constant 2.500000e-01 : f32
    %21 = vector.broadcast %cst_13 : f32 to vector<2x8x8xf32>
    %22 = arith.mulf %20, %21 : vector<2x8x8xf32>
    %cst_14 = arith.constant 0.000000e+00 : f32
    %23 = vector.broadcast %cst_14 : f32 to vector<2x1x8xf32>
    %24 = arith.cmpf ogt, %2, %23 : vector<2x1x8xf32>
    %cst_15 = arith.constant -1.000000e+04 : f32
    %25 = vector.shape_cast %24 : vector<2x1x8xi1> to vector<2x1x8xi1>
    %26 = vector.broadcast %25 : vector<2x1x8xi1> to vector<2x8x8xi1>
    %27 = vector.broadcast %cst_15 : f32 to vector<2x8x8xf32>
    %28 = arith.select %26, %22, %27 : vector<2x8x8xi1>, vector<2x8x8xf32>
    %cst_16 = arith.constant dense<0xFF800000> : vector<2x8xf32>
    %29 = vector.multi_reduction <maximumf>, %28, %cst_16 [2] : vector<2x8x8xf32> to vector<2x8xf32>
    %30 = vector.shape_cast %29 : vector<2x8xf32> to vector<2x8x1xf32>
    %31 = vector.broadcast %30 : vector<2x8x1xf32> to vector<2x8x8xf32>
    %32 = arith.subf %28, %31 : vector<2x8x8xf32>
    %33 = math.exp %32 : vector<2x8x8xf32>
    %cst_17 = arith.constant dense<0.000000e+00> : vector<2x8xf32>
    %34 = vector.multi_reduction <add>, %33, %cst_17 [2] : vector<2x8x8xf32> to vector<2x8xf32>
    %35 = vector.shape_cast %34 : vector<2x8xf32> to vector<2x8x1xf32>
    %36 = tpu.reciprocal %35 {approx = true} : vector<2x8x1xf32> -> vector<2x8x1xf32>
    %37 = vector.broadcast %36 : vector<2x8x1xf32> to vector<2x8x8xf32>
    %38 = arith.mulf %33, %37 : vector<2x8x8xf32>
    %39 = arith.truncf %38 : vector<2x8x8xf32> to vector<2x8x8xbf16>
    "tpu.trace_start"() <{level = 10 : i32, message = "bqk,bkd->bqd"}> : () -> ()
    %cst_18 = arith.constant dense<0.000000e+00> : vector<2x8x16xf32>
    %40 = tpu.matmul %39, %19, %cst_18 {dimension_numbers = #tpu.dot_dimension_numbers<[2], [1], [1], [2], [0, 0, 0, 1, 1, 2], [0], [0]>} : vector<2x8x8xbf16>, vector<2x8x16xbf16>, vector<2x8x16xf32> -> vector<2x8x16xf32>
    "tpu.trace_stop"() : () -> ()
    %41 = vector.extract_strided_slice %11 {offsets = [0, 0, 16], sizes = [2, 8, 16], strides = [1, 1, 1]} : vector<2x8x32xf32> to vector<2x8x16xf32>
    %42 = arith.truncf %41 : vector<2x8x16xf32> to vector<2x8x16xbf16>
    %43 = vector.extract_strided_slice %12 {offsets = [0, 0, 16], sizes = [2, 8, 16], strides = [1, 1, 1]} : vector<2x8x32xf32> to vector<2x8x16xf32>
    %44 = arith.truncf %43 : vector<2x8x16xf32> to vector<2x8x16xbf16>
    %45 = vector.extract_strided_slice %13 {offsets = [0, 0, 16], sizes = [2, 8, 16], strides = [1, 1, 1]} : vector<2x8x32xf32> to vector<2x8x16xf32>
    %46 = arith.truncf %45 : vector<2x8x16xf32> to vector<2x8x16xbf16>
    "tpu.trace_start"() <{level = 10 : i32, message = "bqd,bkd->bqk"}> : () -> ()
    %cst_19 = arith.constant dense<0.000000e+00> : vector<2x8x8xf32>
    %47 = tpu.matmul %42, %44, %cst_19 {dimension_numbers = #tpu.dot_dimension_numbers<[2], [2], [1], [1], [0, 0, 0, 1, 1, 1], [0], [0]>} : vector<2x8x16xbf16>, vector<2x8x16xbf16>, vector<2x8x8xf32> -> vector<2x8x8xf32>
    "tpu.trace_stop"() : () -> ()
    %cst_20 = arith.constant 2.500000e-01 : f32
    %48 = vector.broadcast %cst_20 : f32 to vector<2x8x8xf32>
    %49 = arith.mulf %47, %48 : vector<2x8x8xf32>
    %cst_21 = arith.constant 0.000000e+00 : f32
    %50 = vector.broadcast %cst_21 : f32 to vector<2x1x8xf32>
    %51 = arith.cmpf ogt, %2, %50 : vector<2x1x8xf32>
    %cst_22 = arith.constant -1.000000e+04 : f32
    %52 = vector.shape_cast %51 : vector<2x1x8xi1> to vector<2x1x8xi1>
    %53 = vector.broadcast %52 : vector<2x1x8xi1> to vector<2x8x8xi1>
    %54 = vector.broadcast %cst_22 : f32 to vector<2x8x8xf32>
    %55 = arith.select %53, %49, %54 : vector<2x8x8xi1>, vector<2x8x8xf32>
    %cst_23 = arith.constant dense<0xFF800000> : vector<2x8xf32>
    %56 = vector.multi_reduction <maximumf>, %55, %cst_23 [2] : vector<2x8x8xf32> to vector<2x8xf32>
    %57 = vector.shape_cast %56 : vector<2x8xf32> to vector<2x8x1xf32>
    %58 = vector.broadcast %57 : vector<2x8x1xf32> to vector<2x8x8xf32>
    %59 = arith.subf %55, %58 : vector<2x8x8xf32>
    %60 = math.exp %59 : vector<2x8x8xf32>
    %cst_24 = arith.constant dense<0.000000e+00> : vector<2x8xf32>
    %61 = vector.multi_reduction <add>, %60, %cst_24 [2] : vector<2x8x8xf32> to vector<2x8xf32>
    %62 = vector.shape_cast %61 : vector<2x8xf32> to vector<2x8x1xf32>
    %63 = tpu.reciprocal %62 {approx = true} : vector<2x8x1xf32> -> vector<2x8x1xf32>
    %64 = vector.broadcast %63 : vector<2x8x1xf32> to vector<2x8x8xf32>
    %65 = arith.mulf %60, %64 : vector<2x8x8xf32>
    %66 = arith.truncf %65 : vector<2x8x8xf32> to vector<2x8x8xbf16>
    "tpu.trace_start"() <{level = 10 : i32, message = "bqk,bkd->bqd"}> : () -> ()
    %cst_25 = arith.constant dense<0.000000e+00> : vector<2x8x16xf32>
    %67 = tpu.matmul %66, %46, %cst_25 {dimension_numbers = #tpu.dot_dimension_numbers<[2], [1], [1], [2], [0, 0, 0, 1, 1, 2], [0], [0]>} : vector<2x8x8xbf16>, vector<2x8x16xbf16>, vector<2x8x16xf32> -> vector<2x8x16xf32>
    "tpu.trace_stop"() : () -> ()
    %68 = tpu.concatenate %40, %67 in 2 : vector<2x8x16xf32>, vector<2x8x16xf32> -> vector<2x8x32xf32>
    %69 = vector.shape_cast %68 : vector<2x8x32xf32> to vector<16x32xf32>
    %70 = arith.truncf %69 : vector<16x32xf32> to vector<16x32xbf16>
    %c0_26 = arith.constant 0 : index
    %c0_27 = arith.constant 0 : index
    %71 = vector.load %arg5[%c0_26, %c0_27] : memref<32x32xbf16, #tpu.memory_space<vmem>>, vector<32x32xbf16>
    %cst_28 = arith.constant dense<0.000000e+00> : vector<16x32xf32>
    %72 = tpu.matmul %70, %71, %cst_28 {dimension_numbers = #tpu.dot_dimension_numbers<[1], [0], [0], [1], [0, 0, 1, 1], [], []>} : vector<16x32xbf16>, vector<32x32xbf16>, vector<16x32xf32> -> vector<16x32xf32>
    %c0_29 = arith.constant 0 : index
    %c0_30 = arith.constant 0 : index
    %73 = vector.load %arg6[%c0_29, %c0_30] : memref<1x32xf32, #tpu.memory_space<vmem>>, vector<1x32xf32>
    %74 = vector.broadcast %73 : vector<1x32xf32> to vector<16x32xf32>
    %75 = arith.addf %72, %74 : vector<16x32xf32>
    %76 = vector.shape_cast %75 : vector<16x32xf32> to vector<2x8x32xf32>
    %77 = arith.addf %0, %76 : vector<2x8x32xf32>
    %c0_31 = arith.constant 0 : index
    %c0_32 = arith.constant 0 : index
    %78 = vector.load %arg7[%c0_31, %c0_32] : memref<1x32xf32, #tpu.memory_space<vmem>>, vector<1x32xf32>
    %c0_33 = arith.constant 0 : index
    %c0_34 = arith.constant 0 : index
    %79 = vector.load %arg8[%c0_33, %c0_34] : memref<1x32xf32, #tpu.memory_space<vmem>>, vector<1x32xf32>
    %cst_35 = arith.constant dense<0.000000e+00> : vector<2x8xf32>
    %80 = vector.multi_reduction <add>, %77, %cst_35 [2] : vector<2x8x32xf32> to vector<2x8xf32>
    %81 = vector.shape_cast %80 : vector<2x8xf32> to vector<2x8x1xf32>
    %cst_36 = arith.constant 3.200000e+01 : f32
    %82 = vector.broadcast %cst_36 : f32 to vector<2x8x1xf32>
    %83 = arith.divf %81, %82 : vector<2x8x1xf32>
    %84 = vector.broadcast %83 : vector<2x8x1xf32> to vector<2x8x32xf32>
    %85 = arith.subf %77, %84 : vector<2x8x32xf32>
    %86 = arith.mulf %85, %85 : vector<2x8x32xf32>
    %cst_37 = arith.constant dense<0.000000e+00> : vector<2x8xf32>
    %87 = vector.multi_reduction <add>, %86, %cst_37 [2] : vector<2x8x32xf32> to vector<2x8xf32>
    %88 = vector.shape_cast %87 : vector<2x8xf32> to vector<2x8x1xf32>
    %cst_38 = arith.constant 3.200000e+01 : f32
    %89 = vector.broadcast %cst_38 : f32 to vector<2x8x1xf32>
    %90 = arith.divf %88, %89 : vector<2x8x1xf32>
    %cst_39 = arith.constant 9.99999974E-6 : f32
    %91 = vector.broadcast %cst_39 : f32 to vector<2x8x1xf32>
    %92 = arith.addf %90, %91 : vector<2x8x1xf32>
    %93 = math.rsqrt %92 : vector<2x8x1xf32>
    %94 = vector.broadcast %93 : vector<2x8x1xf32> to vector<2x8x32xf32>
    %95 = arith.mulf %85, %94 : vector<2x8x32xf32>
    %96 = vector.shape_cast %78 : vector<1x32xf32> to vector<1x1x32xf32>
    %97 = vector.broadcast %96 : vector<1x1x32xf32> to vector<2x8x32xf32>
    %98 = arith.mulf %95, %97 : vector<2x8x32xf32>
    %99 = vector.shape_cast %79 : vector<1x32xf32> to vector<1x1x32xf32>
    %100 = vector.broadcast %99 : vector<1x1x32xf32> to vector<2x8x32xf32>
    %101 = arith.addf %98, %100 : vector<2x8x32xf32>
    %102 = vector.broadcast %1 : vector<2x8x1xf32> to vector<2x8x32xf32>
    %103 = arith.mulf %101, %102 : vector<2x8x32xf32>
    %cst_40 = arith.constant 0.000000e+00 : f32
    %104 = vector.broadcast %cst_40 : f32 to vector<2x1x32xf32>
    %cst_41 = arith.constant 0.000000e+00 : f32
    %105 = vector.broadcast %cst_41 : f32 to vector<2x1x32xf32>
    %106 = tpu.concatenate %104, %103, %105 in 1 : vector<2x1x32xf32>, vector<2x8x32xf32>, vector<2x1x32xf32> -> vector<2x10x32xf32>
    %107 = vector.extract_strided_slice %106 {offsets = [0, 0, 0], sizes = [2, 8, 32], strides = [1, 1, 1]} : vector<2x10x32xf32> to vector<2x8x32xf32>
    %108 = vector.extract_strided_slice %106 {offsets = [0, 1, 0], sizes = [2, 8, 32], strides = [1, 1, 1]} : vector<2x10x32xf32> to vector<2x8x32xf32>
    %109 = vector.extract_strided_slice %106 {offsets = [0, 2, 0], sizes = [2, 8, 32], strides = [1, 1, 1]} : vector<2x10x32xf32> to vector<2x8x32xf32>
    %110 = tpu.concatenate %107, %108, %109 in 2 : vector<2x8x32xf32>, vector<2x8x32xf32>, vector<2x8x32xf32> -> vector<2x8x96xf32>
    %111 = vector.shape_cast %110 : vector<2x8x96xf32> to vector<16x96xf32>
    %112 = arith.truncf %111 : vector<16x96xf32> to vector<16x96xbf16>
    %c0_42 = arith.constant 0 : index
    %c0_43 = arith.constant 0 : index
    %113 = vector.load %arg9[%c0_42, %c0_43] : memref<96x64xbf16, #tpu.memory_space<vmem>>, vector<96x64xbf16>
    %cst_44 = arith.constant dense<0.000000e+00> : vector<16x64xf32>
    %114 = tpu.matmul %112, %113, %cst_44 {dimension_numbers = #tpu.dot_dimension_numbers<[1], [0], [0], [1], [0, 0, 1, 1], [], []>} : vector<16x96xbf16>, vector<96x64xbf16>, vector<16x64xf32> -> vector<16x64xf32>
    %c0_45 = arith.constant 0 : index
    %c0_46 = arith.constant 0 : index
    %115 = vector.load %arg10[%c0_45, %c0_46] : memref<1x64xf32, #tpu.memory_space<vmem>>, vector<1x64xf32>
    %116 = vector.broadcast %115 : vector<1x64xf32> to vector<16x64xf32>
    %117 = arith.addf %114, %116 : vector<16x64xf32>
    %cst_47 = arith.constant 0.000000e+00 : f32
    %118 = vector.broadcast %cst_47 : f32 to vector<16x64xf32>
    %119 = arith.maximumf %117, %118 : vector<16x64xf32>
    %120 = vector.shape_cast %119 : vector<16x64xf32> to vector<2x8x64xf32>
    %121 = vector.broadcast %1 : vector<2x8x1xf32> to vector<2x8x64xf32>
    %122 = arith.mulf %120, %121 : vector<2x8x64xf32>
    %cst_48 = arith.constant 0.000000e+00 : f32
    %123 = vector.broadcast %cst_48 : f32 to vector<2x1x64xf32>
    %cst_49 = arith.constant 0.000000e+00 : f32
    %124 = vector.broadcast %cst_49 : f32 to vector<2x1x64xf32>
    %125 = tpu.concatenate %123, %122, %124 in 1 : vector<2x1x64xf32>, vector<2x8x64xf32>, vector<2x1x64xf32> -> vector<2x10x64xf32>
    %126 = vector.extract_strided_slice %125 {offsets = [0, 0, 0], sizes = [2, 8, 64], strides = [1, 1, 1]} : vector<2x10x64xf32> to vector<2x8x64xf32>
    %127 = vector.extract_strided_slice %125 {offsets = [0, 1, 0], sizes = [2, 8, 64], strides = [1, 1, 1]} : vector<2x10x64xf32> to vector<2x8x64xf32>
    %128 = vector.extract_strided_slice %125 {offsets = [0, 2, 0], sizes = [2, 8, 64], strides = [1, 1, 1]} : vector<2x10x64xf32> to vector<2x8x64xf32>
    %129 = tpu.concatenate %126, %127, %128 in 2 : vector<2x8x64xf32>, vector<2x8x64xf32>, vector<2x8x64xf32> -> vector<2x8x192xf32>
    %130 = vector.shape_cast %129 : vector<2x8x192xf32> to vector<16x192xf32>
    %131 = arith.truncf %130 : vector<16x192xf32> to vector<16x192xbf16>
    %c0_50 = arith.constant 0 : index
    %c0_51 = arith.constant 0 : index
    %132 = vector.load %arg11[%c0_50, %c0_51] : memref<192x32xbf16, #tpu.memory_space<vmem>>, vector<192x32xbf16>
    %cst_52 = arith.constant dense<0.000000e+00> : vector<16x32xf32>
    %133 = tpu.matmul %131, %132, %cst_52 {dimension_numbers = #tpu.dot_dimension_numbers<[1], [0], [0], [1], [0, 0, 1, 1], [], []>} : vector<16x192xbf16>, vector<192x32xbf16>, vector<16x32xf32> -> vector<16x32xf32>
    %c0_53 = arith.constant 0 : index
    %c0_54 = arith.constant 0 : index
    %134 = vector.load %arg12[%c0_53, %c0_54] : memref<1x32xf32, #tpu.memory_space<vmem>>, vector<1x32xf32>
    %135 = vector.broadcast %134 : vector<1x32xf32> to vector<16x32xf32>
    %136 = arith.addf %133, %135 : vector<16x32xf32>
    %137 = vector.shape_cast %136 : vector<16x32xf32> to vector<2x8x32xf32>
    %138 = vector.broadcast %1 : vector<2x8x1xf32> to vector<2x8x32xf32>
    %139 = arith.mulf %137, %138 : vector<2x8x32xf32>
    %140 = arith.addf %101, %139 : vector<2x8x32xf32>
    %c0_55 = arith.constant 0 : index
    %c0_56 = arith.constant 0 : index
    %141 = vector.load %arg13[%c0_55, %c0_56] : memref<1x32xf32, #tpu.memory_space<vmem>>, vector<1x32xf32>
    %c0_57 = arith.constant 0 : index
    %c0_58 = arith.constant 0 : index
    %142 = vector.load %arg14[%c0_57, %c0_58] : memref<1x32xf32, #tpu.memory_space<vmem>>, vector<1x32xf32>
    %cst_59 = arith.constant dense<0.000000e+00> : vector<2x8xf32>
    %143 = vector.multi_reduction <add>, %140, %cst_59 [2] : vector<2x8x32xf32> to vector<2x8xf32>
    %144 = vector.shape_cast %143 : vector<2x8xf32> to vector<2x8x1xf32>
    %cst_60 = arith.constant 3.200000e+01 : f32
    %145 = vector.broadcast %cst_60 : f32 to vector<2x8x1xf32>
    %146 = arith.divf %144, %145 : vector<2x8x1xf32>
    %147 = vector.broadcast %146 : vector<2x8x1xf32> to vector<2x8x32xf32>
    %148 = arith.subf %140, %147 : vector<2x8x32xf32>
    %149 = arith.mulf %148, %148 : vector<2x8x32xf32>
    %cst_61 = arith.constant dense<0.000000e+00> : vector<2x8xf32>
    %150 = vector.multi_reduction <add>, %149, %cst_61 [2] : vector<2x8x32xf32> to vector<2x8xf32>
    %151 = vector.shape_cast %150 : vector<2x8xf32> to vector<2x8x1xf32>
    %cst_62 = arith.constant 3.200000e+01 : f32
    %152 = vector.broadcast %cst_62 : f32 to vector<2x8x1xf32>
    %153 = arith.divf %151, %152 : vector<2x8x1xf32>
    %cst_63 = arith.constant 9.99999974E-6 : f32
    %154 = vector.broadcast %cst_63 : f32 to vector<2x8x1xf32>
    %155 = arith.addf %153, %154 : vector<2x8x1xf32>
    %156 = math.rsqrt %155 : vector<2x8x1xf32>
    %157 = vector.broadcast %156 : vector<2x8x1xf32> to vector<2x8x32xf32>
    %158 = arith.mulf %148, %157 : vector<2x8x32xf32>
    %159 = vector.shape_cast %141 : vector<1x32xf32> to vector<1x1x32xf32>
    %160 = vector.broadcast %159 : vector<1x1x32xf32> to vector<2x8x32xf32>
    %161 = arith.mulf %158, %160 : vector<2x8x32xf32>
    %162 = vector.shape_cast %142 : vector<1x32xf32> to vector<1x1x32xf32>
    %163 = vector.broadcast %162 : vector<1x1x32xf32> to vector<2x8x32xf32>
    %164 = arith.addf %161, %163 : vector<2x8x32xf32>
    %c0_64 = arith.constant 0 : index
    %c0_65 = arith.constant 0 : index
    %c0_66 = arith.constant 0 : index
    %165 = vector.load %arg15[%c0_64, %c0_65, %c0_66] : memref<2x8x32xf32, #tpu.memory_space<vmem>>, vector<2x8x32xf32>
    tpu.vector_store %arg15[%c0_64, %c0_65, %c0_66], %164 {strides = array<i32>} : memref<2x8x32xf32, #tpu.memory_space<vmem>>, vector<2x8x32xf32>,
    return
  }
}

</mosaic_0001>

<llo_original>
// kernel: synthesizer_forward.17
$region0: #{synthesizer_forward.17}
  #allocation0 [shape = 'u32[]', space=smem, size = 0x4, offset = 0x4, fixed_abs, tag = 'smem constant byte address 0x4 - core index']
  #allocation1 [shape = 'u32[72,128]{1,0:T(1,128)}', space=vmem, size = 0x9000, scoped, tag = 'internal scratch']
  %s0 = inlined_call_operand.vmem [shape: f32[2,8,64], index: 0, kind: input, shape index: {}]
  %s1 = inlined_call_operand.vmem [shape: f32[2,8,1], index: 1, kind: input, shape index: {}]
  %s2 = inlined_call_operand.vmem [shape: f32[2,16], index: 2, kind: input, shape index: {}]
  %s3 = inlined_call_operand.vmem [shape: bf16[64,32], index: 3, kind: input, shape index: {}]
  %s4 = inlined_call_operand.vmem [shape: f32[1,32], index: 4, kind: input, shape index: {}]
  %s5 = inlined_call_operand.vmem [shape: bf16[16,160,64], index: 5, kind: input, shape index: {}]
  %s6 = inlined_call_operand.vmem [shape: f32[16,1,64], index: 6, kind: input, shape index: {}]
  %s7 = inlined_call_operand.vmem [shape: bf16[16,32,64], index: 7, kind: input, shape index: {}]
  %s8 = inlined_call_operand.vmem [shape: f32[16,1,64], index: 8, kind: input, shape index: {}]
  %s9 = inlined_call_operand.vmem [shape: bf16[16,16,64], index: 9, kind: input, shape index: {}]
  %s10 = inlined_call_operand.vmem [shape: f32[16,1,64], index: 10, kind: input, shape index: {}]
  %s11 = inlined_call_operand.vmem [shape: bf16[32,64], index: 11, kind: input, shape index: {}]
  %s12 = inlined_call_operand.vmem [shape: f32[1,64], index: 12, kind: input, shape index: {}]
  %s13 = inlined_call_operand.vmem [shape: f32[2,8,64], index: 13, kind: output, shape index: {}]
  %s14 = sld [smem:[#allocation0]]
  $region69: #{synthesizer_forward.17} parent=0
    _
  %s16 = ssub.s32 1, %s14
  %s17 = scalar_select 0, %s16, %s14
  // Predicated region
  $region2: #{synthesizer_forward.17} parent=0 // pred_check
    _
  $region3: #{synthesizer_forward.17} parent=0 // pred_check_branch
    %19 = sbr.rel (0) target = $region5
  $region4: #{synthesizer_forward.17} parent=0 // pred_region
    _
  $region5: #{synthesizer_forward.17} parent=0 // pred_fallthru
    _
  // Predicated region
  $region6: #{synthesizer_forward.17} parent=0 // pred_check
    _
  $region7: #{synthesizer_forward.17} parent=0 // pred_check_branch
    %21 = sbr.rel (0) target = $region9
  $region8: #{synthesizer_forward.17} parent=0 // pred_region
    _
  $region9: #{synthesizer_forward.17} parent=0 // pred_fallthru
    _
  // Predicated region
  $region10: #{synthesizer_forward.17} parent=0 // pred_check
    _
  $region11: #{synthesizer_forward.17} parent=0 // pred_check_branch
    %23 = sbr.rel (0) target = $region13
  $region12: #{synthesizer_forward.17} parent=0 // pred_region
    _
  $region13: #{synthesizer_forward.17} parent=0 // pred_fallthru
    _
  // Predicated region
  $region14: #{synthesizer_forward.17} parent=0 // pred_check
    _
  $region15: #{synthesizer_forward.17} parent=0 // pred_check_branch
    %25 = sbr.rel (0) target = $region17
  $region16: #{synthesizer_forward.17} parent=0 // pred_region
    _
  $region17: #{synthesizer_forward.17} parent=0 // pred_fallthru
    _
  // Predicated region
  $region18: #{synthesizer_forward.17} parent=0 // pred_check
    _
  $region19: #{synthesizer_forward.17} parent=0 // pred_check_branch
    %27 = sbr.rel (0) target = $region21
  $region20: #{synthesizer_forward.17} parent=0 // pred_region
    _
  $region21: #{synthesizer_forward.17} parent=0 // pred_fallthru
    _
  // Predicated region
  $region22: #{synthesizer_forward.17} parent=0 // pred_check
    _
  $region23: #{synthesizer_forward.17} parent=0 // pred_check_branch
    %29 = sbr.rel (0) target = $region25
  $region24: #{synthesizer_forward.17} parent=0 // pred_region
    _
  $region25: #{synthesizer_forward.17} parent=0 // pred_fallthru
    _
  // Predicated region
  $region26: #{synthesizer_forward.17} parent=0 // pred_check
    _
  $region27: #{synthesizer_forward.17} parent=0 // pred_check_branch
    %31 = sbr.rel (0) target = $region29
  $region28: #{synthesizer_forward.17} parent=0 // pred_region
    _
  $region29: #{synthesizer_forward.17} parent=0 // pred_fallthru
    _
  // Predicated region
  $region30: #{synthesizer_forward.17} parent=0 // pred_check
    _
  $region31: #{synthesizer_forward.17} parent=0 // pred_check_branch
    %33 = sbr.rel (0) target = $region33
  $region32: #{synthesizer_forward.17} parent=0 // pred_region
    _
  $region33: #{synthesizer_forward.17} parent=0 // pred_fallthru
    _
  // Predicated region
  $region34: #{synthesizer_forward.17} parent=0 // pred_check
    _
  $region35: #{synthesizer_forward.17} parent=0 // pred_check_branch
    %35 = sbr.rel (0) target = $region37
  $region36: #{synthesizer_forward.17} parent=0 // pred_region
    _
  $region37: #{synthesizer_forward.17} parent=0 // pred_fallthru
    _
  // Predicated region
  $region38: #{synthesizer_forward.17} parent=0 // pred_check
    _
  $region39: #{synthesizer_forward.17} parent=0 // pred_check_branch
    %37 = sbr.rel (0) target = $region41
  $region40: #{synthesizer_forward.17} parent=0 // pred_region
    _
  $region41: #{synthesizer_forward.17} parent=0 // pred_fallthru
    _
  // Predicated region
  $region42: #{synthesizer_forward.17} parent=0 // pred_check
    _
  $region43: #{synthesizer_forward.17} parent=0 // pred_check_branch
    %39 = sbr.rel (0) target = $region45
  $region44: #{synthesizer_forward.17} parent=0 // pred_region
    _
  $region45: #{synthesizer_forward.17} parent=0 // pred_fallthru
    _
  // Predicated region
  $region46: #{synthesizer_forward.17} parent=0 // pred_check
    _
  $region47: #{synthesizer_forward.17} parent=0 // pred_check_branch
    %41 = sbr.rel (0) target = $region49
  $region48: #{synthesizer_forward.17} parent=0 // pred_region
    _
  $region49: #{synthesizer_forward.17} parent=0 // pred_fallthru
    _
  // Predicated region
  $region50: #{synthesizer_forward.17} parent=0 // pred_check
    _
  $region51: #{synthesizer_forward.17} parent=0 // pred_check_branch
    %43 = sbr.rel (0) target = $region53
  $region52: #{synthesizer_forward.17} parent=0 // pred_region
    _
  $region53: #{synthesizer_forward.17} parent=0 // pred_fallthru
    _
  %v45 = vld [vmem:[%s1] sm:$0xff]
  %v46 = vld [vmem:[%s1 + $0x8] sm:$0xff]
  %v47 = vld [vmem:[%s0] sm:$0xff]
  %v48 = vld [vmem:[%s0 + $0x8] sm:$0xff]
  %v49 = vpack.c.bf16 %v48, %v47
  %v50 = vld [vmem:[%s3] sm:$0xf]
  %v51 = vld [vmem:[%s3 + $0x4] sm:$0xf]
  %v52 = vld [vmem:[%s3 + $0x8] sm:$0xf]
  %v53 = vld [vmem:[%s3 + $0xc] sm:$0xf]
  %v54 = vld [vmem:[%s3 + $0x10] sm:$0xf]
  %v55 = vld [vmem:[%s3 + $0x14] sm:$0xf]
  %v56 = vld [vmem:[%s3 + $0x18] sm:$0xf]
  %v57 = vld [vmem:[%s3 + $0x1c] sm:$0xf]
  %v58 = vld [vmem:[%s4] sm:$0x1]
  %v60 = vperm.slane %v58, 0
  %v70 = vunpack.c.l.b16 %v50
  %v71 = vunpack.c.l.b16 %v51
  %v72 = vunpack.c.l.b16 %v52
  %v73 = vunpack.c.l.b16 %v53
  %v74 = vunpack.c.l.b16 %v54
  %v75 = vunpack.c.l.b16 %v55
  %v76 = vunpack.c.l.b16 %v56
  %v77 = vunpack.c.l.b16 %v57
  %v78 = vpack.c.b16 %v71, %v70
  %v79 = vpack.c.b16 %v73, %v72
  %v80 = vpack.c.b16 %v75, %v74
  %v81 = vpack.c.b16 %v77, %v76
  %vm86 = vcmask 523264
  %v88 = vsel %vm86, %v49, 0
  %90 = vmatpush.bf16.msra.mxu0 0
  %91 = vmatpush.bf16.msra.mxu0 0
  %92 = vmatpush.bf16.msra.mxu0 0
  %93 = vmatpush.bf16.msra.mxu0 0
  %94 = vmatpush.bf16.msra.mxu0 %v81
  %95 = vmatpush.bf16.msra.mxu0 %v80
  %96 = vmatpush.bf16.msra.mxu0 %v79
  %97 = vmatpush.bf16.msra.mxu0 %v78
  %98 = vmatmul.bf16.gmra.mxu0 %v88
  %v99 = vpop.f32.mrf.mxu0
  %v100 = vadd.f32 %v60, %v99
  %v101 = vpop.f32.mrf.mxu0
  %v102 = vadd.f32 %v60, %v101
  %103 = vdwg.mxu0
  %105 = vset.pattern.permute.xlu0 0
  %106 = vperm.xlu0 %105, %v45
  %v107 = vpop.permute.xlu0 %106
  %110 = vset.pattern.permute.xlu0 0
  %111 = vperm.xlu0 %110, %v46
  %v112 = vpop.permute.xlu0 %111
  %v114 = vmul.f32 %v100, %v107
  %v115 = vmul.f32 %v102, %v112
  %v116 = vld [vmem:[%s2] sm:$0x3]
  %v117 = vpack.c.bf16 %v116, %v116
  loop: start=0, step=1, limit=16
  $region54: #{synthesizer_forward.17} parent=0 // loop_pre_header
    _
  $region55: #{synthesizer_forward.17} parent=0 // loop_header
    %s119 = sphi 0, %s123
    %p120 = scmp.ge.s32.totalorder %s119, 16
    %v124 = vphi %v114, %v457
    %v125 = vphi %v115, %v458
    %v126 = vphi 0.0, %v459
    %v127 = vphi 0.0, %v460
  $region56: #{synthesizer_forward.17} parent=0 // loop_header_branch
    %122 = sbr.rel (%p120) target = $region60
  $region57: #{synthesizer_forward.17} parent=0 // loop_body
    %v130 = vrot.slane %v124, 6
    %v131 = vrot.slane %v125, 6
    %vm134 = vcmask 1041408
    %v135 = vsel %vm134, 0.0, %v130
    %v136 = vsel %vm134, 0.0, %v131
    %v137 = vsel %vm134, %v130, 0.0
    %v138 = vsel %vm134, %v131, 0.0
    %vm143 = vcmask 1046528
    %v144 = vrot.slane %v135, 1
    %v145 = vrot.slane %v137, 1
    %v146 = vsel %vm143, %v144, %v145
    %v147 = vrot.slane %v136, 1
    %v148 = vrot.slane %v138, 1
    %v149 = vsel %vm143, %v147, %v148
    %150 = vrot.lane.b32.xlu0 %v146, 32
    %v151 = vpop.permute.xlu0 %150
    %152 = vrot.lane.b32.xlu0 %v149, 32
    %v153 = vpop.permute.xlu0 %152
    %vm156 = vcmask 1045504
    %v157 = vrot.slane %v135, 2
    %v158 = vrot.slane %v137, 2
    %v159 = vsel %vm156, %v157, %v158
    %v160 = vrot.slane %v136, 2
    %v161 = vrot.slane %v138, 2
    %v162 = vsel %vm156, %v160, %v161
    %163 = vrot.lane.b32.xlu0 %v159, 64
    %v164 = vpop.permute.xlu0 %163
    %165 = vrot.lane.b32.xlu0 %v162, 64
    %v166 = vpop.permute.xlu0 %165
    %vm169 = vcmask 1044480
    %v170 = vrot.slane %v135, 3
    %v171 = vrot.slane %v137, 3
    %v172 = vsel %vm169, %v170, %v171
    %v173 = vrot.slane %v136, 3
    %v174 = vrot.slane %v138, 3
    %v175 = vsel %vm169, %v173, %v174
    %176 = vrot.lane.b32.xlu0 %v172, 96
    %v177 = vpop.permute.xlu0 %176
    %178 = vrot.lane.b32.xlu0 %v175, 96
    %v179 = vpop.permute.xlu0 %178
    %vm182 = vcmask 1043456
    %v183 = vrot.slane %v135, 4
    %v184 = vrot.slane %v137, 4
    %v185 = vsel %vm182, %v183, %v184
    %v186 = vrot.slane %v136, 4
    %v187 = vrot.slane %v138, 4
    %v188 = vsel %vm182, %v186, %v187
    %vm191 = vcmask 261120
    %v192 = vsel %vm191, %v135, %v151
    %v193 = vsel %vm191, %v136, %v153
    %v194 = vsel %vm86, %v192, %v164
    %v195 = vsel %vm86, %v193, %v166
    %vm196 = vcmask 785408
    %v197 = vsel %vm196, %v194, %v177
    %v198 = vsel %vm196, %v195, %v179
    %v199 = vpack.c.bf16 %v198, %v197
    %v200 = vpack.c.bf16 %v188, %v185
    %s201 = smul.u32 %s119, 20
    %s202 = smul.addr %s201, 4
    %s203 = scalar_lea.vmem %s5, %s202
    %v204 = vld [vmem:[%s203] sm:$0xf]
    %v205 = vld [vmem:[%s203 + $0x4] sm:$0xf]
    %v206 = vld [vmem:[%s203 + $0x8] sm:$0xf]
    %v207 = vld [vmem:[%s203 + $0xc] sm:$0xf]
    %v208 = vld [vmem:[%s203 + $0x10] sm:$0xf]
    %v209 = vld [vmem:[%s203 + $0x14] sm:$0xf]
    %v210 = vld [vmem:[%s203 + $0x18] sm:$0xf]
    %v211 = vld [vmem:[%s203 + $0x1c] sm:$0xf]
    %v212 = vld [vmem:[%s203 + $0x20] sm:$0xf]
    %v213 = vld [vmem:[%s203 + $0x24] sm:$0xf]
    %v214 = vld [vmem:[%s203 + $0x28] sm:$0xf]
    %v215 = vld [vmem:[%s203 + $0x2c] sm:$0xf]
    %v216 = vld [vmem:[%s203 + $0x30] sm:$0xf]
    %v217 = vld [vmem:[%s203 + $0x34] sm:$0xf]
    %v218 = vld [vmem:[%s203 + $0x38] sm:$0xf]
    %v219 = vld [vmem:[%s203 + $0x3c] sm:$0xf]
    %v220 = vld [vmem:[%s203 + $0x40] sm:$0xf]
    %v221 = vld [vmem:[%s203 + $0x44] sm:$0xf]
    %v222 = vld [vmem:[%s203 + $0x48] sm:$0xf]
    %v223 = vld [vmem:[%s203 + $0x4c] sm:$0xf]
    %v244 = vunpack.c.l.b16 %v204
    %v245 = vunpack.c.l.b16 %v205
    %v246 = vunpack.c.l.b16 %v206
    %v247 = vunpack.c.l.b16 %v207
    %v248 = vunpack.c.l.b16 %v208
    %v249 = vunpack.c.l.b16 %v209
    %v250 = vunpack.c.l.b16 %v210
    %v251 = vunpack.c.l.b16 %v211
    %v252 = vunpack.c.l.b16 %v212
    %v253 = vunpack.c.l.b16 %v213
    %v254 = vunpack.c.l.b16 %v214
    %v255 = vunpack.c.l.b16 %v215
    %v256 = vunpack.c.l.b16 %v216
    %v257 = vunpack.c.l.b16 %v217
    %v258 = vunpack.c.l.b16 %v218
    %v259 = vunpack.c.l.b16 %v219
    %v260 = vunpack.c.l.b16 %v220
    %v261 = vunpack.c.l.b16 %v221
    %v262 = vunpack.c.l.b16 %v222
    %v263 = vunpack.c.l.b16 %v223
    %v264 = vpack.c.b16 %v245, %v244
    %v265 = vpack.c.b16 %v247, %v246
    %v266 = vpack.c.b16 %v249, %v248
    %v267 = vpack.c.b16 %v251, %v250
    %v268 = vpack.c.b16 %v253, %v252
    %v269 = vpack.c.b16 %v255, %v254
    %v270 = vpack.c.b16 %v257, %v256
    %v271 = vpack.c.b16 %v259, %v258
    %v272 = vpack.c.b16 %v261, %v260
    %v273 = vpack.c.b16 %v263, %v262
    %v285 = vsel %vm191, %v200, 0
    %287 = vmatpush.bf16.msra.mxu0 %v271
    %288 = vmatpush.bf16.msra.mxu0 %v270
    %289 = vmatpush.bf16.msra.mxu0 %v269
    %290 = vmatpush.bf16.msra.mxu0 %v268
    %291 = vmatpush.bf16.msra.mxu0 %v267
    %292 = vmatpush.bf16.msra.mxu0 %v266
    %293 = vmatpush.bf16.msra.mxu0 %v265
    %294 = vmatpush.bf16.msra.mxu0 %v264
    %295 = vmatmul.bf16.gmra.mxu0 %v199
    %v296 = vpop.f32.mrf.mxu0
    %v297 = vadd.f32 0.0, %v296
    %v298 = vpop.f32.mrf.mxu0
    %v299 = vadd.f32 0.0, %v298
    %300 = vdwg.mxu0
    %301 = vmatpush.bf16.msra.mxu0 0
    %302 = vmatpush.bf16.msra.mxu0 0
    %303 = vmatpush.bf16.msra.mxu0 0
    %304 = vmatpush.bf16.msra.mxu0 0
    %305 = vmatpush.bf16.msra.mxu0 0
    %306 = vmatpush.bf16.msra.mxu0 0
    %307 = vmatpush.bf16.msra.mxu0 %v273
    %308 = vmatpush.bf16.msra.mxu0 %v272
    %309 = vmatmul.bf16.gmra.mxu0 %v285
    %v310 = vpop.f32.mrf.mxu0
    %v311 = vadd.f32 %v297, %v310
    %v312 = vpop.f32.mrf.mxu0
    %v313 = vadd.f32 %v299, %v312
    %314 = vdwg.mxu0
    %s315 = smul.u32 %s119, 2
    %s316 = smul.addr %s315, 4
    %s317 = scalar_lea.vmem %s9, %s316
    %v318 = vld [vmem:[%s317] sm:$0xf]
    %v319 = vld [vmem:[%s317 + $0x4] sm:$0xf]
    %s320 = scalar_lea.vmem %s10, %s119
    %v321 = vld [vmem:[%s320] sm:$0x1]
    %v323 = vperm.slane %v321, 0
    %v327 = vunpack.c.l.b16 %v318
    %v328 = vunpack.c.l.b16 %v319
    %v329 = vpack.c.b16 %v328, %v327
    %vm331 = vcmask 130048
    %v333 = vsel %vm331, %v117, 0
    %335 = vmatpush.bf16.msra.mxu0 0
    %336 = vmatpush.bf16.msra.mxu0 0
    %337 = vmatpush.bf16.msra.mxu0 0
    %338 = vmatpush.bf16.msra.mxu0 0
    %339 = vmatpush.bf16.msra.mxu0 0
    %340 = vmatpush.bf16.msra.mxu0 0
    %341 = vmatpush.bf16.msra.mxu0 0
    %342 = vmatpush.bf16.msra.mxu0 %v329
    %343 = vmatmul.bf16.gmra.mxu0 %v333
    %v344 = vpop.f32.mrf.mxu0
    %v345 = vadd.f32 %v323, %v344
    %v346 = vpop.f32.mrf.mxu0
    %347 = vdwg.mxu0
    %v349 = vrot.slane %v345, 1
    %s350 = scalar_lea.vmem %s6, %s119
    %v351 = vld [vmem:[%s350] sm:$0x1]
    %v353 = vperm.slane %v351, 0
    %v355 = vadd.f32 %v311, %v353
    %v356 = vadd.f32 %v313, %v353
    %v357 = vperm.slane %v345, 0
    %v358 = vperm.slane %v349, 0
    %v361 = vadd.f32 %v355, %v357
    %v362 = vadd.f32 %v356, %v358
    %v363 = vtanh.pop %v361
    %v364 = vtanh.pop %v362
    %v365 = vxor.u32 %v361, 2147483648
    %v366 = vxor.u32 %v362, 2147483648
    %v367 = vmul.f32 %v365, 1.442695
    %v368 = vpow.pop %v367
    %v369 = vmul.f32 %v366, 1.442695
    %v370 = vpow.pop %v369
    %v371 = vadd.f32 %v368, 1.0
    %v372 = vadd.f32 %v370, 1.0
    %v373 = vrcp.pop %v371
    %v374 = vmul.f32 %v371, %v373
    %v375 = vsub.f32 1.0, %v374
    %v376 = vmul.f32 %v373, %v375
    %v377 = vadd.f32 %v373, %v376
    %vm378 = vweird.f32 %v371
    %vm379 = vweird.f32 %v373
    %vm380 = vmor %vm378, %vm379
    %v381 = vsel %vm380, %v373, %v377
    %v382 = vand.u32 2147483647, %v371
    %vm383 = vcmp.eq.f32.partialorder %v382, 8.507059e+37
    %v384 = vand.u32 %v371, 2147483648
    %v385 = vor.u32 1.1754944e-38, %v384
    %v386 = vsel %vm383, %v385, %v381
    %v387 = vmul.f32 1.0, %v386
    %v388 = vrcp.pop %v372
    %v389 = vmul.f32 %v372, %v388
    %v390 = vsub.f32 1.0, %v389
    %v391 = vmul.f32 %v388, %v390
    %v392 = vadd.f32 %v388, %v391
    %vm393 = vweird.f32 %v372
    %vm394 = vweird.f32 %v388
    %vm395 = vmor %vm393, %vm394
    %v396 = vsel %vm395, %v388, %v392
    %v397 = vand.u32 2147483647, %v372
    %vm398 = vcmp.eq.f32.partialorder %v397, 8.507059e+37
    %v399 = vand.u32 %v372, 2147483648
    %v400 = vor.u32 1.1754944e-38, %v399
    %v401 = vsel %vm398, %v400, %v396
    %v402 = vmul.f32 1.0, %v401
    %405 = vrot.lane.b32.xlu0 %v387, 96
    %v406 = vpop.permute.xlu0 %405
    %407 = vrot.lane.b32.xlu0 %v402, 96
    %v408 = vpop.permute.xlu0 %407
    %v411 = vmul.f32 %v363, %v406
    %v412 = vmul.f32 %v364, %v408
    %v413 = vpack.c.bf16 %v412, %v411
    %s414 = smul.u32 %s119, 4
    %s415 = smul.addr %s414, 4
    %s416 = scalar_lea.vmem %s7, %s415
    %v417 = vld [vmem:[%s416] sm:$0xf]
    %v418 = vld [vmem:[%s416 + $0x4] sm:$0xf]
    %v419 = vld [vmem:[%s416 + $0x8] sm:$0xf]
    %v420 = vld [vmem:[%s416 + $0xc] sm:$0xf]
    %s421 = scalar_lea.vmem %s8, %s119
    %v422 = vld [vmem:[%s421] sm:$0x1]
    %v424 = vperm.slane %v422, 0
    %v430 = vunpack.c.l.b16 %v417
    %v431 = vunpack.c.l.b16 %v418
    %v432 = vunpack.c.l.b16 %v419
    %v433 = vunpack.c.l.b16 %v420
    %v434 = vpack.c.b16 %v431, %v430
    %v435 = vpack.c.b16 %v433, %v432
    %v439 = vsel %vm191, %v413, 0
    %441 = vmatpush.bf16.msra.mxu0 0
    %442 = vmatpush.bf16.msra.mxu0 0
    %443 = vmatpush.bf16.msra.mxu0 0
    %444 = vmatpush.bf16.msra.mxu0 0
    %445 = vmatpush.bf16.msra.mxu0 0
    %446 = vmatpush.bf16.msra.mxu0 0
    %447 = vmatpush.bf16.msra.mxu0 %v435
    %448 = vmatpush.bf16.msra.mxu0 %v434
    %449 = vmatmul.bf16.gmra.mxu0 %v439
    %v450 = vpop.f32.mrf.mxu0
    %v451 = vadd.f32 %v424, %v450
    %v452 = vpop.f32.mrf.mxu0
    %v453 = vadd.f32 %v424, %v452
    %454 = vdwg.mxu0
    %v455 = vadd.f32 %v124, %v451
    %v456 = vadd.f32 %v125, %v453
    %v457 = vmul.f32 %v455, %v107
    %v458 = vmul.f32 %v456, %v112
    %v459 = vadd.f32 %v126, %v451
    %v460 = vadd.f32 %v127, %v453
  $region58: #{synthesizer_forward.17} parent=0 // loop_footer
    %s123 = sadd.s32 1, %s119
  $region59: #{synthesizer_forward.17} parent=0 // loop_footer_branch
    %118 = sbr.rel target = $region55
  $region60: #{synthesizer_forward.17} parent=0 // loop_exit
    _
  %v461 = vmul.f32 %v126, %v107
  %v462 = vmul.f32 %v127, %v112
  %v463 = vpack.c.bf16 %v462, %v461
  %v464 = vld [vmem:[%s11] sm:$0xf]
  %v465 = vld [vmem:[%s11 + $0x4] sm:$0xf]
  %v466 = vld [vmem:[%s11 + $0x8] sm:$0xf]
  %v467 = vld [vmem:[%s11 + $0xc] sm:$0xf]
  %v468 = vld [vmem:[%s12] sm:$0x1]
  %v470 = vperm.slane %v468, 0
  %473 = vrot.lane.b32.xlu0 %v463, 96
  %v474 = vpop.permute.xlu0 %473
  %v479 = vunpack.c.l.b16 %v464
  %v480 = vunpack.c.l.b16 %v465
  %v481 = vunpack.c.l.b16 %v466
  %v482 = vunpack.c.l.b16 %v467
  %v483 = vpack.c.b16 %v480, %v479
  %v484 = vpack.c.b16 %v482, %v481
  %vm487 = vcmask 261120
  %v489 = vsel %vm487, %v474, 0
  %491 = vmatpush.bf16.msra.mxu0 0
  %492 = vmatpush.bf16.msra.mxu0 0
  %493 = vmatpush.bf16.msra.mxu0 0
  %494 = vmatpush.bf16.msra.mxu0 0
  %495 = vmatpush.bf16.msra.mxu0 0
  %496 = vmatpush.bf16.msra.mxu0 0
  %497 = vmatpush.bf16.msra.mxu0 %v484
  %498 = vmatpush.bf16.msra.mxu0 %v483
  %499 = vmatmul.bf16.gmra.mxu0 %v489
  %v500 = vpop.f32.mrf.mxu0
  %v501 = vadd.f32 %v470, %v500
  %v502 = vpop.f32.mrf.mxu0
  %v503 = vadd.f32 %v470, %v502
  %504 = vdwg.mxu0
  %v505 = vmul.f32 %v501, %v107
  %v506 = vmul.f32 %v503, %v112
  %507 = vst.msk [vmem:[%s13] sm:$0xff] %vm86, %v505
  %508 = vst.msk [vmem:[%s13 + $0x8] sm:$0xff] %vm86, %v506
  // Predicated region
  $region61: #{synthesizer_forward.17} parent=0 // pred_check
    _
  $region62: #{synthesizer_forward.17} parent=0 // pred_check_branch
    %510 = sbr.rel (0) target = $region64
  $region63: #{synthesizer_forward.17} parent=0 // pred_region
    _
  $region64: #{synthesizer_forward.17} parent=0 // pred_fallthru
    _
  // Predicated region
  $region65: #{synthesizer_forward.17} parent=0 // pred_check
    _
  $region66: #{synthesizer_forward.17} parent=0 // pred_check_branch
    %512 = sbr.rel (0) target = $region68
  $region67: #{synthesizer_forward.17} parent=0 // pred_region
    _
  $region68: #{synthesizer_forward.17} parent=0 // pred_fallthru
    _

// kernel: synthesizer_forward.18
$region0: #{synthesizer_forward.18}
  #allocation0 [shape = 'u32[]', space=smem, size = 0x4, offset = 0x4, fixed_abs, tag = 'smem constant byte address 0x4 - core index']
  #allocation1 [shape = 'u32[72,128]{1,0:T(1,128)}', space=vmem, size = 0x9000, scoped, tag = 'internal scratch']
  %s0 = inlined_call_operand.vmem [shape: f32[2,4,32], index: 0, kind: input, shape index: {}]
  %s1 = inlined_call_operand.vmem [shape: bf16[224,32], index: 1, kind: input, shape index: {}]
  %s2 = inlined_call_operand.vmem [shape: f32[1,32], index: 2, kind: input, shape index: {}]
  %s3 = inlined_call_operand.vmem [shape: bf16[2,4,32], index: 3, kind: output, shape index: {}]
  %s4 = sld [smem:[#allocation0]]
  $region22: #{synthesizer_forward.18} parent=0
    _
  %s6 = ssub.s32 1, %s4
  %s7 = scalar_select 0, %s6, %s4
  // Predicated region
  $region2: #{synthesizer_forward.18} parent=0 // pred_check
    _
  $region3: #{synthesizer_forward.18} parent=0 // pred_check_branch
    %9 = sbr.rel (0) target = $region5
  $region4: #{synthesizer_forward.18} parent=0 // pred_region
    _
  $region5: #{synthesizer_forward.18} parent=0 // pred_fallthru
    _
  // Predicated region
  $region6: #{synthesizer_forward.18} parent=0 // pred_check
    _
  $region7: #{synthesizer_forward.18} parent=0 // pred_check_branch
    %11 = sbr.rel (0) target = $region9
  $region8: #{synthesizer_forward.18} parent=0 // pred_region
    _
  $region9: #{synthesizer_forward.18} parent=0 // pred_fallthru
    _
  // Predicated region
  $region10: #{synthesizer_forward.18} parent=0 // pred_check
    _
  $region11: #{synthesizer_forward.18} parent=0 // pred_check_branch
    %13 = sbr.rel (0) target = $region13
  $region12: #{synthesizer_forward.18} parent=0 // pred_region
    _
  $region13: #{synthesizer_forward.18} parent=0 // pred_fallthru
    _
  %v15 = vld [vmem:[%s0] sm:$0xf]
  %v16 = vld [vmem:[%s0 + $0x4] sm:$0xf]
  %v19 = vrot.slane %v15, 5
  %v20 = vrot.slane %v16, 5
  %vm23 = vcmask 1042432
  %v24 = vsel %vm23, 0.0, %v19
  %v25 = vsel %vm23, 0.0, %v20
  %vm26 = vcmask 1046528
  %v27 = vsel %vm26, %v24, 0.0
  %v28 = vsel %vm26, %v25, 0.0
  %v31 = vrot.slane %v27, 1
  %v32 = vrot.slane %v28, 1
  %33 = vrot.lane.b32.xlu0 %v31, 32
  %v34 = vpop.permute.xlu0 %33
  %35 = vrot.lane.b32.xlu0 %v32, 32
  %v36 = vpop.permute.xlu0 %35
  %v39 = vrot.slane %v27, 2
  %v40 = vrot.slane %v28, 2
  %41 = vrot.lane.b32.xlu0 %v39, 64
  %v42 = vpop.permute.xlu0 %41
  %43 = vrot.lane.b32.xlu0 %v40, 64
  %v44 = vpop.permute.xlu0 %43
  %v47 = vrot.slane %v27, 3
  %v48 = vrot.slane %v28, 3
  %49 = vrot.lane.b32.xlu0 %v47, 96
  %v50 = vpop.permute.xlu0 %49
  %51 = vrot.lane.b32.xlu0 %v48, 96
  %v52 = vpop.permute.xlu0 %51
  %v55 = vrot.slane %v27, 4
  %v56 = vrot.slane %v28, 4
  %v60 = vrot.slane %v27, 5
  %v61 = vrot.slane 0.0, 5
  %v62 = vsel %vm23, %v60, %v61
  %v63 = vrot.slane %v28, 5
  %v64 = vsel %vm23, %v63, %v61
  %65 = vrot.lane.b32.xlu0 %v62, 32
  %v66 = vpop.permute.xlu0 %65
  %67 = vrot.lane.b32.xlu0 %v64, 32
  %v68 = vpop.permute.xlu0 %67
  %vm71 = vcmask 1041408
  %v72 = vrot.slane %v27, 6
  %v73 = vrot.slane 0.0, 6
  %v74 = vsel %vm71, %v72, %v73
  %v75 = vrot.slane %v28, 6
  %v76 = vsel %vm71, %v75, %v73
  %77 = vrot.lane.b32.xlu0 %v74, 64
  %v78 = vpop.permute.xlu0 %77
  %79 = vrot.lane.b32.xlu0 %v76, 64
  %v80 = vpop.permute.xlu0 %79
  %vm83 = vcmask 261120
  %v84 = vsel %vm83, %v27, %v34
  %v85 = vsel %vm83, %v28, %v36
  %vm86 = vcmask 523264
  %v87 = vsel %vm86, %v84, %v42
  %v88 = vsel %vm86, %v85, %v44
  %vm89 = vcmask 785408
  %v90 = vsel %vm89, %v87, %v50
  %v91 = vsel %vm89, %v88, %v52
  %v92 = vsel %vm83, %v55, %v66
  %v93 = vsel %vm83, %v56, %v68
  %v94 = vsel %vm86, %v92, %v78
  %v95 = vsel %vm86, %v93, %v80
  %v100 = vrot.slane %v94, 4
  %v101 = vrot.slane %v95, 4
  %vm102 = vcmask 1043456
  %v103 = vsel %vm102, %v90, %v100
  %v104 = vsel %vm102, %v91, %v101
  %105 = vst [vmem:[#allocation1] ss:$2 sm:$0xff] %v103
  %s106 = scalar_lea.vmem [#allocation1], 1
  %107 = vst [vmem:[%s106] ss:$2 sm:$0xff] %v104
  %v108 = vld.sshfl [vmem:[#allocation1] sm:$0xff pattern:$0x75316420]
  %v109 = vld.sshfl [vmem:[#allocation1 + $0x8] sm:$0xff pattern:$0x75316420]
  %v112 = vpack.c.bf16 %v108, %v108
  %v113 = vpack.c.bf16 %v109, %v109
  %v114 = vld [vmem:[%s1] sm:$0xf]
  %v115 = vld [vmem:[%s1 + $0x4] sm:$0xf]
  %v116 = vld [vmem:[%s1 + $0x8] sm:$0xf]
  %v117 = vld [vmem:[%s1 + $0xc] sm:$0xf]
  %v118 = vld [vmem:[%s1 + $0x10] sm:$0xf]
  %v119 = vld [vmem:[%s1 + $0x14] sm:$0xf]
  %v120 = vld [vmem:[%s1 + $0x18] sm:$0xf]
  %v121 = vld [vmem:[%s1 + $0x1c] sm:$0xf]
  %v122 = vld [vmem:[%s1 + $0x20] sm:$0xf]
  %v123 = vld [vmem:[%s1 + $0x24] sm:$0xf]
  %v124 = vld [vmem:[%s1 + $0x28] sm:$0xf]
  %v125 = vld [vmem:[%s1 + $0x2c] sm:$0xf]
  %v126 = vld [vmem:[%s1 + $0x30] sm:$0xf]
  %v127 = vld [vmem:[%s1 + $0x34] sm:$0xf]
  %v128 = vld [vmem:[%s1 + $0x38] sm:$0xf]
  %v129 = vld [vmem:[%s1 + $0x3c] sm:$0xf]
  %v130 = vld [vmem:[%s1 + $0x40] sm:$0xf]
  %v131 = vld [vmem:[%s1 + $0x44] sm:$0xf]
  %v132 = vld [vmem:[%s1 + $0x48] sm:$0xf]
  %v133 = vld [vmem:[%s1 + $0x4c] sm:$0xf]
  %v134 = vld [vmem:[%s1 + $0x50] sm:$0xf]
  %v135 = vld [vmem:[%s1 + $0x54] sm:$0xf]
  %v136 = vld [vmem:[%s1 + $0x58] sm:$0xf]
  %v137 = vld [vmem:[%s1 + $0x5c] sm:$0xf]
  %v138 = vld [vmem:[%s1 + $0x60] sm:$0xf]
  %v139 = vld [vmem:[%s1 + $0x64] sm:$0xf]
  %v140 = vld [vmem:[%s1 + $0x68] sm:$0xf]
  %v141 = vld [vmem:[%s1 + $0x6c] sm:$0xf]
  %v142 = vld [vmem:[%s2] sm:$0x1]
  %v144 = vperm.slane %v142, 0
  %v174 = vunpack.c.l.b16 %v114
  %v175 = vunpack.c.l.b16 %v115
  %v176 = vunpack.c.l.b16 %v116
  %v177 = vunpack.c.l.b16 %v117
  %v178 = vunpack.c.l.b16 %v118
  %v179 = vunpack.c.l.b16 %v119
  %v180 = vunpack.c.l.b16 %v120
  %v181 = vunpack.c.l.b16 %v121
  %v182 = vunpack.c.l.b16 %v122
  %v183 = vunpack.c.l.b16 %v123
  %v184 = vunpack.c.l.b16 %v124
  %v185 = vunpack.c.l.b16 %v125
  %v186 = vunpack.c.l.b16 %v126
  %v187 = vunpack.c.l.b16 %v127
  %v188 = vunpack.c.l.b16 %v128
  %v189 = vunpack.c.l.b16 %v129
  %v190 = vunpack.c.l.b16 %v130
  %v191 = vunpack.c.l.b16 %v131
  %v192 = vunpack.c.l.b16 %v132
  %v193 = vunpack.c.l.b16 %v133
  %v194 = vunpack.c.l.b16 %v134
  %v195 = vunpack.c.l.b16 %v135
  %v196 = vunpack.c.l.b16 %v136
  %v197 = vunpack.c.l.b16 %v137
  %v198 = vunpack.c.l.b16 %v138
  %v199 = vunpack.c.l.b16 %v139
  %v200 = vunpack.c.l.b16 %v140
  %v201 = vunpack.c.l.b16 %v141
  %v202 = vpack.c.b16 %v175, %v174
  %v203 = vpack.c.b16 %v177, %v176
  %v204 = vpack.c.b16 %v179, %v178
  %v205 = vpack.c.b16 %v181, %v180
  %v206 = vpack.c.b16 %v183, %v182
  %v207 = vpack.c.b16 %v185, %v184
  %v208 = vpack.c.b16 %v187, %v186
  %v209 = vpack.c.b16 %v189, %v188
  %v210 = vpack.c.b16 %v191, %v190
  %v211 = vpack.c.b16 %v193, %v192
  %v212 = vpack.c.b16 %v195, %v194
  %v213 = vpack.c.b16 %v197, %v196
  %v214 = vpack.c.b16 %v199, %v198
  %v215 = vpack.c.b16 %v201, %v200
  %v231 = vsel %vm89, %v113, 0
  %233 = vmatpush.bf16.msra.mxu0 %v209
  %234 = vmatpush.bf16.msra.mxu0 %v208
  %235 = vmatpush.bf16.msra.mxu0 %v207
  %236 = vmatpush.bf16.msra.mxu0 %v206
  %237 = vmatpush.bf16.msra.mxu0 %v205
  %238 = vmatpush.bf16.msra.mxu0 %v204
  %239 = vmatpush.bf16.msra.mxu0 %v203
  %240 = vmatpush.bf16.msra.mxu0 %v202
  %241 = vmatmul.bf16.gmra.mxu0 %v112
  %v242 = vpop.f32.mrf.mxu0
  %v243 = vadd.f32 %v144, %v242
  %v244 = vpop.f32.mrf.mxu0
  %245 = vdwg.mxu0
  %246 = vmatpush.bf16.msra.mxu0 0
  %247 = vmatpush.bf16.msra.mxu0 0
  %248 = vmatpush.bf16.msra.mxu0 %v215
  %249 = vmatpush.bf16.msra.mxu0 %v214
  %250 = vmatpush.bf16.msra.mxu0 %v213
  %251 = vmatpush.bf16.msra.mxu0 %v212
  %252 = vmatpush.bf16.msra.mxu0 %v211
  %253 = vmatpush.bf16.msra.mxu0 %v210
  %254 = vmatmul.bf16.gmra.mxu0 %v231
  %v255 = vpop.f32.mrf.mxu0
  %v256 = vadd.f32 %v243, %v255
  %v257 = vpop.f32.mrf.mxu0
  %258 = vdwg.mxu0
  %v260 = vrot.slane %v256, 4
  %v262 = vpack.c.bf16 %v256, %v256
  %v263 = vpack.c.bf16 %v260, %v260
  %vm264 = vcmask 254976
  %265 = vst.msk [vmem:[%s3] sm:$0x3] %vm264, %v262
  %266 = vst.msk [vmem:[%s3 + $0x2] sm:$0x3] %vm264, %v263
  // Predicated region
  $region14: #{synthesizer_forward.18} parent=0 // pred_check
    _
  $region15: #{synthesizer_forward.18} parent=0 // pred_check_branch
    %268 = sbr.rel (0) target = $region17
  $region16: #{synthesizer_forward.18} parent=0 // pred_region
    _
  $region17: #{synthesizer_forward.18} parent=0 // pred_fallthru
    _
  // Predicated region
  $region18: #{synthesizer_forward.18} parent=0 // pred_check
    _
  $region19: #{synthesizer_forward.18} parent=0 // pred_check_branch
    %270 = sbr.rel (0) target = $region21
  $region20: #{synthesizer_forward.18} parent=0 // pred_region
    _
  $region21: #{synthesizer_forward.18} parent=0 // pred_fallthru
    _

// kernel: synthesizer_forward.19
$region0: #{synthesizer_forward.19}
  #allocation0 [shape = 'u32[]', space=smem, size = 0x4, offset = 0x4, fixed_abs, tag = 'smem constant byte address 0x4 - core index']
  #allocation1 [shape = 'u32[72,128]{1,0:T(1,128)}', space=vmem, size = 0x9000, scoped, tag = 'internal scratch']
  %s0 = inlined_call_operand.vmem [shape: f32[2,16], index: 0, kind: input, shape index: {}]
  %s1 = inlined_call_operand.vmem [shape: bf16[16,32], index: 1, kind: input, shape index: {}]
  %s2 = inlined_call_operand.vmem [shape: f32[1,32], index: 2, kind: input, shape index: {}]
  %s3 = inlined_call_operand.vmem [shape: bf16[2,32], index: 3, kind: output, shape index: {}]
  %s4 = sld [smem:[#allocation0]]
  $region22: #{synthesizer_forward.19} parent=0
    _
  %s6 = ssub.s32 1, %s4
  %s7 = scalar_select 0, %s6, %s4
  // Predicated region
  $region2: #{synthesizer_forward.19} parent=0 // pred_check
    _
  $region3: #{synthesizer_forward.19} parent=0 // pred_check_branch
    %9 = sbr.rel (0) target = $region5
  $region4: #{synthesizer_forward.19} parent=0 // pred_region
    _
  $region5: #{synthesizer_forward.19} parent=0 // pred_fallthru
    _
  // Predicated region
  $region6: #{synthesizer_forward.19} parent=0 // pred_check
    _
  $region7: #{synthesizer_forward.19} parent=0 // pred_check_branch
    %11 = sbr.rel (0) target = $region9
  $region8: #{synthesizer_forward.19} parent=0 // pred_region
    _
  $region9: #{synthesizer_forward.19} parent=0 // pred_fallthru
    _
  // Predicated region
  $region10: #{synthesizer_forward.19} parent=0 // pred_check
    _
  $region11: #{synthesizer_forward.19} parent=0 // pred_check_branch
    %13 = sbr.rel (0) target = $region13
  $region12: #{synthesizer_forward.19} parent=0 // pred_region
    _
  $region13: #{synthesizer_forward.19} parent=0 // pred_fallthru
    _
  %v15 = vld [vmem:[%s0] sm:$0x3]
  %v16 = vpack.c.bf16 %v15, %v15
  %v17 = vld [vmem:[%s1] sm:$0xf]
  %v18 = vld [vmem:[%s1 + $0x4] sm:$0xf]
  %v19 = vld [vmem:[%s2] sm:$0x1]
  %v21 = vperm.slane %v19, 0
  %v25 = vunpack.c.l.b16 %v17
  %v26 = vunpack.c.l.b16 %v18
  %v27 = vpack.c.b16 %v26, %v25
  %vm29 = vcmask 130048
  %v31 = vsel %vm29, %v16, 0
  %33 = vmatpush.bf16.msra.mxu0 0
  %34 = vmatpush.bf16.msra.mxu0 0
  %35 = vmatpush.bf16.msra.mxu0 0
  %36 = vmatpush.bf16.msra.mxu0 0
  %37 = vmatpush.bf16.msra.mxu0 0
  %38 = vmatpush.bf16.msra.mxu0 0
  %39 = vmatpush.bf16.msra.mxu0 0
  %40 = vmatpush.bf16.msra.mxu0 %v27
  %41 = vmatmul.bf16.gmra.mxu0 %v31
  %v42 = vpop.f32.mrf.mxu0
  %v43 = vadd.f32 %v21, %v42
  %v44 = vpop.f32.mrf.mxu0
  %45 = vdwg.mxu0
  %v46 = vpack.c.bf16 %v43, %v43
  %vm47 = vcmask 253952
  %48 = vst.msk [vmem:[%s3] sm:$0x1] %vm47, %v46
  // Predicated region
  $region14: #{synthesizer_forward.19} parent=0 // pred_check
    _
  $region15: #{synthesizer_forward.19} parent=0 // pred_check_branch
    %50 = sbr.rel (0) target = $region17
  $region16: #{synthesizer_forward.19} parent=0 // pred_region
    _
  $region17: #{synthesizer_forward.19} parent=0 // pred_fallthru
    _
  // Predicated region
  $region18: #{synthesizer_forward.19} parent=0 // pred_check
    _
  $region19: #{synthesizer_forward.19} parent=0 // pred_check_branch
    %52 = sbr.rel (0) target = $region21
  $region20: #{synthesizer_forward.19} parent=0 // pred_region
    _
  $region21: #{synthesizer_forward.19} parent=0 // pred_fallthru
    _

// kernel: synthesizer_forward.20
$region0: #{synthesizer_forward.20}
  #allocation0 [shape = 'u32[]', space=smem, size = 0x4, offset = 0x4, fixed_abs, tag = 'smem constant byte address 0x4 - core index']
  #allocation1 [shape = 'u32[72,128]{1,0:T(1,128)}', space=vmem, size = 0x9000, scoped, tag = 'internal scratch']
  %s0 = inlined_call_operand.vmem [shape: bf16[2,4,32], index: 0, kind: input, shape index: {}]
  %s1 = inlined_call_operand.vmem [shape: bf16[4,64,16], index: 1, kind: input, shape index: {}]
  %s2 = inlined_call_operand.vmem [shape: f32[1,16], index: 2, kind: input, shape index: {}]
  %s3 = inlined_call_operand.vmem [shape: bf16[2,4,64], index: 3, kind: output, shape index: {}]
  %s4 = sld [smem:[#allocation0]]
  $region22: #{synthesizer_forward.20} parent=0
    _
  %s6 = ssub.s32 1, %s4
  %s7 = scalar_select 0, %s6, %s4
  // Predicated region
  $region2: #{synthesizer_forward.20} parent=0 // pred_check
    _
  $region3: #{synthesizer_forward.20} parent=0 // pred_check_branch
    %9 = sbr.rel (0) target = $region5
  $region4: #{synthesizer_forward.20} parent=0 // pred_region
    _
  $region5: #{synthesizer_forward.20} parent=0 // pred_fallthru
    _
  // Predicated region
  $region6: #{synthesizer_forward.20} parent=0 // pred_check
    _
  $region7: #{synthesizer_forward.20} parent=0 // pred_check_branch
    %11 = sbr.rel (0) target = $region9
  $region8: #{synthesizer_forward.20} parent=0 // pred_region
    _
  $region9: #{synthesizer_forward.20} parent=0 // pred_fallthru
    _
  // Predicated region
  $region10: #{synthesizer_forward.20} parent=0 // pred_check
    _
  $region11: #{synthesizer_forward.20} parent=0 // pred_check_branch
    %13 = sbr.rel (0) target = $region13
  $region12: #{synthesizer_forward.20} parent=0 // pred_region
    _
  $region13: #{synthesizer_forward.20} parent=0 // pred_fallthru
    _
  %v15 = vld [vmem:[%s0] sm:$0x3]
  %v16 = vld [vmem:[%s0 + $0x2] sm:$0x3]
  %v17 = vunpack.c.l.bf16 %v15
  %v18 = vunpack.c.l.bf16 %v16
  %vm19 = vcmp.ge.f32.partialorder %v17, 0.0
  %vm20 = vcmp.ge.f32.partialorder %v18, 0.0
  %v21 = vmul.f32 %v17, 0.1
  %v22 = vmul.f32 %v18, 0.1
  %v23 = vsel %vm19, %v17, %v21
  %v24 = vsel %vm20, %v18, %v22
  %27 = vst [vmem:[#allocation1] ss:$2 sm:$0xff] %v23
  %v28 = vld.sshfl [vmem:[#allocation1] sm:$0xff pattern:$0x75316420]
  %s29 = scalar_lea.vmem [#allocation1], 16
  %30 = vst [vmem:[%s29] ss:$2 sm:$0xff] %v24
  %v31 = vld.sshfl [vmem:[#allocation1 + $0x10] sm:$0xff pattern:$0x75316420]
  %v32 = vrot.slane %v28, 7
  %v33 = vrot.slane %v31, 7
  %vm36 = vcmask 1040384
  %v37 = vsel %vm36, 0.0, %v32
  %v38 = vsel %vm36, 0.0, %v33
  %vm39 = vcmask 1044480
  %v40 = vsel %vm39, %v37, 0.0
  %v41 = vsel %vm39, %v38, 0.0
  %v42 = vld [vmem:[%s2] sm:$0x1]
  %v45 = vrot.slane %v40, 1
  %v46 = vrot.slane %v41, 1
  %47 = vrot.lane.b32.xlu0 %v45, 32
  %v48 = vpop.permute.xlu0 %47
  %49 = vrot.lane.b32.xlu0 %v46, 32
  %v50 = vpop.permute.xlu0 %49
  %vm53 = vcmask 261120
  %v54 = vsel %vm53, %v40, %v48
  %v55 = vsel %vm53, %v41, %v50
  %58 = vst [vmem:[#allocation1] ss:$2 sm:$0xff] %v54
  %s59 = scalar_lea.vmem [#allocation1], 1
  %60 = vst [vmem:[%s59] ss:$2 sm:$0xff] %v55
  %v61 = vld.sshfl [vmem:[#allocation1] sm:$0xff pattern:$0x75316420]
  %v63 = vpack.c.bf16 %v61, %v61
  %v64 = vld [vmem:[%s1] sm:$0xf]
  %v65 = vld [vmem:[%s1 + $0x4] sm:$0xf]
  %v66 = vld [vmem:[%s1 + $0x8] sm:$0xf]
  %v67 = vld [vmem:[%s1 + $0xc] sm:$0xf]
  %v68 = vld [vmem:[%s1 + $0x10] sm:$0xf]
  %v69 = vld [vmem:[%s1 + $0x14] sm:$0xf]
  %v70 = vld [vmem:[%s1 + $0x18] sm:$0xf]
  %v71 = vld [vmem:[%s1 + $0x1c] sm:$0xf]
  %v73 = vperm.slane %v42, 0
  %v83 = vunpack.c.l.b16 %v64
  %v84 = vunpack.c.l.b16 %v65
  %v85 = vunpack.c.l.b16 %v66
  %v86 = vunpack.c.l.b16 %v67
  %v87 = vunpack.c.l.b16 %v68
  %v88 = vunpack.c.l.b16 %v69
  %v89 = vunpack.c.l.b16 %v70
  %v90 = vunpack.c.l.b16 %v71
  %v91 = vpack.c.b16 %v84, %v83
  %v92 = vpack.c.b16 %v86, %v85
  %v93 = vpack.c.b16 %v88, %v87
  %v94 = vpack.c.b16 %v90, %v89
  %vm99 = vcmask 523264
  %v101 = vsel %vm99, %v63, 0
  %103 = vmatpush.bf16.msra.mxu0 0
  %104 = vmatpush.bf16.msra.mxu0 0
  %105 = vmatpush.bf16.msra.mxu0 0
  %106 = vmatpush.bf16.msra.mxu0 0
  %107 = vmatpush.bf16.msra.mxu0 %v94
  %108 = vmatpush.bf16.msra.mxu0 %v93
  %109 = vmatpush.bf16.msra.mxu0 %v92
  %110 = vmatpush.bf16.msra.mxu0 %v91
  %111 = vmatmul.bf16.gmra.mxu0 %v101
  %v112 = vpop.f32.mrf.mxu0
  %v113 = vadd.f32 %v73, %v112
  %v114 = vpop.f32.mrf.mxu0
  %115 = vdwg.mxu0
  %v117 = vrot.slane %v113, 4
  %s119 = scalar_lea.vmem %s1, 32
  %v120 = vld [vmem:[%s119] sm:$0xf]
  %v121 = vld [vmem:[%s119 + $0x4] sm:$0xf]
  %v122 = vld [vmem:[%s119 + $0x8] sm:$0xf]
  %v123 = vld [vmem:[%s119 + $0xc] sm:$0xf]
  %v124 = vld [vmem:[%s119 + $0x10] sm:$0xf]
  %v125 = vld [vmem:[%s119 + $0x14] sm:$0xf]
  %v126 = vld [vmem:[%s119 + $0x18] sm:$0xf]
  %v127 = vld [vmem:[%s119 + $0x1c] sm:$0xf]
  %v136 = vunpack.c.l.b16 %v120
  %v137 = vunpack.c.l.b16 %v121
  %v138 = vunpack.c.l.b16 %v122
  %v139 = vunpack.c.l.b16 %v123
  %v140 = vunpack.c.l.b16 %v124
  %v141 = vunpack.c.l.b16 %v125
  %v142 = vunpack.c.l.b16 %v126
  %v143 = vunpack.c.l.b16 %v127
  %v144 = vpack.c.b16 %v137, %v136
  %v145 = vpack.c.b16 %v139, %v138
  %v146 = vpack.c.b16 %v141, %v140
  %v147 = vpack.c.b16 %v143, %v142
  %152 = vmatpush.bf16.msra.mxu0 0
  %153 = vmatpush.bf16.msra.mxu0 0
  %154 = vmatpush.bf16.msra.mxu0 0
  %155 = vmatpush.bf16.msra.mxu0 0
  %156 = vmatpush.bf16.msra.mxu0 %v147
  %157 = vmatpush.bf16.msra.mxu0 %v146
  %158 = vmatpush.bf16.msra.mxu0 %v145
  %159 = vmatpush.bf16.msra.mxu0 %v144
  %160 = vmatmul.bf16.gmra.mxu0 %v101
  %v161 = vpop.f32.mrf.mxu0
  %v162 = vadd.f32 %v73, %v161
  %v163 = vpop.f32.mrf.mxu0
  %164 = vdwg.mxu0
  %v166 = vrot.slane %v162, 4
  %v167 = vrot.slane %v54, 4
  %v168 = vrot.slane %v55, 4
  %vm169 = vcmask 1042432
  %vm170 = vcmask 1046532
  %vm171 = vmor %vm169, %vm170
  %v172 = vrot.slane %v54, 5
  %v173 = vrot.slane %v172, 4
  %v174 = vrot.slane %v167, 5
  %v175 = vsel %vm171, %v173, %v174
  %v176 = vrot.slane %v55, 5
  %v177 = vrot.slane %v176, 4
  %v178 = vrot.slane %v168, 5
  %v179 = vsel %vm171, %v177, %v178
  %180 = vst [vmem:[#allocation1] ss:$2 sm:$0xff] %v175
  %s181 = scalar_lea.vmem [#allocation1], 1
  %182 = vst [vmem:[%s181] ss:$2 sm:$0xff] %v179
  %v183 = vld.sshfl [vmem:[#allocation1] sm:$0xff pattern:$0x75316420]
  %v185 = vpack.c.bf16 %v183, %v183
  %s186 = scalar_lea.vmem %s1, 64
  %v187 = vld [vmem:[%s186] sm:$0xf]
  %v188 = vld [vmem:[%s186 + $0x4] sm:$0xf]
  %v189 = vld [vmem:[%s186 + $0x8] sm:$0xf]
  %v190 = vld [vmem:[%s186 + $0xc] sm:$0xf]
  %v191 = vld [vmem:[%s186 + $0x10] sm:$0xf]
  %v192 = vld [vmem:[%s186 + $0x14] sm:$0xf]
  %v193 = vld [vmem:[%s186 + $0x18] sm:$0xf]
  %v194 = vld [vmem:[%s186 + $0x1c] sm:$0xf]
  %v203 = vunpack.c.l.b16 %v187
  %v204 = vunpack.c.l.b16 %v188
  %v205 = vunpack.c.l.b16 %v189
  %v206 = vunpack.c.l.b16 %v190
  %v207 = vunpack.c.l.b16 %v191
  %v208 = vunpack.c.l.b16 %v192
  %v209 = vunpack.c.l.b16 %v193
  %v210 = vunpack.c.l.b16 %v194
  %v211 = vpack.c.b16 %v204, %v203
  %v212 = vpack.c.b16 %v206, %v205
  %v213 = vpack.c.b16 %v208, %v207
  %v214 = vpack.c.b16 %v210, %v209
  %v220 = vsel %vm99, %v185, 0
  %222 = vmatpush.bf16.msra.mxu0 0
  %223 = vmatpush.bf16.msra.mxu0 0
  %224 = vmatpush.bf16.msra.mxu0 0
  %225 = vmatpush.bf16.msra.mxu0 0
  %226 = vmatpush.bf16.msra.mxu0 %v214
  %227 = vmatpush.bf16.msra.mxu0 %v213
  %228 = vmatpush.bf16.msra.mxu0 %v212
  %229 = vmatpush.bf16.msra.mxu0 %v211
  %230 = vmatmul.bf16.gmra.mxu0 %v220
  %v231 = vpop.f32.mrf.mxu0
  %v232 = vadd.f32 %v73, %v231
  %v233 = vpop.f32.mrf.mxu0
  %234 = vdwg.mxu0
  %v236 = vrot.slane %v232, 4
  %s237 = scalar_lea.vmem %s1, 96
  %v238 = vld [vmem:[%s237] sm:$0xf]
  %v239 = vld [vmem:[%s237 + $0x4] sm:$0xf]
  %v240 = vld [vmem:[%s237 + $0x8] sm:$0xf]
  %v241 = vld [vmem:[%s237 + $0xc] sm:$0xf]
  %v242 = vld [vmem:[%s237 + $0x10] sm:$0xf]
  %v243 = vld [vmem:[%s237 + $0x14] sm:$0xf]
  %v244 = vld [vmem:[%s237 + $0x18] sm:$0xf]
  %v245 = vld [vmem:[%s237 + $0x1c] sm:$0xf]
  %v254 = vunpack.c.l.b16 %v238
  %v255 = vunpack.c.l.b16 %v239
  %v256 = vunpack.c.l.b16 %v240
  %v257 = vunpack.c.l.b16 %v241
  %v258 = vunpack.c.l.b16 %v242
  %v259 = vunpack.c.l.b16 %v243
  %v260 = vunpack.c.l.b16 %v244
  %v261 = vunpack.c.l.b16 %v245
  %v262 = vpack.c.b16 %v255, %v254
  %v263 = vpack.c.b16 %v257, %v256
  %v264 = vpack.c.b16 %v259, %v258
  %v265 = vpack.c.b16 %v261, %v260
  %270 = vmatpush.bf16.msra.mxu0 0
  %271 = vmatpush.bf16.msra.mxu0 0
  %272 = vmatpush.bf16.msra.mxu0 0
  %273 = vmatpush.bf16.msra.mxu0 0
  %274 = vmatpush.bf16.msra.mxu0 %v265
  %275 = vmatpush.bf16.msra.mxu0 %v264
  %276 = vmatpush.bf16.msra.mxu0 %v263
  %277 = vmatpush.bf16.msra.mxu0 %v262
  %278 = vmatmul.bf16.gmra.mxu0 %v220
  %v279 = vpop.f32.mrf.mxu0
  %v280 = vadd.f32 %v73, %v279
  %v281 = vpop.f32.mrf.mxu0
  %282 = vdwg.mxu0
  %v284 = vrot.slane %v280, 4
  %285 = vst [vmem:[#allocation1] ss:$2 sm:$0xff] %v162
  %v286 = vld.sshfl [vmem:[#allocation1] sm:$0xff pattern:$0x75316420]
  %s287 = scalar_lea.vmem [#allocation1], 16
  %288 = vst [vmem:[%s287] ss:$2 sm:$0xff] %v166
  %v289 = vld.sshfl [vmem:[#allocation1 + $0x10] sm:$0xff pattern:$0x75316420]
  %290 = vrot.lane.b32.xlu0 %v286, 16
  %v291 = vpop.permute.xlu0 %290
  %292 = vrot.lane.b32.xlu0 %v289, 16
  %v293 = vpop.permute.xlu0 %292
  %296 = vst [vmem:[#allocation1] ss:$2 sm:$0xff] %v232
  %v297 = vld.sshfl [vmem:[#allocation1] sm:$0xff pattern:$0x75316420]
  %s298 = scalar_lea.vmem [#allocation1], 16
  %299 = vst [vmem:[%s298] ss:$2 sm:$0xff] %v236
  %v300 = vld.sshfl [vmem:[#allocation1 + $0x10] sm:$0xff pattern:$0x75316420]
  %301 = vrot.lane.b32.xlu0 %v297, 32
  %v302 = vpop.permute.xlu0 %301
  %303 = vrot.lane.b32.xlu0 %v300, 32
  %v304 = vpop.permute.xlu0 %303
  %307 = vst [vmem:[#allocation1] ss:$2 sm:$0xff] %v280
  %v308 = vld.sshfl [vmem:[#allocation1] sm:$0xff pattern:$0x75316420]
  %s309 = scalar_lea.vmem [#allocation1], 16
  %310 = vst [vmem:[%s309] ss:$2 sm:$0xff] %v284
  %v311 = vld.sshfl [vmem:[#allocation1 + $0x10] sm:$0xff pattern:$0x75316420]
  %312 = vrot.lane.b32.xlu0 %v308, 48
  %v313 = vpop.permute.xlu0 %312
  %314 = vrot.lane.b32.xlu0 %v311, 48
  %v315 = vpop.permute.xlu0 %314
  %vm318 = vcmask 130048
  %v319 = vsel %vm318, %v113, %v291
  %v320 = vsel %vm318, %v117, %v293
  %v321 = vsel %vm53, %v319, %v302
  %v322 = vsel %vm53, %v320, %v304
  %vm323 = vcmask 392192
  %v324 = vsel %vm323, %v321, %v313
  %v325 = vsel %vm323, %v322, %v315
  %v326 = vpack.c.bf16 %v324, %v324
  %v327 = vpack.c.bf16 %v325, %v325
  %vm328 = vcmask 517120
  %329 = vst.msk [vmem:[%s3] sm:$0x3] %vm328, %v326
  %330 = vst.msk [vmem:[%s3 + $0x2] sm:$0x3] %vm328, %v327
  // Predicated region
  $region14: #{synthesizer_forward.20} parent=0 // pred_check
    _
  $region15: #{synthesizer_forward.20} parent=0 // pred_check_branch
    %332 = sbr.rel (0) target = $region17
  $region16: #{synthesizer_forward.20} parent=0 // pred_region
    _
  $region17: #{synthesizer_forward.20} parent=0 // pred_fallthru
    _
  // Predicated region
  $region18: #{synthesizer_forward.20} parent=0 // pred_check
    _
  $region19: #{synthesizer_forward.20} parent=0 // pred_check_branch
    %334 = sbr.rel (0) target = $region21
  $region20: #{synthesizer_forward.20} parent=0 // pred_region
    _
  $region21: #{synthesizer_forward.20} parent=0 // pred_fallthru
    _

// kernel: synthesizer_forward.21
$region0: #{synthesizer_forward.21}
  #allocation0 [shape = 'u32[]', space=smem, size = 0x4, offset = 0x4, fixed_abs, tag = 'smem constant byte address 0x4 - core index']
  #allocation1 [shape = 'u32[72,128]{1,0:T(1,128)}', space=vmem, size = 0x9000, scoped, tag = 'internal scratch']
  %s0 = inlined_call_operand.vmem [shape: f32[32,8], index: 0, kind: input, shape index: {}]
  %s1 = inlined_call_operand.vmem [shape: bf16[8,16], index: 1, kind: input, shape index: {}]
  %s2 = inlined_call_operand.vmem [shape: f32[1,16], index: 2, kind: input, shape index: {}]
  %s3 = inlined_call_operand.vmem [shape: bf16[32,16], index: 3, kind: output, shape index: {}]
  %s4 = sld [smem:[#allocation0]]
  $region22: #{synthesizer_forward.21} parent=0
    _
  %s6 = ssub.s32 1, %s4
  %s7 = scalar_select 0, %s6, %s4
  // Predicated region
  $region2: #{synthesizer_forward.21} parent=0 // pred_check
    _
  $region3: #{synthesizer_forward.21} parent=0 // pred_check_branch
    %9 = sbr.rel (0) target = $region5
  $region4: #{synthesizer_forward.21} parent=0 // pred_region
    _
  $region5: #{synthesizer_forward.21} parent=0 // pred_fallthru
    _
  // Predicated region
  $region6: #{synthesizer_forward.21} parent=0 // pred_check
    _
  $region7: #{synthesizer_forward.21} parent=0 // pred_check_branch
    %11 = sbr.rel (0) target = $region9
  $region8: #{synthesizer_forward.21} parent=0 // pred_region
    _
  $region9: #{synthesizer_forward.21} parent=0 // pred_fallthru
    _
  // Predicated region
  $region10: #{synthesizer_forward.21} parent=0 // pred_check
    _
  $region11: #{synthesizer_forward.21} parent=0 // pred_check_branch
    %13 = sbr.rel (0) target = $region13
  $region12: #{synthesizer_forward.21} parent=0 // pred_region
    _
  $region13: #{synthesizer_forward.21} parent=0 // pred_fallthru
    _
  %v15 = vld [vmem:[%s0] sm:$0xff]
  %v16 = vld [vmem:[%s0 + $0x8] sm:$0xff]
  %v17 = vld [vmem:[%s0 + $0x10] sm:$0xff]
  %v18 = vld [vmem:[%s0 + $0x18] sm:$0xff]
  %v19 = vpack.c.bf16 %v16, %v15
  %v20 = vpack.c.bf16 %v18, %v17
  %v21 = vld [vmem:[%s1] sm:$0xf]
  %v22 = vld [vmem:[%s2] sm:$0x1]
  %v24 = vperm.slane %v22, 0
  %vm26 = vcmask 64512
  %v28 = vsel %vm26, %v19, 0
  %v31 = vsel %vm26, %v20, 0
  %vm33 = vcmask 1043456
  %v35 = vsel %vm33, %v21, 0
  %37 = vmatpush.bf16.msra.mxu0 0
  %38 = vmatpush.bf16.msra.mxu0 0
  %39 = vmatpush.bf16.msra.mxu0 0
  %40 = vmatpush.bf16.msra.mxu0 0
  %41 = vmatpush.bf16.msra.mxu0 0
  %42 = vmatpush.bf16.msra.mxu0 0
  %43 = vmatpush.bf16.msra.mxu0 0
  %44 = vmatpush.bf16.msra.mxu0 %v35
  %45 = vmatmul.bf16.gmra.mxu0 %v28
  %v46 = vpop.f32.mrf.mxu0
  %v47 = vadd.f32 %v24, %v46
  %v48 = vpop.f32.mrf.mxu0
  %v49 = vadd.f32 %v24, %v48
  %50 = vmatmul.bf16.gmra.mxu0 %v31
  %v51 = vpop.f32.mrf.mxu0
  %v52 = vadd.f32 %v24, %v51
  %v53 = vpop.f32.mrf.mxu0
  %v54 = vadd.f32 %v24, %v53
  %55 = vdwg.mxu0
  %v56 = vpack.c.bf16 %v47, %v47
  %v57 = vpack.c.bf16 %v49, %v49
  %v58 = vpack.c.bf16 %v52, %v52
  %v59 = vpack.c.bf16 %v54, %v54
  %vm60 = vcmask 125952
  %61 = vst.msk [vmem:[%s3] sm:$0xf] %vm60, %v56
  %62 = vst.msk [vmem:[%s3 + $0x4] sm:$0xf] %vm60, %v57
  %63 = vst.msk [vmem:[%s3 + $0x8] sm:$0xf] %vm60, %v58
  %64 = vst.msk [vmem:[%s3 + $0xc] sm:$0xf] %vm60, %v59
  // Predicated region
  $region14: #{synthesizer_forward.21} parent=0 // pred_check
    _
  $region15: #{synthesizer_forward.21} parent=0 // pred_check_branch
    %66 = sbr.rel (0) target = $region17
  $region16: #{synthesizer_forward.21} parent=0 // pred_region
    _
  $region17: #{synthesizer_forward.21} parent=0 // pred_fallthru
    _
  // Predicated region
  $region18: #{synthesizer_forward.21} parent=0 // pred_check
    _
  $region19: #{synthesizer_forward.21} parent=0 // pred_check_branch
    %68 = sbr.rel (0) target = $region21
  $region20: #{synthesizer_forward.21} parent=0 // pred_region
    _
  $region21: #{synthesizer_forward.21} parent=0 // pred_fallthru
    _

// kernel: synthesizer_forward.23
$region0: #{synthesizer_forward.23}
  #allocation0 [shape = 'u32[]', space=smem, size = 0x4, offset = 0x4, fixed_abs, tag = 'smem constant byte address 0x4 - core index']
  #allocation1 [shape = 'u32[72,128]{1,0:T(1,128)}', space=vmem, size = 0x9000, scoped, tag = 'internal scratch']
  %s0 = inlined_call_operand.vmem [shape: bf16[2,16,16], index: 0, kind: input, shape index: {}]
  %s1 = inlined_call_operand.vmem [shape: bf16[4,32,8], index: 1, kind: input, shape index: {}]
  %s2 = inlined_call_operand.vmem [shape: f32[1,8], index: 2, kind: input, shape index: {}]
  %s3 = inlined_call_operand.vmem [shape: bf16[2,16,32], index: 3, kind: output, shape index: {}]
  %s4 = sld [smem:[#allocation0]]
  $region22: #{synthesizer_forward.23} parent=0
    _
  %s6 = ssub.s32 1, %s4
  %s7 = scalar_select 0, %s6, %s4
  // Predicated region
  $region2: #{synthesizer_forward.23} parent=0 // pred_check
    _
  $region3: #{synthesizer_forward.23} parent=0 // pred_check_branch
    %9 = sbr.rel (0) target = $region5
  $region4: #{synthesizer_forward.23} parent=0 // pred_region
    _
  $region5: #{synthesizer_forward.23} parent=0 // pred_fallthru
    _
  // Predicated region
  $region6: #{synthesizer_forward.23} parent=0 // pred_check
    _
  $region7: #{synthesizer_forward.23} parent=0 // pred_check_branch
    %11 = sbr.rel (0) target = $region9
  $region8: #{synthesizer_forward.23} parent=0 // pred_region
    _
  $region9: #{synthesizer_forward.23} parent=0 // pred_fallthru
    _
  // Predicated region
  $region10: #{synthesizer_forward.23} parent=0 // pred_check
    _
  $region11: #{synthesizer_forward.23} parent=0 // pred_check_branch
    %13 = sbr.rel (0) target = $region13
  $region12: #{synthesizer_forward.23} parent=0 // pred_region
    _
  $region13: #{synthesizer_forward.23} parent=0 // pred_fallthru
    _
  %v15 = vld [vmem:[%s0] sm:$0xf]
  %v16 = vld [vmem:[%s0 + $0x4] sm:$0xf]
  %v17 = vld [vmem:[%s0 + $0x8] sm:$0xf]
  %v18 = vld [vmem:[%s0 + $0xc] sm:$0xf]
  %v19 = vunpack.c.l.bf16 %v15
  %v20 = vunpack.c.l.bf16 %v16
  %v21 = vunpack.c.l.bf16 %v17
  %v22 = vunpack.c.l.bf16 %v18
  %vm23 = vcmp.ge.f32.partialorder %v19, 0.0
  %vm24 = vcmp.ge.f32.partialorder %v20, 0.0
  %vm25 = vcmp.ge.f32.partialorder %v21, 0.0
  %vm26 = vcmp.ge.f32.partialorder %v22, 0.0
  %v27 = vmul.f32 %v19, 0.1
  %v28 = vmul.f32 %v20, 0.1
  %v29 = vmul.f32 %v21, 0.1
  %v30 = vmul.f32 %v22, 0.1
  %v31 = vsel %vm23, %v19, %v27
  %v32 = vsel %vm24, %v20, %v28
  %v33 = vsel %vm25, %v21, %v29
  %v34 = vsel %vm26, %v22, %v30
  %vm39 = vcmask 1040384
  %v40 = vrot.slane %v31, 7
  %v41 = vrot.slane %v32, 7
  %v42 = vsel %vm39, %v40, %v41
  %v43 = vrot.slane %v33, 7
  %v44 = vrot.slane %v34, 7
  %v45 = vsel %vm39, %v43, %v44
  %v52 = vsel %vm39, 0.0, %v40
  %v53 = vsel %vm39, 0.0, %v43
  %v54 = vsel %vm39, %v41, 0.0
  %v55 = vsel %vm39, %v44, 0.0
  %v56 = vld [vmem:[%s2] sm:$0x1]
  %vm61 = vcmask 1046528
  %v62 = vrot.slane %v52, 1
  %v63 = vrot.slane %v42, 1
  %v64 = vsel %vm61, %v62, %v63
  %v65 = vrot.slane %v54, 1
  %v66 = vsel %vm61, %v63, %v65
  %v67 = vrot.slane %v53, 1
  %v68 = vrot.slane %v45, 1
  %v69 = vsel %vm61, %v67, %v68
  %v70 = vrot.slane %v55, 1
  %v71 = vsel %vm61, %v68, %v70
  %72 = vrot.lane.b32.xlu0 %v64, 16
  %v73 = vpop.permute.xlu0 %72
  %74 = vrot.lane.b32.xlu0 %v66, 16
  %v75 = vpop.permute.xlu0 %74
  %76 = vrot.lane.b32.xlu0 %v69, 16
  %v77 = vpop.permute.xlu0 %76
  %78 = vrot.lane.b32.xlu0 %v71, 16
  %v79 = vpop.permute.xlu0 %78
  %vm84 = vcmask 130048
  %v85 = vsel %vm84, %v52, %v73
  %v86 = vsel %vm84, %v42, %v75
  %v87 = vsel %vm84, %v53, %v77
  %v88 = vsel %vm84, %v45, %v79
  %v89 = vpack.c.bf16 %v86, %v85
  %v90 = vpack.c.bf16 %v88, %v87
  %v91 = vld [vmem:[%s1] sm:$0xf]
  %v92 = vld [vmem:[%s1 + $0x4] sm:$0xf]
  %v93 = vld [vmem:[%s1 + $0x8] sm:$0xf]
  %v94 = vld [vmem:[%s1 + $0xc] sm:$0xf]
  %v96 = vperm.slane %v56, 0
  %v102 = vunpack.c.l.b16 %v91
  %v103 = vunpack.c.l.b16 %v92
  %v104 = vunpack.c.l.b16 %v93
  %v105 = vunpack.c.l.b16 %v94
  %v106 = vpack.c.b16 %v103, %v102
  %v107 = vpack.c.b16 %v105, %v104
  %vm110 = vcmask 261120
  %v112 = vsel %vm110, %v89, 0
  %v115 = vsel %vm110, %v90, 0
  %117 = vmatpush.bf16.msra.mxu0 0
  %118 = vmatpush.bf16.msra.mxu0 0
  %119 = vmatpush.bf16.msra.mxu0 0
  %120 = vmatpush.bf16.msra.mxu0 0
  %121 = vmatpush.bf16.msra.mxu0 0
  %122 = vmatpush.bf16.msra.mxu0 0
  %123 = vmatpush.bf16.msra.mxu0 %v107
  %124 = vmatpush.bf16.msra.mxu0 %v106
  %125 = vmatmul.bf16.gmra.mxu0 %v112
  %v126 = vpop.f32.mrf.mxu0
  %v127 = vadd.f32 %v96, %v126
  %v128 = vpop.f32.mrf.mxu0
  %v129 = vadd.f32 %v96, %v128
  %130 = vmatmul.bf16.gmra.mxu0 %v115
  %v131 = vpop.f32.mrf.mxu0
  %v132 = vadd.f32 %v96, %v131
  %v133 = vpop.f32.mrf.mxu0
  %v134 = vadd.f32 %v96, %v133
  %135 = vdwg.mxu0
  %s136 = scalar_lea.vmem %s1, 16
  %v137 = vld [vmem:[%s136] sm:$0xf]
  %v138 = vld [vmem:[%s136 + $0x4] sm:$0xf]
  %v139 = vld [vmem:[%s136 + $0x8] sm:$0xf]
  %v140 = vld [vmem:[%s136 + $0xc] sm:$0xf]
  %v145 = vunpack.c.l.b16 %v137
  %v146 = vunpack.c.l.b16 %v138
  %v147 = vunpack.c.l.b16 %v139
  %v148 = vunpack.c.l.b16 %v140
  %v149 = vpack.c.b16 %v146, %v145
  %v150 = vpack.c.b16 %v148, %v147
  %153 = vmatpush.bf16.msra.mxu0 0
  %154 = vmatpush.bf16.msra.mxu0 0
  %155 = vmatpush.bf16.msra.mxu0 0
  %156 = vmatpush.bf16.msra.mxu0 0
  %157 = vmatpush.bf16.msra.mxu0 0
  %158 = vmatpush.bf16.msra.mxu0 0
  %159 = vmatpush.bf16.msra.mxu0 %v150
  %160 = vmatpush.bf16.msra.mxu0 %v149
  %161 = vmatmul.bf16.gmra.mxu0 %v112
  %v162 = vpop.f32.mrf.mxu0
  %v163 = vadd.f32 %v96, %v162
  %v164 = vpop.f32.mrf.mxu0
  %v165 = vadd.f32 %v96, %v164
  %166 = vmatmul.bf16.gmra.mxu0 %v115
  %v167 = vpop.f32.mrf.mxu0
  %v168 = vadd.f32 %v96, %v167
  %v169 = vpop.f32.mrf.mxu0
  %v170 = vadd.f32 %v96, %v169
  %171 = vdwg.mxu0
  %172 = vrot.lane.b32.xlu0 %v65, 16
  %v173 = vpop.permute.xlu0 %172
  %174 = vrot.lane.b32.xlu0 %v70, 16
  %v175 = vpop.permute.xlu0 %174
  %v178 = vsel %vm84, %v54, %v173
  %v179 = vsel %vm84, %v55, %v175
  %v186 = vrot.slane %v85, 1
  %v187 = vrot.slane %v86, 1
  %v188 = vsel %vm61, %v186, %v187
  %v189 = vrot.slane %v178, 1
  %v190 = vsel %vm61, %v187, %v189
  %v191 = vrot.slane %v87, 1
  %v192 = vrot.slane %v88, 1
  %v193 = vsel %vm61, %v191, %v192
  %v194 = vrot.slane %v179, 1
  %v195 = vsel %vm61, %v192, %v194
  %v200 = vpack.c.bf16 %v190, %v188
  %v201 = vpack.c.bf16 %v195, %v193
  %s202 = scalar_lea.vmem %s1, 32
  %v203 = vld [vmem:[%s202] sm:$0xf]
  %v204 = vld [vmem:[%s202 + $0x4] sm:$0xf]
  %v205 = vld [vmem:[%s202 + $0x8] sm:$0xf]
  %v206 = vld [vmem:[%s202 + $0xc] sm:$0xf]
  %v211 = vunpack.c.l.b16 %v203
  %v212 = vunpack.c.l.b16 %v204
  %v213 = vunpack.c.l.b16 %v205
  %v214 = vunpack.c.l.b16 %v206
  %v215 = vpack.c.b16 %v212, %v211
  %v216 = vpack.c.b16 %v214, %v213
  %v220 = vsel %vm110, %v200, 0
  %v223 = vsel %vm110, %v201, 0
  %225 = vmatpush.bf16.msra.mxu0 0
  %226 = vmatpush.bf16.msra.mxu0 0
  %227 = vmatpush.bf16.msra.mxu0 0
  %228 = vmatpush.bf16.msra.mxu0 0
  %229 = vmatpush.bf16.msra.mxu0 0
  %230 = vmatpush.bf16.msra.mxu0 0
  %231 = vmatpush.bf16.msra.mxu0 %v216
  %232 = vmatpush.bf16.msra.mxu0 %v215
  %233 = vmatmul.bf16.gmra.mxu0 %v220
  %v234 = vpop.f32.mrf.mxu0
  %v235 = vadd.f32 %v96, %v234
  %v236 = vpop.f32.mrf.mxu0
  %v237 = vadd.f32 %v96, %v236
  %238 = vmatmul.bf16.gmra.mxu0 %v223
  %v239 = vpop.f32.mrf.mxu0
  %v240 = vadd.f32 %v96, %v239
  %v241 = vpop.f32.mrf.mxu0
  %v242 = vadd.f32 %v96, %v241
  %243 = vdwg.mxu0
  %s244 = scalar_lea.vmem %s1, 48
  %v245 = vld [vmem:[%s244] sm:$0xf]
  %v246 = vld [vmem:[%s244 + $0x4] sm:$0xf]
  %v247 = vld [vmem:[%s244 + $0x8] sm:$0xf]
  %v248 = vld [vmem:[%s244 + $0xc] sm:$0xf]
  %v253 = vunpack.c.l.b16 %v245
  %v254 = vunpack.c.l.b16 %v246
  %v255 = vunpack.c.l.b16 %v247
  %v256 = vunpack.c.l.b16 %v248
  %v257 = vpack.c.b16 %v254, %v253
  %v258 = vpack.c.b16 %v256, %v255
  %261 = vmatpush.bf16.msra.mxu0 0
  %262 = vmatpush.bf16.msra.mxu0 0
  %263 = vmatpush.bf16.msra.mxu0 0
  %264 = vmatpush.bf16.msra.mxu0 0
  %265 = vmatpush.bf16.msra.mxu0 0
  %266 = vmatpush.bf16.msra.mxu0 0
  %267 = vmatpush.bf16.msra.mxu0 %v258
  %268 = vmatpush.bf16.msra.mxu0 %v257
  %269 = vmatmul.bf16.gmra.mxu0 %v220
  %v270 = vpop.f32.mrf.mxu0
  %v271 = vadd.f32 %v96, %v270
  %v272 = vpop.f32.mrf.mxu0
  %v273 = vadd.f32 %v96, %v272
  %274 = vmatmul.bf16.gmra.mxu0 %v223
  %v275 = vpop.f32.mrf.mxu0
  %v276 = vadd.f32 %v96, %v275
  %v277 = vpop.f32.mrf.mxu0
  %v278 = vadd.f32 %v96, %v277
  %279 = vdwg.mxu0
  %284 = vrot.lane.b32.xlu0 %v163, 8
  %v285 = vpop.permute.xlu0 %284
  %286 = vrot.lane.b32.xlu0 %v165, 8
  %v287 = vpop.permute.xlu0 %286
  %288 = vrot.lane.b32.xlu0 %v168, 8
  %v289 = vpop.permute.xlu0 %288
  %290 = vrot.lane.b32.xlu0 %v170, 8
  %v291 = vpop.permute.xlu0 %290
  %300 = vrot.lane.b32.xlu0 %v235, 16
  %v301 = vpop.permute.xlu0 %300
  %302 = vrot.lane.b32.xlu0 %v237, 16
  %v303 = vpop.permute.xlu0 %302
  %304 = vrot.lane.b32.xlu0 %v240, 16
  %v305 = vpop.permute.xlu0 %304
  %306 = vrot.lane.b32.xlu0 %v242, 16
  %v307 = vpop.permute.xlu0 %306
  %316 = vrot.lane.b32.xlu0 %v271, 24
  %v317 = vpop.permute.xlu0 %316
  %318 = vrot.lane.b32.xlu0 %v273, 24
  %v319 = vpop.permute.xlu0 %318
  %320 = vrot.lane.b32.xlu0 %v276, 24
  %v321 = vpop.permute.xlu0 %320
  %322 = vrot.lane.b32.xlu0 %v278, 24
  %v323 = vpop.permute.xlu0 %322
  %vm328 = vcmask 64512
  %v329 = vsel %vm328, %v127, %v285
  %v330 = vsel %vm328, %v129, %v287
  %v331 = vsel %vm328, %v132, %v289
  %v332 = vsel %vm328, %v134, %v291
  %v333 = vsel %vm84, %v329, %v301
  %v334 = vsel %vm84, %v330, %v303
  %v335 = vsel %vm84, %v331, %v305
  %v336 = vsel %vm84, %v332, %v307
  %vm337 = vcmask 195584
  %v338 = vsel %vm337, %v333, %v317
  %v339 = vsel %vm337, %v334, %v319
  %v340 = vsel %vm337, %v335, %v321
  %v341 = vsel %vm337, %v336, %v323
  %v342 = vpack.c.bf16 %v338, %v338
  %v343 = vpack.c.bf16 %v339, %v339
  %v344 = vpack.c.bf16 %v340, %v340
  %v345 = vpack.c.bf16 %v341, %v341
  %vm346 = vcmask 257024
  %347 = vst.msk [vmem:[%s3] sm:$0xf] %vm346, %v342
  %348 = vst.msk [vmem:[%s3 + $0x4] sm:$0xf] %vm346, %v343
  %349 = vst.msk [vmem:[%s3 + $0x8] sm:$0xf] %vm346, %v344
  %350 = vst.msk [vmem:[%s3 + $0xc] sm:$0xf] %vm346, %v345
  // Predicated region
  $region14: #{synthesizer_forward.23} parent=0 // pred_check
    _
  $region15: #{synthesizer_forward.23} parent=0 // pred_check_branch
    %352 = sbr.rel (0) target = $region17
  $region16: #{synthesizer_forward.23} parent=0 // pred_region
    _
  $region17: #{synthesizer_forward.23} parent=0 // pred_fallthru
    _
  // Predicated region
  $region18: #{synthesizer_forward.23} parent=0 // pred_check
    _
  $region19: #{synthesizer_forward.23} parent=0 // pred_check_branch
    %354 = sbr.rel (0) target = $region21
  $region20: #{synthesizer_forward.23} parent=0 // pred_region
    _
  $region21: #{synthesizer_forward.23} parent=0 // pred_fallthru
    _

// kernel: synthesizer_forward.22
$region0: #{synthesizer_forward.22}
  #allocation0 [shape = 'u32[]', space=smem, size = 0x4, offset = 0x4, fixed_abs, tag = 'smem constant byte address 0x4 - core index']
  #allocation1 [shape = 'u32[72,128]{1,0:T(1,128)}', space=vmem, size = 0x9000, scoped, tag = 'internal scratch']
  %s0 = inlined_call_operand.vmem [shape: bf16[2,16,16], index: 0, kind: input, shape index: {}]
  %s1 = inlined_call_operand.vmem [shape: bf16[2,16,16], index: 1, kind: input, shape index: {}]
  %s2 = inlined_call_operand.vmem [shape: bf16[3,48,16], index: 2, kind: input, shape index: {}]
  %s3 = inlined_call_operand.vmem [shape: f32[3,1,16], index: 3, kind: input, shape index: {}]
  %s4 = inlined_call_operand.vmem [shape: bf16[3,48,16], index: 4, kind: input, shape index: {}]
  %s5 = inlined_call_operand.vmem [shape: f32[3,1,16], index: 5, kind: input, shape index: {}]
  %s6 = inlined_call_operand.vmem [shape: bf16[2,16,16], index: 6, kind: output, shape index: {}]
  %s7 = sld [smem:[#allocation0]]
  $region34: #{synthesizer_forward.22} parent=0
    _
  %s9 = ssub.s32 1, %s7
  %s10 = scalar_select 0, %s9, %s7
  // Predicated region
  $region2: #{synthesizer_forward.22} parent=0 // pred_check
    _
  $region3: #{synthesizer_forward.22} parent=0 // pred_check_branch
    %12 = sbr.rel (0) target = $region5
  $region4: #{synthesizer_forward.22} parent=0 // pred_region
    _
  $region5: #{synthesizer_forward.22} parent=0 // pred_fallthru
    _
  // Predicated region
  $region6: #{synthesizer_forward.22} parent=0 // pred_check
    _
  $region7: #{synthesizer_forward.22} parent=0 // pred_check_branch
    %14 = sbr.rel (0) target = $region9
  $region8: #{synthesizer_forward.22} parent=0 // pred_region
    _
  $region9: #{synthesizer_forward.22} parent=0 // pred_fallthru
    _
  // Predicated region
  $region10: #{synthesizer_forward.22} parent=0 // pred_check
    _
  $region11: #{synthesizer_forward.22} parent=0 // pred_check_branch
    %16 = sbr.rel (0) target = $region13
  $region12: #{synthesizer_forward.22} parent=0 // pred_region
    _
  $region13: #{synthesizer_forward.22} parent=0 // pred_fallthru
    _
  // Predicated region
  $region14: #{synthesizer_forward.22} parent=0 // pred_check
    _
  $region15: #{synthesizer_forward.22} parent=0 // pred_check_branch
    %18 = sbr.rel (0) target = $region17
  $region16: #{synthesizer_forward.22} parent=0 // pred_region
    _
  $region17: #{synthesizer_forward.22} parent=0 // pred_fallthru
    _
  // Predicated region
  $region18: #{synthesizer_forward.22} parent=0 // pred_check
    _
  $region19: #{synthesizer_forward.22} parent=0 // pred_check_branch
    %20 = sbr.rel (0) target = $region21
  $region20: #{synthesizer_forward.22} parent=0 // pred_region
    _
  $region21: #{synthesizer_forward.22} parent=0 // pred_fallthru
    _
  // Predicated region
  $region22: #{synthesizer_forward.22} parent=0 // pred_check
    _
  $region23: #{synthesizer_forward.22} parent=0 // pred_check_branch
    %22 = sbr.rel (0) target = $region25
  $region24: #{synthesizer_forward.22} parent=0 // pred_region
    _
  $region25: #{synthesizer_forward.22} parent=0 // pred_fallthru
    _
  %v24 = vld [vmem:[%s0] sm:$0xf]
  %v25 = vld [vmem:[%s0 + $0x4] sm:$0xf]
  %v26 = vld [vmem:[%s0 + $0x8] sm:$0xf]
  %v27 = vld [vmem:[%s0 + $0xc] sm:$0xf]
  %v28 = vunpack.c.l.bf16 %v24
  %v29 = vunpack.c.l.bf16 %v25
  %v30 = vunpack.c.l.bf16 %v26
  %v31 = vunpack.c.l.bf16 %v27
  %v32 = vld [vmem:[%s1] sm:$0xf]
  %v33 = vld [vmem:[%s1 + $0x4] sm:$0xf]
  %v34 = vld [vmem:[%s1 + $0x8] sm:$0xf]
  %v35 = vld [vmem:[%s1 + $0xc] sm:$0xf]
  %v36 = vunpack.c.l.bf16 %v32
  %v37 = vunpack.c.l.bf16 %v33
  %v38 = vunpack.c.l.bf16 %v34
  %v39 = vunpack.c.l.bf16 %v35
  %v40 = vadd.f32 %v28, %v36
  %v41 = vadd.f32 %v29, %v37
  %v42 = vadd.f32 %v30, %v38
  %v43 = vadd.f32 %v31, %v39
  %v44 = vld [vmem:[%s2] sm:$0xf]
  %v45 = vld [vmem:[%s2 + $0x4] sm:$0xf]
  %v46 = vld [vmem:[%s2 + $0x8] sm:$0xf]
  %v47 = vld [vmem:[%s2 + $0xc] sm:$0xf]
  %v48 = vld [vmem:[%s2 + $0x10] sm:$0xf]
  %v49 = vld [vmem:[%s2 + $0x14] sm:$0xf]
  %v50 = vld [vmem:[%s3] sm:$0x1]
  %vm51 = vcmp.ge.f32.partialorder %v40, 0.0
  %vm52 = vcmp.ge.f32.partialorder %v41, 0.0
  %vm53 = vcmp.ge.f32.partialorder %v42, 0.0
  %vm54 = vcmp.ge.f32.partialorder %v43, 0.0
  %v55 = vmul.f32 %v40, 0.1
  %v56 = vmul.f32 %v41, 0.1
  %v57 = vmul.f32 %v42, 0.1
  %v58 = vmul.f32 %v43, 0.1
  %v59 = vsel %vm51, %v40, %v55
  %v60 = vsel %vm52, %v41, %v56
  %v61 = vsel %vm53, %v42, %v57
  %v62 = vsel %vm54, %v43, %v58
  %vm67 = vcmask 1040384
  %v68 = vrot.slane %v59, 7
  %v69 = vrot.slane %v60, 7
  %v70 = vsel %vm67, %v68, %v69
  %v71 = vrot.slane %v61, 7
  %v72 = vrot.slane %v62, 7
  %v73 = vsel %vm67, %v71, %v72
  %v80 = vsel %vm67, 0.0, %v68
  %v81 = vsel %vm67, 0.0, %v71
  %v82 = vsel %vm67, %v69, 0.0
  %v83 = vsel %vm67, %v72, 0.0
  %vm88 = vcmask 1046528
  %v89 = vrot.slane %v80, 1
  %v90 = vrot.slane %v70, 1
  %v91 = vsel %vm88, %v89, %v90
  %v92 = vrot.slane %v82, 1
  %v93 = vsel %vm88, %v90, %v92
  %v94 = vrot.slane %v81, 1
  %v95 = vrot.slane %v73, 1
  %v96 = vsel %vm88, %v94, %v95
  %v97 = vrot.slane %v83, 1
  %v98 = vsel %vm88, %v95, %v97
  %99 = vrot.lane.b32.xlu0 %v91, 16
  %v100 = vpop.permute.xlu0 %99
  %101 = vrot.lane.b32.xlu0 %v93, 16
  %v102 = vpop.permute.xlu0 %101
  %103 = vrot.lane.b32.xlu0 %v96, 16
  %v104 = vpop.permute.xlu0 %103
  %105 = vrot.lane.b32.xlu0 %v98, 16
  %v106 = vpop.permute.xlu0 %105
  %vm111 = vcmask 1045504
  %v112 = vrot.slane %v80, 2
  %v113 = vrot.slane %v70, 2
  %v114 = vsel %vm111, %v112, %v113
  %v115 = vrot.slane %v82, 2
  %v116 = vsel %vm111, %v113, %v115
  %v117 = vrot.slane %v81, 2
  %v118 = vrot.slane %v73, 2
  %v119 = vsel %vm111, %v117, %v118
  %v120 = vrot.slane %v83, 2
  %v121 = vsel %vm111, %v118, %v120
  %122 = vrot.lane.b32.xlu0 %v114, 32
  %v123 = vpop.permute.xlu0 %122
  %124 = vrot.lane.b32.xlu0 %v116, 32
  %v125 = vpop.permute.xlu0 %124
  %126 = vrot.lane.b32.xlu0 %v119, 32
  %v127 = vpop.permute.xlu0 %126
  %128 = vrot.lane.b32.xlu0 %v121, 32
  %v129 = vpop.permute.xlu0 %128
  %vm134 = vcmask 130048
  %v135 = vsel %vm134, %v80, %v100
  %v136 = vsel %vm134, %v70, %v102
  %v137 = vsel %vm134, %v81, %v104
  %v138 = vsel %vm134, %v73, %v106
  %vm139 = vcmask 261120
  %v140 = vsel %vm139, %v135, %v123
  %v141 = vsel %vm139, %v136, %v125
  %v142 = vsel %vm139, %v137, %v127
  %v143 = vsel %vm139, %v138, %v129
  %v144 = vpack.c.bf16 %v141, %v140
  %v145 = vpack.c.bf16 %v143, %v142
  %v147 = vperm.slane %v50, 0
  %v155 = vunpack.c.l.b16 %v44
  %v156 = vunpack.c.l.b16 %v45
  %v157 = vunpack.c.l.b16 %v46
  %v158 = vunpack.c.l.b16 %v47
  %v159 = vunpack.c.l.b16 %v48
  %v160 = vunpack.c.l.b16 %v49
  %v161 = vpack.c.b16 %v156, %v155
  %v162 = vpack.c.b16 %v158, %v157
  %v163 = vpack.c.b16 %v160, %v159
  %vm167 = vcmask 392192
  %v169 = vsel %vm167, %v144, 0
  %v172 = vsel %vm167, %v145, 0
  %174 = vmatpush.bf16.msra.mxu0 0
  %175 = vmatpush.bf16.msra.mxu0 0
  %176 = vmatpush.bf16.msra.mxu0 0
  %177 = vmatpush.bf16.msra.mxu0 0
  %178 = vmatpush.bf16.msra.mxu0 0
  %179 = vmatpush.bf16.msra.mxu0 %v163
  %180 = vmatpush.bf16.msra.mxu0 %v162
  %181 = vmatpush.bf16.msra.mxu0 %v161
  %182 = vmatmul.bf16.gmra.mxu0 %v169
  %v183 = vpop.f32.mrf.mxu0
  %v184 = vadd.f32 %v147, %v183
  %v185 = vpop.f32.mrf.mxu0
  %v186 = vadd.f32 %v147, %v185
  %187 = vmatmul.bf16.gmra.mxu0 %v172
  %v188 = vpop.f32.mrf.mxu0
  %v189 = vadd.f32 %v147, %v188
  %v190 = vpop.f32.mrf.mxu0
  %v191 = vadd.f32 %v147, %v190
  %192 = vdwg.mxu0
  %v193 = vld [vmem:[%s4] sm:$0xf]
  %v194 = vld [vmem:[%s4 + $0x4] sm:$0xf]
  %v195 = vld [vmem:[%s4 + $0x8] sm:$0xf]
  %v196 = vld [vmem:[%s4 + $0xc] sm:$0xf]
  %v197 = vld [vmem:[%s4 + $0x10] sm:$0xf]
  %v198 = vld [vmem:[%s4 + $0x14] sm:$0xf]
  %v199 = vld [vmem:[%s5] sm:$0x1]
  %vm200 = vcmp.ge.f32.partialorder %v184, 0.0
  %vm201 = vcmp.ge.f32.partialorder %v186, 0.0
  %vm202 = vcmp.ge.f32.partialorder %v189, 0.0
  %vm203 = vcmp.ge.f32.partialorder %v191, 0.0
  %v204 = vmul.f32 %v184, 0.1
  %v205 = vmul.f32 %v186, 0.1
  %v206 = vmul.f32 %v189, 0.1
  %v207 = vmul.f32 %v191, 0.1
  %v208 = vsel %vm200, %v184, %v204
  %v209 = vsel %vm201, %v186, %v205
  %v210 = vsel %vm202, %v189, %v206
  %v211 = vsel %vm203, %v191, %v207
  %v216 = vrot.slane %v208, 7
  %v217 = vrot.slane %v209, 7
  %v218 = vsel %vm67, %v216, %v217
  %v219 = vrot.slane %v210, 7
  %v220 = vrot.slane %v211, 7
  %v221 = vsel %vm67, %v219, %v220
  %v228 = vsel %vm67, 0.0, %v216
  %v229 = vsel %vm67, 0.0, %v219
  %v230 = vsel %vm67, %v217, 0.0
  %v231 = vsel %vm67, %v220, 0.0
  %v236 = vrot.slane %v228, 1
  %v237 = vrot.slane %v218, 1
  %v238 = vsel %vm88, %v236, %v237
  %v239 = vrot.slane %v230, 1
  %v240 = vsel %vm88, %v237, %v239
  %v241 = vrot.slane %v229, 1
  %v242 = vrot.slane %v221, 1
  %v243 = vsel %vm88, %v241, %v242
  %v244 = vrot.slane %v231, 1
  %v245 = vsel %vm88, %v242, %v244
  %246 = vrot.lane.b32.xlu0 %v238, 16
  %v247 = vpop.permute.xlu0 %246
  %248 = vrot.lane.b32.xlu0 %v240, 16
  %v249 = vpop.permute.xlu0 %248
  %250 = vrot.lane.b32.xlu0 %v243, 16
  %v251 = vpop.permute.xlu0 %250
  %252 = vrot.lane.b32.xlu0 %v245, 16
  %v253 = vpop.permute.xlu0 %252
  %v258 = vrot.slane %v228, 2
  %v259 = vrot.slane %v218, 2
  %v260 = vsel %vm111, %v258, %v259
  %v261 = vrot.slane %v230, 2
  %v262 = vsel %vm111, %v259, %v261
  %v263 = vrot.slane %v229, 2
  %v264 = vrot.slane %v221, 2
  %v265 = vsel %vm111, %v263, %v264
  %v266 = vrot.slane %v231, 2
  %v267 = vsel %vm111, %v264, %v266
  %268 = vrot.lane.b32.xlu0 %v260, 32
  %v269 = vpop.permute.xlu0 %268
  %270 = vrot.lane.b32.xlu0 %v262, 32
  %v271 = vpop.permute.xlu0 %270
  %272 = vrot.lane.b32.xlu0 %v265, 32
  %v273 = vpop.permute.xlu0 %272
  %274 = vrot.lane.b32.xlu0 %v267, 32
  %v275 = vpop.permute.xlu0 %274
  %v280 = vsel %vm134, %v228, %v247
  %v281 = vsel %vm134, %v218, %v249
  %v282 = vsel %vm134, %v229, %v251
  %v283 = vsel %vm134, %v221, %v253
  %v284 = vsel %vm139, %v280, %v269
  %v285 = vsel %vm139, %v281, %v271
  %v286 = vsel %vm139, %v282, %v273
  %v287 = vsel %vm139, %v283, %v275
  %v288 = vpack.c.bf16 %v285, %v284
  %v289 = vpack.c.bf16 %v287, %v286
  %v291 = vperm.slane %v199, 0
  %v299 = vunpack.c.l.b16 %v193
  %v300 = vunpack.c.l.b16 %v194
  %v301 = vunpack.c.l.b16 %v195
  %v302 = vunpack.c.l.b16 %v196
  %v303 = vunpack.c.l.b16 %v197
  %v304 = vunpack.c.l.b16 %v198
  %v305 = vpack.c.b16 %v300, %v299
  %v306 = vpack.c.b16 %v302, %v301
  %v307 = vpack.c.b16 %v304, %v303
  %v312 = vsel %vm167, %v288, 0
  %v315 = vsel %vm167, %v289, 0
  %317 = vmatpush.bf16.msra.mxu0 0
  %318 = vmatpush.bf16.msra.mxu0 0
  %319 = vmatpush.bf16.msra.mxu0 0
  %320 = vmatpush.bf16.msra.mxu0 0
  %321 = vmatpush.bf16.msra.mxu0 0
  %322 = vmatpush.bf16.msra.mxu0 %v307
  %323 = vmatpush.bf16.msra.mxu0 %v306
  %324 = vmatpush.bf16.msra.mxu0 %v305
  %325 = vmatmul.bf16.gmra.mxu0 %v312
  %v326 = vpop.f32.mrf.mxu0
  %v327 = vadd.f32 %v291, %v326
  %v328 = vpop.f32.mrf.mxu0
  %v329 = vadd.f32 %v291, %v328
  %330 = vmatmul.bf16.gmra.mxu0 %v315
  %v331 = vpop.f32.mrf.mxu0
  %v332 = vadd.f32 %v291, %v331
  %v333 = vpop.f32.mrf.mxu0
  %v334 = vadd.f32 %v291, %v333
  %335 = vdwg.mxu0
  %v336 = vadd.f32 %v40, %v327
  %v337 = vadd.f32 %v41, %v329
  %v338 = vadd.f32 %v42, %v332
  %v339 = vadd.f32 %v43, %v334
  %s340 = scalar_lea.vmem %s2, 24
  %v341 = vld [vmem:[%s340] sm:$0xf]
  %v342 = vld [vmem:[%s340 + $0x4] sm:$0xf]
  %v343 = vld [vmem:[%s340 + $0x8] sm:$0xf]
  %v344 = vld [vmem:[%s340 + $0xc] sm:$0xf]
  %v345 = vld [vmem:[%s340 + $0x10] sm:$0xf]
  %v346 = vld [vmem:[%s340 + $0x14] sm:$0xf]
  %s347 = scalar_lea.vmem %s3, 1
  %v348 = vld [vmem:[%s347] sm:$0x1]
  %vm349 = vcmp.ge.f32.partialorder %v336, 0.0
  %vm350 = vcmp.ge.f32.partialorder %v337, 0.0
  %vm351 = vcmp.ge.f32.partialorder %v338, 0.0
  %vm352 = vcmp.ge.f32.partialorder %v339, 0.0
  %v353 = vmul.f32 %v336, 0.1
  %v354 = vmul.f32 %v337, 0.1
  %v355 = vmul.f32 %v338, 0.1
  %v356 = vmul.f32 %v339, 0.1
  %v357 = vsel %vm349, %v336, %v353
  %v358 = vsel %vm350, %v337, %v354
  %v359 = vsel %vm351, %v338, %v355
  %v360 = vsel %vm352, %v339, %v356
  %vm365 = vcmask 1042432
  %v366 = vrot.slane %v357, 5
  %v367 = vrot.slane %v358, 5
  %v368 = vsel %vm365, %v366, %v367
  %v369 = vrot.slane %v359, 5
  %v370 = vrot.slane %v360, 5
  %v371 = vsel %vm365, %v369, %v370
  %v378 = vsel %vm365, 0.0, %v366
  %v379 = vsel %vm365, 0.0, %v369
  %v380 = vsel %vm365, %v367, 0.0
  %v381 = vsel %vm365, %v370, 0.0
  %vm386 = vcmask 1044480
  %v387 = vrot.slane %v378, 3
  %v388 = vrot.slane %v368, 3
  %v389 = vsel %vm386, %v387, %v388
  %v390 = vrot.slane %v380, 3
  %v391 = vsel %vm386, %v388, %v390
  %v392 = vrot.slane %v379, 3
  %v393 = vrot.slane %v371, 3
  %v394 = vsel %vm386, %v392, %v393
  %v395 = vrot.slane %v381, 3
  %v396 = vsel %vm386, %v393, %v395
  %397 = vrot.lane.b32.xlu0 %v389, 16
  %v398 = vpop.permute.xlu0 %397
  %399 = vrot.lane.b32.xlu0 %v391, 16
  %v400 = vpop.permute.xlu0 %399
  %401 = vrot.lane.b32.xlu0 %v394, 16
  %v402 = vpop.permute.xlu0 %401
  %403 = vrot.lane.b32.xlu0 %v396, 16
  %v404 = vpop.permute.xlu0 %403
  %vm409 = vcmask 1041408
  %v410 = vrot.slane %v378, 6
  %v411 = vrot.slane %v368, 6
  %v412 = vsel %vm409, %v410, %v411
  %v413 = vrot.slane %v380, 6
  %v414 = vsel %vm409, %v411, %v413
  %v415 = vrot.slane %v379, 6
  %v416 = vrot.slane %v371, 6
  %v417 = vsel %vm409, %v415, %v416
  %v418 = vrot.slane %v381, 6
  %v419 = vsel %vm409, %v416, %v418
  %420 = vrot.lane.b32.xlu0 %v412, 32
  %v421 = vpop.permute.xlu0 %420
  %422 = vrot.lane.b32.xlu0 %v414, 32
  %v423 = vpop.permute.xlu0 %422
  %424 = vrot.lane.b32.xlu0 %v417, 32
  %v425 = vpop.permute.xlu0 %424
  %426 = vrot.lane.b32.xlu0 %v419, 32
  %v427 = vpop.permute.xlu0 %426
  %v432 = vsel %vm134, %v378, %v398
  %v433 = vsel %vm134, %v368, %v400
  %v434 = vsel %vm134, %v379, %v402
  %v435 = vsel %vm134, %v371, %v404
  %v436 = vsel %vm139, %v432, %v421
  %v437 = vsel %vm139, %v433, %v423
  %v438 = vsel %vm139, %v434, %v425
  %v439 = vsel %vm139, %v435, %v427
  %v440 = vpack.c.bf16 %v437, %v436
  %v441 = vpack.c.bf16 %v439, %v438
  %v443 = vperm.slane %v348, 0
  %v451 = vunpack.c.l.b16 %v341
  %v452 = vunpack.c.l.b16 %v342
  %v453 = vunpack.c.l.b16 %v343
  %v454 = vunpack.c.l.b16 %v344
  %v455 = vunpack.c.l.b16 %v345
  %v456 = vunpack.c.l.b16 %v346
  %v457 = vpack.c.b16 %v452, %v451
  %v458 = vpack.c.b16 %v454, %v453
  %v459 = vpack.c.b16 %v456, %v455
  %v464 = vsel %vm167, %v440, 0
  %v467 = vsel %vm167, %v441, 0
  %469 = vmatpush.bf16.msra.mxu0 0
  %470 = vmatpush.bf16.msra.mxu0 0
  %471 = vmatpush.bf16.msra.mxu0 0
  %472 = vmatpush.bf16.msra.mxu0 0
  %473 = vmatpush.bf16.msra.mxu0 0
  %474 = vmatpush.bf16.msra.mxu0 %v459
  %475 = vmatpush.bf16.msra.mxu0 %v458
  %476 = vmatpush.bf16.msra.mxu0 %v457
  %477 = vmatmul.bf16.gmra.mxu0 %v464
  %v478 = vpop.f32.mrf.mxu0
  %v479 = vadd.f32 %v443, %v478
  %v480 = vpop.f32.mrf.mxu0
  %v481 = vadd.f32 %v443, %v480
  %482 = vmatmul.bf16.gmra.mxu0 %v467
  %v483 = vpop.f32.mrf.mxu0
  %v484 = vadd.f32 %v443, %v483
  %v485 = vpop.f32.mrf.mxu0
  %v486 = vadd.f32 %v443, %v485
  %487 = vdwg.mxu0
  %s488 = scalar_lea.vmem %s4, 24
  %v489 = vld [vmem:[%s488] sm:$0xf]
  %v490 = vld [vmem:[%s488 + $0x4] sm:$0xf]
  %v491 = vld [vmem:[%s488 + $0x8] sm:$0xf]
  %v492 = vld [vmem:[%s488 + $0xc] sm:$0xf]
  %v493 = vld [vmem:[%s488 + $0x10] sm:$0xf]
  %v494 = vld [vmem:[%s488 + $0x14] sm:$0xf]
  %s495 = scalar_lea.vmem %s5, 1
  %v496 = vld [vmem:[%s495] sm:$0x1]
  %vm497 = vcmp.ge.f32.partialorder %v479, 0.0
  %vm498 = vcmp.ge.f32.partialorder %v481, 0.0
  %vm499 = vcmp.ge.f32.partialorder %v484, 0.0
  %vm500 = vcmp.ge.f32.partialorder %v486, 0.0
  %v501 = vmul.f32 %v479, 0.1
  %v502 = vmul.f32 %v481, 0.1
  %v503 = vmul.f32 %v484, 0.1
  %v504 = vmul.f32 %v486, 0.1
  %v505 = vsel %vm497, %v479, %v501
  %v506 = vsel %vm498, %v481, %v502
  %v507 = vsel %vm499, %v484, %v503
  %v508 = vsel %vm500, %v486, %v504
  %v513 = vrot.slane %v505, 7
  %v514 = vrot.slane %v506, 7
  %v515 = vsel %vm67, %v513, %v514
  %v516 = vrot.slane %v507, 7
  %v517 = vrot.slane %v508, 7
  %v518 = vsel %vm67, %v516, %v517
  %v525 = vsel %vm67, 0.0, %v513
  %v526 = vsel %vm67, 0.0, %v516
  %v527 = vsel %vm67, %v514, 0.0
  %v528 = vsel %vm67, %v517, 0.0
  %v533 = vrot.slane %v525, 1
  %v534 = vrot.slane %v515, 1
  %v535 = vsel %vm88, %v533, %v534
  %v536 = vrot.slane %v527, 1
  %v537 = vsel %vm88, %v534, %v536
  %v538 = vrot.slane %v526, 1
  %v539 = vrot.slane %v518, 1
  %v540 = vsel %vm88, %v538, %v539
  %v541 = vrot.slane %v528, 1
  %v542 = vsel %vm88, %v539, %v541
  %543 = vrot.lane.b32.xlu0 %v535, 16
  %v544 = vpop.permute.xlu0 %543
  %545 = vrot.lane.b32.xlu0 %v537, 16
  %v546 = vpop.permute.xlu0 %545
  %547 = vrot.lane.b32.xlu0 %v540, 16
  %v548 = vpop.permute.xlu0 %547
  %549 = vrot.lane.b32.xlu0 %v542, 16
  %v550 = vpop.permute.xlu0 %549
  %v555 = vrot.slane %v525, 2
  %v556 = vrot.slane %v515, 2
  %v557 = vsel %vm111, %v555, %v556
  %v558 = vrot.slane %v527, 2
  %v559 = vsel %vm111, %v556, %v558
  %v560 = vrot.slane %v526, 2
  %v561 = vrot.slane %v518, 2
  %v562 = vsel %vm111, %v560, %v561
  %v563 = vrot.slane %v528, 2
  %v564 = vsel %vm111, %v561, %v563
  %565 = vrot.lane.b32.xlu0 %v557, 32
  %v566 = vpop.permute.xlu0 %565
  %567 = vrot.lane.b32.xlu0 %v559, 32
  %v568 = vpop.permute.xlu0 %567
  %569 = vrot.lane.b32.xlu0 %v562, 32
  %v570 = vpop.permute.xlu0 %569
  %571 = vrot.lane.b32.xlu0 %v564, 32
  %v572 = vpop.permute.xlu0 %571
  %v577 = vsel %vm134, %v525, %v544
  %v578 = vsel %vm134, %v515, %v546
  %v579 = vsel %vm134, %v526, %v548
  %v580 = vsel %vm134, %v518, %v550
  %v581 = vsel %vm139, %v577, %v566
  %v582 = vsel %vm139, %v578, %v568
  %v583 = vsel %vm139, %v579, %v570
  %v584 = vsel %vm139, %v580, %v572
  %v585 = vpack.c.bf16 %v582, %v581
  %v586 = vpack.c.bf16 %v584, %v583
  %v588 = vperm.slane %v496, 0
  %v596 = vunpack.c.l.b16 %v489
  %v597 = vunpack.c.l.b16 %v490
  %v598 = vunpack.c.l.b16 %v491
  %v599 = vunpack.c.l.b16 %v492
  %v600 = vunpack.c.l.b16 %v493
  %v601 = vunpack.c.l.b16 %v494
  %v602 = vpack.c.b16 %v597, %v596
  %v603 = vpack.c.b16 %v599, %v598
  %v604 = vpack.c.b16 %v601, %v600
  %v609 = vsel %vm167, %v585, 0
  %v612 = vsel %vm167, %v586, 0
  %614 = vmatpush.bf16.msra.mxu0 0
  %615 = vmatpush.bf16.msra.mxu0 0
  %616 = vmatpush.bf16.msra.mxu0 0
  %617 = vmatpush.bf16.msra.mxu0 0
  %618 = vmatpush.bf16.msra.mxu0 0
  %619 = vmatpush.bf16.msra.mxu0 %v604
  %620 = vmatpush.bf16.msra.mxu0 %v603
  %621 = vmatpush.bf16.msra.mxu0 %v602
  %622 = vmatmul.bf16.gmra.mxu0 %v609
  %v623 = vpop.f32.mrf.mxu0
  %v624 = vadd.f32 %v588, %v623
  %v625 = vpop.f32.mrf.mxu0
  %v626 = vadd.f32 %v588, %v625
  %627 = vmatmul.bf16.gmra.mxu0 %v612
  %v628 = vpop.f32.mrf.mxu0
  %v629 = vadd.f32 %v588, %v628
  %v630 = vpop.f32.mrf.mxu0
  %v631 = vadd.f32 %v588, %v630
  %632 = vdwg.mxu0
  %v633 = vadd.f32 %v336, %v624
  %v634 = vadd.f32 %v337, %v626
  %v635 = vadd.f32 %v338, %v629
  %v636 = vadd.f32 %v339, %v631
  %s637 = scalar_lea.vmem %s2, 48
  %v638 = vld [vmem:[%s637] sm:$0xf]
  %v639 = vld [vmem:[%s637 + $0x4] sm:$0xf]
  %v640 = vld [vmem:[%s637 + $0x8] sm:$0xf]
  %v641 = vld [vmem:[%s637 + $0xc] sm:$0xf]
  %v642 = vld [vmem:[%s637 + $0x10] sm:$0xf]
  %v643 = vld [vmem:[%s637 + $0x14] sm:$0xf]
  %s644 = scalar_lea.vmem %s3, 2
  %v645 = vld [vmem:[%s644] sm:$0x1]
  %vm646 = vcmp.ge.f32.partialorder %v633, 0.0
  %vm647 = vcmp.ge.f32.partialorder %v634, 0.0
  %vm648 = vcmp.ge.f32.partialorder %v635, 0.0
  %vm649 = vcmp.ge.f32.partialorder %v636, 0.0
  %v650 = vmul.f32 %v633, 0.1
  %v651 = vmul.f32 %v634, 0.1
  %v652 = vmul.f32 %v635, 0.1
  %v653 = vmul.f32 %v636, 0.1
  %v654 = vsel %vm646, %v633, %v650
  %v655 = vsel %vm647, %v634, %v651
  %v656 = vsel %vm648, %v635, %v652
  %v657 = vsel %vm649, %v636, %v653
  %v662 = vrot.slane %v654, 3
  %v663 = vrot.slane %v655, 3
  %v664 = vsel %vm386, %v662, %v663
  %v665 = vrot.slane %v656, 3
  %v666 = vrot.slane %v657, 3
  %v667 = vsel %vm386, %v665, %v666
  %v674 = vsel %vm386, 0.0, %v662
  %v675 = vsel %vm386, 0.0, %v665
  %v676 = vsel %vm386, %v663, 0.0
  %v677 = vsel %vm386, %v666, 0.0
  %v682 = vrot.slane %v674, 5
  %v683 = vrot.slane %v664, 5
  %v684 = vsel %vm365, %v682, %v683
  %v685 = vrot.slane %v676, 5
  %v686 = vsel %vm365, %v683, %v685
  %v687 = vrot.slane %v675, 5
  %v688 = vrot.slane %v667, 5
  %v689 = vsel %vm365, %v687, %v688
  %v690 = vrot.slane %v677, 5
  %v691 = vsel %vm365, %v688, %v690
  %692 = vrot.lane.b32.xlu0 %v684, 16
  %v693 = vpop.permute.xlu0 %692
  %694 = vrot.lane.b32.xlu0 %v686, 16
  %v695 = vpop.permute.xlu0 %694
  %696 = vrot.lane.b32.xlu0 %v689, 16
  %v697 = vpop.permute.xlu0 %696
  %698 = vrot.lane.b32.xlu0 %v691, 16
  %v699 = vpop.permute.xlu0 %698
  %v705 = vrot.slane %v664, 2
  %v706 = vrot.slane %v676, 2
  %v707 = vsel %vm111, %v705, %v706
  %v708 = vrot.slane 0.0, 2
  %v709 = vsel %vm111, %v706, %v708
  %v710 = vrot.slane %v667, 2
  %v711 = vrot.slane %v677, 2
  %v712 = vsel %vm111, %v710, %v711
  %v713 = vsel %vm111, %v711, %v708
  %714 = vrot.lane.b32.xlu0 %v707, 32
  %v715 = vpop.permute.xlu0 %714
  %716 = vrot.lane.b32.xlu0 %v709, 32
  %v717 = vpop.permute.xlu0 %716
  %718 = vrot.lane.b32.xlu0 %v712, 32
  %v719 = vpop.permute.xlu0 %718
  %720 = vrot.lane.b32.xlu0 %v713, 32
  %v721 = vpop.permute.xlu0 %720
  %v726 = vsel %vm134, %v674, %v693
  %v727 = vsel %vm134, %v664, %v695
  %v728 = vsel %vm134, %v675, %v697
  %v729 = vsel %vm134, %v667, %v699
  %v730 = vsel %vm139, %v726, %v715
  %v731 = vsel %vm139, %v727, %v717
  %v732 = vsel %vm139, %v728, %v719
  %v733 = vsel %vm139, %v729, %v721
  %v734 = vpack.c.bf16 %v731, %v730
  %v735 = vpack.c.bf16 %v733, %v732
  %v737 = vperm.slane %v645, 0
  %v745 = vunpack.c.l.b16 %v638
  %v746 = vunpack.c.l.b16 %v639
  %v747 = vunpack.c.l.b16 %v640
  %v748 = vunpack.c.l.b16 %v641
  %v749 = vunpack.c.l.b16 %v642
  %v750 = vunpack.c.l.b16 %v643
  %v751 = vpack.c.b16 %v746, %v745
  %v752 = vpack.c.b16 %v748, %v747
  %v753 = vpack.c.b16 %v750, %v749
  %v758 = vsel %vm167, %v734, 0
  %v761 = vsel %vm167, %v735, 0
  %763 = vmatpush.bf16.msra.mxu0 0
  %764 = vmatpush.bf16.msra.mxu0 0
  %765 = vmatpush.bf16.msra.mxu0 0
  %766 = vmatpush.bf16.msra.mxu0 0
  %767 = vmatpush.bf16.msra.mxu0 0
  %768 = vmatpush.bf16.msra.mxu0 %v753
  %769 = vmatpush.bf16.msra.mxu0 %v752
  %770 = vmatpush.bf16.msra.mxu0 %v751
  %771 = vmatmul.bf16.gmra.mxu0 %v758
  %v772 = vpop.f32.mrf.mxu0
  %v773 = vadd.f32 %v737, %v772
  %v774 = vpop.f32.mrf.mxu0
  %v775 = vadd.f32 %v737, %v774
  %776 = vmatmul.bf16.gmra.mxu0 %v761
  %v777 = vpop.f32.mrf.mxu0
  %v778 = vadd.f32 %v737, %v777
  %v779 = vpop.f32.mrf.mxu0
  %v780 = vadd.f32 %v737, %v779
  %781 = vdwg.mxu0
  %s782 = scalar_lea.vmem %s4, 48
  %v783 = vld [vmem:[%s782] sm:$0xf]
  %v784 = vld [vmem:[%s782 + $0x4] sm:$0xf]
  %v785 = vld [vmem:[%s782 + $0x8] sm:$0xf]
  %v786 = vld [vmem:[%s782 + $0xc] sm:$0xf]
  %v787 = vld [vmem:[%s782 + $0x10] sm:$0xf]
  %v788 = vld [vmem:[%s782 + $0x14] sm:$0xf]
  %s789 = scalar_lea.vmem %s5, 2
  %v790 = vld [vmem:[%s789] sm:$0x1]
  %vm791 = vcmp.ge.f32.partialorder %v773, 0.0
  %vm792 = vcmp.ge.f32.partialorder %v775, 0.0
  %vm793 = vcmp.ge.f32.partialorder %v778, 0.0
  %vm794 = vcmp.ge.f32.partialorder %v780, 0.0
  %v795 = vmul.f32 %v773, 0.1
  %v796 = vmul.f32 %v775, 0.1
  %v797 = vmul.f32 %v778, 0.1
  %v798 = vmul.f32 %v780, 0.1
  %v799 = vsel %vm791, %v773, %v795
  %v800 = vsel %vm792, %v775, %v796
  %v801 = vsel %vm793, %v778, %v797
  %v802 = vsel %vm794, %v780, %v798
  %v807 = vrot.slane %v799, 7
  %v808 = vrot.slane %v800, 7
  %v809 = vsel %vm67, %v807, %v808
  %v810 = vrot.slane %v801, 7
  %v811 = vrot.slane %v802, 7
  %v812 = vsel %vm67, %v810, %v811
  %v819 = vsel %vm67, 0.0, %v807
  %v820 = vsel %vm67, 0.0, %v810
  %v821 = vsel %vm67, %v808, 0.0
  %v822 = vsel %vm67, %v811, 0.0
  %v827 = vrot.slane %v819, 1
  %v828 = vrot.slane %v809, 1
  %v829 = vsel %vm88, %v827, %v828
  %v830 = vrot.slane %v821, 1
  %v831 = vsel %vm88, %v828, %v830
  %v832 = vrot.slane %v820, 1
  %v833 = vrot.slane %v812, 1
  %v834 = vsel %vm88, %v832, %v833
  %v835 = vrot.slane %v822, 1
  %v836 = vsel %vm88, %v833, %v835
  %837 = vrot.lane.b32.xlu0 %v829, 16
  %v838 = vpop.permute.xlu0 %837
  %839 = vrot.lane.b32.xlu0 %v831, 16
  %v840 = vpop.permute.xlu0 %839
  %841 = vrot.lane.b32.xlu0 %v834, 16
  %v842 = vpop.permute.xlu0 %841
  %843 = vrot.lane.b32.xlu0 %v836, 16
  %v844 = vpop.permute.xlu0 %843
  %v849 = vrot.slane %v819, 2
  %v850 = vrot.slane %v809, 2
  %v851 = vsel %vm111, %v849, %v850
  %v852 = vrot.slane %v821, 2
  %v853 = vsel %vm111, %v850, %v852
  %v854 = vrot.slane %v820, 2
  %v855 = vrot.slane %v812, 2
  %v856 = vsel %vm111, %v854, %v855
  %v857 = vrot.slane %v822, 2
  %v858 = vsel %vm111, %v855, %v857
  %859 = vrot.lane.b32.xlu0 %v851, 32
  %v860 = vpop.permute.xlu0 %859
  %861 = vrot.lane.b32.xlu0 %v853, 32
  %v862 = vpop.permute.xlu0 %861
  %863 = vrot.lane.b32.xlu0 %v856, 32
  %v864 = vpop.permute.xlu0 %863
  %865 = vrot.lane.b32.xlu0 %v858, 32
  %v866 = vpop.permute.xlu0 %865
  %v871 = vsel %vm134, %v819, %v838
  %v872 = vsel %vm134, %v809, %v840
  %v873 = vsel %vm134, %v820, %v842
  %v874 = vsel %vm134, %v812, %v844
  %v875 = vsel %vm139, %v871, %v860
  %v876 = vsel %vm139, %v872, %v862
  %v877 = vsel %vm139, %v873, %v864
  %v878 = vsel %vm139, %v874, %v866
  %v879 = vpack.c.bf16 %v876, %v875
  %v880 = vpack.c.bf16 %v878, %v877
  %v882 = vperm.slane %v790, 0
  %v890 = vunpack.c.l.b16 %v783
  %v891 = vunpack.c.l.b16 %v784
  %v892 = vunpack.c.l.b16 %v785
  %v893 = vunpack.c.l.b16 %v786
  %v894 = vunpack.c.l.b16 %v787
  %v895 = vunpack.c.l.b16 %v788
  %v896 = vpack.c.b16 %v891, %v890
  %v897 = vpack.c.b16 %v893, %v892
  %v898 = vpack.c.b16 %v895, %v894
  %v903 = vsel %vm167, %v879, 0
  %v906 = vsel %vm167, %v880, 0
  %908 = vmatpush.bf16.msra.mxu0 0
  %909 = vmatpush.bf16.msra.mxu0 0
  %910 = vmatpush.bf16.msra.mxu0 0
  %911 = vmatpush.bf16.msra.mxu0 0
  %912 = vmatpush.bf16.msra.mxu0 0
  %913 = vmatpush.bf16.msra.mxu0 %v898
  %914 = vmatpush.bf16.msra.mxu0 %v897
  %915 = vmatpush.bf16.msra.mxu0 %v896
  %916 = vmatmul.bf16.gmra.mxu0 %v903
  %v917 = vpop.f32.mrf.mxu0
  %v918 = vadd.f32 %v882, %v917
  %v919 = vpop.f32.mrf.mxu0
  %v920 = vadd.f32 %v882, %v919
  %921 = vmatmul.bf16.gmra.mxu0 %v906
  %v922 = vpop.f32.mrf.mxu0
  %v923 = vadd.f32 %v882, %v922
  %v924 = vpop.f32.mrf.mxu0
  %v925 = vadd.f32 %v882, %v924
  %926 = vdwg.mxu0
  %v927 = vadd.f32 %v633, %v918
  %v928 = vadd.f32 %v634, %v920
  %v929 = vadd.f32 %v635, %v923
  %v930 = vadd.f32 %v636, %v925
  %v931 = vpack.c.bf16 %v927, %v927
  %v932 = vpack.c.bf16 %v928, %v928
  %v933 = vpack.c.bf16 %v929, %v929
  %v934 = vpack.c.bf16 %v930, %v930
  %vm935 = vcmask 125952
  %936 = vst.msk [vmem:[%s6] sm:$0xf] %vm935, %v931
  %937 = vst.msk [vmem:[%s6 + $0x4] sm:$0xf] %vm935, %v932
  %938 = vst.msk [vmem:[%s6 + $0x8] sm:$0xf] %vm935, %v933
  %939 = vst.msk [vmem:[%s6 + $0xc] sm:$0xf] %vm935, %v934
  // Predicated region
  $region26: #{synthesizer_forward.22} parent=0 // pred_check
    _
  $region27: #{synthesizer_forward.22} parent=0 // pred_check_branch
    %941 = sbr.rel (0) target = $region29
  $region28: #{synthesizer_forward.22} parent=0 // pred_region
    _
  $region29: #{synthesizer_forward.22} parent=0 // pred_fallthru
    _
  // Predicated region
  $region30: #{synthesizer_forward.22} parent=0 // pred_check
    _
  $region31: #{synthesizer_forward.22} parent=0 // pred_check_branch
    %943 = sbr.rel (0) target = $region33
  $region32: #{synthesizer_forward.22} parent=0 // pred_region
    _
  $region33: #{synthesizer_forward.22} parent=0 // pred_fallthru
    _

// kernel: synthesizer_forward.26
$region0: #{synthesizer_forward.26}
  #allocation0 [shape = 'u32[]', space=smem, size = 0x4, offset = 0x4, fixed_abs, tag = 'smem constant byte address 0x4 - core index']
  #allocation1 [shape = 'u32[72,128]{1,0:T(1,128)}', space=vmem, size = 0x9000, scoped, tag = 'internal scratch']
  %s0 = inlined_call_operand.vmem [shape: f32[2,8,32], index: 0, kind: input, shape index: {}]
  %s1 = inlined_call_operand.vmem [shape: f32[2,8,1], index: 1, kind: input, shape index: {}]
  %s2 = inlined_call_operand.vmem [shape: f32[2,16], index: 2, kind: input, shape index: {}]
  %s3 = inlined_call_operand.vmem [shape: bf16[16,32], index: 3, kind: input, shape index: {}]
  %s4 = inlined_call_operand.vmem [shape: f32[1,32], index: 4, kind: input, shape index: {}]
  %s5 = inlined_call_operand.vmem [shape: bf16[3,160,64], index: 5, kind: input, shape index: {}]
  %s6 = inlined_call_operand.vmem [shape: f32[3,1,64], index: 6, kind: input, shape index: {}]
  %s7 = inlined_call_operand.vmem [shape: bf16[3,32,64], index: 7, kind: input, shape index: {}]
  %s8 = inlined_call_operand.vmem [shape: f32[3,1,64], index: 8, kind: input, shape index: {}]
  %s9 = inlined_call_operand.vmem [shape: bf16[3,16,64], index: 9, kind: input, shape index: {}]
  %s10 = inlined_call_operand.vmem [shape: f32[3,1,64], index: 10, kind: input, shape index: {}]
  %s11 = inlined_call_operand.vmem [shape: bf16[32,16], index: 11, kind: input, shape index: {}]
  %s12 = inlined_call_operand.vmem [shape: f32[1,16], index: 12, kind: input, shape index: {}]
  %s13 = inlined_call_operand.vmem [shape: f32[2,8,32], index: 13, kind: output, shape index: {}]
  %s14 = sld [smem:[#allocation0]]
  $region69: #{synthesizer_forward.26} parent=0
    _
  %s16 = ssub.s32 1, %s14
  %s17 = scalar_select 0, %s16, %s14
  // Predicated region
  $region2: #{synthesizer_forward.26} parent=0 // pred_check
    _
  $region3: #{synthesizer_forward.26} parent=0 // pred_check_branch
    %19 = sbr.rel (0) target = $region5
  $region4: #{synthesizer_forward.26} parent=0 // pred_region
    _
  $region5: #{synthesizer_forward.26} parent=0 // pred_fallthru
    _
  // Predicated region
  $region6: #{synthesizer_forward.26} parent=0 // pred_check
    _
  $region7: #{synthesizer_forward.26} parent=0 // pred_check_branch
    %21 = sbr.rel (0) target = $region9
  $region8: #{synthesizer_forward.26} parent=0 // pred_region
    _
  $region9: #{synthesizer_forward.26} parent=0 // pred_fallthru
    _
  // Predicated region
  $region10: #{synthesizer_forward.26} parent=0 // pred_check
    _
  $region11: #{synthesizer_forward.26} parent=0 // pred_check_branch
    %23 = sbr.rel (0) target = $region13
  $region12: #{synthesizer_forward.26} parent=0 // pred_region
    _
  $region13: #{synthesizer_forward.26} parent=0 // pred_fallthru
    _
  // Predicated region
  $region14: #{synthesizer_forward.26} parent=0 // pred_check
    _
  $region15: #{synthesizer_forward.26} parent=0 // pred_check_branch
    %25 = sbr.rel (0) target = $region17
  $region16: #{synthesizer_forward.26} parent=0 // pred_region
    _
  $region17: #{synthesizer_forward.26} parent=0 // pred_fallthru
    _
  // Predicated region
  $region18: #{synthesizer_forward.26} parent=0 // pred_check
    _
  $region19: #{synthesizer_forward.26} parent=0 // pred_check_branch
    %27 = sbr.rel (0) target = $region21
  $region20: #{synthesizer_forward.26} parent=0 // pred_region
    _
  $region21: #{synthesizer_forward.26} parent=0 // pred_fallthru
    _
  // Predicated region
  $region22: #{synthesizer_forward.26} parent=0 // pred_check
    _
  $region23: #{synthesizer_forward.26} parent=0 // pred_check_branch
    %29 = sbr.rel (0) target = $region25
  $region24: #{synthesizer_forward.26} parent=0 // pred_region
    _
  $region25: #{synthesizer_forward.26} parent=0 // pred_fallthru
    _
  // Predicated region
  $region26: #{synthesizer_forward.26} parent=0 // pred_check
    _
  $region27: #{synthesizer_forward.26} parent=0 // pred_check_branch
    %31 = sbr.rel (0) target = $region29
  $region28: #{synthesizer_forward.26} parent=0 // pred_region
    _
  $region29: #{synthesizer_forward.26} parent=0 // pred_fallthru
    _
  // Predicated region
  $region30: #{synthesizer_forward.26} parent=0 // pred_check
    _
  $region31: #{synthesizer_forward.26} parent=0 // pred_check_branch
    %33 = sbr.rel (0) target = $region33
  $region32: #{synthesizer_forward.26} parent=0 // pred_region
    _
  $region33: #{synthesizer_forward.26} parent=0 // pred_fallthru
    _
  // Predicated region
  $region34: #{synthesizer_forward.26} parent=0 // pred_check
    _
  $region35: #{synthesizer_forward.26} parent=0 // pred_check_branch
    %35 = sbr.rel (0) target = $region37
  $region36: #{synthesizer_forward.26} parent=0 // pred_region
    _
  $region37: #{synthesizer_forward.26} parent=0 // pred_fallthru
    _
  // Predicated region
  $region38: #{synthesizer_forward.26} parent=0 // pred_check
    _
  $region39: #{synthesizer_forward.26} parent=0 // pred_check_branch
    %37 = sbr.rel (0) target = $region41
  $region40: #{synthesizer_forward.26} parent=0 // pred_region
    _
  $region41: #{synthesizer_forward.26} parent=0 // pred_fallthru
    _
  // Predicated region
  $region42: #{synthesizer_forward.26} parent=0 // pred_check
    _
  $region43: #{synthesizer_forward.26} parent=0 // pred_check_branch
    %39 = sbr.rel (0) target = $region45
  $region44: #{synthesizer_forward.26} parent=0 // pred_region
    _
  $region45: #{synthesizer_forward.26} parent=0 // pred_fallthru
    _
  // Predicated region
  $region46: #{synthesizer_forward.26} parent=0 // pred_check
    _
  $region47: #{synthesizer_forward.26} parent=0 // pred_check_branch
    %41 = sbr.rel (0) target = $region49
  $region48: #{synthesizer_forward.26} parent=0 // pred_region
    _
  $region49: #{synthesizer_forward.26} parent=0 // pred_fallthru
    _
  // Predicated region
  $region50: #{synthesizer_forward.26} parent=0 // pred_check
    _
  $region51: #{synthesizer_forward.26} parent=0 // pred_check_branch
    %43 = sbr.rel (0) target = $region53
  $region52: #{synthesizer_forward.26} parent=0 // pred_region
    _
  $region53: #{synthesizer_forward.26} parent=0 // pred_fallthru
    _
  %v45 = vld [vmem:[%s1] sm:$0xff]
  %v46 = vld [vmem:[%s1 + $0x8] sm:$0xff]
  %v47 = vld [vmem:[%s0] sm:$0xff]
  %v48 = vld [vmem:[%s0 + $0x8] sm:$0xff]
  %v49 = vpack.c.bf16 %v48, %v47
  %v50 = vld [vmem:[%s3] sm:$0xf]
  %v51 = vld [vmem:[%s3 + $0x4] sm:$0xf]
  %v52 = vld [vmem:[%s4] sm:$0x1]
  %v54 = vperm.slane %v52, 0
  %v58 = vunpack.c.l.b16 %v50
  %v59 = vunpack.c.l.b16 %v51
  %v60 = vpack.c.b16 %v59, %v58
  %vm62 = vcmask 130048
  %v64 = vsel %vm62, %v49, 0
  %66 = vmatpush.bf16.msra.mxu0 0
  %67 = vmatpush.bf16.msra.mxu0 0
  %68 = vmatpush.bf16.msra.mxu0 0
  %69 = vmatpush.bf16.msra.mxu0 0
  %70 = vmatpush.bf16.msra.mxu0 0
  %71 = vmatpush.bf16.msra.mxu0 0
  %72 = vmatpush.bf16.msra.mxu0 0
  %73 = vmatpush.bf16.msra.mxu0 %v60
  %74 = vmatmul.bf16.gmra.mxu0 %v64
  %v75 = vpop.f32.mrf.mxu0
  %v76 = vadd.f32 %v54, %v75
  %v77 = vpop.f32.mrf.mxu0
  %v78 = vadd.f32 %v54, %v77
  %79 = vdwg.mxu0
  %81 = vset.pattern.permute.xlu0 0
  %82 = vperm.xlu0 %81, %v45
  %v83 = vpop.permute.xlu0 %82
  %86 = vset.pattern.permute.xlu0 0
  %87 = vperm.xlu0 %86, %v46
  %v88 = vpop.permute.xlu0 %87
  %v90 = vmul.f32 %v76, %v83
  %v91 = vmul.f32 %v78, %v88
  %v92 = vld [vmem:[%s2] sm:$0x3]
  %v93 = vpack.c.bf16 %v92, %v92
  loop: start=0, step=1, limit=3
  $region54: #{synthesizer_forward.26} parent=0 // loop_pre_header
    _
  $region55: #{synthesizer_forward.26} parent=0 // loop_header
    %s95 = sphi 0, %s99
    %p96 = scmp.ge.s32.totalorder %s95, 3
    %v100 = vphi %v90, %v433
    %v101 = vphi %v91, %v434
    %v102 = vphi 0.0, %v435
    %v103 = vphi 0.0, %v436
  $region56: #{synthesizer_forward.26} parent=0 // loop_header_branch
    %98 = sbr.rel (%p96) target = $region60
  $region57: #{synthesizer_forward.26} parent=0 // loop_body
    %v106 = vrot.slane %v100, 6
    %v107 = vrot.slane %v101, 6
    %vm110 = vcmask 1041408
    %v111 = vsel %vm110, 0.0, %v106
    %v112 = vsel %vm110, 0.0, %v107
    %v113 = vsel %vm110, %v106, 0.0
    %v114 = vsel %vm110, %v107, 0.0
    %vm119 = vcmask 1046528
    %v120 = vrot.slane %v111, 1
    %v121 = vrot.slane %v113, 1
    %v122 = vsel %vm119, %v120, %v121
    %v123 = vrot.slane %v112, 1
    %v124 = vrot.slane %v114, 1
    %v125 = vsel %vm119, %v123, %v124
    %126 = vrot.lane.b32.xlu0 %v122, 32
    %v127 = vpop.permute.xlu0 %126
    %128 = vrot.lane.b32.xlu0 %v125, 32
    %v129 = vpop.permute.xlu0 %128
    %vm132 = vcmask 1045504
    %v133 = vrot.slane %v111, 2
    %v134 = vrot.slane %v113, 2
    %v135 = vsel %vm132, %v133, %v134
    %v136 = vrot.slane %v112, 2
    %v137 = vrot.slane %v114, 2
    %v138 = vsel %vm132, %v136, %v137
    %139 = vrot.lane.b32.xlu0 %v135, 64
    %v140 = vpop.permute.xlu0 %139
    %141 = vrot.lane.b32.xlu0 %v138, 64
    %v142 = vpop.permute.xlu0 %141
    %vm145 = vcmask 1044480
    %v146 = vrot.slane %v111, 3
    %v147 = vrot.slane %v113, 3
    %v148 = vsel %vm145, %v146, %v147
    %v149 = vrot.slane %v112, 3
    %v150 = vrot.slane %v114, 3
    %v151 = vsel %vm145, %v149, %v150
    %152 = vrot.lane.b32.xlu0 %v148, 96
    %v153 = vpop.permute.xlu0 %152
    %154 = vrot.lane.b32.xlu0 %v151, 96
    %v155 = vpop.permute.xlu0 %154
    %vm158 = vcmask 1043456
    %v159 = vrot.slane %v111, 4
    %v160 = vrot.slane %v113, 4
    %v161 = vsel %vm158, %v159, %v160
    %v162 = vrot.slane %v112, 4
    %v163 = vrot.slane %v114, 4
    %v164 = vsel %vm158, %v162, %v163
    %vm167 = vcmask 261120
    %v168 = vsel %vm167, %v111, %v127
    %v169 = vsel %vm167, %v112, %v129
    %vm170 = vcmask 523264
    %v171 = vsel %vm170, %v168, %v140
    %v172 = vsel %vm170, %v169, %v142
    %vm173 = vcmask 785408
    %v174 = vsel %vm173, %v171, %v153
    %v175 = vsel %vm173, %v172, %v155
    %v176 = vpack.c.bf16 %v175, %v174
    %v177 = vpack.c.bf16 %v164, %v161
    %s178 = smul.u32 %s95, 20
    %s179 = smul.addr %s178, 4
    %s180 = scalar_lea.vmem %s5, %s179
    %v181 = vld [vmem:[%s180] sm:$0xf]
    %v182 = vld [vmem:[%s180 + $0x4] sm:$0xf]
    %v183 = vld [vmem:[%s180 + $0x8] sm:$0xf]
    %v184 = vld [vmem:[%s180 + $0xc] sm:$0xf]
    %v185 = vld [vmem:[%s180 + $0x10] sm:$0xf]
    %v186 = vld [vmem:[%s180 + $0x14] sm:$0xf]
    %v187 = vld [vmem:[%s180 + $0x18] sm:$0xf]
    %v188 = vld [vmem:[%s180 + $0x1c] sm:$0xf]
    %v189 = vld [vmem:[%s180 + $0x20] sm:$0xf]
    %v190 = vld [vmem:[%s180 + $0x24] sm:$0xf]
    %v191 = vld [vmem:[%s180 + $0x28] sm:$0xf]
    %v192 = vld [vmem:[%s180 + $0x2c] sm:$0xf]
    %v193 = vld [vmem:[%s180 + $0x30] sm:$0xf]
    %v194 = vld [vmem:[%s180 + $0x34] sm:$0xf]
    %v195 = vld [vmem:[%s180 + $0x38] sm:$0xf]
    %v196 = vld [vmem:[%s180 + $0x3c] sm:$0xf]
    %v197 = vld [vmem:[%s180 + $0x40] sm:$0xf]
    %v198 = vld [vmem:[%s180 + $0x44] sm:$0xf]
    %v199 = vld [vmem:[%s180 + $0x48] sm:$0xf]
    %v200 = vld [vmem:[%s180 + $0x4c] sm:$0xf]
    %v221 = vunpack.c.l.b16 %v181
    %v222 = vunpack.c.l.b16 %v182
    %v223 = vunpack.c.l.b16 %v183
    %v224 = vunpack.c.l.b16 %v184
    %v225 = vunpack.c.l.b16 %v185
    %v226 = vunpack.c.l.b16 %v186
    %v227 = vunpack.c.l.b16 %v187
    %v228 = vunpack.c.l.b16 %v188
    %v229 = vunpack.c.l.b16 %v189
    %v230 = vunpack.c.l.b16 %v190
    %v231 = vunpack.c.l.b16 %v191
    %v232 = vunpack.c.l.b16 %v192
    %v233 = vunpack.c.l.b16 %v193
    %v234 = vunpack.c.l.b16 %v194
    %v235 = vunpack.c.l.b16 %v195
    %v236 = vunpack.c.l.b16 %v196
    %v237 = vunpack.c.l.b16 %v197
    %v238 = vunpack.c.l.b16 %v198
    %v239 = vunpack.c.l.b16 %v199
    %v240 = vunpack.c.l.b16 %v200
    %v241 = vpack.c.b16 %v222, %v221
    %v242 = vpack.c.b16 %v224, %v223
    %v243 = vpack.c.b16 %v226, %v225
    %v244 = vpack.c.b16 %v228, %v227
    %v245 = vpack.c.b16 %v230, %v229
    %v246 = vpack.c.b16 %v232, %v231
    %v247 = vpack.c.b16 %v234, %v233
    %v248 = vpack.c.b16 %v236, %v235
    %v249 = vpack.c.b16 %v238, %v237
    %v250 = vpack.c.b16 %v240, %v239
    %v262 = vsel %vm167, %v177, 0
    %264 = vmatpush.bf16.msra.mxu0 %v248
    %265 = vmatpush.bf16.msra.mxu0 %v247
    %266 = vmatpush.bf16.msra.mxu0 %v246
    %267 = vmatpush.bf16.msra.mxu0 %v245
    %268 = vmatpush.bf16.msra.mxu0 %v244
    %269 = vmatpush.bf16.msra.mxu0 %v243
    %270 = vmatpush.bf16.msra.mxu0 %v242
    %271 = vmatpush.bf16.msra.mxu0 %v241
    %272 = vmatmul.bf16.gmra.mxu0 %v176
    %v273 = vpop.f32.mrf.mxu0
    %v274 = vadd.f32 0.0, %v273
    %v275 = vpop.f32.mrf.mxu0
    %v276 = vadd.f32 0.0, %v275
    %277 = vdwg.mxu0
    %278 = vmatpush.bf16.msra.mxu0 0
    %279 = vmatpush.bf16.msra.mxu0 0
    %280 = vmatpush.bf16.msra.mxu0 0
    %281 = vmatpush.bf16.msra.mxu0 0
    %282 = vmatpush.bf16.msra.mxu0 0
    %283 = vmatpush.bf16.msra.mxu0 0
    %284 = vmatpush.bf16.msra.mxu0 %v250
    %285 = vmatpush.bf16.msra.mxu0 %v249
    %286 = vmatmul.bf16.gmra.mxu0 %v262
    %v287 = vpop.f32.mrf.mxu0
    %v288 = vadd.f32 %v274, %v287
    %v289 = vpop.f32.mrf.mxu0
    %v290 = vadd.f32 %v276, %v289
    %291 = vdwg.mxu0
    %s292 = smul.u32 %s95, 2
    %s293 = smul.addr %s292, 4
    %s294 = scalar_lea.vmem %s9, %s293
    %v295 = vld [vmem:[%s294] sm:$0xf]
    %v296 = vld [vmem:[%s294 + $0x4] sm:$0xf]
    %s297 = scalar_lea.vmem %s10, %s95
    %v298 = vld [vmem:[%s297] sm:$0x1]
    %v300 = vperm.slane %v298, 0
    %v304 = vunpack.c.l.b16 %v295
    %v305 = vunpack.c.l.b16 %v296
    %v306 = vpack.c.b16 %v305, %v304
    %v309 = vsel %vm62, %v93, 0
    %311 = vmatpush.bf16.msra.mxu0 0
    %312 = vmatpush.bf16.msra.mxu0 0
    %313 = vmatpush.bf16.msra.mxu0 0
    %314 = vmatpush.bf16.msra.mxu0 0
    %315 = vmatpush.bf16.msra.mxu0 0
    %316 = vmatpush.bf16.msra.mxu0 0
    %317 = vmatpush.bf16.msra.mxu0 0
    %318 = vmatpush.bf16.msra.mxu0 %v306
    %319 = vmatmul.bf16.gmra.mxu0 %v309
    %v320 = vpop.f32.mrf.mxu0
    %v321 = vadd.f32 %v300, %v320
    %v322 = vpop.f32.mrf.mxu0
    %323 = vdwg.mxu0
    %v325 = vrot.slane %v321, 1
    %s326 = scalar_lea.vmem %s6, %s95
    %v327 = vld [vmem:[%s326] sm:$0x1]
    %v329 = vperm.slane %v327, 0
    %v331 = vadd.f32 %v288, %v329
    %v332 = vadd.f32 %v290, %v329
    %v333 = vperm.slane %v321, 0
    %v334 = vperm.slane %v325, 0
    %v337 = vadd.f32 %v331, %v333
    %v338 = vadd.f32 %v332, %v334
    %v339 = vtanh.pop %v337
    %v340 = vtanh.pop %v338
    %v341 = vxor.u32 %v337, 2147483648
    %v342 = vxor.u32 %v338, 2147483648
    %v343 = vmul.f32 %v341, 1.442695
    %v344 = vpow.pop %v343
    %v345 = vmul.f32 %v342, 1.442695
    %v346 = vpow.pop %v345
    %v347 = vadd.f32 %v344, 1.0
    %v348 = vadd.f32 %v346, 1.0
    %v349 = vrcp.pop %v347
    %v350 = vmul.f32 %v347, %v349
    %v351 = vsub.f32 1.0, %v350
    %v352 = vmul.f32 %v349, %v351
    %v353 = vadd.f32 %v349, %v352
    %vm354 = vweird.f32 %v347
    %vm355 = vweird.f32 %v349
    %vm356 = vmor %vm354, %vm355
    %v357 = vsel %vm356, %v349, %v353
    %v358 = vand.u32 2147483647, %v347
    %vm359 = vcmp.eq.f32.partialorder %v358, 8.507059e+37
    %v360 = vand.u32 %v347, 2147483648
    %v361 = vor.u32 1.1754944e-38, %v360
    %v362 = vsel %vm359, %v361, %v357
    %v363 = vmul.f32 1.0, %v362
    %v364 = vrcp.pop %v348
    %v365 = vmul.f32 %v348, %v364
    %v366 = vsub.f32 1.0, %v365
    %v367 = vmul.f32 %v364, %v366
    %v368 = vadd.f32 %v364, %v367
    %vm369 = vweird.f32 %v348
    %vm370 = vweird.f32 %v364
    %vm371 = vmor %vm369, %vm370
    %v372 = vsel %vm371, %v364, %v368
    %v373 = vand.u32 2147483647, %v348
    %vm374 = vcmp.eq.f32.partialorder %v373, 8.507059e+37
    %v375 = vand.u32 %v348, 2147483648
    %v376 = vor.u32 1.1754944e-38, %v375
    %v377 = vsel %vm374, %v376, %v372
    %v378 = vmul.f32 1.0, %v377
    %381 = vrot.lane.b32.xlu0 %v363, 96
    %v382 = vpop.permute.xlu0 %381
    %383 = vrot.lane.b32.xlu0 %v378, 96
    %v384 = vpop.permute.xlu0 %383
    %v387 = vmul.f32 %v339, %v382
    %v388 = vmul.f32 %v340, %v384
    %v389 = vpack.c.bf16 %v388, %v387
    %s390 = smul.u32 %s95, 4
    %s391 = smul.addr %s390, 4
    %s392 = scalar_lea.vmem %s7, %s391
    %v393 = vld [vmem:[%s392] sm:$0xf]
    %v394 = vld [vmem:[%s392 + $0x4] sm:$0xf]
    %v395 = vld [vmem:[%s392 + $0x8] sm:$0xf]
    %v396 = vld [vmem:[%s392 + $0xc] sm:$0xf]
    %s397 = scalar_lea.vmem %s8, %s95
    %v398 = vld [vmem:[%s397] sm:$0x1]
    %v400 = vperm.slane %v398, 0
    %v406 = vunpack.c.l.b16 %v393
    %v407 = vunpack.c.l.b16 %v394
    %v408 = vunpack.c.l.b16 %v395
    %v409 = vunpack.c.l.b16 %v396
    %v410 = vpack.c.b16 %v407, %v406
    %v411 = vpack.c.b16 %v409, %v408
    %v415 = vsel %vm167, %v389, 0
    %417 = vmatpush.bf16.msra.mxu0 0
    %418 = vmatpush.bf16.msra.mxu0 0
    %419 = vmatpush.bf16.msra.mxu0 0
    %420 = vmatpush.bf16.msra.mxu0 0
    %421 = vmatpush.bf16.msra.mxu0 0
    %422 = vmatpush.bf16.msra.mxu0 0
    %423 = vmatpush.bf16.msra.mxu0 %v411
    %424 = vmatpush.bf16.msra.mxu0 %v410
    %425 = vmatmul.bf16.gmra.mxu0 %v415
    %v426 = vpop.f32.mrf.mxu0
    %v427 = vadd.f32 %v400, %v426
    %v428 = vpop.f32.mrf.mxu0
    %v429 = vadd.f32 %v400, %v428
    %430 = vdwg.mxu0
    %v431 = vadd.f32 %v100, %v427
    %v432 = vadd.f32 %v101, %v429
    %v433 = vmul.f32 %v431, %v83
    %v434 = vmul.f32 %v432, %v88
    %v435 = vadd.f32 %v102, %v427
    %v436 = vadd.f32 %v103, %v429
  $region58: #{synthesizer_forward.26} parent=0 // loop_footer
    %s99 = sadd.s32 1, %s95
  $region59: #{synthesizer_forward.26} parent=0 // loop_footer_branch
    %94 = sbr.rel target = $region55
  $region60: #{synthesizer_forward.26} parent=0 // loop_exit
    _
  %v437 = vmul.f32 %v102, %v83
  %v438 = vmul.f32 %v103, %v88
  %v439 = vpack.c.bf16 %v438, %v437
  %v440 = vld [vmem:[%s11] sm:$0xf]
  %v441 = vld [vmem:[%s11 + $0x4] sm:$0xf]
  %v442 = vld [vmem:[%s11 + $0x8] sm:$0xf]
  %v443 = vld [vmem:[%s11 + $0xc] sm:$0xf]
  %v444 = vld [vmem:[%s12] sm:$0x1]
  %v446 = vperm.slane %v444, 0
  %449 = vrot.lane.b32.xlu0 %v439, 96
  %v450 = vpop.permute.xlu0 %449
  %v455 = vunpack.c.l.b16 %v440
  %v456 = vunpack.c.l.b16 %v441
  %v457 = vunpack.c.l.b16 %v442
  %v458 = vunpack.c.l.b16 %v443
  %v459 = vpack.c.b16 %v456, %v455
  %v460 = vpack.c.b16 %v458, %v457
  %vm463 = vcmask 261120
  %v465 = vsel %vm463, %v450, 0
  %467 = vmatpush.bf16.msra.mxu0 0
  %468 = vmatpush.bf16.msra.mxu0 0
  %469 = vmatpush.bf16.msra.mxu0 0
  %470 = vmatpush.bf16.msra.mxu0 0
  %471 = vmatpush.bf16.msra.mxu0 0
  %472 = vmatpush.bf16.msra.mxu0 0
  %473 = vmatpush.bf16.msra.mxu0 %v460
  %474 = vmatpush.bf16.msra.mxu0 %v459
  %475 = vmatmul.bf16.gmra.mxu0 %v465
  %v476 = vpop.f32.mrf.mxu0
  %v477 = vadd.f32 %v446, %v476
  %v478 = vpop.f32.mrf.mxu0
  %v479 = vadd.f32 %v446, %v478
  %480 = vdwg.mxu0
  %v481 = vmul.f32 %v477, %v83
  %v482 = vmul.f32 %v479, %v88
  %v483 = vmul.f32 %v47, %v83
  %v484 = vmul.f32 %v48, %v88
  %487 = vrot.lane.b32.xlu0 %v483, 112
  %v488 = vpop.permute.xlu0 %487
  %489 = vrot.lane.b32.xlu0 %v484, 112
  %v490 = vpop.permute.xlu0 %489
  %v493 = vadd.f32 %v481, %v488
  %v494 = vadd.f32 %v482, %v490
  %497 = vrot.lane.b32.xlu0 %v493, 16
  %v498 = vpop.permute.xlu0 %497
  %499 = vrot.lane.b32.xlu0 %v494, 16
  %v500 = vpop.permute.xlu0 %499
  %v503 = vsel %vm62, %v47, %v498
  %v504 = vsel %vm62, %v48, %v500
  %505 = vst.msk [vmem:[%s13] sm:$0xff] %vm463, %v503
  %506 = vst.msk [vmem:[%s13 + $0x8] sm:$0xff] %vm463, %v504
  // Predicated region
  $region61: #{synthesizer_forward.26} parent=0 // pred_check
    _
  $region62: #{synthesizer_forward.26} parent=0 // pred_check_branch
    %508 = sbr.rel (0) target = $region64
  $region63: #{synthesizer_forward.26} parent=0 // pred_region
    _
  $region64: #{synthesizer_forward.26} parent=0 // pred_fallthru
    _
  // Predicated region
  $region65: #{synthesizer_forward.26} parent=0 // pred_check
    _
  $region66: #{synthesizer_forward.26} parent=0 // pred_check_branch
    %510 = sbr.rel (0) target = $region68
  $region67: #{synthesizer_forward.26} parent=0 // pred_region
    _
  $region68: #{synthesizer_forward.26} parent=0 // pred_fallthru
    _

// kernel: synthesizer_forward.25
$region0: #{synthesizer_forward.25}
  #allocation0 [shape = 'u32[]', space=smem, size = 0x4, offset = 0x4, fixed_abs, tag = 'smem constant byte address 0x4 - core index']
  #allocation1 [shape = 'u32[72,128]{1,0:T(1,128)}', space=vmem, size = 0x9000, scoped, tag = 'internal scratch']
  #allocation2 [shape = 'f32[1,1]{1,0:T(1,128)S(1)}', space=vmem, size = 0x200, scoped, tag = 'scoped memory for synthesizer_forward.25']
  %s0 = inlined_call_operand.vmem [shape: bf16[2,64,8], index: 0, kind: input, shape index: {}]
  %s1 = inlined_call_operand.vmem [shape: bf16[56,1], index: 1, kind: input, shape index: {}]
  %s2 = inlined_call_operand.<no memory space> [shape: f32[1,1], index: 2, kind: input, shape index: {}]
  %s3 = inlined_call_operand.vmem [shape: f32[2,64,1], index: 3, kind: output, shape index: {}]
  %s4 = sld [smem:[#allocation0]]
  $region22: #{synthesizer_forward.25} parent=0
    _
  %s6 = ssub.s32 1, %s4
  %s7 = scalar_select 0, %s6, %s4
  %v8 = vstv %s2
  %9 = vst [vmem:[#allocation2] sm:$0x1] %v8
  // Predicated region
  $region2: #{synthesizer_forward.25} parent=0 // pred_check
    _
  $region3: #{synthesizer_forward.25} parent=0 // pred_check_branch
    %11 = sbr.rel (0) target = $region5
  $region4: #{synthesizer_forward.25} parent=0 // pred_region
    _
  $region5: #{synthesizer_forward.25} parent=0 // pred_fallthru
    _
  // Predicated region
  $region6: #{synthesizer_forward.25} parent=0 // pred_check
    _
  $region7: #{synthesizer_forward.25} parent=0 // pred_check_branch
    %13 = sbr.rel (0) target = $region9
  $region8: #{synthesizer_forward.25} parent=0 // pred_region
    _
  $region9: #{synthesizer_forward.25} parent=0 // pred_fallthru
    _
  // Predicated region
  $region10: #{synthesizer_forward.25} parent=0 // pred_check
    _
  $region11: #{synthesizer_forward.25} parent=0 // pred_check_branch
    %15 = sbr.rel (0) target = $region13
  $region12: #{synthesizer_forward.25} parent=0 // pred_region
    _
  $region13: #{synthesizer_forward.25} parent=0 // pred_fallthru
    _
  %v17 = vld [vmem:[%s0] sm:$0xf]
  %v18 = vld [vmem:[%s0 + $0x4] sm:$0xf]
  %v19 = vld [vmem:[%s0 + $0x8] sm:$0xf]
  %v20 = vld [vmem:[%s0 + $0xc] sm:$0xf]
  %v21 = vld [vmem:[%s0 + $0x10] sm:$0xf]
  %v22 = vld [vmem:[%s0 + $0x14] sm:$0xf]
  %v23 = vld [vmem:[%s0 + $0x18] sm:$0xf]
  %v24 = vld [vmem:[%s0 + $0x1c] sm:$0xf]
  %v25 = vld [vmem:[%s0 + $0x20] sm:$0xf]
  %v26 = vld [vmem:[%s0 + $0x24] sm:$0xf]
  %v27 = vld [vmem:[%s0 + $0x28] sm:$0xf]
  %v28 = vld [vmem:[%s0 + $0x2c] sm:$0xf]
  %v29 = vld [vmem:[%s0 + $0x30] sm:$0xf]
  %v30 = vld [vmem:[%s0 + $0x34] sm:$0xf]
  %v31 = vld [vmem:[%s0 + $0x38] sm:$0xf]
  %v32 = vld [vmem:[%s0 + $0x3c] sm:$0xf]
  %v33 = vunpack.c.l.bf16 %v17
  %v34 = vunpack.c.l.bf16 %v18
  %v35 = vunpack.c.l.bf16 %v19
  %v36 = vunpack.c.l.bf16 %v20
  %v37 = vunpack.c.l.bf16 %v21
  %v38 = vunpack.c.l.bf16 %v22
  %v39 = vunpack.c.l.bf16 %v23
  %v40 = vunpack.c.l.bf16 %v24
  %v41 = vunpack.c.l.bf16 %v25
  %v42 = vunpack.c.l.bf16 %v26
  %v43 = vunpack.c.l.bf16 %v27
  %v44 = vunpack.c.l.bf16 %v28
  %v45 = vunpack.c.l.bf16 %v29
  %v46 = vunpack.c.l.bf16 %v30
  %v47 = vunpack.c.l.bf16 %v31
  %v48 = vunpack.c.l.bf16 %v32
  %vm49 = vcmp.ge.f32.partialorder %v33, 0.0
  %vm50 = vcmp.ge.f32.partialorder %v34, 0.0
  %vm51 = vcmp.ge.f32.partialorder %v35, 0.0
  %vm52 = vcmp.ge.f32.partialorder %v36, 0.0
  %vm53 = vcmp.ge.f32.partialorder %v37, 0.0
  %vm54 = vcmp.ge.f32.partialorder %v38, 0.0
  %vm55 = vcmp.ge.f32.partialorder %v39, 0.0
  %vm56 = vcmp.ge.f32.partialorder %v40, 0.0
  %vm57 = vcmp.ge.f32.partialorder %v41, 0.0
  %vm58 = vcmp.ge.f32.partialorder %v42, 0.0
  %vm59 = vcmp.ge.f32.partialorder %v43, 0.0
  %vm60 = vcmp.ge.f32.partialorder %v44, 0.0
  %vm61 = vcmp.ge.f32.partialorder %v45, 0.0
  %vm62 = vcmp.ge.f32.partialorder %v46, 0.0
  %vm63 = vcmp.ge.f32.partialorder %v47, 0.0
  %vm64 = vcmp.ge.f32.partialorder %v48, 0.0
  %v65 = vmul.f32 %v33, 0.01
  %v66 = vmul.f32 %v34, 0.01
  %v67 = vmul.f32 %v35, 0.01
  %v68 = vmul.f32 %v36, 0.01
  %v69 = vmul.f32 %v37, 0.01
  %v70 = vmul.f32 %v38, 0.01
  %v71 = vmul.f32 %v39, 0.01
  %v72 = vmul.f32 %v40, 0.01
  %v73 = vmul.f32 %v41, 0.01
  %v74 = vmul.f32 %v42, 0.01
  %v75 = vmul.f32 %v43, 0.01
  %v76 = vmul.f32 %v44, 0.01
  %v77 = vmul.f32 %v45, 0.01
  %v78 = vmul.f32 %v46, 0.01
  %v79 = vmul.f32 %v47, 0.01
  %v80 = vmul.f32 %v48, 0.01
  %v81 = vsel %vm49, %v33, %v65
  %v82 = vsel %vm50, %v34, %v66
  %v83 = vsel %vm51, %v35, %v67
  %v84 = vsel %vm52, %v36, %v68
  %v85 = vsel %vm53, %v37, %v69
  %v86 = vsel %vm54, %v38, %v70
  %v87 = vsel %vm55, %v39, %v71
  %v88 = vsel %vm56, %v40, %v72
  %v89 = vsel %vm57, %v41, %v73
  %v90 = vsel %vm58, %v42, %v74
  %v91 = vsel %vm59, %v43, %v75
  %v92 = vsel %vm60, %v44, %v76
  %v93 = vsel %vm61, %v45, %v77
  %v94 = vsel %vm62, %v46, %v78
  %v95 = vsel %vm63, %v47, %v79
  %v96 = vsel %vm64, %v48, %v80
  %vm113 = vcmask 1042432
  %v114 = vrot.slane %v81, 5
  %v115 = vrot.slane %v82, 5
  %v116 = vsel %vm113, %v114, %v115
  %v117 = vrot.slane %v83, 5
  %v118 = vsel %vm113, %v115, %v117
  %v119 = vrot.slane %v84, 5
  %v120 = vsel %vm113, %v117, %v119
  %v121 = vrot.slane %v85, 5
  %v122 = vsel %vm113, %v119, %v121
  %v123 = vrot.slane %v86, 5
  %v124 = vsel %vm113, %v121, %v123
  %v125 = vrot.slane %v87, 5
  %v126 = vsel %vm113, %v123, %v125
  %v127 = vrot.slane %v88, 5
  %v128 = vsel %vm113, %v125, %v127
  %v129 = vrot.slane %v89, 5
  %v130 = vrot.slane %v90, 5
  %v131 = vsel %vm113, %v129, %v130
  %v132 = vrot.slane %v91, 5
  %v133 = vsel %vm113, %v130, %v132
  %v134 = vrot.slane %v92, 5
  %v135 = vsel %vm113, %v132, %v134
  %v136 = vrot.slane %v93, 5
  %v137 = vsel %vm113, %v134, %v136
  %v138 = vrot.slane %v94, 5
  %v139 = vsel %vm113, %v136, %v138
  %v140 = vrot.slane %v95, 5
  %v141 = vsel %vm113, %v138, %v140
  %v142 = vrot.slane %v96, 5
  %v143 = vsel %vm113, %v140, %v142
  %v162 = vsel %vm113, 0.0, %v114
  %v163 = vsel %vm113, 0.0, %v129
  %v164 = vsel %vm113, %v127, 0.0
  %v165 = vsel %vm113, %v142, 0.0
  %vm170 = vcmask 1046528
  %v171 = vrot.slane %v162, 1
  %v172 = vrot.slane %v116, 1
  %v173 = vsel %vm170, %v171, %v172
  %v174 = vrot.slane %v118, 1
  %v175 = vsel %vm170, %v172, %v174
  %v176 = vrot.slane %v120, 1
  %v177 = vsel %vm170, %v174, %v176
  %v178 = vrot.slane %v122, 1
  %v179 = vsel %vm170, %v176, %v178
  %v180 = vrot.slane %v124, 1
  %v181 = vsel %vm170, %v178, %v180
  %v182 = vrot.slane %v126, 1
  %v183 = vsel %vm170, %v180, %v182
  %v184 = vrot.slane %v128, 1
  %v185 = vsel %vm170, %v182, %v184
  %v186 = vrot.slane %v164, 1
  %v187 = vsel %vm170, %v184, %v186
  %v188 = vrot.slane %v163, 1
  %v189 = vrot.slane %v131, 1
  %v190 = vsel %vm170, %v188, %v189
  %v191 = vrot.slane %v133, 1
  %v192 = vsel %vm170, %v189, %v191
  %v193 = vrot.slane %v135, 1
  %v194 = vsel %vm170, %v191, %v193
  %v195 = vrot.slane %v137, 1
  %v196 = vsel %vm170, %v193, %v195
  %v197 = vrot.slane %v139, 1
  %v198 = vsel %vm170, %v195, %v197
  %v199 = vrot.slane %v141, 1
  %v200 = vsel %vm170, %v197, %v199
  %v201 = vrot.slane %v143, 1
  %v202 = vsel %vm170, %v199, %v201
  %v203 = vrot.slane %v165, 1
  %v204 = vsel %vm170, %v201, %v203
  %205 = vrot.lane.b32.xlu0 %v173, 8
  %v206 = vpop.permute.xlu0 %205
  %207 = vrot.lane.b32.xlu0 %v175, 8
  %v208 = vpop.permute.xlu0 %207
  %209 = vrot.lane.b32.xlu0 %v177, 8
  %v210 = vpop.permute.xlu0 %209
  %211 = vrot.lane.b32.xlu0 %v179, 8
  %v212 = vpop.permute.xlu0 %211
  %213 = vrot.lane.b32.xlu0 %v181, 8
  %v214 = vpop.permute.xlu0 %213
  %215 = vrot.lane.b32.xlu0 %v183, 8
  %v216 = vpop.permute.xlu0 %215
  %217 = vrot.lane.b32.xlu0 %v185, 8
  %v218 = vpop.permute.xlu0 %217
  %219 = vrot.lane.b32.xlu0 %v187, 8
  %v220 = vpop.permute.xlu0 %219
  %221 = vrot.lane.b32.xlu0 %v190, 8
  %v222 = vpop.permute.xlu0 %221
  %223 = vrot.lane.b32.xlu0 %v192, 8
  %v224 = vpop.permute.xlu0 %223
  %225 = vrot.lane.b32.xlu0 %v194, 8
  %v226 = vpop.permute.xlu0 %225
  %227 = vrot.lane.b32.xlu0 %v196, 8
  %v228 = vpop.permute.xlu0 %227
  %229 = vrot.lane.b32.xlu0 %v198, 8
  %v230 = vpop.permute.xlu0 %229
  %231 = vrot.lane.b32.xlu0 %v200, 8
  %v232 = vpop.permute.xlu0 %231
  %233 = vrot.lane.b32.xlu0 %v202, 8
  %v234 = vpop.permute.xlu0 %233
  %235 = vrot.lane.b32.xlu0 %v204, 8
  %v236 = vpop.permute.xlu0 %235
  %vm253 = vcmask 1045504
  %v254 = vrot.slane %v162, 2
  %v255 = vrot.slane %v116, 2
  %v256 = vsel %vm253, %v254, %v255
  %v257 = vrot.slane %v118, 2
  %v258 = vsel %vm253, %v255, %v257
  %v259 = vrot.slane %v120, 2
  %v260 = vsel %vm253, %v257, %v259
  %v261 = vrot.slane %v122, 2
  %v262 = vsel %vm253, %v259, %v261
  %v263 = vrot.slane %v124, 2
  %v264 = vsel %vm253, %v261, %v263
  %v265 = vrot.slane %v126, 2
  %v266 = vsel %vm253, %v263, %v265
  %v267 = vrot.slane %v128, 2
  %v268 = vsel %vm253, %v265, %v267
  %v269 = vrot.slane %v164, 2
  %v270 = vsel %vm253, %v267, %v269
  %v271 = vrot.slane %v163, 2
  %v272 = vrot.slane %v131, 2
  %v273 = vsel %vm253, %v271, %v272
  %v274 = vrot.slane %v133, 2
  %v275 = vsel %vm253, %v272, %v274
  %v276 = vrot.slane %v135, 2
  %v277 = vsel %vm253, %v274, %v276
  %v278 = vrot.slane %v137, 2
  %v279 = vsel %vm253, %v276, %v278
  %v280 = vrot.slane %v139, 2
  %v281 = vsel %vm253, %v278, %v280
  %v282 = vrot.slane %v141, 2
  %v283 = vsel %vm253, %v280, %v282
  %v284 = vrot.slane %v143, 2
  %v285 = vsel %vm253, %v282, %v284
  %v286 = vrot.slane %v165, 2
  %v287 = vsel %vm253, %v284, %v286
  %288 = vrot.lane.b32.xlu0 %v256, 16
  %v289 = vpop.permute.xlu0 %288
  %290 = vrot.lane.b32.xlu0 %v258, 16
  %v291 = vpop.permute.xlu0 %290
  %292 = vrot.lane.b32.xlu0 %v260, 16
  %v293 = vpop.permute.xlu0 %292
  %294 = vrot.lane.b32.xlu0 %v262, 16
  %v295 = vpop.permute.xlu0 %294
  %296 = vrot.lane.b32.xlu0 %v264, 16
  %v297 = vpop.permute.xlu0 %296
  %298 = vrot.lane.b32.xlu0 %v266, 16
  %v299 = vpop.permute.xlu0 %298
  %300 = vrot.lane.b32.xlu0 %v268, 16
  %v301 = vpop.permute.xlu0 %300
  %302 = vrot.lane.b32.xlu0 %v270, 16
  %v303 = vpop.permute.xlu0 %302
  %304 = vrot.lane.b32.xlu0 %v273, 16
  %v305 = vpop.permute.xlu0 %304
  %306 = vrot.lane.b32.xlu0 %v275, 16
  %v307 = vpop.permute.xlu0 %306
  %308 = vrot.lane.b32.xlu0 %v277, 16
  %v309 = vpop.permute.xlu0 %308
  %310 = vrot.lane.b32.xlu0 %v279, 16
  %v311 = vpop.permute.xlu0 %310
  %312 = vrot.lane.b32.xlu0 %v281, 16
  %v313 = vpop.permute.xlu0 %312
  %314 = vrot.lane.b32.xlu0 %v283, 16
  %v315 = vpop.permute.xlu0 %314
  %316 = vrot.lane.b32.xlu0 %v285, 16
  %v317 = vpop.permute.xlu0 %316
  %318 = vrot.lane.b32.xlu0 %v287, 16
  %v319 = vpop.permute.xlu0 %318
  %vm336 = vcmask 1044480
  %v337 = vrot.slane %v162, 3
  %v338 = vrot.slane %v116, 3
  %v339 = vsel %vm336, %v337, %v338
  %v340 = vrot.slane %v118, 3
  %v341 = vsel %vm336, %v338, %v340
  %v342 = vrot.slane %v120, 3
  %v343 = vsel %vm336, %v340, %v342
  %v344 = vrot.slane %v122, 3
  %v345 = vsel %vm336, %v342, %v344
  %v346 = vrot.slane %v124, 3
  %v347 = vsel %vm336, %v344, %v346
  %v348 = vrot.slane %v126, 3
  %v349 = vsel %vm336, %v346, %v348
  %v350 = vrot.slane %v128, 3
  %v351 = vsel %vm336, %v348, %v350
  %v352 = vrot.slane %v164, 3
  %v353 = vsel %vm336, %v350, %v352
  %v354 = vrot.slane %v163, 3
  %v355 = vrot.slane %v131, 3
  %v356 = vsel %vm336, %v354, %v355
  %v357 = vrot.slane %v133, 3
  %v358 = vsel %vm336, %v355, %v357
  %v359 = vrot.slane %v135, 3
  %v360 = vsel %vm336, %v357, %v359
  %v361 = vrot.slane %v137, 3
  %v362 = vsel %vm336, %v359, %v361
  %v363 = vrot.slane %v139, 3
  %v364 = vsel %vm336, %v361, %v363
  %v365 = vrot.slane %v141, 3
  %v366 = vsel %vm336, %v363, %v365
  %v367 = vrot.slane %v143, 3
  %v368 = vsel %vm336, %v365, %v367
  %v369 = vrot.slane %v165, 3
  %v370 = vsel %vm336, %v367, %v369
  %371 = vrot.lane.b32.xlu0 %v339, 24
  %v372 = vpop.permute.xlu0 %371
  %373 = vrot.lane.b32.xlu0 %v341, 24
  %v374 = vpop.permute.xlu0 %373
  %375 = vrot.lane.b32.xlu0 %v343, 24
  %v376 = vpop.permute.xlu0 %375
  %377 = vrot.lane.b32.xlu0 %v345, 24
  %v378 = vpop.permute.xlu0 %377
  %379 = vrot.lane.b32.xlu0 %v347, 24
  %v380 = vpop.permute.xlu0 %379
  %381 = vrot.lane.b32.xlu0 %v349, 24
  %v382 = vpop.permute.xlu0 %381
  %383 = vrot.lane.b32.xlu0 %v351, 24
  %v384 = vpop.permute.xlu0 %383
  %385 = vrot.lane.b32.xlu0 %v353, 24
  %v386 = vpop.permute.xlu0 %385
  %387 = vrot.lane.b32.xlu0 %v356, 24
  %v388 = vpop.permute.xlu0 %387
  %389 = vrot.lane.b32.xlu0 %v358, 24
  %v390 = vpop.permute.xlu0 %389
  %391 = vrot.lane.b32.xlu0 %v360, 24
  %v392 = vpop.permute.xlu0 %391
  %393 = vrot.lane.b32.xlu0 %v362, 24
  %v394 = vpop.permute.xlu0 %393
  %395 = vrot.lane.b32.xlu0 %v364, 24
  %v396 = vpop.permute.xlu0 %395
  %397 = vrot.lane.b32.xlu0 %v366, 24
  %v398 = vpop.permute.xlu0 %397
  %399 = vrot.lane.b32.xlu0 %v368, 24
  %v400 = vpop.permute.xlu0 %399
  %401 = vrot.lane.b32.xlu0 %v370, 24
  %v402 = vpop.permute.xlu0 %401
  %vm419 = vcmask 1043456
  %v420 = vrot.slane %v162, 4
  %v421 = vrot.slane %v116, 4
  %v422 = vsel %vm419, %v420, %v421
  %v423 = vrot.slane %v118, 4
  %v424 = vsel %vm419, %v421, %v423
  %v425 = vrot.slane %v120, 4
  %v426 = vsel %vm419, %v423, %v425
  %v427 = vrot.slane %v122, 4
  %v428 = vsel %vm419, %v425, %v427
  %v429 = vrot.slane %v124, 4
  %v430 = vsel %vm419, %v427, %v429
  %v431 = vrot.slane %v126, 4
  %v432 = vsel %vm419, %v429, %v431
  %v433 = vrot.slane %v128, 4
  %v434 = vsel %vm419, %v431, %v433
  %v435 = vrot.slane %v164, 4
  %v436 = vsel %vm419, %v433, %v435
  %v437 = vrot.slane %v163, 4
  %v438 = vrot.slane %v131, 4
  %v439 = vsel %vm419, %v437, %v438
  %v440 = vrot.slane %v133, 4
  %v441 = vsel %vm419, %v438, %v440
  %v442 = vrot.slane %v135, 4
  %v443 = vsel %vm419, %v440, %v442
  %v444 = vrot.slane %v137, 4
  %v445 = vsel %vm419, %v442, %v444
  %v446 = vrot.slane %v139, 4
  %v447 = vsel %vm419, %v444, %v446
  %v448 = vrot.slane %v141, 4
  %v449 = vsel %vm419, %v446, %v448
  %v450 = vrot.slane %v143, 4
  %v451 = vsel %vm419, %v448, %v450
  %v452 = vrot.slane %v165, 4
  %v453 = vsel %vm419, %v450, %v452
  %454 = vrot.lane.b32.xlu0 %v422, 32
  %v455 = vpop.permute.xlu0 %454
  %456 = vrot.lane.b32.xlu0 %v424, 32
  %v457 = vpop.permute.xlu0 %456
  %458 = vrot.lane.b32.xlu0 %v426, 32
  %v459 = vpop.permute.xlu0 %458
  %460 = vrot.lane.b32.xlu0 %v428, 32
  %v461 = vpop.permute.xlu0 %460
  %462 = vrot.lane.b32.xlu0 %v430, 32
  %v463 = vpop.permute.xlu0 %462
  %464 = vrot.lane.b32.xlu0 %v432, 32
  %v465 = vpop.permute.xlu0 %464
  %466 = vrot.lane.b32.xlu0 %v434, 32
  %v467 = vpop.permute.xlu0 %466
  %468 = vrot.lane.b32.xlu0 %v436, 32
  %v469 = vpop.permute.xlu0 %468
  %470 = vrot.lane.b32.xlu0 %v439, 32
  %v471 = vpop.permute.xlu0 %470
  %472 = vrot.lane.b32.xlu0 %v441, 32
  %v473 = vpop.permute.xlu0 %472
  %474 = vrot.lane.b32.xlu0 %v443, 32
  %v475 = vpop.permute.xlu0 %474
  %476 = vrot.lane.b32.xlu0 %v445, 32
  %v477 = vpop.permute.xlu0 %476
  %478 = vrot.lane.b32.xlu0 %v447, 32
  %v479 = vpop.permute.xlu0 %478
  %480 = vrot.lane.b32.xlu0 %v449, 32
  %v481 = vpop.permute.xlu0 %480
  %482 = vrot.lane.b32.xlu0 %v451, 32
  %v483 = vpop.permute.xlu0 %482
  %484 = vrot.lane.b32.xlu0 %v453, 32
  %v485 = vpop.permute.xlu0 %484
  %v502 = vrot.slane %v162, 5
  %v503 = vrot.slane %v116, 5
  %v504 = vsel %vm113, %v502, %v503
  %v505 = vrot.slane %v118, 5
  %v506 = vsel %vm113, %v503, %v505
  %v507 = vrot.slane %v120, 5
  %v508 = vsel %vm113, %v505, %v507
  %v509 = vrot.slane %v122, 5
  %v510 = vsel %vm113, %v507, %v509
  %v511 = vrot.slane %v124, 5
  %v512 = vsel %vm113, %v509, %v511
  %v513 = vrot.slane %v126, 5
  %v514 = vsel %vm113, %v511, %v513
  %v515 = vrot.slane %v128, 5
  %v516 = vsel %vm113, %v513, %v515
  %v517 = vrot.slane %v164, 5
  %v518 = vsel %vm113, %v515, %v517
  %v519 = vrot.slane %v163, 5
  %v520 = vrot.slane %v131, 5
  %v521 = vsel %vm113, %v519, %v520
  %v522 = vrot.slane %v133, 5
  %v523 = vsel %vm113, %v520, %v522
  %v524 = vrot.slane %v135, 5
  %v525 = vsel %vm113, %v522, %v524
  %v526 = vrot.slane %v137, 5
  %v527 = vsel %vm113, %v524, %v526
  %v528 = vrot.slane %v139, 5
  %v529 = vsel %vm113, %v526, %v528
  %v530 = vrot.slane %v141, 5
  %v531 = vsel %vm113, %v528, %v530
  %v532 = vrot.slane %v143, 5
  %v533 = vsel %vm113, %v530, %v532
  %v534 = vrot.slane %v165, 5
  %v535 = vsel %vm113, %v532, %v534
  %536 = vrot.lane.b32.xlu0 %v504, 40
  %v537 = vpop.permute.xlu0 %536
  %538 = vrot.lane.b32.xlu0 %v506, 40
  %v539 = vpop.permute.xlu0 %538
  %540 = vrot.lane.b32.xlu0 %v508, 40
  %v541 = vpop.permute.xlu0 %540
  %542 = vrot.lane.b32.xlu0 %v510, 40
  %v543 = vpop.permute.xlu0 %542
  %544 = vrot.lane.b32.xlu0 %v512, 40
  %v545 = vpop.permute.xlu0 %544
  %546 = vrot.lane.b32.xlu0 %v514, 40
  %v547 = vpop.permute.xlu0 %546
  %548 = vrot.lane.b32.xlu0 %v516, 40
  %v549 = vpop.permute.xlu0 %548
  %550 = vrot.lane.b32.xlu0 %v518, 40
  %v551 = vpop.permute.xlu0 %550
  %552 = vrot.lane.b32.xlu0 %v521, 40
  %v553 = vpop.permute.xlu0 %552
  %554 = vrot.lane.b32.xlu0 %v523, 40
  %v555 = vpop.permute.xlu0 %554
  %556 = vrot.lane.b32.xlu0 %v525, 40
  %v557 = vpop.permute.xlu0 %556
  %558 = vrot.lane.b32.xlu0 %v527, 40
  %v559 = vpop.permute.xlu0 %558
  %560 = vrot.lane.b32.xlu0 %v529, 40
  %v561 = vpop.permute.xlu0 %560
  %562 = vrot.lane.b32.xlu0 %v531, 40
  %v563 = vpop.permute.xlu0 %562
  %564 = vrot.lane.b32.xlu0 %v533, 40
  %v565 = vpop.permute.xlu0 %564
  %566 = vrot.lane.b32.xlu0 %v535, 40
  %v567 = vpop.permute.xlu0 %566
  %vm584 = vcmask 1041408
  %v585 = vrot.slane %v162, 6
  %v586 = vrot.slane %v116, 6
  %v587 = vsel %vm584, %v585, %v586
  %v588 = vrot.slane %v118, 6
  %v589 = vsel %vm584, %v586, %v588
  %v590 = vrot.slane %v120, 6
  %v591 = vsel %vm584, %v588, %v590
  %v592 = vrot.slane %v122, 6
  %v593 = vsel %vm584, %v590, %v592
  %v594 = vrot.slane %v124, 6
  %v595 = vsel %vm584, %v592, %v594
  %v596 = vrot.slane %v126, 6
  %v597 = vsel %vm584, %v594, %v596
  %v598 = vrot.slane %v128, 6
  %v599 = vsel %vm584, %v596, %v598
  %v600 = vrot.slane %v164, 6
  %v601 = vsel %vm584, %v598, %v600
  %v602 = vrot.slane %v163, 6
  %v603 = vrot.slane %v131, 6
  %v604 = vsel %vm584, %v602, %v603
  %v605 = vrot.slane %v133, 6
  %v606 = vsel %vm584, %v603, %v605
  %v607 = vrot.slane %v135, 6
  %v608 = vsel %vm584, %v605, %v607
  %v609 = vrot.slane %v137, 6
  %v610 = vsel %vm584, %v607, %v609
  %v611 = vrot.slane %v139, 6
  %v612 = vsel %vm584, %v609, %v611
  %v613 = vrot.slane %v141, 6
  %v614 = vsel %vm584, %v611, %v613
  %v615 = vrot.slane %v143, 6
  %v616 = vsel %vm584, %v613, %v615
  %v617 = vrot.slane %v165, 6
  %v618 = vsel %vm584, %v615, %v617
  %619 = vrot.lane.b32.xlu0 %v587, 48
  %v620 = vpop.permute.xlu0 %619
  %621 = vrot.lane.b32.xlu0 %v589, 48
  %v622 = vpop.permute.xlu0 %621
  %623 = vrot.lane.b32.xlu0 %v591, 48
  %v624 = vpop.permute.xlu0 %623
  %625 = vrot.lane.b32.xlu0 %v593, 48
  %v626 = vpop.permute.xlu0 %625
  %627 = vrot.lane.b32.xlu0 %v595, 48
  %v628 = vpop.permute.xlu0 %627
  %629 = vrot.lane.b32.xlu0 %v597, 48
  %v630 = vpop.permute.xlu0 %629
  %631 = vrot.lane.b32.xlu0 %v599, 48
  %v632 = vpop.permute.xlu0 %631
  %633 = vrot.lane.b32.xlu0 %v601, 48
  %v634 = vpop.permute.xlu0 %633
  %635 = vrot.lane.b32.xlu0 %v604, 48
  %v636 = vpop.permute.xlu0 %635
  %637 = vrot.lane.b32.xlu0 %v606, 48
  %v638 = vpop.permute.xlu0 %637
  %639 = vrot.lane.b32.xlu0 %v608, 48
  %v640 = vpop.permute.xlu0 %639
  %641 = vrot.lane.b32.xlu0 %v610, 48
  %v642 = vpop.permute.xlu0 %641
  %643 = vrot.lane.b32.xlu0 %v612, 48
  %v644 = vpop.permute.xlu0 %643
  %645 = vrot.lane.b32.xlu0 %v614, 48
  %v646 = vpop.permute.xlu0 %645
  %647 = vrot.lane.b32.xlu0 %v616, 48
  %v648 = vpop.permute.xlu0 %647
  %649 = vrot.lane.b32.xlu0 %v618, 48
  %v650 = vpop.permute.xlu0 %649
  %vm667 = vcmask 64512
  %v668 = vsel %vm667, %v162, %v206
  %v669 = vsel %vm667, %v116, %v208
  %v670 = vsel %vm667, %v118, %v210
  %v671 = vsel %vm667, %v120, %v212
  %v672 = vsel %vm667, %v122, %v214
  %v673 = vsel %vm667, %v124, %v216
  %v674 = vsel %vm667, %v126, %v218
  %v675 = vsel %vm667, %v128, %v220
  %v676 = vsel %vm667, %v163, %v222
  %v677 = vsel %vm667, %v131, %v224
  %v678 = vsel %vm667, %v133, %v226
  %v679 = vsel %vm667, %v135, %v228
  %v680 = vsel %vm667, %v137, %v230
  %v681 = vsel %vm667, %v139, %v232
  %v682 = vsel %vm667, %v141, %v234
  %v683 = vsel %vm667, %v143, %v236
  %vm684 = vcmask 130048
  %v685 = vsel %vm684, %v668, %v289
  %v686 = vsel %vm684, %v669, %v291
  %v687 = vsel %vm684, %v670, %v293
  %v688 = vsel %vm684, %v671, %v295
  %v689 = vsel %vm684, %v672, %v297
  %v690 = vsel %vm684, %v673, %v299
  %v691 = vsel %vm684, %v674, %v301
  %v692 = vsel %vm684, %v675, %v303
  %v693 = vsel %vm684, %v676, %v305
  %v694 = vsel %vm684, %v677, %v307
  %v695 = vsel %vm684, %v678, %v309
  %v696 = vsel %vm684, %v679, %v311
  %v697 = vsel %vm684, %v680, %v313
  %v698 = vsel %vm684, %v681, %v315
  %v699 = vsel %vm684, %v682, %v317
  %v700 = vsel %vm684, %v683, %v319
  %vm701 = vcmask 195584
  %v702 = vsel %vm701, %v685, %v372
  %v703 = vsel %vm701, %v686, %v374
  %v704 = vsel %vm701, %v687, %v376
  %v705 = vsel %vm701, %v688, %v378
  %v706 = vsel %vm701, %v689, %v380
  %v707 = vsel %vm701, %v690, %v382
  %v708 = vsel %vm701, %v691, %v384
  %v709 = vsel %vm701, %v692, %v386
  %v710 = vsel %vm701, %v693, %v388
  %v711 = vsel %vm701, %v694, %v390
  %v712 = vsel %vm701, %v695, %v392
  %v713 = vsel %vm701, %v696, %v394
  %v714 = vsel %vm701, %v697, %v396
  %v715 = vsel %vm701, %v698, %v398
  %v716 = vsel %vm701, %v699, %v400
  %v717 = vsel %vm701, %v700, %v402
  %vm718 = vcmask 261120
  %v719 = vsel %vm718, %v702, %v455
  %v720 = vsel %vm718, %v703, %v457
  %v721 = vsel %vm718, %v704, %v459
  %v722 = vsel %vm718, %v705, %v461
  %v723 = vsel %vm718, %v706, %v463
  %v724 = vsel %vm718, %v707, %v465
  %v725 = vsel %vm718, %v708, %v467
  %v726 = vsel %vm718, %v709, %v469
  %v727 = vsel %vm718, %v710, %v471
  %v728 = vsel %vm718, %v711, %v473
  %v729 = vsel %vm718, %v712, %v475
  %v730 = vsel %vm718, %v713, %v477
  %v731 = vsel %vm718, %v714, %v479
  %v732 = vsel %vm718, %v715, %v481
  %v733 = vsel %vm718, %v716, %v483
  %v734 = vsel %vm718, %v717, %v485
  %vm735 = vcmask 326656
  %v736 = vsel %vm735, %v719, %v537
  %v737 = vsel %vm735, %v720, %v539
  %v738 = vsel %vm735, %v721, %v541
  %v739 = vsel %vm735, %v722, %v543
  %v740 = vsel %vm735, %v723, %v545
  %v741 = vsel %vm735, %v724, %v547
  %v742 = vsel %vm735, %v725, %v549
  %v743 = vsel %vm735, %v726, %v551
  %v744 = vsel %vm735, %v727, %v553
  %v745 = vsel %vm735, %v728, %v555
  %v746 = vsel %vm735, %v729, %v557
  %v747 = vsel %vm735, %v730, %v559
  %v748 = vsel %vm735, %v731, %v561
  %v749 = vsel %vm735, %v732, %v563
  %v750 = vsel %vm735, %v733, %v565
  %v751 = vsel %vm735, %v734, %v567
  %vm752 = vcmask 392192
  %v753 = vsel %vm752, %v736, %v620
  %v754 = vsel %vm752, %v737, %v622
  %v755 = vsel %vm752, %v738, %v624
  %v756 = vsel %vm752, %v739, %v626
  %v757 = vsel %vm752, %v740, %v628
  %v758 = vsel %vm752, %v741, %v630
  %v759 = vsel %vm752, %v742, %v632
  %v760 = vsel %vm752, %v743, %v634
  %v761 = vsel %vm752, %v744, %v636
  %v762 = vsel %vm752, %v745, %v638
  %v763 = vsel %vm752, %v746, %v640
  %v764 = vsel %vm752, %v747, %v642
  %v765 = vsel %vm752, %v748, %v644
  %v766 = vsel %vm752, %v749, %v646
  %v767 = vsel %vm752, %v750, %v648
  %v768 = vsel %vm752, %v751, %v650
  %v769 = vpack.c.bf16 %v754, %v753
  %v770 = vpack.c.bf16 %v756, %v755
  %v771 = vpack.c.bf16 %v758, %v757
  %v772 = vpack.c.bf16 %v760, %v759
  %v773 = vpack.c.bf16 %v762, %v761
  %v774 = vpack.c.bf16 %v764, %v763
  %v775 = vpack.c.bf16 %v766, %v765
  %v776 = vpack.c.bf16 %v768, %v767
  %v777 = vld [vmem:[%s1] sm:$0xf]
  %v778 = vld [vmem:[%s1 + $0x4] sm:$0xf]
  %v779 = vld [vmem:[%s1 + $0x8] sm:$0xf]
  %v780 = vld [vmem:[%s1 + $0xc] sm:$0xf]
  %v781 = vld [vmem:[%s1 + $0x10] sm:$0xf]
  %v782 = vld [vmem:[%s1 + $0x14] sm:$0xf]
  %v783 = vld [vmem:[%s1 + $0x18] sm:$0xf]
  %v784 = vld [vmem:[#allocation2] sm:$0x1]
  %v786 = vperm.slane %v784, 0
  %v795 = vunpack.c.l.b16 %v777
  %v796 = vunpack.c.l.b16 %v778
  %v797 = vunpack.c.l.b16 %v779
  %v798 = vunpack.c.l.b16 %v780
  %v799 = vunpack.c.l.b16 %v781
  %v800 = vunpack.c.l.b16 %v782
  %v801 = vunpack.c.l.b16 %v783
  %v802 = vpack.c.b16 %v796, %v795
  %v803 = vpack.c.b16 %v798, %v797
  %v804 = vpack.c.b16 %v800, %v799
  %v805 = vpack.c.b16 %v801, %v801
  %vm809 = vcmask 457728
  %v811 = vsel %vm809, %v769, 0
  %v814 = vsel %vm809, %v770, 0
  %v817 = vsel %vm809, %v771, 0
  %v820 = vsel %vm809, %v772, 0
  %v823 = vsel %vm809, %v773, 0
  %v826 = vsel %vm809, %v774, 0
  %v829 = vsel %vm809, %v775, 0
  %v832 = vsel %vm809, %v776, 0
  %v835 = vsel %vm419, %v805, 0
  %837 = vmatpush.bf16.msra.mxu0 0
  %838 = vmatpush.bf16.msra.mxu0 0
  %839 = vmatpush.bf16.msra.mxu0 0
  %840 = vmatpush.bf16.msra.mxu0 0
  %841 = vmatpush.bf16.msra.mxu0 %v835
  %842 = vmatpush.bf16.msra.mxu0 %v804
  %843 = vmatpush.bf16.msra.mxu0 %v803
  %844 = vmatpush.bf16.msra.mxu0 %v802
  %845 = vmatmul.bf16.gmra.mxu0 %v811
  %v846 = vpop.f32.mrf.mxu0
  %v847 = vadd.f32 %v786, %v846
  %v848 = vpop.f32.mrf.mxu0
  %v849 = vadd.f32 %v786, %v848
  %850 = vmatmul.bf16.gmra.mxu0 %v814
  %v851 = vpop.f32.mrf.mxu0
  %v852 = vadd.f32 %v786, %v851
  %v853 = vpop.f32.mrf.mxu0
  %v854 = vadd.f32 %v786, %v853
  %855 = vmatmul.bf16.gmra.mxu0 %v817
  %v856 = vpop.f32.mrf.mxu0
  %v857 = vadd.f32 %v786, %v856
  %v858 = vpop.f32.mrf.mxu0
  %v859 = vadd.f32 %v786, %v858
  %860 = vmatmul.bf16.gmra.mxu0 %v820
  %v861 = vpop.f32.mrf.mxu0
  %v862 = vadd.f32 %v786, %v861
  %v863 = vpop.f32.mrf.mxu0
  %v864 = vadd.f32 %v786, %v863
  %865 = vmatmul.bf16.gmra.mxu0 %v823
  %v866 = vpop.f32.mrf.mxu0
  %v867 = vadd.f32 %v786, %v866
  %v868 = vpop.f32.mrf.mxu0
  %v869 = vadd.f32 %v786, %v868
  %870 = vmatmul.bf16.gmra.mxu0 %v826
  %v871 = vpop.f32.mrf.mxu0
  %v872 = vadd.f32 %v786, %v871
  %v873 = vpop.f32.mrf.mxu0
  %v874 = vadd.f32 %v786, %v873
  %875 = vmatmul.bf16.gmra.mxu0 %v829
  %v876 = vpop.f32.mrf.mxu0
  %v877 = vadd.f32 %v786, %v876
  %v878 = vpop.f32.mrf.mxu0
  %v879 = vadd.f32 %v786, %v878
  %880 = vmatmul.bf16.gmra.mxu0 %v832
  %v881 = vpop.f32.mrf.mxu0
  %v882 = vadd.f32 %v786, %v881
  %v883 = vpop.f32.mrf.mxu0
  %v884 = vadd.f32 %v786, %v883
  %885 = vdwg.mxu0
  %v886 = vtanh.pop %v847
  %v887 = vtanh.pop %v849
  %v888 = vtanh.pop %v852
  %v889 = vtanh.pop %v854
  %v890 = vtanh.pop %v857
  %v891 = vtanh.pop %v859
  %v892 = vtanh.pop %v862
  %v893 = vtanh.pop %v864
  %v894 = vtanh.pop %v867
  %v895 = vtanh.pop %v869
  %v896 = vtanh.pop %v872
  %v897 = vtanh.pop %v874
  %v898 = vtanh.pop %v877
  %v899 = vtanh.pop %v879
  %v900 = vtanh.pop %v882
  %v901 = vtanh.pop %v884
  %vm902 = vcmask 7168
  %903 = vst.msk [vmem:[%s3] sm:$0xff] %vm902, %v886
  %904 = vst.msk [vmem:[%s3 + $0x8] sm:$0xff] %vm902, %v887
  %905 = vst.msk [vmem:[%s3 + $0x10] sm:$0xff] %vm902, %v888
  %906 = vst.msk [vmem:[%s3 + $0x18] sm:$0xff] %vm902, %v889
  %907 = vst.msk [vmem:[%s3 + $0x20] sm:$0xff] %vm902, %v890
  %908 = vst.msk [vmem:[%s3 + $0x28] sm:$0xff] %vm902, %v891
  %909 = vst.msk [vmem:[%s3 + $0x30] sm:$0xff] %vm902, %v892
  %910 = vst.msk [vmem:[%s3 + $0x38] sm:$0xff] %vm902, %v893
  %911 = vst.msk [vmem:[%s3 + $0x40] sm:$0xff] %vm902, %v894
  %912 = vst.msk [vmem:[%s3 + $0x48] sm:$0xff] %vm902, %v895
  %913 = vst.msk [vmem:[%s3 + $0x50] sm:$0xff] %vm902, %v896
  %914 = vst.msk [vmem:[%s3 + $0x58] sm:$0xff] %vm902, %v897
  %915 = vst.msk [vmem:[%s3 + $0x60] sm:$0xff] %vm902, %v898
  %916 = vst.msk [vmem:[%s3 + $0x68] sm:$0xff] %vm902, %v899
  %917 = vst.msk [vmem:[%s3 + $0x70] sm:$0xff] %vm902, %v900
  %918 = vst.msk [vmem:[%s3 + $0x78] sm:$0xff] %vm902, %v901
  // Predicated region
  $region14: #{synthesizer_forward.25} parent=0 // pred_check
    _
  $region15: #{synthesizer_forward.25} parent=0 // pred_check_branch
    %920 = sbr.rel (0) target = $region17
  $region16: #{synthesizer_forward.25} parent=0 // pred_region
    _
  $region17: #{synthesizer_forward.25} parent=0 // pred_fallthru
    _
  // Predicated region
  $region18: #{synthesizer_forward.25} parent=0 // pred_check
    _
  $region19: #{synthesizer_forward.25} parent=0 // pred_check_branch
    %922 = sbr.rel (0) target = $region21
  $region20: #{synthesizer_forward.25} parent=0 // pred_region
    _
  $region21: #{synthesizer_forward.25} parent=0 // pred_fallthru
    _

// kernel: synthesizer_forward.30
$region0: #{synthesizer_forward.30}
  #allocation0 [shape = 'u32[]', space=smem, size = 0x4, offset = 0x4, fixed_abs, tag = 'smem constant byte address 0x4 - core index']
  #allocation1 [shape = 'u32[72,128]{1,0:T(1,128)}', space=vmem, size = 0x9000, scoped, tag = 'internal scratch']
  %s0 = inlined_call_operand.vmem [shape: f32[16,768], index: 0, kind: input, shape index: {}]
  %s1 = inlined_call_operand.vmem [shape: bf16[768,32], index: 1, kind: input, shape index: {}]
  %s2 = inlined_call_operand.vmem [shape: f32[1,32], index: 2, kind: input, shape index: {}]
  %s3 = inlined_call_operand.vmem [shape: f32[16,32], index: 3, kind: output, shape index: {}]
  %s4 = sld [smem:[#allocation0]]
  $region22: #{synthesizer_forward.30} parent=0
    _
  %s6 = ssub.s32 1, %s4
  %s7 = scalar_select 0, %s6, %s4
  // Predicated region
  $region2: #{synthesizer_forward.30} parent=0 // pred_check
    _
  $region3: #{synthesizer_forward.30} parent=0 // pred_check_branch
    %9 = sbr.rel (0) target = $region5
  $region4: #{synthesizer_forward.30} parent=0 // pred_region
    _
  $region5: #{synthesizer_forward.30} parent=0 // pred_fallthru
    _
  // Predicated region
  $region6: #{synthesizer_forward.30} parent=0 // pred_check
    _
  $region7: #{synthesizer_forward.30} parent=0 // pred_check_branch
    %11 = sbr.rel (0) target = $region9
  $region8: #{synthesizer_forward.30} parent=0 // pred_region
    _
  $region9: #{synthesizer_forward.30} parent=0 // pred_fallthru
    _
  // Predicated region
  $region10: #{synthesizer_forward.30} parent=0 // pred_check
    _
  $region11: #{synthesizer_forward.30} parent=0 // pred_check_branch
    %13 = sbr.rel (0) target = $region13
  $region12: #{synthesizer_forward.30} parent=0 // pred_region
    _
  $region13: #{synthesizer_forward.30} parent=0 // pred_fallthru
    _
  %v14 = vld [vmem:[%s0] sm:$0xff]
  %v15 = vld [vmem:[%s0 + $0x8] sm:$0xff]
  %v16 = vld [vmem:[%s0 + $0x10] sm:$0xff]
  %v17 = vld [vmem:[%s0 + $0x18] sm:$0xff]
  %v18 = vld [vmem:[%s0 + $0x20] sm:$0xff]
  %v19 = vld [vmem:[%s0 + $0x28] sm:$0xff]
  %v20 = vld [vmem:[%s0 + $0x30] sm:$0xff]
  %v21 = vld [vmem:[%s0 + $0x38] sm:$0xff]
  %v22 = vld [vmem:[%s0 + $0x40] sm:$0xff]
  %v23 = vld [vmem:[%s0 + $0x48] sm:$0xff]
  %v24 = vld [vmem:[%s0 + $0x50] sm:$0xff]
  %v25 = vld [vmem:[%s0 + $0x58] sm:$0xff]
  %v26 = vpack.c.bf16 %v20, %v14
  %v27 = vpack.c.bf16 %v21, %v15
  %v28 = vpack.c.bf16 %v22, %v16
  %v29 = vpack.c.bf16 %v23, %v17
  %v30 = vpack.c.bf16 %v24, %v18
  %v31 = vpack.c.bf16 %v25, %v19
  %v32 = vld [vmem:[%s1] sm:$0xf]
  %v33 = vld [vmem:[%s1 + $0x4] sm:$0xf]
  %v34 = vld [vmem:[%s1 + $0x8] sm:$0xf]
  %v35 = vld [vmem:[%s1 + $0xc] sm:$0xf]
  %v36 = vld [vmem:[%s1 + $0x10] sm:$0xf]
  %v37 = vld [vmem:[%s1 + $0x14] sm:$0xf]
  %v38 = vld [vmem:[%s1 + $0x18] sm:$0xf]
  %v39 = vld [vmem:[%s1 + $0x1c] sm:$0xf]
  %v40 = vld [vmem:[%s1 + $0x20] sm:$0xf]
  %v41 = vld [vmem:[%s1 + $0x24] sm:$0xf]
  %v42 = vld [vmem:[%s1 + $0x28] sm:$0xf]
  %v43 = vld [vmem:[%s1 + $0x2c] sm:$0xf]
  %v44 = vld [vmem:[%s1 + $0x30] sm:$0xf]
  %v45 = vld [vmem:[%s1 + $0x34] sm:$0xf]
  %v46 = vld [vmem:[%s1 + $0x38] sm:$0xf]
  %v47 = vld [vmem:[%s1 + $0x3c] sm:$0xf]
  %v48 = vld [vmem:[%s1 + $0x40] sm:$0xf]
  %v49 = vld [vmem:[%s1 + $0x44] sm:$0xf]
  %v50 = vld [vmem:[%s1 + $0x48] sm:$0xf]
  %v51 = vld [vmem:[%s1 + $0x4c] sm:$0xf]
  %v52 = vld [vmem:[%s1 + $0x50] sm:$0xf]
  %v53 = vld [vmem:[%s1 + $0x54] sm:$0xf]
  %v54 = vld [vmem:[%s1 + $0x58] sm:$0xf]
  %v55 = vld [vmem:[%s1 + $0x5c] sm:$0xf]
  %v56 = vld [vmem:[%s1 + $0x60] sm:$0xf]
  %v57 = vld [vmem:[%s1 + $0x64] sm:$0xf]
  %v58 = vld [vmem:[%s1 + $0x68] sm:$0xf]
  %v59 = vld [vmem:[%s1 + $0x6c] sm:$0xf]
  %v60 = vld [vmem:[%s1 + $0x70] sm:$0xf]
  %v61 = vld [vmem:[%s1 + $0x74] sm:$0xf]
  %v62 = vld [vmem:[%s1 + $0x78] sm:$0xf]
  %v63 = vld [vmem:[%s1 + $0x7c] sm:$0xf]
  %v64 = vld [vmem:[%s1 + $0x80] sm:$0xf]
  %v65 = vld [vmem:[%s1 + $0x84] sm:$0xf]
  %v66 = vld [vmem:[%s1 + $0x88] sm:$0xf]
  %v67 = vld [vmem:[%s1 + $0x8c] sm:$0xf]
  %v68 = vld [vmem:[%s1 + $0x90] sm:$0xf]
  %v69 = vld [vmem:[%s1 + $0x94] sm:$0xf]
  %v70 = vld [vmem:[%s1 + $0x98] sm:$0xf]
  %v71 = vld [vmem:[%s1 + $0x9c] sm:$0xf]
  %v72 = vld [vmem:[%s1 + $0xa0] sm:$0xf]
  %v73 = vld [vmem:[%s1 + $0xa4] sm:$0xf]
  %v74 = vld [vmem:[%s1 + $0xa8] sm:$0xf]
  %v75 = vld [vmem:[%s1 + $0xac] sm:$0xf]
  %v76 = vld [vmem:[%s1 + $0xb0] sm:$0xf]
  %v77 = vld [vmem:[%s1 + $0xb4] sm:$0xf]
  %v78 = vld [vmem:[%s1 + $0xb8] sm:$0xf]
  %v79 = vld [vmem:[%s1 + $0xbc] sm:$0xf]
  %v80 = vld [vmem:[%s1 + $0xc0] sm:$0xf]
  %v81 = vld [vmem:[%s1 + $0xc4] sm:$0xf]
  %v82 = vld [vmem:[%s1 + $0xc8] sm:$0xf]
  %v83 = vld [vmem:[%s1 + $0xcc] sm:$0xf]
  %v84 = vld [vmem:[%s1 + $0xd0] sm:$0xf]
  %v85 = vld [vmem:[%s1 + $0xd4] sm:$0xf]
  %v86 = vld [vmem:[%s1 + $0xd8] sm:$0xf]
  %v87 = vld [vmem:[%s1 + $0xdc] sm:$0xf]
  %v88 = vld [vmem:[%s1 + $0xe0] sm:$0xf]
  %v89 = vld [vmem:[%s1 + $0xe4] sm:$0xf]
  %v90 = vld [vmem:[%s1 + $0xe8] sm:$0xf]
  %v91 = vld [vmem:[%s1 + $0xec] sm:$0xf]
  %v92 = vld [vmem:[%s1 + $0xf0] sm:$0xf]
  %v93 = vld [vmem:[%s1 + $0xf4] sm:$0xf]
  %v94 = vld [vmem:[%s1 + $0xf8] sm:$0xf]
  %v95 = vld [vmem:[%s1 + $0xfc] sm:$0xf]
  %v96 = vld [vmem:[%s1 + $0x100] sm:$0xf]
  %v97 = vld [vmem:[%s1 + $0x104] sm:$0xf]
  %v98 = vld [vmem:[%s1 + $0x108] sm:$0xf]
  %v99 = vld [vmem:[%s1 + $0x10c] sm:$0xf]
  %v100 = vld [vmem:[%s1 + $0x110] sm:$0xf]
  %v101 = vld [vmem:[%s1 + $0x114] sm:$0xf]
  %v102 = vld [vmem:[%s1 + $0x118] sm:$0xf]
  %v103 = vld [vmem:[%s1 + $0x11c] sm:$0xf]
  %v104 = vld [vmem:[%s1 + $0x120] sm:$0xf]
  %v105 = vld [vmem:[%s1 + $0x124] sm:$0xf]
  %v106 = vld [vmem:[%s1 + $0x128] sm:$0xf]
  %v107 = vld [vmem:[%s1 + $0x12c] sm:$0xf]
  %v108 = vld [vmem:[%s1 + $0x130] sm:$0xf]
  %v109 = vld [vmem:[%s1 + $0x134] sm:$0xf]
  %v110 = vld [vmem:[%s1 + $0x138] sm:$0xf]
  %v111 = vld [vmem:[%s1 + $0x13c] sm:$0xf]
  %v112 = vld [vmem:[%s1 + $0x140] sm:$0xf]
  %v113 = vld [vmem:[%s1 + $0x144] sm:$0xf]
  %v114 = vld [vmem:[%s1 + $0x148] sm:$0xf]
  %v115 = vld [vmem:[%s1 + $0x14c] sm:$0xf]
  %v116 = vld [vmem:[%s1 + $0x150] sm:$0xf]
  %v117 = vld [vmem:[%s1 + $0x154] sm:$0xf]
  %v118 = vld [vmem:[%s1 + $0x158] sm:$0xf]
  %v119 = vld [vmem:[%s1 + $0x15c] sm:$0xf]
  %v120 = vld [vmem:[%s1 + $0x160] sm:$0xf]
  %v121 = vld [vmem:[%s1 + $0x164] sm:$0xf]
  %v122 = vld [vmem:[%s1 + $0x168] sm:$0xf]
  %v123 = vld [vmem:[%s1 + $0x16c] sm:$0xf]
  %v124 = vld [vmem:[%s1 + $0x170] sm:$0xf]
  %v125 = vld [vmem:[%s1 + $0x174] sm:$0xf]
  %v126 = vld [vmem:[%s1 + $0x178] sm:$0xf]
  %v127 = vld [vmem:[%s1 + $0x17c] sm:$0xf]
  %v128 = vld [vmem:[%s2] sm:$0x1]
  %v130 = vperm.slane %v128, 0
  %v228 = vunpack.c.l.b16 %v32
  %v229 = vunpack.c.l.b16 %v33
  %v230 = vunpack.c.l.b16 %v34
  %v231 = vunpack.c.l.b16 %v35
  %v232 = vunpack.c.l.b16 %v36
  %v233 = vunpack.c.l.b16 %v37
  %v234 = vunpack.c.l.b16 %v38
  %v235 = vunpack.c.l.b16 %v39
  %v236 = vunpack.c.l.b16 %v40
  %v237 = vunpack.c.l.b16 %v41
  %v238 = vunpack.c.l.b16 %v42
  %v239 = vunpack.c.l.b16 %v43
  %v240 = vunpack.c.l.b16 %v44
  %v241 = vunpack.c.l.b16 %v45
  %v242 = vunpack.c.l.b16 %v46
  %v243 = vunpack.c.l.b16 %v47
  %v244 = vunpack.c.l.b16 %v48
  %v245 = vunpack.c.l.b16 %v49
  %v246 = vunpack.c.l.b16 %v50
  %v247 = vunpack.c.l.b16 %v51
  %v248 = vunpack.c.l.b16 %v52
  %v249 = vunpack.c.l.b16 %v53
  %v250 = vunpack.c.l.b16 %v54
  %v251 = vunpack.c.l.b16 %v55
  %v252 = vunpack.c.l.b16 %v56
  %v253 = vunpack.c.l.b16 %v57
  %v254 = vunpack.c.l.b16 %v58
  %v255 = vunpack.c.l.b16 %v59
  %v256 = vunpack.c.l.b16 %v60
  %v257 = vunpack.c.l.b16 %v61
  %v258 = vunpack.c.l.b16 %v62
  %v259 = vunpack.c.l.b16 %v63
  %v260 = vunpack.c.l.b16 %v64
  %v261 = vunpack.c.l.b16 %v65
  %v262 = vunpack.c.l.b16 %v66
  %v263 = vunpack.c.l.b16 %v67
  %v264 = vunpack.c.l.b16 %v68
  %v265 = vunpack.c.l.b16 %v69
  %v266 = vunpack.c.l.b16 %v70
  %v267 = vunpack.c.l.b16 %v71
  %v268 = vunpack.c.l.b16 %v72
  %v269 = vunpack.c.l.b16 %v73
  %v270 = vunpack.c.l.b16 %v74
  %v271 = vunpack.c.l.b16 %v75
  %v272 = vunpack.c.l.b16 %v76
  %v273 = vunpack.c.l.b16 %v77
  %v274 = vunpack.c.l.b16 %v78
  %v275 = vunpack.c.l.b16 %v79
  %v276 = vunpack.c.l.b16 %v80
  %v277 = vunpack.c.l.b16 %v81
  %v278 = vunpack.c.l.b16 %v82
  %v279 = vunpack.c.l.b16 %v83
  %v280 = vunpack.c.l.b16 %v84
  %v281 = vunpack.c.l.b16 %v85
  %v282 = vunpack.c.l.b16 %v86
  %v283 = vunpack.c.l.b16 %v87
  %v284 = vunpack.c.l.b16 %v88
  %v285 = vunpack.c.l.b16 %v89
  %v286 = vunpack.c.l.b16 %v90
  %v287 = vunpack.c.l.b16 %v91
  %v288 = vunpack.c.l.b16 %v92
  %v289 = vunpack.c.l.b16 %v93
  %v290 = vunpack.c.l.b16 %v94
  %v291 = vunpack.c.l.b16 %v95
  %v292 = vunpack.c.l.b16 %v96
  %v293 = vunpack.c.l.b16 %v97
  %v294 = vunpack.c.l.b16 %v98
  %v295 = vunpack.c.l.b16 %v99
  %v296 = vunpack.c.l.b16 %v100
  %v297 = vunpack.c.l.b16 %v101
  %v298 = vunpack.c.l.b16 %v102
  %v299 = vunpack.c.l.b16 %v103
  %v300 = vunpack.c.l.b16 %v104
  %v301 = vunpack.c.l.b16 %v105
  %v302 = vunpack.c.l.b16 %v106
  %v303 = vunpack.c.l.b16 %v107
  %v304 = vunpack.c.l.b16 %v108
  %v305 = vunpack.c.l.b16 %v109
  %v306 = vunpack.c.l.b16 %v110
  %v307 = vunpack.c.l.b16 %v111
  %v308 = vunpack.c.l.b16 %v112
  %v309 = vunpack.c.l.b16 %v113
  %v310 = vunpack.c.l.b16 %v114
  %v311 = vunpack.c.l.b16 %v115
  %v312 = vunpack.c.l.b16 %v116
  %v313 = vunpack.c.l.b16 %v117
  %v314 = vunpack.c.l.b16 %v118
  %v315 = vunpack.c.l.b16 %v119
  %v316 = vunpack.c.l.b16 %v120
  %v317 = vunpack.c.l.b16 %v121
  %v318 = vunpack.c.l.b16 %v122
  %v319 = vunpack.c.l.b16 %v123
  %v320 = vunpack.c.l.b16 %v124
  %v321 = vunpack.c.l.b16 %v125
  %v322 = vunpack.c.l.b16 %v126
  %v323 = vunpack.c.l.b16 %v127
  %v324 = vpack.c.b16 %v229, %v228
  %v325 = vpack.c.b16 %v231, %v230
  %v326 = vpack.c.b16 %v233, %v232
  %v327 = vpack.c.b16 %v235, %v234
  %v328 = vpack.c.b16 %v237, %v236
  %v329 = vpack.c.b16 %v239, %v238
  %v330 = vpack.c.b16 %v241, %v240
  %v331 = vpack.c.b16 %v243, %v242
  %v332 = vpack.c.b16 %v245, %v244
  %v333 = vpack.c.b16 %v247, %v246
  %v334 = vpack.c.b16 %v249, %v248
  %v335 = vpack.c.b16 %v251, %v250
  %v336 = vpack.c.b16 %v253, %v252
  %v337 = vpack.c.b16 %v255, %v254
  %v338 = vpack.c.b16 %v257, %v256
  %v339 = vpack.c.b16 %v259, %v258
  %v340 = vpack.c.b16 %v261, %v260
  %v341 = vpack.c.b16 %v263, %v262
  %v342 = vpack.c.b16 %v265, %v264
  %v343 = vpack.c.b16 %v267, %v266
  %v344 = vpack.c.b16 %v269, %v268
  %v345 = vpack.c.b16 %v271, %v270
  %v346 = vpack.c.b16 %v273, %v272
  %v347 = vpack.c.b16 %v275, %v274
  %v348 = vpack.c.b16 %v277, %v276
  %v349 = vpack.c.b16 %v279, %v278
  %v350 = vpack.c.b16 %v281, %v280
  %v351 = vpack.c.b16 %v283, %v282
  %v352 = vpack.c.b16 %v285, %v284
  %v353 = vpack.c.b16 %v287, %v286
  %v354 = vpack.c.b16 %v289, %v288
  %v355 = vpack.c.b16 %v291, %v290
  %v356 = vpack.c.b16 %v293, %v292
  %v357 = vpack.c.b16 %v295, %v294
  %v358 = vpack.c.b16 %v297, %v296
  %v359 = vpack.c.b16 %v299, %v298
  %v360 = vpack.c.b16 %v301, %v300
  %v361 = vpack.c.b16 %v303, %v302
  %v362 = vpack.c.b16 %v305, %v304
  %v363 = vpack.c.b16 %v307, %v306
  %v364 = vpack.c.b16 %v309, %v308
  %v365 = vpack.c.b16 %v311, %v310
  %v366 = vpack.c.b16 %v313, %v312
  %v367 = vpack.c.b16 %v315, %v314
  %v368 = vpack.c.b16 %v317, %v316
  %v369 = vpack.c.b16 %v319, %v318
  %v370 = vpack.c.b16 %v321, %v320
  %v371 = vpack.c.b16 %v323, %v322
  %420 = vmatpush.bf16.msra.mxu0 %v331
  %421 = vmatpush.bf16.msra.mxu0 %v330
  %422 = vmatpush.bf16.msra.mxu0 %v329
  %423 = vmatpush.bf16.msra.mxu0 %v328
  %424 = vmatpush.bf16.msra.mxu0 %v327
  %425 = vmatpush.bf16.msra.mxu0 %v326
  %426 = vmatpush.bf16.msra.mxu0 %v325
  %427 = vmatpush.bf16.msra.mxu0 %v324
  %428 = vmatmul.bf16.gmra.mxu0 %v26
  %v429 = vpop.f32.mrf.mxu0
  %v430 = vadd.f32 %v130, %v429
  %v431 = vpop.f32.mrf.mxu0
  %v432 = vadd.f32 %v130, %v431
  %433 = vdwg.mxu0
  %434 = vmatpush.bf16.msra.mxu0 %v339
  %435 = vmatpush.bf16.msra.mxu0 %v338
  %436 = vmatpush.bf16.msra.mxu0 %v337
  %437 = vmatpush.bf16.msra.mxu0 %v336
  %438 = vmatpush.bf16.msra.mxu0 %v335
  %439 = vmatpush.bf16.msra.mxu0 %v334
  %440 = vmatpush.bf16.msra.mxu0 %v333
  %441 = vmatpush.bf16.msra.mxu0 %v332
  %442 = vmatmul.bf16.gmra.mxu0 %v27
  %v443 = vpop.f32.mrf.mxu0
  %v444 = vadd.f32 %v430, %v443
  %v445 = vpop.f32.mrf.mxu0
  %v446 = vadd.f32 %v432, %v445
  %447 = vdwg.mxu0
  %448 = vmatpush.bf16.msra.mxu0 %v347
  %449 = vmatpush.bf16.msra.mxu0 %v346
  %450 = vmatpush.bf16.msra.mxu0 %v345
  %451 = vmatpush.bf16.msra.mxu0 %v344
  %452 = vmatpush.bf16.msra.mxu0 %v343
  %453 = vmatpush.bf16.msra.mxu0 %v342
  %454 = vmatpush.bf16.msra.mxu0 %v341
  %455 = vmatpush.bf16.msra.mxu0 %v340
  %456 = vmatmul.bf16.gmra.mxu0 %v28
  %v457 = vpop.f32.mrf.mxu0
  %v458 = vadd.f32 %v444, %v457
  %v459 = vpop.f32.mrf.mxu0
  %v460 = vadd.f32 %v446, %v459
  %461 = vdwg.mxu0
  %462 = vmatpush.bf16.msra.mxu0 %v355
  %463 = vmatpush.bf16.msra.mxu0 %v354
  %464 = vmatpush.bf16.msra.mxu0 %v353
  %465 = vmatpush.bf16.msra.mxu0 %v352
  %466 = vmatpush.bf16.msra.mxu0 %v351
  %467 = vmatpush.bf16.msra.mxu0 %v350
  %468 = vmatpush.bf16.msra.mxu0 %v349
  %469 = vmatpush.bf16.msra.mxu0 %v348
  %470 = vmatmul.bf16.gmra.mxu0 %v29
  %v471 = vpop.f32.mrf.mxu0
  %v472 = vadd.f32 %v458, %v471
  %v473 = vpop.f32.mrf.mxu0
  %v474 = vadd.f32 %v460, %v473
  %475 = vdwg.mxu0
  %476 = vmatpush.bf16.msra.mxu0 %v363
  %477 = vmatpush.bf16.msra.mxu0 %v362
  %478 = vmatpush.bf16.msra.mxu0 %v361
  %479 = vmatpush.bf16.msra.mxu0 %v360
  %480 = vmatpush.bf16.msra.mxu0 %v359
  %481 = vmatpush.bf16.msra.mxu0 %v358
  %482 = vmatpush.bf16.msra.mxu0 %v357
  %483 = vmatpush.bf16.msra.mxu0 %v356
  %484 = vmatmul.bf16.gmra.mxu0 %v30
  %v485 = vpop.f32.mrf.mxu0
  %v486 = vadd.f32 %v472, %v485
  %v487 = vpop.f32.mrf.mxu0
  %v488 = vadd.f32 %v474, %v487
  %489 = vdwg.mxu0
  %490 = vmatpush.bf16.msra.mxu0 %v371
  %491 = vmatpush.bf16.msra.mxu0 %v370
  %492 = vmatpush.bf16.msra.mxu0 %v369
  %493 = vmatpush.bf16.msra.mxu0 %v368
  %494 = vmatpush.bf16.msra.mxu0 %v367
  %495 = vmatpush.bf16.msra.mxu0 %v366
  %496 = vmatpush.bf16.msra.mxu0 %v365
  %497 = vmatpush.bf16.msra.mxu0 %v364
  %498 = vmatmul.bf16.gmra.mxu0 %v31
  %v499 = vpop.f32.mrf.mxu0
  %v500 = vadd.f32 %v486, %v499
  %v501 = vpop.f32.mrf.mxu0
  %v502 = vadd.f32 %v488, %v501
  %503 = vdwg.mxu0
  %vm504 = vcmask 261120
  %505 = vst.msk [vmem:[%s3] sm:$0xff] %vm504, %v500
  %506 = vst.msk [vmem:[%s3 + $0x8] sm:$0xff] %vm504, %v502
  // Predicated region
  $region14: #{synthesizer_forward.30} parent=0 // pred_check
    _
  $region15: #{synthesizer_forward.30} parent=0 // pred_check_branch
    %508 = sbr.rel (0) target = $region17
  $region16: #{synthesizer_forward.30} parent=0 // pred_region
    _
  $region17: #{synthesizer_forward.30} parent=0 // pred_fallthru
    _
  // Predicated region
  $region18: #{synthesizer_forward.30} parent=0 // pred_check
    _
  $region19: #{synthesizer_forward.30} parent=0 // pred_check_branch
    %510 = sbr.rel (0) target = $region21
  $region20: #{synthesizer_forward.30} parent=0 // pred_region
    _
  $region21: #{synthesizer_forward.30} parent=0 // pred_fallthru
    _

// kernel: synthesizer_forward.33
$region0: #{synthesizer_forward.33}
  #allocation0 [shape = 'u32[]', space=smem, size = 0x4, offset = 0x4, fixed_abs, tag = 'smem constant byte address 0x4 - core index']
  #allocation1 [shape = 'u32[72,128]{1,0:T(1,128)}', space=vmem, size = 0x9000, scoped, tag = 'internal scratch']
  %s0 = inlined_call_operand.vmem [shape: f32[16,32], index: 0, kind: input, shape index: {}]
  %s1 = inlined_call_operand.vmem [shape: bf16[32,64], index: 1, kind: input, shape index: {}]
  %s2 = inlined_call_operand.vmem [shape: f32[1,64], index: 2, kind: input, shape index: {}]
  %s3 = inlined_call_operand.vmem [shape: f32[16,64], index: 3, kind: output, shape index: {}]
  %s4 = sld [smem:[#allocation0]]
  $region22: #{synthesizer_forward.33} parent=0
    _
  %s6 = ssub.s32 1, %s4
  %s7 = scalar_select 0, %s6, %s4
  // Predicated region
  $region2: #{synthesizer_forward.33} parent=0 // pred_check
    _
  $region3: #{synthesizer_forward.33} parent=0 // pred_check_branch
    %9 = sbr.rel (0) target = $region5
  $region4: #{synthesizer_forward.33} parent=0 // pred_region
    _
  $region5: #{synthesizer_forward.33} parent=0 // pred_fallthru
    _
  // Predicated region
  $region6: #{synthesizer_forward.33} parent=0 // pred_check
    _
  $region7: #{synthesizer_forward.33} parent=0 // pred_check_branch
    %11 = sbr.rel (0) target = $region9
  $region8: #{synthesizer_forward.33} parent=0 // pred_region
    _
  $region9: #{synthesizer_forward.33} parent=0 // pred_fallthru
    _
  // Predicated region
  $region10: #{synthesizer_forward.33} parent=0 // pred_check
    _
  $region11: #{synthesizer_forward.33} parent=0 // pred_check_branch
    %13 = sbr.rel (0) target = $region13
  $region12: #{synthesizer_forward.33} parent=0 // pred_region
    _
  $region13: #{synthesizer_forward.33} parent=0 // pred_fallthru
    _
  %v15 = vld [vmem:[%s0] sm:$0xff]
  %v16 = vld [vmem:[%s0 + $0x8] sm:$0xff]
  %v17 = vpack.c.bf16 %v16, %v15
  %v18 = vld [vmem:[%s1] sm:$0xf]
  %v19 = vld [vmem:[%s1 + $0x4] sm:$0xf]
  %v20 = vld [vmem:[%s1 + $0x8] sm:$0xf]
  %v21 = vld [vmem:[%s1 + $0xc] sm:$0xf]
  %v22 = vld [vmem:[%s2] sm:$0x1]
  %v24 = vperm.slane %v22, 0
  %v30 = vunpack.c.l.b16 %v18
  %v31 = vunpack.c.l.b16 %v19
  %v32 = vunpack.c.l.b16 %v20
  %v33 = vunpack.c.l.b16 %v21
  %v34 = vpack.c.b16 %v31, %v30
  %v35 = vpack.c.b16 %v33, %v32
  %vm38 = vcmask 261120
  %v40 = vsel %vm38, %v17, 0
  %42 = vmatpush.bf16.msra.mxu0 0
  %43 = vmatpush.bf16.msra.mxu0 0
  %44 = vmatpush.bf16.msra.mxu0 0
  %45 = vmatpush.bf16.msra.mxu0 0
  %46 = vmatpush.bf16.msra.mxu0 0
  %47 = vmatpush.bf16.msra.mxu0 0
  %48 = vmatpush.bf16.msra.mxu0 %v35
  %49 = vmatpush.bf16.msra.mxu0 %v34
  %50 = vmatmul.bf16.gmra.mxu0 %v40
  %v51 = vpop.f32.mrf.mxu0
  %v52 = vadd.f32 %v24, %v51
  %v53 = vpop.f32.mrf.mxu0
  %v54 = vadd.f32 %v24, %v53
  %55 = vdwg.mxu0
  %vm56 = vcmask 523264
  %57 = vst.msk [vmem:[%s3] sm:$0xff] %vm56, %v52
  %58 = vst.msk [vmem:[%s3 + $0x8] sm:$0xff] %vm56, %v54
  // Predicated region
  $region14: #{synthesizer_forward.33} parent=0 // pred_check
    _
  $region15: #{synthesizer_forward.33} parent=0 // pred_check_branch
    %60 = sbr.rel (0) target = $region17
  $region16: #{synthesizer_forward.33} parent=0 // pred_region
    _
  $region17: #{synthesizer_forward.33} parent=0 // pred_fallthru
    _
  // Predicated region
  $region18: #{synthesizer_forward.33} parent=0 // pred_check
    _
  $region19: #{synthesizer_forward.33} parent=0 // pred_check_branch
    %62 = sbr.rel (0) target = $region21
  $region20: #{synthesizer_forward.33} parent=0 // pred_region
    _
  $region21: #{synthesizer_forward.33} parent=0 // pred_fallthru
    _

// kernel: synthesizer_forward.24
$region0: #{synthesizer_forward.24}
  #allocation0 [shape = 'u32[]', space=smem, size = 0x4, offset = 0x4, fixed_abs, tag = 'smem constant byte address 0x4 - core index']
  #allocation1 [shape = 'u32[72,128]{1,0:T(1,128)}', space=vmem, size = 0x9000, scoped, tag = 'internal scratch']
  %s0 = inlined_call_operand.vmem [shape: bf16[2,64,8], index: 0, kind: input, shape index: {}]
  %s1 = inlined_call_operand.vmem [shape: bf16[2,64,8], index: 1, kind: input, shape index: {}]
  %s2 = inlined_call_operand.vmem [shape: bf16[3,24,8], index: 2, kind: input, shape index: {}]
  %s3 = inlined_call_operand.vmem [shape: f32[3,1,8], index: 3, kind: input, shape index: {}]
  %s4 = inlined_call_operand.vmem [shape: bf16[3,24,8], index: 4, kind: input, shape index: {}]
  %s5 = inlined_call_operand.vmem [shape: f32[3,1,8], index: 5, kind: input, shape index: {}]
  %s6 = inlined_call_operand.vmem [shape: bf16[2,64,8], index: 6, kind: output, shape index: {}]
  %s7 = sld [smem:[#allocation0]]
  $region34: #{synthesizer_forward.24} parent=0
    _
  %s9 = ssub.s32 1, %s7
  %s10 = scalar_select 0, %s9, %s7
  // Predicated region
  $region2: #{synthesizer_forward.24} parent=0 // pred_check
    _
  $region3: #{synthesizer_forward.24} parent=0 // pred_check_branch
    %12 = sbr.rel (0) target = $region5
  $region4: #{synthesizer_forward.24} parent=0 // pred_region
    _
  $region5: #{synthesizer_forward.24} parent=0 // pred_fallthru
    _
  // Predicated region
  $region6: #{synthesizer_forward.24} parent=0 // pred_check
    _
  $region7: #{synthesizer_forward.24} parent=0 // pred_check_branch
    %14 = sbr.rel (0) target = $region9
  $region8: #{synthesizer_forward.24} parent=0 // pred_region
    _
  $region9: #{synthesizer_forward.24} parent=0 // pred_fallthru
    _
  // Predicated region
  $region10: #{synthesizer_forward.24} parent=0 // pred_check
    _
  $region11: #{synthesizer_forward.24} parent=0 // pred_check_branch
    %16 = sbr.rel (0) target = $region13
  $region12: #{synthesizer_forward.24} parent=0 // pred_region
    _
  $region13: #{synthesizer_forward.24} parent=0 // pred_fallthru
    _
  // Predicated region
  $region14: #{synthesizer_forward.24} parent=0 // pred_check
    _
  $region15: #{synthesizer_forward.24} parent=0 // pred_check_branch
    %18 = sbr.rel (0) target = $region17
  $region16: #{synthesizer_forward.24} parent=0 // pred_region
    _
  $region17: #{synthesizer_forward.24} parent=0 // pred_fallthru
    _
  // Predicated region
  $region18: #{synthesizer_forward.24} parent=0 // pred_check
    _
  $region19: #{synthesizer_forward.24} parent=0 // pred_check_branch
    %20 = sbr.rel (0) target = $region21
  $region20: #{synthesizer_forward.24} parent=0 // pred_region
    _
  $region21: #{synthesizer_forward.24} parent=0 // pred_fallthru
    _
  // Predicated region
  $region22: #{synthesizer_forward.24} parent=0 // pred_check
    _
  $region23: #{synthesizer_forward.24} parent=0 // pred_check_branch
    %22 = sbr.rel (0) target = $region25
  $region24: #{synthesizer_forward.24} parent=0 // pred_region
    _
  $region25: #{synthesizer_forward.24} parent=0 // pred_fallthru
    _
  %v24 = vld [vmem:[%s0] sm:$0xf]
  %v25 = vld [vmem:[%s0 + $0x4] sm:$0xf]
  %v26 = vld [vmem:[%s0 + $0x8] sm:$0xf]
  %v27 = vld [vmem:[%s0 + $0xc] sm:$0xf]
  %v28 = vld [vmem:[%s0 + $0x10] sm:$0xf]
  %v29 = vld [vmem:[%s0 + $0x14] sm:$0xf]
  %v30 = vld [vmem:[%s0 + $0x18] sm:$0xf]
  %v31 = vld [vmem:[%s0 + $0x1c] sm:$0xf]
  %v32 = vld [vmem:[%s0 + $0x20] sm:$0xf]
  %v33 = vld [vmem:[%s0 + $0x24] sm:$0xf]
  %v34 = vld [vmem:[%s0 + $0x28] sm:$0xf]
  %v35 = vld [vmem:[%s0 + $0x2c] sm:$0xf]
  %v36 = vld [vmem:[%s0 + $0x30] sm:$0xf]
  %v37 = vld [vmem:[%s0 + $0x34] sm:$0xf]
  %v38 = vld [vmem:[%s0 + $0x38] sm:$0xf]
  %v39 = vld [vmem:[%s0 + $0x3c] sm:$0xf]
  %v40 = vunpack.c.l.bf16 %v24
  %v41 = vunpack.c.l.bf16 %v25
  %v42 = vunpack.c.l.bf16 %v26
  %v43 = vunpack.c.l.bf16 %v27
  %v44 = vunpack.c.l.bf16 %v28
  %v45 = vunpack.c.l.bf16 %v29
  %v46 = vunpack.c.l.bf16 %v30
  %v47 = vunpack.c.l.bf16 %v31
  %v48 = vunpack.c.l.bf16 %v32
  %v49 = vunpack.c.l.bf16 %v33
  %v50 = vunpack.c.l.bf16 %v34
  %v51 = vunpack.c.l.bf16 %v35
  %v52 = vunpack.c.l.bf16 %v36
  %v53 = vunpack.c.l.bf16 %v37
  %v54 = vunpack.c.l.bf16 %v38
  %v55 = vunpack.c.l.bf16 %v39
  %v56 = vld [vmem:[%s1] sm:$0xf]
  %v57 = vld [vmem:[%s1 + $0x4] sm:$0xf]
  %v58 = vld [vmem:[%s1 + $0x8] sm:$0xf]
  %v59 = vld [vmem:[%s1 + $0xc] sm:$0xf]
  %v60 = vld [vmem:[%s1 + $0x10] sm:$0xf]
  %v61 = vld [vmem:[%s1 + $0x14] sm:$0xf]
  %v62 = vld [vmem:[%s1 + $0x18] sm:$0xf]
  %v63 = vld [vmem:[%s1 + $0x1c] sm:$0xf]
  %v64 = vld [vmem:[%s1 + $0x20] sm:$0xf]
  %v65 = vld [vmem:[%s1 + $0x24] sm:$0xf]
  %v66 = vld [vmem:[%s1 + $0x28] sm:$0xf]
  %v67 = vld [vmem:[%s1 + $0x2c] sm:$0xf]
  %v68 = vld [vmem:[%s1 + $0x30] sm:$0xf]
  %v69 = vld [vmem:[%s1 + $0x34] sm:$0xf]
  %v70 = vld [vmem:[%s1 + $0x38] sm:$0xf]
  %v71 = vld [vmem:[%s1 + $0x3c] sm:$0xf]
  %v72 = vunpack.c.l.bf16 %v56
  %v73 = vunpack.c.l.bf16 %v57
  %v74 = vunpack.c.l.bf16 %v58
  %v75 = vunpack.c.l.bf16 %v59
  %v76 = vunpack.c.l.bf16 %v60
  %v77 = vunpack.c.l.bf16 %v61
  %v78 = vunpack.c.l.bf16 %v62
  %v79 = vunpack.c.l.bf16 %v63
  %v80 = vunpack.c.l.bf16 %v64
  %v81 = vunpack.c.l.bf16 %v65
  %v82 = vunpack.c.l.bf16 %v66
  %v83 = vunpack.c.l.bf16 %v67
  %v84 = vunpack.c.l.bf16 %v68
  %v85 = vunpack.c.l.bf16 %v69
  %v86 = vunpack.c.l.bf16 %v70
  %v87 = vunpack.c.l.bf16 %v71
  %v88 = vadd.f32 %v40, %v72
  %v89 = vadd.f32 %v41, %v73
  %v90 = vadd.f32 %v42, %v74
  %v91 = vadd.f32 %v43, %v75
  %v92 = vadd.f32 %v44, %v76
  %v93 = vadd.f32 %v45, %v77
  %v94 = vadd.f32 %v46, %v78
  %v95 = vadd.f32 %v47, %v79
  %v96 = vadd.f32 %v48, %v80
  %v97 = vadd.f32 %v49, %v81
  %v98 = vadd.f32 %v50, %v82
  %v99 = vadd.f32 %v51, %v83
  %v100 = vadd.f32 %v52, %v84
  %v101 = vadd.f32 %v53, %v85
  %v102 = vadd.f32 %v54, %v86
  %v103 = vadd.f32 %v55, %v87
  %v104 = vld [vmem:[%s2] sm:$0xf]
  %v105 = vld [vmem:[%s2 + $0x4] sm:$0xf]
  %v106 = vld [vmem:[%s2 + $0x8] sm:$0xf]
  %v107 = vld [vmem:[%s3] sm:$0x1]
  %vm108 = vcmp.ge.f32.partialorder %v88, 0.0
  %vm109 = vcmp.ge.f32.partialorder %v89, 0.0
  %vm110 = vcmp.ge.f32.partialorder %v90, 0.0
  %vm111 = vcmp.ge.f32.partialorder %v91, 0.0
  %vm112 = vcmp.ge.f32.partialorder %v92, 0.0
  %vm113 = vcmp.ge.f32.partialorder %v93, 0.0
  %vm114 = vcmp.ge.f32.partialorder %v94, 0.0
  %vm115 = vcmp.ge.f32.partialorder %v95, 0.0
  %vm116 = vcmp.ge.f32.partialorder %v96, 0.0
  %vm117 = vcmp.ge.f32.partialorder %v97, 0.0
  %vm118 = vcmp.ge.f32.partialorder %v98, 0.0
  %vm119 = vcmp.ge.f32.partialorder %v99, 0.0
  %vm120 = vcmp.ge.f32.partialorder %v100, 0.0
  %vm121 = vcmp.ge.f32.partialorder %v101, 0.0
  %vm122 = vcmp.ge.f32.partialorder %v102, 0.0
  %vm123 = vcmp.ge.f32.partialorder %v103, 0.0
  %v124 = vmul.f32 %v88, 0.1
  %v125 = vmul.f32 %v89, 0.1
  %v126 = vmul.f32 %v90, 0.1
  %v127 = vmul.f32 %v91, 0.1
  %v128 = vmul.f32 %v92, 0.1
  %v129 = vmul.f32 %v93, 0.1
  %v130 = vmul.f32 %v94, 0.1
  %v131 = vmul.f32 %v95, 0.1
  %v132 = vmul.f32 %v96, 0.1
  %v133 = vmul.f32 %v97, 0.1
  %v134 = vmul.f32 %v98, 0.1
  %v135 = vmul.f32 %v99, 0.1
  %v136 = vmul.f32 %v100, 0.1
  %v137 = vmul.f32 %v101, 0.1
  %v138 = vmul.f32 %v102, 0.1
  %v139 = vmul.f32 %v103, 0.1
  %v140 = vsel %vm108, %v88, %v124
  %v141 = vsel %vm109, %v89, %v125
  %v142 = vsel %vm110, %v90, %v126
  %v143 = vsel %vm111, %v91, %v127
  %v144 = vsel %vm112, %v92, %v128
  %v145 = vsel %vm113, %v93, %v129
  %v146 = vsel %vm114, %v94, %v130
  %v147 = vsel %vm115, %v95, %v131
  %v148 = vsel %vm116, %v96, %v132
  %v149 = vsel %vm117, %v97, %v133
  %v150 = vsel %vm118, %v98, %v134
  %v151 = vsel %vm119, %v99, %v135
  %v152 = vsel %vm120, %v100, %v136
  %v153 = vsel %vm121, %v101, %v137
  %v154 = vsel %vm122, %v102, %v138
  %v155 = vsel %vm123, %v103, %v139
  %vm172 = vcmask 1040384
  %v173 = vrot.slane %v140, 7
  %v174 = vrot.slane %v141, 7
  %v175 = vsel %vm172, %v173, %v174
  %v176 = vrot.slane %v142, 7
  %v177 = vsel %vm172, %v174, %v176
  %v178 = vrot.slane %v143, 7
  %v179 = vsel %vm172, %v176, %v178
  %v180 = vrot.slane %v144, 7
  %v181 = vsel %vm172, %v178, %v180
  %v182 = vrot.slane %v145, 7
  %v183 = vsel %vm172, %v180, %v182
  %v184 = vrot.slane %v146, 7
  %v185 = vsel %vm172, %v182, %v184
  %v186 = vrot.slane %v147, 7
  %v187 = vsel %vm172, %v184, %v186
  %v188 = vrot.slane %v148, 7
  %v189 = vrot.slane %v149, 7
  %v190 = vsel %vm172, %v188, %v189
  %v191 = vrot.slane %v150, 7
  %v192 = vsel %vm172, %v189, %v191
  %v193 = vrot.slane %v151, 7
  %v194 = vsel %vm172, %v191, %v193
  %v195 = vrot.slane %v152, 7
  %v196 = vsel %vm172, %v193, %v195
  %v197 = vrot.slane %v153, 7
  %v198 = vsel %vm172, %v195, %v197
  %v199 = vrot.slane %v154, 7
  %v200 = vsel %vm172, %v197, %v199
  %v201 = vrot.slane %v155, 7
  %v202 = vsel %vm172, %v199, %v201
  %v221 = vsel %vm172, 0.0, %v173
  %v222 = vsel %vm172, 0.0, %v188
  %v223 = vsel %vm172, %v186, 0.0
  %v224 = vsel %vm172, %v201, 0.0
  %vm229 = vcmask 1046528
  %v230 = vrot.slane %v221, 1
  %v231 = vrot.slane %v175, 1
  %v232 = vsel %vm229, %v230, %v231
  %v233 = vrot.slane %v177, 1
  %v234 = vsel %vm229, %v231, %v233
  %v235 = vrot.slane %v179, 1
  %v236 = vsel %vm229, %v233, %v235
  %v237 = vrot.slane %v181, 1
  %v238 = vsel %vm229, %v235, %v237
  %v239 = vrot.slane %v183, 1
  %v240 = vsel %vm229, %v237, %v239
  %v241 = vrot.slane %v185, 1
  %v242 = vsel %vm229, %v239, %v241
  %v243 = vrot.slane %v187, 1
  %v244 = vsel %vm229, %v241, %v243
  %v245 = vrot.slane %v223, 1
  %v246 = vsel %vm229, %v243, %v245
  %v247 = vrot.slane %v222, 1
  %v248 = vrot.slane %v190, 1
  %v249 = vsel %vm229, %v247, %v248
  %v250 = vrot.slane %v192, 1
  %v251 = vsel %vm229, %v248, %v250
  %v252 = vrot.slane %v194, 1
  %v253 = vsel %vm229, %v250, %v252
  %v254 = vrot.slane %v196, 1
  %v255 = vsel %vm229, %v252, %v254
  %v256 = vrot.slane %v198, 1
  %v257 = vsel %vm229, %v254, %v256
  %v258 = vrot.slane %v200, 1
  %v259 = vsel %vm229, %v256, %v258
  %v260 = vrot.slane %v202, 1
  %v261 = vsel %vm229, %v258, %v260
  %v262 = vrot.slane %v224, 1
  %v263 = vsel %vm229, %v260, %v262
  %264 = vrot.lane.b32.xlu0 %v232, 8
  %v265 = vpop.permute.xlu0 %264
  %266 = vrot.lane.b32.xlu0 %v234, 8
  %v267 = vpop.permute.xlu0 %266
  %268 = vrot.lane.b32.xlu0 %v236, 8
  %v269 = vpop.permute.xlu0 %268
  %270 = vrot.lane.b32.xlu0 %v238, 8
  %v271 = vpop.permute.xlu0 %270
  %272 = vrot.lane.b32.xlu0 %v240, 8
  %v273 = vpop.permute.xlu0 %272
  %274 = vrot.lane.b32.xlu0 %v242, 8
  %v275 = vpop.permute.xlu0 %274
  %276 = vrot.lane.b32.xlu0 %v244, 8
  %v277 = vpop.permute.xlu0 %276
  %278 = vrot.lane.b32.xlu0 %v246, 8
  %v279 = vpop.permute.xlu0 %278
  %280 = vrot.lane.b32.xlu0 %v249, 8
  %v281 = vpop.permute.xlu0 %280
  %282 = vrot.lane.b32.xlu0 %v251, 8
  %v283 = vpop.permute.xlu0 %282
  %284 = vrot.lane.b32.xlu0 %v253, 8
  %v285 = vpop.permute.xlu0 %284
  %286 = vrot.lane.b32.xlu0 %v255, 8
  %v287 = vpop.permute.xlu0 %286
  %288 = vrot.lane.b32.xlu0 %v257, 8
  %v289 = vpop.permute.xlu0 %288
  %290 = vrot.lane.b32.xlu0 %v259, 8
  %v291 = vpop.permute.xlu0 %290
  %292 = vrot.lane.b32.xlu0 %v261, 8
  %v293 = vpop.permute.xlu0 %292
  %294 = vrot.lane.b32.xlu0 %v263, 8
  %v295 = vpop.permute.xlu0 %294
  %vm312 = vcmask 1045504
  %v313 = vrot.slane %v221, 2
  %v314 = vrot.slane %v175, 2
  %v315 = vsel %vm312, %v313, %v314
  %v316 = vrot.slane %v177, 2
  %v317 = vsel %vm312, %v314, %v316
  %v318 = vrot.slane %v179, 2
  %v319 = vsel %vm312, %v316, %v318
  %v320 = vrot.slane %v181, 2
  %v321 = vsel %vm312, %v318, %v320
  %v322 = vrot.slane %v183, 2
  %v323 = vsel %vm312, %v320, %v322
  %v324 = vrot.slane %v185, 2
  %v325 = vsel %vm312, %v322, %v324
  %v326 = vrot.slane %v187, 2
  %v327 = vsel %vm312, %v324, %v326
  %v328 = vrot.slane %v223, 2
  %v329 = vsel %vm312, %v326, %v328
  %v330 = vrot.slane %v222, 2
  %v331 = vrot.slane %v190, 2
  %v332 = vsel %vm312, %v330, %v331
  %v333 = vrot.slane %v192, 2
  %v334 = vsel %vm312, %v331, %v333
  %v335 = vrot.slane %v194, 2
  %v336 = vsel %vm312, %v333, %v335
  %v337 = vrot.slane %v196, 2
  %v338 = vsel %vm312, %v335, %v337
  %v339 = vrot.slane %v198, 2
  %v340 = vsel %vm312, %v337, %v339
  %v341 = vrot.slane %v200, 2
  %v342 = vsel %vm312, %v339, %v341
  %v343 = vrot.slane %v202, 2
  %v344 = vsel %vm312, %v341, %v343
  %v345 = vrot.slane %v224, 2
  %v346 = vsel %vm312, %v343, %v345
  %347 = vrot.lane.b32.xlu0 %v315, 16
  %v348 = vpop.permute.xlu0 %347
  %349 = vrot.lane.b32.xlu0 %v317, 16
  %v350 = vpop.permute.xlu0 %349
  %351 = vrot.lane.b32.xlu0 %v319, 16
  %v352 = vpop.permute.xlu0 %351
  %353 = vrot.lane.b32.xlu0 %v321, 16
  %v354 = vpop.permute.xlu0 %353
  %355 = vrot.lane.b32.xlu0 %v323, 16
  %v356 = vpop.permute.xlu0 %355
  %357 = vrot.lane.b32.xlu0 %v325, 16
  %v358 = vpop.permute.xlu0 %357
  %359 = vrot.lane.b32.xlu0 %v327, 16
  %v360 = vpop.permute.xlu0 %359
  %361 = vrot.lane.b32.xlu0 %v329, 16
  %v362 = vpop.permute.xlu0 %361
  %363 = vrot.lane.b32.xlu0 %v332, 16
  %v364 = vpop.permute.xlu0 %363
  %365 = vrot.lane.b32.xlu0 %v334, 16
  %v366 = vpop.permute.xlu0 %365
  %367 = vrot.lane.b32.xlu0 %v336, 16
  %v368 = vpop.permute.xlu0 %367
  %369 = vrot.lane.b32.xlu0 %v338, 16
  %v370 = vpop.permute.xlu0 %369
  %371 = vrot.lane.b32.xlu0 %v340, 16
  %v372 = vpop.permute.xlu0 %371
  %373 = vrot.lane.b32.xlu0 %v342, 16
  %v374 = vpop.permute.xlu0 %373
  %375 = vrot.lane.b32.xlu0 %v344, 16
  %v376 = vpop.permute.xlu0 %375
  %377 = vrot.lane.b32.xlu0 %v346, 16
  %v378 = vpop.permute.xlu0 %377
  %vm395 = vcmask 64512
  %v396 = vsel %vm395, %v221, %v265
  %v397 = vsel %vm395, %v175, %v267
  %v398 = vsel %vm395, %v177, %v269
  %v399 = vsel %vm395, %v179, %v271
  %v400 = vsel %vm395, %v181, %v273
  %v401 = vsel %vm395, %v183, %v275
  %v402 = vsel %vm395, %v185, %v277
  %v403 = vsel %vm395, %v187, %v279
  %v404 = vsel %vm395, %v222, %v281
  %v405 = vsel %vm395, %v190, %v283
  %v406 = vsel %vm395, %v192, %v285
  %v407 = vsel %vm395, %v194, %v287
  %v408 = vsel %vm395, %v196, %v289
  %v409 = vsel %vm395, %v198, %v291
  %v410 = vsel %vm395, %v200, %v293
  %v411 = vsel %vm395, %v202, %v295
  %vm412 = vcmask 130048
  %v413 = vsel %vm412, %v396, %v348
  %v414 = vsel %vm412, %v397, %v350
  %v415 = vsel %vm412, %v398, %v352
  %v416 = vsel %vm412, %v399, %v354
  %v417 = vsel %vm412, %v400, %v356
  %v418 = vsel %vm412, %v401, %v358
  %v419 = vsel %vm412, %v402, %v360
  %v420 = vsel %vm412, %v403, %v362
  %v421 = vsel %vm412, %v404, %v364
  %v422 = vsel %vm412, %v405, %v366
  %v423 = vsel %vm412, %v406, %v368
  %v424 = vsel %vm412, %v407, %v370
  %v425 = vsel %vm412, %v408, %v372
  %v426 = vsel %vm412, %v409, %v374
  %v427 = vsel %vm412, %v410, %v376
  %v428 = vsel %vm412, %v411, %v378
  %v429 = vpack.c.bf16 %v414, %v413
  %v430 = vpack.c.bf16 %v416, %v415
  %v431 = vpack.c.bf16 %v418, %v417
  %v432 = vpack.c.bf16 %v420, %v419
  %v433 = vpack.c.bf16 %v422, %v421
  %v434 = vpack.c.bf16 %v424, %v423
  %v435 = vpack.c.bf16 %v426, %v425
  %v436 = vpack.c.bf16 %v428, %v427
  %v438 = vperm.slane %v107, 0
  %v443 = vunpack.c.l.b16 %v104
  %v444 = vunpack.c.l.b16 %v105
  %v445 = vunpack.c.l.b16 %v106
  %v446 = vpack.c.b16 %v444, %v443
  %v447 = vpack.c.b16 %v445, %v445
  %vm449 = vcmask 195584
  %v451 = vsel %vm449, %v429, 0
  %v454 = vsel %vm449, %v430, 0
  %v457 = vsel %vm449, %v431, 0
  %v460 = vsel %vm449, %v432, 0
  %v463 = vsel %vm449, %v433, 0
  %v466 = vsel %vm449, %v434, 0
  %v469 = vsel %vm449, %v435, 0
  %v472 = vsel %vm449, %v436, 0
  %vm474 = vcmask 1043456
  %v476 = vsel %vm474, %v447, 0
  %478 = vmatpush.bf16.msra.mxu0 0
  %479 = vmatpush.bf16.msra.mxu0 0
  %480 = vmatpush.bf16.msra.mxu0 0
  %481 = vmatpush.bf16.msra.mxu0 0
  %482 = vmatpush.bf16.msra.mxu0 0
  %483 = vmatpush.bf16.msra.mxu0 0
  %484 = vmatpush.bf16.msra.mxu0 %v476
  %485 = vmatpush.bf16.msra.mxu0 %v446
  %486 = vmatmul.bf16.gmra.mxu0 %v451
  %v487 = vpop.f32.mrf.mxu0
  %v488 = vadd.f32 %v438, %v487
  %v489 = vpop.f32.mrf.mxu0
  %v490 = vadd.f32 %v438, %v489
  %491 = vmatmul.bf16.gmra.mxu0 %v454
  %v492 = vpop.f32.mrf.mxu0
  %v493 = vadd.f32 %v438, %v492
  %v494 = vpop.f32.mrf.mxu0
  %v495 = vadd.f32 %v438, %v494
  %496 = vmatmul.bf16.gmra.mxu0 %v457
  %v497 = vpop.f32.mrf.mxu0
  %v498 = vadd.f32 %v438, %v497
  %v499 = vpop.f32.mrf.mxu0
  %v500 = vadd.f32 %v438, %v499
  %501 = vmatmul.bf16.gmra.mxu0 %v460
  %v502 = vpop.f32.mrf.mxu0
  %v503 = vadd.f32 %v438, %v502
  %v504 = vpop.f32.mrf.mxu0
  %v505 = vadd.f32 %v438, %v504
  %506 = vmatmul.bf16.gmra.mxu0 %v463
  %v507 = vpop.f32.mrf.mxu0
  %v508 = vadd.f32 %v438, %v507
  %v509 = vpop.f32.mrf.mxu0
  %v510 = vadd.f32 %v438, %v509
  %511 = vmatmul.bf16.gmra.mxu0 %v466
  %v512 = vpop.f32.mrf.mxu0
  %v513 = vadd.f32 %v438, %v512
  %v514 = vpop.f32.mrf.mxu0
  %v515 = vadd.f32 %v438, %v514
  %516 = vmatmul.bf16.gmra.mxu0 %v469
  %v517 = vpop.f32.mrf.mxu0
  %v518 = vadd.f32 %v438, %v517
  %v519 = vpop.f32.mrf.mxu0
  %v520 = vadd.f32 %v438, %v519
  %521 = vmatmul.bf16.gmra.mxu0 %v472
  %v522 = vpop.f32.mrf.mxu0
  %v523 = vadd.f32 %v438, %v522
  %v524 = vpop.f32.mrf.mxu0
  %v525 = vadd.f32 %v438, %v524
  %526 = vdwg.mxu0
  %v527 = vld [vmem:[%s4] sm:$0xf]
  %v528 = vld [vmem:[%s4 + $0x4] sm:$0xf]
  %v529 = vld [vmem:[%s4 + $0x8] sm:$0xf]
  %v530 = vld [vmem:[%s5] sm:$0x1]
  %vm531 = vcmp.ge.f32.partialorder %v488, 0.0
  %vm532 = vcmp.ge.f32.partialorder %v490, 0.0
  %vm533 = vcmp.ge.f32.partialorder %v493, 0.0
  %vm534 = vcmp.ge.f32.partialorder %v495, 0.0
  %vm535 = vcmp.ge.f32.partialorder %v498, 0.0
  %vm536 = vcmp.ge.f32.partialorder %v500, 0.0
  %vm537 = vcmp.ge.f32.partialorder %v503, 0.0
  %vm538 = vcmp.ge.f32.partialorder %v505, 0.0
  %vm539 = vcmp.ge.f32.partialorder %v508, 0.0
  %vm540 = vcmp.ge.f32.partialorder %v510, 0.0
  %vm541 = vcmp.ge.f32.partialorder %v513, 0.0
  %vm542 = vcmp.ge.f32.partialorder %v515, 0.0
  %vm543 = vcmp.ge.f32.partialorder %v518, 0.0
  %vm544 = vcmp.ge.f32.partialorder %v520, 0.0
  %vm545 = vcmp.ge.f32.partialorder %v523, 0.0
  %vm546 = vcmp.ge.f32.partialorder %v525, 0.0
  %v547 = vmul.f32 %v488, 0.1
  %v548 = vmul.f32 %v490, 0.1
  %v549 = vmul.f32 %v493, 0.1
  %v550 = vmul.f32 %v495, 0.1
  %v551 = vmul.f32 %v498, 0.1
  %v552 = vmul.f32 %v500, 0.1
  %v553 = vmul.f32 %v503, 0.1
  %v554 = vmul.f32 %v505, 0.1
  %v555 = vmul.f32 %v508, 0.1
  %v556 = vmul.f32 %v510, 0.1
  %v557 = vmul.f32 %v513, 0.1
  %v558 = vmul.f32 %v515, 0.1
  %v559 = vmul.f32 %v518, 0.1
  %v560 = vmul.f32 %v520, 0.1
  %v561 = vmul.f32 %v523, 0.1
  %v562 = vmul.f32 %v525, 0.1
  %v563 = vsel %vm531, %v488, %v547
  %v564 = vsel %vm532, %v490, %v548
  %v565 = vsel %vm533, %v493, %v549
  %v566 = vsel %vm534, %v495, %v550
  %v567 = vsel %vm535, %v498, %v551
  %v568 = vsel %vm536, %v500, %v552
  %v569 = vsel %vm537, %v503, %v553
  %v570 = vsel %vm538, %v505, %v554
  %v571 = vsel %vm539, %v508, %v555
  %v572 = vsel %vm540, %v510, %v556
  %v573 = vsel %vm541, %v513, %v557
  %v574 = vsel %vm542, %v515, %v558
  %v575 = vsel %vm543, %v518, %v559
  %v576 = vsel %vm544, %v520, %v560
  %v577 = vsel %vm545, %v523, %v561
  %v578 = vsel %vm546, %v525, %v562
  %v595 = vrot.slane %v563, 7
  %v596 = vrot.slane %v564, 7
  %v597 = vsel %vm172, %v595, %v596
  %v598 = vrot.slane %v565, 7
  %v599 = vsel %vm172, %v596, %v598
  %v600 = vrot.slane %v566, 7
  %v601 = vsel %vm172, %v598, %v600
  %v602 = vrot.slane %v567, 7
  %v603 = vsel %vm172, %v600, %v602
  %v604 = vrot.slane %v568, 7
  %v605 = vsel %vm172, %v602, %v604
  %v606 = vrot.slane %v569, 7
  %v607 = vsel %vm172, %v604, %v606
  %v608 = vrot.slane %v570, 7
  %v609 = vsel %vm172, %v606, %v608
  %v610 = vrot.slane %v571, 7
  %v611 = vrot.slane %v572, 7
  %v612 = vsel %vm172, %v610, %v611
  %v613 = vrot.slane %v573, 7
  %v614 = vsel %vm172, %v611, %v613
  %v615 = vrot.slane %v574, 7
  %v616 = vsel %vm172, %v613, %v615
  %v617 = vrot.slane %v575, 7
  %v618 = vsel %vm172, %v615, %v617
  %v619 = vrot.slane %v576, 7
  %v620 = vsel %vm172, %v617, %v619
  %v621 = vrot.slane %v577, 7
  %v622 = vsel %vm172, %v619, %v621
  %v623 = vrot.slane %v578, 7
  %v624 = vsel %vm172, %v621, %v623
  %v643 = vsel %vm172, 0.0, %v595
  %v644 = vsel %vm172, 0.0, %v610
  %v645 = vsel %vm172, %v608, 0.0
  %v646 = vsel %vm172, %v623, 0.0
  %v651 = vrot.slane %v643, 1
  %v652 = vrot.slane %v597, 1
  %v653 = vsel %vm229, %v651, %v652
  %v654 = vrot.slane %v599, 1
  %v655 = vsel %vm229, %v652, %v654
  %v656 = vrot.slane %v601, 1
  %v657 = vsel %vm229, %v654, %v656
  %v658 = vrot.slane %v603, 1
  %v659 = vsel %vm229, %v656, %v658
  %v660 = vrot.slane %v605, 1
  %v661 = vsel %vm229, %v658, %v660
  %v662 = vrot.slane %v607, 1
  %v663 = vsel %vm229, %v660, %v662
  %v664 = vrot.slane %v609, 1
  %v665 = vsel %vm229, %v662, %v664
  %v666 = vrot.slane %v645, 1
  %v667 = vsel %vm229, %v664, %v666
  %v668 = vrot.slane %v644, 1
  %v669 = vrot.slane %v612, 1
  %v670 = vsel %vm229, %v668, %v669
  %v671 = vrot.slane %v614, 1
  %v672 = vsel %vm229, %v669, %v671
  %v673 = vrot.slane %v616, 1
  %v674 = vsel %vm229, %v671, %v673
  %v675 = vrot.slane %v618, 1
  %v676 = vsel %vm229, %v673, %v675
  %v677 = vrot.slane %v620, 1
  %v678 = vsel %vm229, %v675, %v677
  %v679 = vrot.slane %v622, 1
  %v680 = vsel %vm229, %v677, %v679
  %v681 = vrot.slane %v624, 1
  %v682 = vsel %vm229, %v679, %v681
  %v683 = vrot.slane %v646, 1
  %v684 = vsel %vm229, %v681, %v683
  %685 = vrot.lane.b32.xlu0 %v653, 8
  %v686 = vpop.permute.xlu0 %685
  %687 = vrot.lane.b32.xlu0 %v655, 8
  %v688 = vpop.permute.xlu0 %687
  %689 = vrot.lane.b32.xlu0 %v657, 8
  %v690 = vpop.permute.xlu0 %689
  %691 = vrot.lane.b32.xlu0 %v659, 8
  %v692 = vpop.permute.xlu0 %691
  %693 = vrot.lane.b32.xlu0 %v661, 8
  %v694 = vpop.permute.xlu0 %693
  %695 = vrot.lane.b32.xlu0 %v663, 8
  %v696 = vpop.permute.xlu0 %695
  %697 = vrot.lane.b32.xlu0 %v665, 8
  %v698 = vpop.permute.xlu0 %697
  %699 = vrot.lane.b32.xlu0 %v667, 8
  %v700 = vpop.permute.xlu0 %699
  %701 = vrot.lane.b32.xlu0 %v670, 8
  %v702 = vpop.permute.xlu0 %701
  %703 = vrot.lane.b32.xlu0 %v672, 8
  %v704 = vpop.permute.xlu0 %703
  %705 = vrot.lane.b32.xlu0 %v674, 8
  %v706 = vpop.permute.xlu0 %705
  %707 = vrot.lane.b32.xlu0 %v676, 8
  %v708 = vpop.permute.xlu0 %707
  %709 = vrot.lane.b32.xlu0 %v678, 8
  %v710 = vpop.permute.xlu0 %709
  %711 = vrot.lane.b32.xlu0 %v680, 8
  %v712 = vpop.permute.xlu0 %711
  %713 = vrot.lane.b32.xlu0 %v682, 8
  %v714 = vpop.permute.xlu0 %713
  %715 = vrot.lane.b32.xlu0 %v684, 8
  %v716 = vpop.permute.xlu0 %715
  %v733 = vrot.slane %v643, 2
  %v734 = vrot.slane %v597, 2
  %v735 = vsel %vm312, %v733, %v734
  %v736 = vrot.slane %v599, 2
  %v737 = vsel %vm312, %v734, %v736
  %v738 = vrot.slane %v601, 2
  %v739 = vsel %vm312, %v736, %v738
  %v740 = vrot.slane %v603, 2
  %v741 = vsel %vm312, %v738, %v740
  %v742 = vrot.slane %v605, 2
  %v743 = vsel %vm312, %v740, %v742
  %v744 = vrot.slane %v607, 2
  %v745 = vsel %vm312, %v742, %v744
  %v746 = vrot.slane %v609, 2
  %v747 = vsel %vm312, %v744, %v746
  %v748 = vrot.slane %v645, 2
  %v749 = vsel %vm312, %v746, %v748
  %v750 = vrot.slane %v644, 2
  %v751 = vrot.slane %v612, 2
  %v752 = vsel %vm312, %v750, %v751
  %v753 = vrot.slane %v614, 2
  %v754 = vsel %vm312, %v751, %v753
  %v755 = vrot.slane %v616, 2
  %v756 = vsel %vm312, %v753, %v755
  %v757 = vrot.slane %v618, 2
  %v758 = vsel %vm312, %v755, %v757
  %v759 = vrot.slane %v620, 2
  %v760 = vsel %vm312, %v757, %v759
  %v761 = vrot.slane %v622, 2
  %v762 = vsel %vm312, %v759, %v761
  %v763 = vrot.slane %v624, 2
  %v764 = vsel %vm312, %v761, %v763
  %v765 = vrot.slane %v646, 2
  %v766 = vsel %vm312, %v763, %v765
  %767 = vrot.lane.b32.xlu0 %v735, 16
  %v768 = vpop.permute.xlu0 %767
  %769 = vrot.lane.b32.xlu0 %v737, 16
  %v770 = vpop.permute.xlu0 %769
  %771 = vrot.lane.b32.xlu0 %v739, 16
  %v772 = vpop.permute.xlu0 %771
  %773 = vrot.lane.b32.xlu0 %v741, 16
  %v774 = vpop.permute.xlu0 %773
  %775 = vrot.lane.b32.xlu0 %v743, 16
  %v776 = vpop.permute.xlu0 %775
  %777 = vrot.lane.b32.xlu0 %v745, 16
  %v778 = vpop.permute.xlu0 %777
  %779 = vrot.lane.b32.xlu0 %v747, 16
  %v780 = vpop.permute.xlu0 %779
  %781 = vrot.lane.b32.xlu0 %v749, 16
  %v782 = vpop.permute.xlu0 %781
  %783 = vrot.lane.b32.xlu0 %v752, 16
  %v784 = vpop.permute.xlu0 %783
  %785 = vrot.lane.b32.xlu0 %v754, 16
  %v786 = vpop.permute.xlu0 %785
  %787 = vrot.lane.b32.xlu0 %v756, 16
  %v788 = vpop.permute.xlu0 %787
  %789 = vrot.lane.b32.xlu0 %v758, 16
  %v790 = vpop.permute.xlu0 %789
  %791 = vrot.lane.b32.xlu0 %v760, 16
  %v792 = vpop.permute.xlu0 %791
  %793 = vrot.lane.b32.xlu0 %v762, 16
  %v794 = vpop.permute.xlu0 %793
  %795 = vrot.lane.b32.xlu0 %v764, 16
  %v796 = vpop.permute.xlu0 %795
  %797 = vrot.lane.b32.xlu0 %v766, 16
  %v798 = vpop.permute.xlu0 %797
  %v815 = vsel %vm395, %v643, %v686
  %v816 = vsel %vm395, %v597, %v688
  %v817 = vsel %vm395, %v599, %v690
  %v818 = vsel %vm395, %v601, %v692
  %v819 = vsel %vm395, %v603, %v694
  %v820 = vsel %vm395, %v605, %v696
  %v821 = vsel %vm395, %v607, %v698
  %v822 = vsel %vm395, %v609, %v700
  %v823 = vsel %vm395, %v644, %v702
  %v824 = vsel %vm395, %v612, %v704
  %v825 = vsel %vm395, %v614, %v706
  %v826 = vsel %vm395, %v616, %v708
  %v827 = vsel %vm395, %v618, %v710
  %v828 = vsel %vm395, %v620, %v712
  %v829 = vsel %vm395, %v622, %v714
  %v830 = vsel %vm395, %v624, %v716
  %v831 = vsel %vm412, %v815, %v768
  %v832 = vsel %vm412, %v816, %v770
  %v833 = vsel %vm412, %v817, %v772
  %v834 = vsel %vm412, %v818, %v774
  %v835 = vsel %vm412, %v819, %v776
  %v836 = vsel %vm412, %v820, %v778
  %v837 = vsel %vm412, %v821, %v780
  %v838 = vsel %vm412, %v822, %v782
  %v839 = vsel %vm412, %v823, %v784
  %v840 = vsel %vm412, %v824, %v786
  %v841 = vsel %vm412, %v825, %v788
  %v842 = vsel %vm412, %v826, %v790
  %v843 = vsel %vm412, %v827, %v792
  %v844 = vsel %vm412, %v828, %v794
  %v845 = vsel %vm412, %v829, %v796
  %v846 = vsel %vm412, %v830, %v798
  %v847 = vpack.c.bf16 %v832, %v831
  %v848 = vpack.c.bf16 %v834, %v833
  %v849 = vpack.c.bf16 %v836, %v835
  %v850 = vpack.c.bf16 %v838, %v837
  %v851 = vpack.c.bf16 %v840, %v839
  %v852 = vpack.c.bf16 %v842, %v841
  %v853 = vpack.c.bf16 %v844, %v843
  %v854 = vpack.c.bf16 %v846, %v845
  %v856 = vperm.slane %v530, 0
  %v861 = vunpack.c.l.b16 %v527
  %v862 = vunpack.c.l.b16 %v528
  %v863 = vunpack.c.l.b16 %v529
  %v864 = vpack.c.b16 %v862, %v861
  %v865 = vpack.c.b16 %v863, %v863
  %v868 = vsel %vm449, %v847, 0
  %v871 = vsel %vm449, %v848, 0
  %v874 = vsel %vm449, %v849, 0
  %v877 = vsel %vm449, %v850, 0
  %v880 = vsel %vm449, %v851, 0
  %v883 = vsel %vm449, %v852, 0
  %v886 = vsel %vm449, %v853, 0
  %v889 = vsel %vm449, %v854, 0
  %v892 = vsel %vm474, %v865, 0
  %894 = vmatpush.bf16.msra.mxu0 0
  %895 = vmatpush.bf16.msra.mxu0 0
  %896 = vmatpush.bf16.msra.mxu0 0
  %897 = vmatpush.bf16.msra.mxu0 0
  %898 = vmatpush.bf16.msra.mxu0 0
  %899 = vmatpush.bf16.msra.mxu0 0
  %900 = vmatpush.bf16.msra.mxu0 %v892
  %901 = vmatpush.bf16.msra.mxu0 %v864
  %902 = vmatmul.bf16.gmra.mxu0 %v868
  %v903 = vpop.f32.mrf.mxu0
  %v904 = vadd.f32 %v856, %v903
  %v905 = vpop.f32.mrf.mxu0
  %v906 = vadd.f32 %v856, %v905
  %907 = vmatmul.bf16.gmra.mxu0 %v871
  %v908 = vpop.f32.mrf.mxu0
  %v909 = vadd.f32 %v856, %v908
  %v910 = vpop.f32.mrf.mxu0
  %v911 = vadd.f32 %v856, %v910
  %912 = vmatmul.bf16.gmra.mxu0 %v874
  %v913 = vpop.f32.mrf.mxu0
  %v914 = vadd.f32 %v856, %v913
  %v915 = vpop.f32.mrf.mxu0
  %v916 = vadd.f32 %v856, %v915
  %917 = vmatmul.bf16.gmra.mxu0 %v877
  %v918 = vpop.f32.mrf.mxu0
  %v919 = vadd.f32 %v856, %v918
  %v920 = vpop.f32.mrf.mxu0
  %v921 = vadd.f32 %v856, %v920
  %922 = vmatmul.bf16.gmra.mxu0 %v880
  %v923 = vpop.f32.mrf.mxu0
  %v924 = vadd.f32 %v856, %v923
  %v925 = vpop.f32.mrf.mxu0
  %v926 = vadd.f32 %v856, %v925
  %927 = vmatmul.bf16.gmra.mxu0 %v883
  %v928 = vpop.f32.mrf.mxu0
  %v929 = vadd.f32 %v856, %v928
  %v930 = vpop.f32.mrf.mxu0
  %v931 = vadd.f32 %v856, %v930
  %932 = vmatmul.bf16.gmra.mxu0 %v886
  %v933 = vpop.f32.mrf.mxu0
  %v934 = vadd.f32 %v856, %v933
  %v935 = vpop.f32.mrf.mxu0
  %v936 = vadd.f32 %v856, %v935
  %937 = vmatmul.bf16.gmra.mxu0 %v889
  %v938 = vpop.f32.mrf.mxu0
  %v939 = vadd.f32 %v856, %v938
  %v940 = vpop.f32.mrf.mxu0
  %v941 = vadd.f32 %v856, %v940
  %942 = vdwg.mxu0
  %v943 = vadd.f32 %v88, %v904
  %v944 = vadd.f32 %v89, %v906
  %v945 = vadd.f32 %v90, %v909
  %v946 = vadd.f32 %v91, %v911
  %v947 = vadd.f32 %v92, %v914
  %v948 = vadd.f32 %v93, %v916
  %v949 = vadd.f32 %v94, %v919
  %v950 = vadd.f32 %v95, %v921
  %v951 = vadd.f32 %v96, %v924
  %v952 = vadd.f32 %v97, %v926
  %v953 = vadd.f32 %v98, %v929
  %v954 = vadd.f32 %v99, %v931
  %v955 = vadd.f32 %v100, %v934
  %v956 = vadd.f32 %v101, %v936
  %v957 = vadd.f32 %v102, %v939
  %v958 = vadd.f32 %v103, %v941
  %s959 = scalar_lea.vmem %s2, 12
  %v960 = vld [vmem:[%s959] sm:$0xf]
  %v961 = vld [vmem:[%s959 + $0x4] sm:$0xf]
  %v962 = vld [vmem:[%s959 + $0x8] sm:$0xf]
  %s963 = scalar_lea.vmem %s3, 1
  %v964 = vld [vmem:[%s963] sm:$0x1]
  %vm965 = vcmp.ge.f32.partialorder %v943, 0.0
  %vm966 = vcmp.ge.f32.partialorder %v944, 0.0
  %vm967 = vcmp.ge.f32.partialorder %v945, 0.0
  %vm968 = vcmp.ge.f32.partialorder %v946, 0.0
  %vm969 = vcmp.ge.f32.partialorder %v947, 0.0
  %vm970 = vcmp.ge.f32.partialorder %v948, 0.0
  %vm971 = vcmp.ge.f32.partialorder %v949, 0.0
  %vm972 = vcmp.ge.f32.partialorder %v950, 0.0
  %vm973 = vcmp.ge.f32.partialorder %v951, 0.0
  %vm974 = vcmp.ge.f32.partialorder %v952, 0.0
  %vm975 = vcmp.ge.f32.partialorder %v953, 0.0
  %vm976 = vcmp.ge.f32.partialorder %v954, 0.0
  %vm977 = vcmp.ge.f32.partialorder %v955, 0.0
  %vm978 = vcmp.ge.f32.partialorder %v956, 0.0
  %vm979 = vcmp.ge.f32.partialorder %v957, 0.0
  %vm980 = vcmp.ge.f32.partialorder %v958, 0.0
  %v981 = vmul.f32 %v943, 0.1
  %v982 = vmul.f32 %v944, 0.1
  %v983 = vmul.f32 %v945, 0.1
  %v984 = vmul.f32 %v946, 0.1
  %v985 = vmul.f32 %v947, 0.1
  %v986 = vmul.f32 %v948, 0.1
  %v987 = vmul.f32 %v949, 0.1
  %v988 = vmul.f32 %v950, 0.1
  %v989 = vmul.f32 %v951, 0.1
  %v990 = vmul.f32 %v952, 0.1
  %v991 = vmul.f32 %v953, 0.1
  %v992 = vmul.f32 %v954, 0.1
  %v993 = vmul.f32 %v955, 0.1
  %v994 = vmul.f32 %v956, 0.1
  %v995 = vmul.f32 %v957, 0.1
  %v996 = vmul.f32 %v958, 0.1
  %v997 = vsel %vm965, %v943, %v981
  %v998 = vsel %vm966, %v944, %v982
  %v999 = vsel %vm967, %v945, %v983
  %v1000 = vsel %vm968, %v946, %v984
  %v1001 = vsel %vm969, %v947, %v985
  %v1002 = vsel %vm970, %v948, %v986
  %v1003 = vsel %vm971, %v949, %v987
  %v1004 = vsel %vm972, %v950, %v988
  %v1005 = vsel %vm973, %v951, %v989
  %v1006 = vsel %vm974, %v952, %v990
  %v1007 = vsel %vm975, %v953, %v991
  %v1008 = vsel %vm976, %v954, %v992
  %v1009 = vsel %vm977, %v955, %v993
  %v1010 = vsel %vm978, %v956, %v994
  %v1011 = vsel %vm979, %v957, %v995
  %v1012 = vsel %vm980, %v958, %v996
  %vm1029 = vcmask 1042432
  %v1030 = vrot.slane %v997, 5
  %v1031 = vrot.slane %v998, 5
  %v1032 = vsel %vm1029, %v1030, %v1031
  %v1033 = vrot.slane %v999, 5
  %v1034 = vsel %vm1029, %v1031, %v1033
  %v1035 = vrot.slane %v1000, 5
  %v1036 = vsel %vm1029, %v1033, %v1035
  %v1037 = vrot.slane %v1001, 5
  %v1038 = vsel %vm1029, %v1035, %v1037
  %v1039 = vrot.slane %v1002, 5
  %v1040 = vsel %vm1029, %v1037, %v1039
  %v1041 = vrot.slane %v1003, 5
  %v1042 = vsel %vm1029, %v1039, %v1041
  %v1043 = vrot.slane %v1004, 5
  %v1044 = vsel %vm1029, %v1041, %v1043
  %v1045 = vrot.slane %v1005, 5
  %v1046 = vrot.slane %v1006, 5
  %v1047 = vsel %vm1029, %v1045, %v1046
  %v1048 = vrot.slane %v1007, 5
  %v1049 = vsel %vm1029, %v1046, %v1048
  %v1050 = vrot.slane %v1008, 5
  %v1051 = vsel %vm1029, %v1048, %v1050
  %v1052 = vrot.slane %v1009, 5
  %v1053 = vsel %vm1029, %v1050, %v1052
  %v1054 = vrot.slane %v1010, 5
  %v1055 = vsel %vm1029, %v1052, %v1054
  %v1056 = vrot.slane %v1011, 5
  %v1057 = vsel %vm1029, %v1054, %v1056
  %v1058 = vrot.slane %v1012, 5
  %v1059 = vsel %vm1029, %v1056, %v1058
  %v1078 = vsel %vm1029, 0.0, %v1030
  %v1079 = vsel %vm1029, 0.0, %v1045
  %v1080 = vsel %vm1029, %v1043, 0.0
  %v1081 = vsel %vm1029, %v1058, 0.0
  %vm1086 = vcmask 1044480
  %v1087 = vrot.slane %v1078, 3
  %v1088 = vrot.slane %v1032, 3
  %v1089 = vsel %vm1086, %v1087, %v1088
  %v1090 = vrot.slane %v1034, 3
  %v1091 = vsel %vm1086, %v1088, %v1090
  %v1092 = vrot.slane %v1036, 3
  %v1093 = vsel %vm1086, %v1090, %v1092
  %v1094 = vrot.slane %v1038, 3
  %v1095 = vsel %vm1086, %v1092, %v1094
  %v1096 = vrot.slane %v1040, 3
  %v1097 = vsel %vm1086, %v1094, %v1096
  %v1098 = vrot.slane %v1042, 3
  %v1099 = vsel %vm1086, %v1096, %v1098
  %v1100 = vrot.slane %v1044, 3
  %v1101 = vsel %vm1086, %v1098, %v1100
  %v1102 = vrot.slane %v1080, 3
  %v1103 = vsel %vm1086, %v1100, %v1102
  %v1104 = vrot.slane %v1079, 3
  %v1105 = vrot.slane %v1047, 3
  %v1106 = vsel %vm1086, %v1104, %v1105
  %v1107 = vrot.slane %v1049, 3
  %v1108 = vsel %vm1086, %v1105, %v1107
  %v1109 = vrot.slane %v1051, 3
  %v1110 = vsel %vm1086, %v1107, %v1109
  %v1111 = vrot.slane %v1053, 3
  %v1112 = vsel %vm1086, %v1109, %v1111
  %v1113 = vrot.slane %v1055, 3
  %v1114 = vsel %vm1086, %v1111, %v1113
  %v1115 = vrot.slane %v1057, 3
  %v1116 = vsel %vm1086, %v1113, %v1115
  %v1117 = vrot.slane %v1059, 3
  %v1118 = vsel %vm1086, %v1115, %v1117
  %v1119 = vrot.slane %v1081, 3
  %v1120 = vsel %vm1086, %v1117, %v1119
  %1121 = vrot.lane.b32.xlu0 %v1089, 8
  %v1122 = vpop.permute.xlu0 %1121
  %1123 = vrot.lane.b32.xlu0 %v1091, 8
  %v1124 = vpop.permute.xlu0 %1123
  %1125 = vrot.lane.b32.xlu0 %v1093, 8
  %v1126 = vpop.permute.xlu0 %1125
  %1127 = vrot.lane.b32.xlu0 %v1095, 8
  %v1128 = vpop.permute.xlu0 %1127
  %1129 = vrot.lane.b32.xlu0 %v1097, 8
  %v1130 = vpop.permute.xlu0 %1129
  %1131 = vrot.lane.b32.xlu0 %v1099, 8
  %v1132 = vpop.permute.xlu0 %1131
  %1133 = vrot.lane.b32.xlu0 %v1101, 8
  %v1134 = vpop.permute.xlu0 %1133
  %1135 = vrot.lane.b32.xlu0 %v1103, 8
  %v1136 = vpop.permute.xlu0 %1135
  %1137 = vrot.lane.b32.xlu0 %v1106, 8
  %v1138 = vpop.permute.xlu0 %1137
  %1139 = vrot.lane.b32.xlu0 %v1108, 8
  %v1140 = vpop.permute.xlu0 %1139
  %1141 = vrot.lane.b32.xlu0 %v1110, 8
  %v1142 = vpop.permute.xlu0 %1141
  %1143 = vrot.lane.b32.xlu0 %v1112, 8
  %v1144 = vpop.permute.xlu0 %1143
  %1145 = vrot.lane.b32.xlu0 %v1114, 8
  %v1146 = vpop.permute.xlu0 %1145
  %1147 = vrot.lane.b32.xlu0 %v1116, 8
  %v1148 = vpop.permute.xlu0 %1147
  %1149 = vrot.lane.b32.xlu0 %v1118, 8
  %v1150 = vpop.permute.xlu0 %1149
  %1151 = vrot.lane.b32.xlu0 %v1120, 8
  %v1152 = vpop.permute.xlu0 %1151
  %vm1169 = vcmask 1041408
  %v1170 = vrot.slane %v1078, 6
  %v1171 = vrot.slane %v1032, 6
  %v1172 = vsel %vm1169, %v1170, %v1171
  %v1173 = vrot.slane %v1034, 6
  %v1174 = vsel %vm1169, %v1171, %v1173
  %v1175 = vrot.slane %v1036, 6
  %v1176 = vsel %vm1169, %v1173, %v1175
  %v1177 = vrot.slane %v1038, 6
  %v1178 = vsel %vm1169, %v1175, %v1177
  %v1179 = vrot.slane %v1040, 6
  %v1180 = vsel %vm1169, %v1177, %v1179
  %v1181 = vrot.slane %v1042, 6
  %v1182 = vsel %vm1169, %v1179, %v1181
  %v1183 = vrot.slane %v1044, 6
  %v1184 = vsel %vm1169, %v1181, %v1183
  %v1185 = vrot.slane %v1080, 6
  %v1186 = vsel %vm1169, %v1183, %v1185
  %v1187 = vrot.slane %v1079, 6
  %v1188 = vrot.slane %v1047, 6
  %v1189 = vsel %vm1169, %v1187, %v1188
  %v1190 = vrot.slane %v1049, 6
  %v1191 = vsel %vm1169, %v1188, %v1190
  %v1192 = vrot.slane %v1051, 6
  %v1193 = vsel %vm1169, %v1190, %v1192
  %v1194 = vrot.slane %v1053, 6
  %v1195 = vsel %vm1169, %v1192, %v1194
  %v1196 = vrot.slane %v1055, 6
  %v1197 = vsel %vm1169, %v1194, %v1196
  %v1198 = vrot.slane %v1057, 6
  %v1199 = vsel %vm1169, %v1196, %v1198
  %v1200 = vrot.slane %v1059, 6
  %v1201 = vsel %vm1169, %v1198, %v1200
  %v1202 = vrot.slane %v1081, 6
  %v1203 = vsel %vm1169, %v1200, %v1202
  %1204 = vrot.lane.b32.xlu0 %v1172, 16
  %v1205 = vpop.permute.xlu0 %1204
  %1206 = vrot.lane.b32.xlu0 %v1174, 16
  %v1207 = vpop.permute.xlu0 %1206
  %1208 = vrot.lane.b32.xlu0 %v1176, 16
  %v1209 = vpop.permute.xlu0 %1208
  %1210 = vrot.lane.b32.xlu0 %v1178, 16
  %v1211 = vpop.permute.xlu0 %1210
  %1212 = vrot.lane.b32.xlu0 %v1180, 16
  %v1213 = vpop.permute.xlu0 %1212
  %1214 = vrot.lane.b32.xlu0 %v1182, 16
  %v1215 = vpop.permute.xlu0 %1214
  %1216 = vrot.lane.b32.xlu0 %v1184, 16
  %v1217 = vpop.permute.xlu0 %1216
  %1218 = vrot.lane.b32.xlu0 %v1186, 16
  %v1219 = vpop.permute.xlu0 %1218
  %1220 = vrot.lane.b32.xlu0 %v1189, 16
  %v1221 = vpop.permute.xlu0 %1220
  %1222 = vrot.lane.b32.xlu0 %v1191, 16
  %v1223 = vpop.permute.xlu0 %1222
  %1224 = vrot.lane.b32.xlu0 %v1193, 16
  %v1225 = vpop.permute.xlu0 %1224
  %1226 = vrot.lane.b32.xlu0 %v1195, 16
  %v1227 = vpop.permute.xlu0 %1226
  %1228 = vrot.lane.b32.xlu0 %v1197, 16
  %v1229 = vpop.permute.xlu0 %1228
  %1230 = vrot.lane.b32.xlu0 %v1199, 16
  %v1231 = vpop.permute.xlu0 %1230
  %1232 = vrot.lane.b32.xlu0 %v1201, 16
  %v1233 = vpop.permute.xlu0 %1232
  %1234 = vrot.lane.b32.xlu0 %v1203, 16
  %v1235 = vpop.permute.xlu0 %1234
  %v1252 = vsel %vm395, %v1078, %v1122
  %v1253 = vsel %vm395, %v1032, %v1124
  %v1254 = vsel %vm395, %v1034, %v1126
  %v1255 = vsel %vm395, %v1036, %v1128
  %v1256 = vsel %vm395, %v1038, %v1130
  %v1257 = vsel %vm395, %v1040, %v1132
  %v1258 = vsel %vm395, %v1042, %v1134
  %v1259 = vsel %vm395, %v1044, %v1136
  %v1260 = vsel %vm395, %v1079, %v1138
  %v1261 = vsel %vm395, %v1047, %v1140
  %v1262 = vsel %vm395, %v1049, %v1142
  %v1263 = vsel %vm395, %v1051, %v1144
  %v1264 = vsel %vm395, %v1053, %v1146
  %v1265 = vsel %vm395, %v1055, %v1148
  %v1266 = vsel %vm395, %v1057, %v1150
  %v1267 = vsel %vm395, %v1059, %v1152
  %v1268 = vsel %vm412, %v1252, %v1205
  %v1269 = vsel %vm412, %v1253, %v1207
  %v1270 = vsel %vm412, %v1254, %v1209
  %v1271 = vsel %vm412, %v1255, %v1211
  %v1272 = vsel %vm412, %v1256, %v1213
  %v1273 = vsel %vm412, %v1257, %v1215
  %v1274 = vsel %vm412, %v1258, %v1217
  %v1275 = vsel %vm412, %v1259, %v1219
  %v1276 = vsel %vm412, %v1260, %v1221
  %v1277 = vsel %vm412, %v1261, %v1223
  %v1278 = vsel %vm412, %v1262, %v1225
  %v1279 = vsel %vm412, %v1263, %v1227
  %v1280 = vsel %vm412, %v1264, %v1229
  %v1281 = vsel %vm412, %v1265, %v1231
  %v1282 = vsel %vm412, %v1266, %v1233
  %v1283 = vsel %vm412, %v1267, %v1235
  %v1284 = vpack.c.bf16 %v1269, %v1268
  %v1285 = vpack.c.bf16 %v1271, %v1270
  %v1286 = vpack.c.bf16 %v1273, %v1272
  %v1287 = vpack.c.bf16 %v1275, %v1274
  %v1288 = vpack.c.bf16 %v1277, %v1276
  %v1289 = vpack.c.bf16 %v1279, %v1278
  %v1290 = vpack.c.bf16 %v1281, %v1280
  %v1291 = vpack.c.bf16 %v1283, %v1282
  %v1293 = vperm.slane %v964, 0
  %v1298 = vunpack.c.l.b16 %v960
  %v1299 = vunpack.c.l.b16 %v961
  %v1300 = vunpack.c.l.b16 %v962
  %v1301 = vpack.c.b16 %v1299, %v1298
  %v1302 = vpack.c.b16 %v1300, %v1300
  %v1305 = vsel %vm449, %v1284, 0
  %v1308 = vsel %vm449, %v1285, 0
  %v1311 = vsel %vm449, %v1286, 0
  %v1314 = vsel %vm449, %v1287, 0
  %v1317 = vsel %vm449, %v1288, 0
  %v1320 = vsel %vm449, %v1289, 0
  %v1323 = vsel %vm449, %v1290, 0
  %v1326 = vsel %vm449, %v1291, 0
  %v1329 = vsel %vm474, %v1302, 0
  %1331 = vmatpush.bf16.msra.mxu0 0
  %1332 = vmatpush.bf16.msra.mxu0 0
  %1333 = vmatpush.bf16.msra.mxu0 0
  %1334 = vmatpush.bf16.msra.mxu0 0
  %1335 = vmatpush.bf16.msra.mxu0 0
  %1336 = vmatpush.bf16.msra.mxu0 0
  %1337 = vmatpush.bf16.msra.mxu0 %v1329
  %1338 = vmatpush.bf16.msra.mxu0 %v1301
  %1339 = vmatmul.bf16.gmra.mxu0 %v1305
  %v1340 = vpop.f32.mrf.mxu0
  %v1341 = vadd.f32 %v1293, %v1340
  %v1342 = vpop.f32.mrf.mxu0
  %v1343 = vadd.f32 %v1293, %v1342
  %1344 = vmatmul.bf16.gmra.mxu0 %v1308
  %v1345 = vpop.f32.mrf.mxu0
  %v1346 = vadd.f32 %v1293, %v1345
  %v1347 = vpop.f32.mrf.mxu0
  %v1348 = vadd.f32 %v1293, %v1347
  %1349 = vmatmul.bf16.gmra.mxu0 %v1311
  %v1350 = vpop.f32.mrf.mxu0
  %v1351 = vadd.f32 %v1293, %v1350
  %v1352 = vpop.f32.mrf.mxu0
  %v1353 = vadd.f32 %v1293, %v1352
  %1354 = vmatmul.bf16.gmra.mxu0 %v1314
  %v1355 = vpop.f32.mrf.mxu0
  %v1356 = vadd.f32 %v1293, %v1355
  %v1357 = vpop.f32.mrf.mxu0
  %v1358 = vadd.f32 %v1293, %v1357
  %1359 = vmatmul.bf16.gmra.mxu0 %v1317
  %v1360 = vpop.f32.mrf.mxu0
  %v1361 = vadd.f32 %v1293, %v1360
  %v1362 = vpop.f32.mrf.mxu0
  %v1363 = vadd.f32 %v1293, %v1362
  %1364 = vmatmul.bf16.gmra.mxu0 %v1320
  %v1365 = vpop.f32.mrf.mxu0
  %v1366 = vadd.f32 %v1293, %v1365
  %v1367 = vpop.f32.mrf.mxu0
  %v1368 = vadd.f32 %v1293, %v1367
  %1369 = vmatmul.bf16.gmra.mxu0 %v1323
  %v1370 = vpop.f32.mrf.mxu0
  %v1371 = vadd.f32 %v1293, %v1370
  %v1372 = vpop.f32.mrf.mxu0
  %v1373 = vadd.f32 %v1293, %v1372
  %1374 = vmatmul.bf16.gmra.mxu0 %v1326
  %v1375 = vpop.f32.mrf.mxu0
  %v1376 = vadd.f32 %v1293, %v1375
  %v1377 = vpop.f32.mrf.mxu0
  %v1378 = vadd.f32 %v1293, %v1377
  %1379 = vdwg.mxu0
  %s1380 = scalar_lea.vmem %s4, 12
  %v1381 = vld [vmem:[%s1380] sm:$0xf]
  %v1382 = vld [vmem:[%s1380 + $0x4] sm:$0xf]
  %v1383 = vld [vmem:[%s1380 + $0x8] sm:$0xf]
  %s1384 = scalar_lea.vmem %s5, 1
  %v1385 = vld [vmem:[%s1384] sm:$0x1]
  %vm1386 = vcmp.ge.f32.partialorder %v1341, 0.0
  %vm1387 = vcmp.ge.f32.partialorder %v1343, 0.0
  %vm1388 = vcmp.ge.f32.partialorder %v1346, 0.0
  %vm1389 = vcmp.ge.f32.partialorder %v1348, 0.0
  %vm1390 = vcmp.ge.f32.partialorder %v1351, 0.0
  %vm1391 = vcmp.ge.f32.partialorder %v1353, 0.0
  %vm1392 = vcmp.ge.f32.partialorder %v1356, 0.0
  %vm1393 = vcmp.ge.f32.partialorder %v1358, 0.0
  %vm1394 = vcmp.ge.f32.partialorder %v1361, 0.0
  %vm1395 = vcmp.ge.f32.partialorder %v1363, 0.0
  %vm1396 = vcmp.ge.f32.partialorder %v1366, 0.0
  %vm1397 = vcmp.ge.f32.partialorder %v1368, 0.0
  %vm1398 = vcmp.ge.f32.partialorder %v1371, 0.0
  %vm1399 = vcmp.ge.f32.partialorder %v1373, 0.0
  %vm1400 = vcmp.ge.f32.partialorder %v1376, 0.0
  %vm1401 = vcmp.ge.f32.partialorder %v1378, 0.0
  %v1402 = vmul.f32 %v1341, 0.1
  %v1403 = vmul.f32 %v1343, 0.1
  %v1404 = vmul.f32 %v1346, 0.1
  %v1405 = vmul.f32 %v1348, 0.1
  %v1406 = vmul.f32 %v1351, 0.1
  %v1407 = vmul.f32 %v1353, 0.1
  %v1408 = vmul.f32 %v1356, 0.1
  %v1409 = vmul.f32 %v1358, 0.1
  %v1410 = vmul.f32 %v1361, 0.1
  %v1411 = vmul.f32 %v1363, 0.1
  %v1412 = vmul.f32 %v1366, 0.1
  %v1413 = vmul.f32 %v1368, 0.1
  %v1414 = vmul.f32 %v1371, 0.1
  %v1415 = vmul.f32 %v1373, 0.1
  %v1416 = vmul.f32 %v1376, 0.1
  %v1417 = vmul.f32 %v1378, 0.1
  %v1418 = vsel %vm1386, %v1341, %v1402
  %v1419 = vsel %vm1387, %v1343, %v1403
  %v1420 = vsel %vm1388, %v1346, %v1404
  %v1421 = vsel %vm1389, %v1348, %v1405
  %v1422 = vsel %vm1390, %v1351, %v1406
  %v1423 = vsel %vm1391, %v1353, %v1407
  %v1424 = vsel %vm1392, %v1356, %v1408
  %v1425 = vsel %vm1393, %v1358, %v1409
  %v1426 = vsel %vm1394, %v1361, %v1410
  %v1427 = vsel %vm1395, %v1363, %v1411
  %v1428 = vsel %vm1396, %v1366, %v1412
  %v1429 = vsel %vm1397, %v1368, %v1413
  %v1430 = vsel %vm1398, %v1371, %v1414
  %v1431 = vsel %vm1399, %v1373, %v1415
  %v1432 = vsel %vm1400, %v1376, %v1416
  %v1433 = vsel %vm1401, %v1378, %v1417
  %v1450 = vrot.slane %v1418, 7
  %v1451 = vrot.slane %v1419, 7
  %v1452 = vsel %vm172, %v1450, %v1451
  %v1453 = vrot.slane %v1420, 7
  %v1454 = vsel %vm172, %v1451, %v1453
  %v1455 = vrot.slane %v1421, 7
  %v1456 = vsel %vm172, %v1453, %v1455
  %v1457 = vrot.slane %v1422, 7
  %v1458 = vsel %vm172, %v1455, %v1457
  %v1459 = vrot.slane %v1423, 7
  %v1460 = vsel %vm172, %v1457, %v1459
  %v1461 = vrot.slane %v1424, 7
  %v1462 = vsel %vm172, %v1459, %v1461
  %v1463 = vrot.slane %v1425, 7
  %v1464 = vsel %vm172, %v1461, %v1463
  %v1465 = vrot.slane %v1426, 7
  %v1466 = vrot.slane %v1427, 7
  %v1467 = vsel %vm172, %v1465, %v1466
  %v1468 = vrot.slane %v1428, 7
  %v1469 = vsel %vm172, %v1466, %v1468
  %v1470 = vrot.slane %v1429, 7
  %v1471 = vsel %vm172, %v1468, %v1470
  %v1472 = vrot.slane %v1430, 7
  %v1473 = vsel %vm172, %v1470, %v1472
  %v1474 = vrot.slane %v1431, 7
  %v1475 = vsel %vm172, %v1472, %v1474
  %v1476 = vrot.slane %v1432, 7
  %v1477 = vsel %vm172, %v1474, %v1476
  %v1478 = vrot.slane %v1433, 7
  %v1479 = vsel %vm172, %v1476, %v1478
  %v1498 = vsel %vm172, 0.0, %v1450
  %v1499 = vsel %vm172, 0.0, %v1465
  %v1500 = vsel %vm172, %v1463, 0.0
  %v1501 = vsel %vm172, %v1478, 0.0
  %v1506 = vrot.slane %v1498, 1
  %v1507 = vrot.slane %v1452, 1
  %v1508 = vsel %vm229, %v1506, %v1507
  %v1509 = vrot.slane %v1454, 1
  %v1510 = vsel %vm229, %v1507, %v1509
  %v1511 = vrot.slane %v1456, 1
  %v1512 = vsel %vm229, %v1509, %v1511
  %v1513 = vrot.slane %v1458, 1
  %v1514 = vsel %vm229, %v1511, %v1513
  %v1515 = vrot.slane %v1460, 1
  %v1516 = vsel %vm229, %v1513, %v1515
  %v1517 = vrot.slane %v1462, 1
  %v1518 = vsel %vm229, %v1515, %v1517
  %v1519 = vrot.slane %v1464, 1
  %v1520 = vsel %vm229, %v1517, %v1519
  %v1521 = vrot.slane %v1500, 1
  %v1522 = vsel %vm229, %v1519, %v1521
  %v1523 = vrot.slane %v1499, 1
  %v1524 = vrot.slane %v1467, 1
  %v1525 = vsel %vm229, %v1523, %v1524
  %v1526 = vrot.slane %v1469, 1
  %v1527 = vsel %vm229, %v1524, %v1526
  %v1528 = vrot.slane %v1471, 1
  %v1529 = vsel %vm229, %v1526, %v1528
  %v1530 = vrot.slane %v1473, 1
  %v1531 = vsel %vm229, %v1528, %v1530
  %v1532 = vrot.slane %v1475, 1
  %v1533 = vsel %vm229, %v1530, %v1532
  %v1534 = vrot.slane %v1477, 1
  %v1535 = vsel %vm229, %v1532, %v1534
  %v1536 = vrot.slane %v1479, 1
  %v1537 = vsel %vm229, %v1534, %v1536
  %v1538 = vrot.slane %v1501, 1
  %v1539 = vsel %vm229, %v1536, %v1538
  %1540 = vrot.lane.b32.xlu0 %v1508, 8
  %v1541 = vpop.permute.xlu0 %1540
  %1542 = vrot.lane.b32.xlu0 %v1510, 8
  %v1543 = vpop.permute.xlu0 %1542
  %1544 = vrot.lane.b32.xlu0 %v1512, 8
  %v1545 = vpop.permute.xlu0 %1544
  %1546 = vrot.lane.b32.xlu0 %v1514, 8
  %v1547 = vpop.permute.xlu0 %1546
  %1548 = vrot.lane.b32.xlu0 %v1516, 8
  %v1549 = vpop.permute.xlu0 %1548
  %1550 = vrot.lane.b32.xlu0 %v1518, 8
  %v1551 = vpop.permute.xlu0 %1550
  %1552 = vrot.lane.b32.xlu0 %v1520, 8
  %v1553 = vpop.permute.xlu0 %1552
  %1554 = vrot.lane.b32.xlu0 %v1522, 8
  %v1555 = vpop.permute.xlu0 %1554
  %1556 = vrot.lane.b32.xlu0 %v1525, 8
  %v1557 = vpop.permute.xlu0 %1556
  %1558 = vrot.lane.b32.xlu0 %v1527, 8
  %v1559 = vpop.permute.xlu0 %1558
  %1560 = vrot.lane.b32.xlu0 %v1529, 8
  %v1561 = vpop.permute.xlu0 %1560
  %1562 = vrot.lane.b32.xlu0 %v1531, 8
  %v1563 = vpop.permute.xlu0 %1562
  %1564 = vrot.lane.b32.xlu0 %v1533, 8
  %v1565 = vpop.permute.xlu0 %1564
  %1566 = vrot.lane.b32.xlu0 %v1535, 8
  %v1567 = vpop.permute.xlu0 %1566
  %1568 = vrot.lane.b32.xlu0 %v1537, 8
  %v1569 = vpop.permute.xlu0 %1568
  %1570 = vrot.lane.b32.xlu0 %v1539, 8
  %v1571 = vpop.permute.xlu0 %1570
  %v1588 = vrot.slane %v1498, 2
  %v1589 = vrot.slane %v1452, 2
  %v1590 = vsel %vm312, %v1588, %v1589
  %v1591 = vrot.slane %v1454, 2
  %v1592 = vsel %vm312, %v1589, %v1591
  %v1593 = vrot.slane %v1456, 2
  %v1594 = vsel %vm312, %v1591, %v1593
  %v1595 = vrot.slane %v1458, 2
  %v1596 = vsel %vm312, %v1593, %v1595
  %v1597 = vrot.slane %v1460, 2
  %v1598 = vsel %vm312, %v1595, %v1597
  %v1599 = vrot.slane %v1462, 2
  %v1600 = vsel %vm312, %v1597, %v1599
  %v1601 = vrot.slane %v1464, 2
  %v1602 = vsel %vm312, %v1599, %v1601
  %v1603 = vrot.slane %v1500, 2
  %v1604 = vsel %vm312, %v1601, %v1603
  %v1605 = vrot.slane %v1499, 2
  %v1606 = vrot.slane %v1467, 2
  %v1607 = vsel %vm312, %v1605, %v1606
  %v1608 = vrot.slane %v1469, 2
  %v1609 = vsel %vm312, %v1606, %v1608
  %v1610 = vrot.slane %v1471, 2
  %v1611 = vsel %vm312, %v1608, %v1610
  %v1612 = vrot.slane %v1473, 2
  %v1613 = vsel %vm312, %v1610, %v1612
  %v1614 = vrot.slane %v1475, 2
  %v1615 = vsel %vm312, %v1612, %v1614
  %v1616 = vrot.slane %v1477, 2
  %v1617 = vsel %vm312, %v1614, %v1616
  %v1618 = vrot.slane %v1479, 2
  %v1619 = vsel %vm312, %v1616, %v1618
  %v1620 = vrot.slane %v1501, 2
  %v1621 = vsel %vm312, %v1618, %v1620
  %1622 = vrot.lane.b32.xlu0 %v1590, 16
  %v1623 = vpop.permute.xlu0 %1622
  %1624 = vrot.lane.b32.xlu0 %v1592, 16
  %v1625 = vpop.permute.xlu0 %1624
  %1626 = vrot.lane.b32.xlu0 %v1594, 16
  %v1627 = vpop.permute.xlu0 %1626
  %1628 = vrot.lane.b32.xlu0 %v1596, 16
  %v1629 = vpop.permute.xlu0 %1628
  %1630 = vrot.lane.b32.xlu0 %v1598, 16
  %v1631 = vpop.permute.xlu0 %1630
  %1632 = vrot.lane.b32.xlu0 %v1600, 16
  %v1633 = vpop.permute.xlu0 %1632
  %1634 = vrot.lane.b32.xlu0 %v1602, 16
  %v1635 = vpop.permute.xlu0 %1634
  %1636 = vrot.lane.b32.xlu0 %v1604, 16
  %v1637 = vpop.permute.xlu0 %1636
  %1638 = vrot.lane.b32.xlu0 %v1607, 16
  %v1639 = vpop.permute.xlu0 %1638
  %1640 = vrot.lane.b32.xlu0 %v1609, 16
  %v1641 = vpop.permute.xlu0 %1640
  %1642 = vrot.lane.b32.xlu0 %v1611, 16
  %v1643 = vpop.permute.xlu0 %1642
  %1644 = vrot.lane.b32.xlu0 %v1613, 16
  %v1645 = vpop.permute.xlu0 %1644
  %1646 = vrot.lane.b32.xlu0 %v1615, 16
  %v1647 = vpop.permute.xlu0 %1646
  %1648 = vrot.lane.b32.xlu0 %v1617, 16
  %v1649 = vpop.permute.xlu0 %1648
  %1650 = vrot.lane.b32.xlu0 %v1619, 16
  %v1651 = vpop.permute.xlu0 %1650
  %1652 = vrot.lane.b32.xlu0 %v1621, 16
  %v1653 = vpop.permute.xlu0 %1652
  %v1670 = vsel %vm395, %v1498, %v1541
  %v1671 = vsel %vm395, %v1452, %v1543
  %v1672 = vsel %vm395, %v1454, %v1545
  %v1673 = vsel %vm395, %v1456, %v1547
  %v1674 = vsel %vm395, %v1458, %v1549
  %v1675 = vsel %vm395, %v1460, %v1551
  %v1676 = vsel %vm395, %v1462, %v1553
  %v1677 = vsel %vm395, %v1464, %v1555
  %v1678 = vsel %vm395, %v1499, %v1557
  %v1679 = vsel %vm395, %v1467, %v1559
  %v1680 = vsel %vm395, %v1469, %v1561
  %v1681 = vsel %vm395, %v1471, %v1563
  %v1682 = vsel %vm395, %v1473, %v1565
  %v1683 = vsel %vm395, %v1475, %v1567
  %v1684 = vsel %vm395, %v1477, %v1569
  %v1685 = vsel %vm395, %v1479, %v1571
  %v1686 = vsel %vm412, %v1670, %v1623
  %v1687 = vsel %vm412, %v1671, %v1625
  %v1688 = vsel %vm412, %v1672, %v1627
  %v1689 = vsel %vm412, %v1673, %v1629
  %v1690 = vsel %vm412, %v1674, %v1631
  %v1691 = vsel %vm412, %v1675, %v1633
  %v1692 = vsel %vm412, %v1676, %v1635
  %v1693 = vsel %vm412, %v1677, %v1637
  %v1694 = vsel %vm412, %v1678, %v1639
  %v1695 = vsel %vm412, %v1679, %v1641
  %v1696 = vsel %vm412, %v1680, %v1643
  %v1697 = vsel %vm412, %v1681, %v1645
  %v1698 = vsel %vm412, %v1682, %v1647
  %v1699 = vsel %vm412, %v1683, %v1649
  %v1700 = vsel %vm412, %v1684, %v1651
  %v1701 = vsel %vm412, %v1685, %v1653
  %v1702 = vpack.c.bf16 %v1687, %v1686
  %v1703 = vpack.c.bf16 %v1689, %v1688
  %v1704 = vpack.c.bf16 %v1691, %v1690
  %v1705 = vpack.c.bf16 %v1693, %v1692
  %v1706 = vpack.c.bf16 %v1695, %v1694
  %v1707 = vpack.c.bf16 %v1697, %v1696
  %v1708 = vpack.c.bf16 %v1699, %v1698
  %v1709 = vpack.c.bf16 %v1701, %v1700
  %v1711 = vperm.slane %v1385, 0
  %v1716 = vunpack.c.l.b16 %v1381
  %v1717 = vunpack.c.l.b16 %v1382
  %v1718 = vunpack.c.l.b16 %v1383
  %v1719 = vpack.c.b16 %v1717, %v1716
  %v1720 = vpack.c.b16 %v1718, %v1718
  %v1723 = vsel %vm449, %v1702, 0
  %v1726 = vsel %vm449, %v1703, 0
  %v1729 = vsel %vm449, %v1704, 0
  %v1732 = vsel %vm449, %v1705, 0
  %v1735 = vsel %vm449, %v1706, 0
  %v1738 = vsel %vm449, %v1707, 0
  %v1741 = vsel %vm449, %v1708, 0
  %v1744 = vsel %vm449, %v1709, 0
  %v1747 = vsel %vm474, %v1720, 0
  %1749 = vmatpush.bf16.msra.mxu0 0
  %1750 = vmatpush.bf16.msra.mxu0 0
  %1751 = vmatpush.bf16.msra.mxu0 0
  %1752 = vmatpush.bf16.msra.mxu0 0
  %1753 = vmatpush.bf16.msra.mxu0 0
  %1754 = vmatpush.bf16.msra.mxu0 0
  %1755 = vmatpush.bf16.msra.mxu0 %v1747
  %1756 = vmatpush.bf16.msra.mxu0 %v1719
  %1757 = vmatmul.bf16.gmra.mxu0 %v1723
  %v1758 = vpop.f32.mrf.mxu0
  %v1759 = vadd.f32 %v1711, %v1758
  %v1760 = vpop.f32.mrf.mxu0
  %v1761 = vadd.f32 %v1711, %v1760
  %1762 = vmatmul.bf16.gmra.mxu0 %v1726
  %v1763 = vpop.f32.mrf.mxu0
  %v1764 = vadd.f32 %v1711, %v1763
  %v1765 = vpop.f32.mrf.mxu0
  %v1766 = vadd.f32 %v1711, %v1765
  %1767 = vmatmul.bf16.gmra.mxu0 %v1729
  %v1768 = vpop.f32.mrf.mxu0
  %v1769 = vadd.f32 %v1711, %v1768
  %v1770 = vpop.f32.mrf.mxu0
  %v1771 = vadd.f32 %v1711, %v1770
  %1772 = vmatmul.bf16.gmra.mxu0 %v1732
  %v1773 = vpop.f32.mrf.mxu0
  %v1774 = vadd.f32 %v1711, %v1773
  %v1775 = vpop.f32.mrf.mxu0
  %v1776 = vadd.f32 %v1711, %v1775
  %1777 = vmatmul.bf16.gmra.mxu0 %v1735
  %v1778 = vpop.f32.mrf.mxu0
  %v1779 = vadd.f32 %v1711, %v1778
  %v1780 = vpop.f32.mrf.mxu0
  %v1781 = vadd.f32 %v1711, %v1780
  %1782 = vmatmul.bf16.gmra.mxu0 %v1738
  %v1783 = vpop.f32.mrf.mxu0
  %v1784 = vadd.f32 %v1711, %v1783
  %v1785 = vpop.f32.mrf.mxu0
  %v1786 = vadd.f32 %v1711, %v1785
  %1787 = vmatmul.bf16.gmra.mxu0 %v1741
  %v1788 = vpop.f32.mrf.mxu0
  %v1789 = vadd.f32 %v1711, %v1788
  %v1790 = vpop.f32.mrf.mxu0
  %v1791 = vadd.f32 %v1711, %v1790
  %1792 = vmatmul.bf16.gmra.mxu0 %v1744
  %v1793 = vpop.f32.mrf.mxu0
  %v1794 = vadd.f32 %v1711, %v1793
  %v1795 = vpop.f32.mrf.mxu0
  %v1796 = vadd.f32 %v1711, %v1795
  %1797 = vdwg.mxu0
  %v1798 = vadd.f32 %v943, %v1759
  %v1799 = vadd.f32 %v944, %v1761
  %v1800 = vadd.f32 %v945, %v1764
  %v1801 = vadd.f32 %v946, %v1766
  %v1802 = vadd.f32 %v947, %v1769
  %v1803 = vadd.f32 %v948, %v1771
  %v1804 = vadd.f32 %v949, %v1774
  %v1805 = vadd.f32 %v950, %v1776
  %v1806 = vadd.f32 %v951, %v1779
  %v1807 = vadd.f32 %v952, %v1781
  %v1808 = vadd.f32 %v953, %v1784
  %v1809 = vadd.f32 %v954, %v1786
  %v1810 = vadd.f32 %v955, %v1789
  %v1811 = vadd.f32 %v956, %v1791
  %v1812 = vadd.f32 %v957, %v1794
  %v1813 = vadd.f32 %v958, %v1796
  %s1814 = scalar_lea.vmem %s2, 24
  %v1815 = vld [vmem:[%s1814] sm:$0xf]
  %v1816 = vld [vmem:[%s1814 + $0x4] sm:$0xf]
  %v1817 = vld [vmem:[%s1814 + $0x8] sm:$0xf]
  %s1818 = scalar_lea.vmem %s3, 2
  %v1819 = vld [vmem:[%s1818] sm:$0x1]
  %vm1820 = vcmp.ge.f32.partialorder %v1798, 0.0
  %vm1821 = vcmp.ge.f32.partialorder %v1799, 0.0
  %vm1822 = vcmp.ge.f32.partialorder %v1800, 0.0
  %vm1823 = vcmp.ge.f32.partialorder %v1801, 0.0
  %vm1824 = vcmp.ge.f32.partialorder %v1802, 0.0
  %vm1825 = vcmp.ge.f32.partialorder %v1803, 0.0
  %vm1826 = vcmp.ge.f32.partialorder %v1804, 0.0
  %vm1827 = vcmp.ge.f32.partialorder %v1805, 0.0
  %vm1828 = vcmp.ge.f32.partialorder %v1806, 0.0
  %vm1829 = vcmp.ge.f32.partialorder %v1807, 0.0
  %vm1830 = vcmp.ge.f32.partialorder %v1808, 0.0
  %vm1831 = vcmp.ge.f32.partialorder %v1809, 0.0
  %vm1832 = vcmp.ge.f32.partialorder %v1810, 0.0
  %vm1833 = vcmp.ge.f32.partialorder %v1811, 0.0
  %vm1834 = vcmp.ge.f32.partialorder %v1812, 0.0
  %vm1835 = vcmp.ge.f32.partialorder %v1813, 0.0
  %v1836 = vmul.f32 %v1798, 0.1
  %v1837 = vmul.f32 %v1799, 0.1
  %v1838 = vmul.f32 %v1800, 0.1
  %v1839 = vmul.f32 %v1801, 0.1
  %v1840 = vmul.f32 %v1802, 0.1
  %v1841 = vmul.f32 %v1803, 0.1
  %v1842 = vmul.f32 %v1804, 0.1
  %v1843 = vmul.f32 %v1805, 0.1
  %v1844 = vmul.f32 %v1806, 0.1
  %v1845 = vmul.f32 %v1807, 0.1
  %v1846 = vmul.f32 %v1808, 0.1
  %v1847 = vmul.f32 %v1809, 0.1
  %v1848 = vmul.f32 %v1810, 0.1
  %v1849 = vmul.f32 %v1811, 0.1
  %v1850 = vmul.f32 %v1812, 0.1
  %v1851 = vmul.f32 %v1813, 0.1
  %v1852 = vsel %vm1820, %v1798, %v1836
  %v1853 = vsel %vm1821, %v1799, %v1837
  %v1854 = vsel %vm1822, %v1800, %v1838
  %v1855 = vsel %vm1823, %v1801, %v1839
  %v1856 = vsel %vm1824, %v1802, %v1840
  %v1857 = vsel %vm1825, %v1803, %v1841
  %v1858 = vsel %vm1826, %v1804, %v1842
  %v1859 = vsel %vm1827, %v1805, %v1843
  %v1860 = vsel %vm1828, %v1806, %v1844
  %v1861 = vsel %vm1829, %v1807, %v1845
  %v1862 = vsel %vm1830, %v1808, %v1846
  %v1863 = vsel %vm1831, %v1809, %v1847
  %v1864 = vsel %vm1832, %v1810, %v1848
  %v1865 = vsel %vm1833, %v1811, %v1849
  %v1866 = vsel %vm1834, %v1812, %v1850
  %v1867 = vsel %vm1835, %v1813, %v1851
  %v1884 = vrot.slane %v1852, 3
  %v1885 = vrot.slane %v1853, 3
  %v1886 = vsel %vm1086, %v1884, %v1885
  %v1887 = vrot.slane %v1854, 3
  %v1888 = vsel %vm1086, %v1885, %v1887
  %v1889 = vrot.slane %v1855, 3
  %v1890 = vsel %vm1086, %v1887, %v1889
  %v1891 = vrot.slane %v1856, 3
  %v1892 = vsel %vm1086, %v1889, %v1891
  %v1893 = vrot.slane %v1857, 3
  %v1894 = vsel %vm1086, %v1891, %v1893
  %v1895 = vrot.slane %v1858, 3
  %v1896 = vsel %vm1086, %v1893, %v1895
  %v1897 = vrot.slane %v1859, 3
  %v1898 = vsel %vm1086, %v1895, %v1897
  %v1899 = vrot.slane %v1860, 3
  %v1900 = vrot.slane %v1861, 3
  %v1901 = vsel %vm1086, %v1899, %v1900
  %v1902 = vrot.slane %v1862, 3
  %v1903 = vsel %vm1086, %v1900, %v1902
  %v1904 = vrot.slane %v1863, 3
  %v1905 = vsel %vm1086, %v1902, %v1904
  %v1906 = vrot.slane %v1864, 3
  %v1907 = vsel %vm1086, %v1904, %v1906
  %v1908 = vrot.slane %v1865, 3
  %v1909 = vsel %vm1086, %v1906, %v1908
  %v1910 = vrot.slane %v1866, 3
  %v1911 = vsel %vm1086, %v1908, %v1910
  %v1912 = vrot.slane %v1867, 3
  %v1913 = vsel %vm1086, %v1910, %v1912
  %v1932 = vsel %vm1086, 0.0, %v1884
  %v1933 = vsel %vm1086, 0.0, %v1899
  %v1934 = vsel %vm1086, %v1897, 0.0
  %v1935 = vsel %vm1086, %v1912, 0.0
  %v1940 = vrot.slane %v1932, 5
  %v1941 = vrot.slane %v1886, 5
  %v1942 = vsel %vm1029, %v1940, %v1941
  %v1943 = vrot.slane %v1888, 5
  %v1944 = vsel %vm1029, %v1941, %v1943
  %v1945 = vrot.slane %v1890, 5
  %v1946 = vsel %vm1029, %v1943, %v1945
  %v1947 = vrot.slane %v1892, 5
  %v1948 = vsel %vm1029, %v1945, %v1947
  %v1949 = vrot.slane %v1894, 5
  %v1950 = vsel %vm1029, %v1947, %v1949
  %v1951 = vrot.slane %v1896, 5
  %v1952 = vsel %vm1029, %v1949, %v1951
  %v1953 = vrot.slane %v1898, 5
  %v1954 = vsel %vm1029, %v1951, %v1953
  %v1955 = vrot.slane %v1934, 5
  %v1956 = vsel %vm1029, %v1953, %v1955
  %v1957 = vrot.slane %v1933, 5
  %v1958 = vrot.slane %v1901, 5
  %v1959 = vsel %vm1029, %v1957, %v1958
  %v1960 = vrot.slane %v1903, 5
  %v1961 = vsel %vm1029, %v1958, %v1960
  %v1962 = vrot.slane %v1905, 5
  %v1963 = vsel %vm1029, %v1960, %v1962
  %v1964 = vrot.slane %v1907, 5
  %v1965 = vsel %vm1029, %v1962, %v1964
  %v1966 = vrot.slane %v1909, 5
  %v1967 = vsel %vm1029, %v1964, %v1966
  %v1968 = vrot.slane %v1911, 5
  %v1969 = vsel %vm1029, %v1966, %v1968
  %v1970 = vrot.slane %v1913, 5
  %v1971 = vsel %vm1029, %v1968, %v1970
  %v1972 = vrot.slane %v1935, 5
  %v1973 = vsel %vm1029, %v1970, %v1972
  %1974 = vrot.lane.b32.xlu0 %v1942, 8
  %v1975 = vpop.permute.xlu0 %1974
  %1976 = vrot.lane.b32.xlu0 %v1944, 8
  %v1977 = vpop.permute.xlu0 %1976
  %1978 = vrot.lane.b32.xlu0 %v1946, 8
  %v1979 = vpop.permute.xlu0 %1978
  %1980 = vrot.lane.b32.xlu0 %v1948, 8
  %v1981 = vpop.permute.xlu0 %1980
  %1982 = vrot.lane.b32.xlu0 %v1950, 8
  %v1983 = vpop.permute.xlu0 %1982
  %1984 = vrot.lane.b32.xlu0 %v1952, 8
  %v1985 = vpop.permute.xlu0 %1984
  %1986 = vrot.lane.b32.xlu0 %v1954, 8
  %v1987 = vpop.permute.xlu0 %1986
  %1988 = vrot.lane.b32.xlu0 %v1956, 8
  %v1989 = vpop.permute.xlu0 %1988
  %1990 = vrot.lane.b32.xlu0 %v1959, 8
  %v1991 = vpop.permute.xlu0 %1990
  %1992 = vrot.lane.b32.xlu0 %v1961, 8
  %v1993 = vpop.permute.xlu0 %1992
  %1994 = vrot.lane.b32.xlu0 %v1963, 8
  %v1995 = vpop.permute.xlu0 %1994
  %1996 = vrot.lane.b32.xlu0 %v1965, 8
  %v1997 = vpop.permute.xlu0 %1996
  %1998 = vrot.lane.b32.xlu0 %v1967, 8
  %v1999 = vpop.permute.xlu0 %1998
  %2000 = vrot.lane.b32.xlu0 %v1969, 8
  %v2001 = vpop.permute.xlu0 %2000
  %2002 = vrot.lane.b32.xlu0 %v1971, 8
  %v2003 = vpop.permute.xlu0 %2002
  %2004 = vrot.lane.b32.xlu0 %v1973, 8
  %v2005 = vpop.permute.xlu0 %2004
  %v2023 = vrot.slane %v1886, 2
  %v2024 = vrot.slane %v1888, 2
  %v2025 = vsel %vm312, %v2023, %v2024
  %v2026 = vrot.slane %v1890, 2
  %v2027 = vsel %vm312, %v2024, %v2026
  %v2028 = vrot.slane %v1892, 2
  %v2029 = vsel %vm312, %v2026, %v2028
  %v2030 = vrot.slane %v1894, 2
  %v2031 = vsel %vm312, %v2028, %v2030
  %v2032 = vrot.slane %v1896, 2
  %v2033 = vsel %vm312, %v2030, %v2032
  %v2034 = vrot.slane %v1898, 2
  %v2035 = vsel %vm312, %v2032, %v2034
  %v2036 = vrot.slane %v1934, 2
  %v2037 = vsel %vm312, %v2034, %v2036
  %v2038 = vrot.slane 0.0, 2
  %v2039 = vsel %vm312, %v2036, %v2038
  %v2040 = vrot.slane %v1901, 2
  %v2041 = vrot.slane %v1903, 2
  %v2042 = vsel %vm312, %v2040, %v2041
  %v2043 = vrot.slane %v1905, 2
  %v2044 = vsel %vm312, %v2041, %v2043
  %v2045 = vrot.slane %v1907, 2
  %v2046 = vsel %vm312, %v2043, %v2045
  %v2047 = vrot.slane %v1909, 2
  %v2048 = vsel %vm312, %v2045, %v2047
  %v2049 = vrot.slane %v1911, 2
  %v2050 = vsel %vm312, %v2047, %v2049
  %v2051 = vrot.slane %v1913, 2
  %v2052 = vsel %vm312, %v2049, %v2051
  %v2053 = vrot.slane %v1935, 2
  %v2054 = vsel %vm312, %v2051, %v2053
  %v2055 = vsel %vm312, %v2053, %v2038
  %2056 = vrot.lane.b32.xlu0 %v2025, 16
  %v2057 = vpop.permute.xlu0 %2056
  %2058 = vrot.lane.b32.xlu0 %v2027, 16
  %v2059 = vpop.permute.xlu0 %2058
  %2060 = vrot.lane.b32.xlu0 %v2029, 16
  %v2061 = vpop.permute.xlu0 %2060
  %2062 = vrot.lane.b32.xlu0 %v2031, 16
  %v2063 = vpop.permute.xlu0 %2062
  %2064 = vrot.lane.b32.xlu0 %v2033, 16
  %v2065 = vpop.permute.xlu0 %2064
  %2066 = vrot.lane.b32.xlu0 %v2035, 16
  %v2067 = vpop.permute.xlu0 %2066
  %2068 = vrot.lane.b32.xlu0 %v2037, 16
  %v2069 = vpop.permute.xlu0 %2068
  %2070 = vrot.lane.b32.xlu0 %v2039, 16
  %v2071 = vpop.permute.xlu0 %2070
  %2072 = vrot.lane.b32.xlu0 %v2042, 16
  %v2073 = vpop.permute.xlu0 %2072
  %2074 = vrot.lane.b32.xlu0 %v2044, 16
  %v2075 = vpop.permute.xlu0 %2074
  %2076 = vrot.lane.b32.xlu0 %v2046, 16
  %v2077 = vpop.permute.xlu0 %2076
  %2078 = vrot.lane.b32.xlu0 %v2048, 16
  %v2079 = vpop.permute.xlu0 %2078
  %2080 = vrot.lane.b32.xlu0 %v2050, 16
  %v2081 = vpop.permute.xlu0 %2080
  %2082 = vrot.lane.b32.xlu0 %v2052, 16
  %v2083 = vpop.permute.xlu0 %2082
  %2084 = vrot.lane.b32.xlu0 %v2054, 16
  %v2085 = vpop.permute.xlu0 %2084
  %2086 = vrot.lane.b32.xlu0 %v2055, 16
  %v2087 = vpop.permute.xlu0 %2086
  %v2104 = vsel %vm395, %v1932, %v1975
  %v2105 = vsel %vm395, %v1886, %v1977
  %v2106 = vsel %vm395, %v1888, %v1979
  %v2107 = vsel %vm395, %v1890, %v1981
  %v2108 = vsel %vm395, %v1892, %v1983
  %v2109 = vsel %vm395, %v1894, %v1985
  %v2110 = vsel %vm395, %v1896, %v1987
  %v2111 = vsel %vm395, %v1898, %v1989
  %v2112 = vsel %vm395, %v1933, %v1991
  %v2113 = vsel %vm395, %v1901, %v1993
  %v2114 = vsel %vm395, %v1903, %v1995
  %v2115 = vsel %vm395, %v1905, %v1997
  %v2116 = vsel %vm395, %v1907, %v1999
  %v2117 = vsel %vm395, %v1909, %v2001
  %v2118 = vsel %vm395, %v1911, %v2003
  %v2119 = vsel %vm395, %v1913, %v2005
  %v2120 = vsel %vm412, %v2104, %v2057
  %v2121 = vsel %vm412, %v2105, %v2059
  %v2122 = vsel %vm412, %v2106, %v2061
  %v2123 = vsel %vm412, %v2107, %v2063
  %v2124 = vsel %vm412, %v2108, %v2065
  %v2125 = vsel %vm412, %v2109, %v2067
  %v2126 = vsel %vm412, %v2110, %v2069
  %v2127 = vsel %vm412, %v2111, %v2071
  %v2128 = vsel %vm412, %v2112, %v2073
  %v2129 = vsel %vm412, %v2113, %v2075
  %v2130 = vsel %vm412, %v2114, %v2077
  %v2131 = vsel %vm412, %v2115, %v2079
  %v2132 = vsel %vm412, %v2116, %v2081
  %v2133 = vsel %vm412, %v2117, %v2083
  %v2134 = vsel %vm412, %v2118, %v2085
  %v2135 = vsel %vm412, %v2119, %v2087
  %v2136 = vpack.c.bf16 %v2121, %v2120
  %v2137 = vpack.c.bf16 %v2123, %v2122
  %v2138 = vpack.c.bf16 %v2125, %v2124
  %v2139 = vpack.c.bf16 %v2127, %v2126
  %v2140 = vpack.c.bf16 %v2129, %v2128
  %v2141 = vpack.c.bf16 %v2131, %v2130
  %v2142 = vpack.c.bf16 %v2133, %v2132
  %v2143 = vpack.c.bf16 %v2135, %v2134
  %v2145 = vperm.slane %v1819, 0
  %v2150 = vunpack.c.l.b16 %v1815
  %v2151 = vunpack.c.l.b16 %v1816
  %v2152 = vunpack.c.l.b16 %v1817
  %v2153 = vpack.c.b16 %v2151, %v2150
  %v2154 = vpack.c.b16 %v2152, %v2152
  %v2157 = vsel %vm449, %v2136, 0
  %v2160 = vsel %vm449, %v2137, 0
  %v2163 = vsel %vm449, %v2138, 0
  %v2166 = vsel %vm449, %v2139, 0
  %v2169 = vsel %vm449, %v2140, 0
  %v2172 = vsel %vm449, %v2141, 0
  %v2175 = vsel %vm449, %v2142, 0
  %v2178 = vsel %vm449, %v2143, 0
  %v2181 = vsel %vm474, %v2154, 0
  %2183 = vmatpush.bf16.msra.mxu0 0
  %2184 = vmatpush.bf16.msra.mxu0 0
  %2185 = vmatpush.bf16.msra.mxu0 0
  %2186 = vmatpush.bf16.msra.mxu0 0
  %2187 = vmatpush.bf16.msra.mxu0 0
  %2188 = vmatpush.bf16.msra.mxu0 0
  %2189 = vmatpush.bf16.msra.mxu0 %v2181
  %2190 = vmatpush.bf16.msra.mxu0 %v2153
  %2191 = vmatmul.bf16.gmra.mxu0 %v2157
  %v2192 = vpop.f32.mrf.mxu0
  %v2193 = vadd.f32 %v2145, %v2192
  %v2194 = vpop.f32.mrf.mxu0
  %v2195 = vadd.f32 %v2145, %v2194
  %2196 = vmatmul.bf16.gmra.mxu0 %v2160
  %v2197 = vpop.f32.mrf.mxu0
  %v2198 = vadd.f32 %v2145, %v2197
  %v2199 = vpop.f32.mrf.mxu0
  %v2200 = vadd.f32 %v2145, %v2199
  %2201 = vmatmul.bf16.gmra.mxu0 %v2163
  %v2202 = vpop.f32.mrf.mxu0
  %v2203 = vadd.f32 %v2145, %v2202
  %v2204 = vpop.f32.mrf.mxu0
  %v2205 = vadd.f32 %v2145, %v2204
  %2206 = vmatmul.bf16.gmra.mxu0 %v2166
  %v2207 = vpop.f32.mrf.mxu0
  %v2208 = vadd.f32 %v2145, %v2207
  %v2209 = vpop.f32.mrf.mxu0
  %v2210 = vadd.f32 %v2145, %v2209
  %2211 = vmatmul.bf16.gmra.mxu0 %v2169
  %v2212 = vpop.f32.mrf.mxu0
  %v2213 = vadd.f32 %v2145, %v2212
  %v2214 = vpop.f32.mrf.mxu0
  %v2215 = vadd.f32 %v2145, %v2214
  %2216 = vmatmul.bf16.gmra.mxu0 %v2172
  %v2217 = vpop.f32.mrf.mxu0
  %v2218 = vadd.f32 %v2145, %v2217
  %v2219 = vpop.f32.mrf.mxu0
  %v2220 = vadd.f32 %v2145, %v2219
  %2221 = vmatmul.bf16.gmra.mxu0 %v2175
  %v2222 = vpop.f32.mrf.mxu0
  %v2223 = vadd.f32 %v2145, %v2222
  %v2224 = vpop.f32.mrf.mxu0
  %v2225 = vadd.f32 %v2145, %v2224
  %2226 = vmatmul.bf16.gmra.mxu0 %v2178
  %v2227 = vpop.f32.mrf.mxu0
  %v2228 = vadd.f32 %v2145, %v2227
  %v2229 = vpop.f32.mrf.mxu0
  %v2230 = vadd.f32 %v2145, %v2229
  %2231 = vdwg.mxu0
  %s2232 = scalar_lea.vmem %s4, 24
  %v2233 = vld [vmem:[%s2232] sm:$0xf]
  %v2234 = vld [vmem:[%s2232 + $0x4] sm:$0xf]
  %v2235 = vld [vmem:[%s2232 + $0x8] sm:$0xf]
  %s2236 = scalar_lea.vmem %s5, 2
  %v2237 = vld [vmem:[%s2236] sm:$0x1]
  %vm2238 = vcmp.ge.f32.partialorder %v2193, 0.0
  %vm2239 = vcmp.ge.f32.partialorder %v2195, 0.0
  %vm2240 = vcmp.ge.f32.partialorder %v2198, 0.0
  %vm2241 = vcmp.ge.f32.partialorder %v2200, 0.0
  %vm2242 = vcmp.ge.f32.partialorder %v2203, 0.0
  %vm2243 = vcmp.ge.f32.partialorder %v2205, 0.0
  %vm2244 = vcmp.ge.f32.partialorder %v2208, 0.0
  %vm2245 = vcmp.ge.f32.partialorder %v2210, 0.0
  %vm2246 = vcmp.ge.f32.partialorder %v2213, 0.0
  %vm2247 = vcmp.ge.f32.partialorder %v2215, 0.0
  %vm2248 = vcmp.ge.f32.partialorder %v2218, 0.0
  %vm2249 = vcmp.ge.f32.partialorder %v2220, 0.0
  %vm2250 = vcmp.ge.f32.partialorder %v2223, 0.0
  %vm2251 = vcmp.ge.f32.partialorder %v2225, 0.0
  %vm2252 = vcmp.ge.f32.partialorder %v2228, 0.0
  %vm2253 = vcmp.ge.f32.partialorder %v2230, 0.0
  %v2254 = vmul.f32 %v2193, 0.1
  %v2255 = vmul.f32 %v2195, 0.1
  %v2256 = vmul.f32 %v2198, 0.1
  %v2257 = vmul.f32 %v2200, 0.1
  %v2258 = vmul.f32 %v2203, 0.1
  %v2259 = vmul.f32 %v2205, 0.1
  %v2260 = vmul.f32 %v2208, 0.1
  %v2261 = vmul.f32 %v2210, 0.1
  %v2262 = vmul.f32 %v2213, 0.1
  %v2263 = vmul.f32 %v2215, 0.1
  %v2264 = vmul.f32 %v2218, 0.1
  %v2265 = vmul.f32 %v2220, 0.1
  %v2266 = vmul.f32 %v2223, 0.1
  %v2267 = vmul.f32 %v2225, 0.1
  %v2268 = vmul.f32 %v2228, 0.1
  %v2269 = vmul.f32 %v2230, 0.1
  %v2270 = vsel %vm2238, %v2193, %v2254
  %v2271 = vsel %vm2239, %v2195, %v2255
  %v2272 = vsel %vm2240, %v2198, %v2256
  %v2273 = vsel %vm2241, %v2200, %v2257
  %v2274 = vsel %vm2242, %v2203, %v2258
  %v2275 = vsel %vm2243, %v2205, %v2259
  %v2276 = vsel %vm2244, %v2208, %v2260
  %v2277 = vsel %vm2245, %v2210, %v2261
  %v2278 = vsel %vm2246, %v2213, %v2262
  %v2279 = vsel %vm2247, %v2215, %v2263
  %v2280 = vsel %vm2248, %v2218, %v2264
  %v2281 = vsel %vm2249, %v2220, %v2265
  %v2282 = vsel %vm2250, %v2223, %v2266
  %v2283 = vsel %vm2251, %v2225, %v2267
  %v2284 = vsel %vm2252, %v2228, %v2268
  %v2285 = vsel %vm2253, %v2230, %v2269
  %v2302 = vrot.slane %v2270, 7
  %v2303 = vrot.slane %v2271, 7
  %v2304 = vsel %vm172, %v2302, %v2303
  %v2305 = vrot.slane %v2272, 7
  %v2306 = vsel %vm172, %v2303, %v2305
  %v2307 = vrot.slane %v2273, 7
  %v2308 = vsel %vm172, %v2305, %v2307
  %v2309 = vrot.slane %v2274, 7
  %v2310 = vsel %vm172, %v2307, %v2309
  %v2311 = vrot.slane %v2275, 7
  %v2312 = vsel %vm172, %v2309, %v2311
  %v2313 = vrot.slane %v2276, 7
  %v2314 = vsel %vm172, %v2311, %v2313
  %v2315 = vrot.slane %v2277, 7
  %v2316 = vsel %vm172, %v2313, %v2315
  %v2317 = vrot.slane %v2278, 7
  %v2318 = vrot.slane %v2279, 7
  %v2319 = vsel %vm172, %v2317, %v2318
  %v2320 = vrot.slane %v2280, 7
  %v2321 = vsel %vm172, %v2318, %v2320
  %v2322 = vrot.slane %v2281, 7
  %v2323 = vsel %vm172, %v2320, %v2322
  %v2324 = vrot.slane %v2282, 7
  %v2325 = vsel %vm172, %v2322, %v2324
  %v2326 = vrot.slane %v2283, 7
  %v2327 = vsel %vm172, %v2324, %v2326
  %v2328 = vrot.slane %v2284, 7
  %v2329 = vsel %vm172, %v2326, %v2328
  %v2330 = vrot.slane %v2285, 7
  %v2331 = vsel %vm172, %v2328, %v2330
  %v2350 = vsel %vm172, 0.0, %v2302
  %v2351 = vsel %vm172, 0.0, %v2317
  %v2352 = vsel %vm172, %v2315, 0.0
  %v2353 = vsel %vm172, %v2330, 0.0
  %v2358 = vrot.slane %v2350, 1
  %v2359 = vrot.slane %v2304, 1
  %v2360 = vsel %vm229, %v2358, %v2359
  %v2361 = vrot.slane %v2306, 1
  %v2362 = vsel %vm229, %v2359, %v2361
  %v2363 = vrot.slane %v2308, 1
  %v2364 = vsel %vm229, %v2361, %v2363
  %v2365 = vrot.slane %v2310, 1
  %v2366 = vsel %vm229, %v2363, %v2365
  %v2367 = vrot.slane %v2312, 1
  %v2368 = vsel %vm229, %v2365, %v2367
  %v2369 = vrot.slane %v2314, 1
  %v2370 = vsel %vm229, %v2367, %v2369
  %v2371 = vrot.slane %v2316, 1
  %v2372 = vsel %vm229, %v2369, %v2371
  %v2373 = vrot.slane %v2352, 1
  %v2374 = vsel %vm229, %v2371, %v2373
  %v2375 = vrot.slane %v2351, 1
  %v2376 = vrot.slane %v2319, 1
  %v2377 = vsel %vm229, %v2375, %v2376
  %v2378 = vrot.slane %v2321, 1
  %v2379 = vsel %vm229, %v2376, %v2378
  %v2380 = vrot.slane %v2323, 1
  %v2381 = vsel %vm229, %v2378, %v2380
  %v2382 = vrot.slane %v2325, 1
  %v2383 = vsel %vm229, %v2380, %v2382
  %v2384 = vrot.slane %v2327, 1
  %v2385 = vsel %vm229, %v2382, %v2384
  %v2386 = vrot.slane %v2329, 1
  %v2387 = vsel %vm229, %v2384, %v2386
  %v2388 = vrot.slane %v2331, 1
  %v2389 = vsel %vm229, %v2386, %v2388
  %v2390 = vrot.slane %v2353, 1
  %v2391 = vsel %vm229, %v2388, %v2390
  %2392 = vrot.lane.b32.xlu0 %v2360, 8
  %v2393 = vpop.permute.xlu0 %2392
  %2394 = vrot.lane.b32.xlu0 %v2362, 8
  %v2395 = vpop.permute.xlu0 %2394
  %2396 = vrot.lane.b32.xlu0 %v2364, 8
  %v2397 = vpop.permute.xlu0 %2396
  %2398 = vrot.lane.b32.xlu0 %v2366, 8
  %v2399 = vpop.permute.xlu0 %2398
  %2400 = vrot.lane.b32.xlu0 %v2368, 8
  %v2401 = vpop.permute.xlu0 %2400
  %2402 = vrot.lane.b32.xlu0 %v2370, 8
  %v2403 = vpop.permute.xlu0 %2402
  %2404 = vrot.lane.b32.xlu0 %v2372, 8
  %v2405 = vpop.permute.xlu0 %2404
  %2406 = vrot.lane.b32.xlu0 %v2374, 8
  %v2407 = vpop.permute.xlu0 %2406
  %2408 = vrot.lane.b32.xlu0 %v2377, 8
  %v2409 = vpop.permute.xlu0 %2408
  %2410 = vrot.lane.b32.xlu0 %v2379, 8
  %v2411 = vpop.permute.xlu0 %2410
  %2412 = vrot.lane.b32.xlu0 %v2381, 8
  %v2413 = vpop.permute.xlu0 %2412
  %2414 = vrot.lane.b32.xlu0 %v2383, 8
  %v2415 = vpop.permute.xlu0 %2414
  %2416 = vrot.lane.b32.xlu0 %v2385, 8
  %v2417 = vpop.permute.xlu0 %2416
  %2418 = vrot.lane.b32.xlu0 %v2387, 8
  %v2419 = vpop.permute.xlu0 %2418
  %2420 = vrot.lane.b32.xlu0 %v2389, 8
  %v2421 = vpop.permute.xlu0 %2420
  %2422 = vrot.lane.b32.xlu0 %v2391, 8
  %v2423 = vpop.permute.xlu0 %2422
  %v2440 = vrot.slane %v2350, 2
  %v2441 = vrot.slane %v2304, 2
  %v2442 = vsel %vm312, %v2440, %v2441
  %v2443 = vrot.slane %v2306, 2
  %v2444 = vsel %vm312, %v2441, %v2443
  %v2445 = vrot.slane %v2308, 2
  %v2446 = vsel %vm312, %v2443, %v2445
  %v2447 = vrot.slane %v2310, 2
  %v2448 = vsel %vm312, %v2445, %v2447
  %v2449 = vrot.slane %v2312, 2
  %v2450 = vsel %vm312, %v2447, %v2449
  %v2451 = vrot.slane %v2314, 2
  %v2452 = vsel %vm312, %v2449, %v2451
  %v2453 = vrot.slane %v2316, 2
  %v2454 = vsel %vm312, %v2451, %v2453
  %v2455 = vrot.slane %v2352, 2
  %v2456 = vsel %vm312, %v2453, %v2455
  %v2457 = vrot.slane %v2351, 2
  %v2458 = vrot.slane %v2319, 2
  %v2459 = vsel %vm312, %v2457, %v2458
  %v2460 = vrot.slane %v2321, 2
  %v2461 = vsel %vm312, %v2458, %v2460
  %v2462 = vrot.slane %v2323, 2
  %v2463 = vsel %vm312, %v2460, %v2462
  %v2464 = vrot.slane %v2325, 2
  %v2465 = vsel %vm312, %v2462, %v2464
  %v2466 = vrot.slane %v2327, 2
  %v2467 = vsel %vm312, %v2464, %v2466
  %v2468 = vrot.slane %v2329, 2
  %v2469 = vsel %vm312, %v2466, %v2468
  %v2470 = vrot.slane %v2331, 2
  %v2471 = vsel %vm312, %v2468, %v2470
  %v2472 = vrot.slane %v2353, 2
  %v2473 = vsel %vm312, %v2470, %v2472
  %2474 = vrot.lane.b32.xlu0 %v2442, 16
  %v2475 = vpop.permute.xlu0 %2474
  %2476 = vrot.lane.b32.xlu0 %v2444, 16
  %v2477 = vpop.permute.xlu0 %2476
  %2478 = vrot.lane.b32.xlu0 %v2446, 16
  %v2479 = vpop.permute.xlu0 %2478
  %2480 = vrot.lane.b32.xlu0 %v2448, 16
  %v2481 = vpop.permute.xlu0 %2480
  %2482 = vrot.lane.b32.xlu0 %v2450, 16
  %v2483 = vpop.permute.xlu0 %2482
  %2484 = vrot.lane.b32.xlu0 %v2452, 16
  %v2485 = vpop.permute.xlu0 %2484
  %2486 = vrot.lane.b32.xlu0 %v2454, 16
  %v2487 = vpop.permute.xlu0 %2486
  %2488 = vrot.lane.b32.xlu0 %v2456, 16
  %v2489 = vpop.permute.xlu0 %2488
  %2490 = vrot.lane.b32.xlu0 %v2459, 16
  %v2491 = vpop.permute.xlu0 %2490
  %2492 = vrot.lane.b32.xlu0 %v2461, 16
  %v2493 = vpop.permute.xlu0 %2492
  %2494 = vrot.lane.b32.xlu0 %v2463, 16
  %v2495 = vpop.permute.xlu0 %2494
  %2496 = vrot.lane.b32.xlu0 %v2465, 16
  %v2497 = vpop.permute.xlu0 %2496
  %2498 = vrot.lane.b32.xlu0 %v2467, 16
  %v2499 = vpop.permute.xlu0 %2498
  %2500 = vrot.lane.b32.xlu0 %v2469, 16
  %v2501 = vpop.permute.xlu0 %2500
  %2502 = vrot.lane.b32.xlu0 %v2471, 16
  %v2503 = vpop.permute.xlu0 %2502
  %2504 = vrot.lane.b32.xlu0 %v2473, 16
  %v2505 = vpop.permute.xlu0 %2504
  %v2522 = vsel %vm395, %v2350, %v2393
  %v2523 = vsel %vm395, %v2304, %v2395
  %v2524 = vsel %vm395, %v2306, %v2397
  %v2525 = vsel %vm395, %v2308, %v2399
  %v2526 = vsel %vm395, %v2310, %v2401
  %v2527 = vsel %vm395, %v2312, %v2403
  %v2528 = vsel %vm395, %v2314, %v2405
  %v2529 = vsel %vm395, %v2316, %v2407
  %v2530 = vsel %vm395, %v2351, %v2409
  %v2531 = vsel %vm395, %v2319, %v2411
  %v2532 = vsel %vm395, %v2321, %v2413
  %v2533 = vsel %vm395, %v2323, %v2415
  %v2534 = vsel %vm395, %v2325, %v2417
  %v2535 = vsel %vm395, %v2327, %v2419
  %v2536 = vsel %vm395, %v2329, %v2421
  %v2537 = vsel %vm395, %v2331, %v2423
  %v2538 = vsel %vm412, %v2522, %v2475
  %v2539 = vsel %vm412, %v2523, %v2477
  %v2540 = vsel %vm412, %v2524, %v2479
  %v2541 = vsel %vm412, %v2525, %v2481
  %v2542 = vsel %vm412, %v2526, %v2483
  %v2543 = vsel %vm412, %v2527, %v2485
  %v2544 = vsel %vm412, %v2528, %v2487
  %v2545 = vsel %vm412, %v2529, %v2489
  %v2546 = vsel %vm412, %v2530, %v2491
  %v2547 = vsel %vm412, %v2531, %v2493
  %v2548 = vsel %vm412, %v2532, %v2495
  %v2549 = vsel %vm412, %v2533, %v2497
  %v2550 = vsel %vm412, %v2534, %v2499
  %v2551 = vsel %vm412, %v2535, %v2501
  %v2552 = vsel %vm412, %v2536, %v2503
  %v2553 = vsel %vm412, %v2537, %v2505
  %v2554 = vpack.c.bf16 %v2539, %v2538
  %v2555 = vpack.c.bf16 %v2541, %v2540
  %v2556 = vpack.c.bf16 %v2543, %v2542
  %v2557 = vpack.c.bf16 %v2545, %v2544
  %v2558 = vpack.c.bf16 %v2547, %v2546
  %v2559 = vpack.c.bf16 %v2549, %v2548
  %v2560 = vpack.c.bf16 %v2551, %v2550
  %v2561 = vpack.c.bf16 %v2553, %v2552
  %v2563 = vperm.slane %v2237, 0
  %v2568 = vunpack.c.l.b16 %v2233
  %v2569 = vunpack.c.l.b16 %v2234
  %v2570 = vunpack.c.l.b16 %v2235
  %v2571 = vpack.c.b16 %v2569, %v2568
  %v2572 = vpack.c.b16 %v2570, %v2570
  %v2575 = vsel %vm449, %v2554, 0
  %v2578 = vsel %vm449, %v2555, 0
  %v2581 = vsel %vm449, %v2556, 0
  %v2584 = vsel %vm449, %v2557, 0
  %v2587 = vsel %vm449, %v2558, 0
  %v2590 = vsel %vm449, %v2559, 0
  %v2593 = vsel %vm449, %v2560, 0
  %v2596 = vsel %vm449, %v2561, 0
  %v2599 = vsel %vm474, %v2572, 0
  %2601 = vmatpush.bf16.msra.mxu0 0
  %2602 = vmatpush.bf16.msra.mxu0 0
  %2603 = vmatpush.bf16.msra.mxu0 0
  %2604 = vmatpush.bf16.msra.mxu0 0
  %2605 = vmatpush.bf16.msra.mxu0 0
  %2606 = vmatpush.bf16.msra.mxu0 0
  %2607 = vmatpush.bf16.msra.mxu0 %v2599
  %2608 = vmatpush.bf16.msra.mxu0 %v2571
  %2609 = vmatmul.bf16.gmra.mxu0 %v2575
  %v2610 = vpop.f32.mrf.mxu0
  %v2611 = vadd.f32 %v2563, %v2610
  %v2612 = vpop.f32.mrf.mxu0
  %v2613 = vadd.f32 %v2563, %v2612
  %2614 = vmatmul.bf16.gmra.mxu0 %v2578
  %v2615 = vpop.f32.mrf.mxu0
  %v2616 = vadd.f32 %v2563, %v2615
  %v2617 = vpop.f32.mrf.mxu0
  %v2618 = vadd.f32 %v2563, %v2617
  %2619 = vmatmul.bf16.gmra.mxu0 %v2581
  %v2620 = vpop.f32.mrf.mxu0
  %v2621 = vadd.f32 %v2563, %v2620
  %v2622 = vpop.f32.mrf.mxu0
  %v2623 = vadd.f32 %v2563, %v2622
  %2624 = vmatmul.bf16.gmra.mxu0 %v2584
  %v2625 = vpop.f32.mrf.mxu0
  %v2626 = vadd.f32 %v2563, %v2625
  %v2627 = vpop.f32.mrf.mxu0
  %v2628 = vadd.f32 %v2563, %v2627
  %2629 = vmatmul.bf16.gmra.mxu0 %v2587
  %v2630 = vpop.f32.mrf.mxu0
  %v2631 = vadd.f32 %v2563, %v2630
  %v2632 = vpop.f32.mrf.mxu0
  %v2633 = vadd.f32 %v2563, %v2632
  %2634 = vmatmul.bf16.gmra.mxu0 %v2590
  %v2635 = vpop.f32.mrf.mxu0
  %v2636 = vadd.f32 %v2563, %v2635
  %v2637 = vpop.f32.mrf.mxu0
  %v2638 = vadd.f32 %v2563, %v2637
  %2639 = vmatmul.bf16.gmra.mxu0 %v2593
  %v2640 = vpop.f32.mrf.mxu0
  %v2641 = vadd.f32 %v2563, %v2640
  %v2642 = vpop.f32.mrf.mxu0
  %v2643 = vadd.f32 %v2563, %v2642
  %2644 = vmatmul.bf16.gmra.mxu0 %v2596
  %v2645 = vpop.f32.mrf.mxu0
  %v2646 = vadd.f32 %v2563, %v2645
  %v2647 = vpop.f32.mrf.mxu0
  %v2648 = vadd.f32 %v2563, %v2647
  %2649 = vdwg.mxu0
  %v2650 = vadd.f32 %v1798, %v2611
  %v2651 = vadd.f32 %v1799, %v2613
  %v2652 = vadd.f32 %v1800, %v2616
  %v2653 = vadd.f32 %v1801, %v2618
  %v2654 = vadd.f32 %v1802, %v2621
  %v2655 = vadd.f32 %v1803, %v2623
  %v2656 = vadd.f32 %v1804, %v2626
  %v2657 = vadd.f32 %v1805, %v2628
  %v2658 = vadd.f32 %v1806, %v2631
  %v2659 = vadd.f32 %v1807, %v2633
  %v2660 = vadd.f32 %v1808, %v2636
  %v2661 = vadd.f32 %v1809, %v2638
  %v2662 = vadd.f32 %v1810, %v2641
  %v2663 = vadd.f32 %v1811, %v2643
  %v2664 = vadd.f32 %v1812, %v2646
  %v2665 = vadd.f32 %v1813, %v2648
  %v2666 = vpack.c.bf16 %v2650, %v2650
  %v2667 = vpack.c.bf16 %v2651, %v2651
  %v2668 = vpack.c.bf16 %v2652, %v2652
  %v2669 = vpack.c.bf16 %v2653, %v2653
  %v2670 = vpack.c.bf16 %v2654, %v2654
  %v2671 = vpack.c.bf16 %v2655, %v2655
  %v2672 = vpack.c.bf16 %v2656, %v2656
  %v2673 = vpack.c.bf16 %v2657, %v2657
  %v2674 = vpack.c.bf16 %v2658, %v2658
  %v2675 = vpack.c.bf16 %v2659, %v2659
  %v2676 = vpack.c.bf16 %v2660, %v2660
  %v2677 = vpack.c.bf16 %v2661, %v2661
  %v2678 = vpack.c.bf16 %v2662, %v2662
  %v2679 = vpack.c.bf16 %v2663, %v2663
  %v2680 = vpack.c.bf16 %v2664, %v2664
  %v2681 = vpack.c.bf16 %v2665, %v2665
  %vm2682 = vcmask 60416
  %2683 = vst.msk [vmem:[%s6] sm:$0xf] %vm2682, %v2666
  %2684 = vst.msk [vmem:[%s6 + $0x4] sm:$0xf] %vm2682, %v2667
  %2685 = vst.msk [vmem:[%s6 + $0x8] sm:$0xf] %vm2682, %v2668
  %2686 = vst.msk [vmem:[%s6 + $0xc] sm:$0xf] %vm2682, %v2669
  %2687 = vst.msk [vmem:[%s6 + $0x10] sm:$0xf] %vm2682, %v2670
  %2688 = vst.msk [vmem:[%s6 + $0x14] sm:$0xf] %vm2682, %v2671
  %2689 = vst.msk [vmem:[%s6 + $0x18] sm:$0xf] %vm2682, %v2672
  %2690 = vst.msk [vmem:[%s6 + $0x1c] sm:$0xf] %vm2682, %v2673
  %2691 = vst.msk [vmem:[%s6 + $0x20] sm:$0xf] %vm2682, %v2674
  %2692 = vst.msk [vmem:[%s6 + $0x24] sm:$0xf] %vm2682, %v2675
  %2693 = vst.msk [vmem:[%s6 + $0x28] sm:$0xf] %vm2682, %v2676
  %2694 = vst.msk [vmem:[%s6 + $0x2c] sm:$0xf] %vm2682, %v2677
  %2695 = vst.msk [vmem:[%s6 + $0x30] sm:$0xf] %vm2682, %v2678
  %2696 = vst.msk [vmem:[%s6 + $0x34] sm:$0xf] %vm2682, %v2679
  %2697 = vst.msk [vmem:[%s6 + $0x38] sm:$0xf] %vm2682, %v2680
  %2698 = vst.msk [vmem:[%s6 + $0x3c] sm:$0xf] %vm2682, %v2681
  // Predicated region
  $region26: #{synthesizer_forward.24} parent=0 // pred_check
    _
  $region27: #{synthesizer_forward.24} parent=0 // pred_check_branch
    %2700 = sbr.rel (0) target = $region29
  $region28: #{synthesizer_forward.24} parent=0 // pred_region
    _
  $region29: #{synthesizer_forward.24} parent=0 // pred_fallthru
    _
  // Predicated region
  $region30: #{synthesizer_forward.24} parent=0 // pred_check
    _
  $region31: #{synthesizer_forward.24} parent=0 // pred_check_branch
    %2702 = sbr.rel (0) target = $region33
  $region32: #{synthesizer_forward.24} parent=0 // pred_region
    _
  $region33: #{synthesizer_forward.24} parent=0 // pred_fallthru
    _

// kernel: synthesizer_forward.31
$region0: #{synthesizer_forward.31}
  #allocation0 [shape = 'u32[]', space=smem, size = 0x4, offset = 0x4, fixed_abs, tag = 'smem constant byte address 0x4 - core index']
  #allocation1 [shape = 'u32[72,128]{1,0:T(1,128)}', space=vmem, size = 0x9000, scoped, tag = 'internal scratch']
  %s0 = inlined_call_operand.vmem [shape: f32[2,8,32], index: 0, kind: input, shape index: {}]
  %s1 = inlined_call_operand.vmem [shape: f32[2,8,1], index: 1, kind: input, shape index: {}]
  %s2 = inlined_call_operand.vmem [shape: f32[2,1,8], index: 2, kind: input, shape index: {}]
  %s3 = inlined_call_operand.vmem [shape: bf16[32,96], index: 3, kind: input, shape index: {}]
  %s4 = inlined_call_operand.vmem [shape: f32[1,96], index: 4, kind: input, shape index: {}]
  %s5 = inlined_call_operand.vmem [shape: bf16[32,32], index: 5, kind: input, shape index: {}]
  %s6 = inlined_call_operand.vmem [shape: f32[1,32], index: 6, kind: input, shape index: {}]
  %s7 = inlined_call_operand.vmem [shape: f32[1,32], index: 7, kind: input, shape index: {}]
  %s8 = inlined_call_operand.vmem [shape: f32[1,32], index: 8, kind: input, shape index: {}]
  %s9 = inlined_call_operand.vmem [shape: bf16[96,64], index: 9, kind: input, shape index: {}]
  %s10 = inlined_call_operand.vmem [shape: f32[1,64], index: 10, kind: input, shape index: {}]
  %s11 = inlined_call_operand.vmem [shape: bf16[192,32], index: 11, kind: input, shape index: {}]
  %s12 = inlined_call_operand.vmem [shape: f32[1,32], index: 12, kind: input, shape index: {}]
  %s13 = inlined_call_operand.vmem [shape: f32[1,32], index: 13, kind: input, shape index: {}]
  %s14 = inlined_call_operand.vmem [shape: f32[1,32], index: 14, kind: input, shape index: {}]
  %s15 = inlined_call_operand.vmem [shape: f32[2,8,32], index: 15, kind: output, shape index: {}]
  %s16 = sld [smem:[#allocation0]]
  $region70: #{synthesizer_forward.31} parent=0
    _
  %s18 = ssub.s32 1, %s16
  %s19 = scalar_select 0, %s18, %s16
  // Predicated region
  $region2: #{synthesizer_forward.31} parent=0 // pred_check
    _
  $region3: #{synthesizer_forward.31} parent=0 // pred_check_branch
    %21 = sbr.rel (0) target = $region5
  $region4: #{synthesizer_forward.31} parent=0 // pred_region
    _
  $region5: #{synthesizer_forward.31} parent=0 // pred_fallthru
    _
  // Predicated region
  $region6: #{synthesizer_forward.31} parent=0 // pred_check
    _
  $region7: #{synthesizer_forward.31} parent=0 // pred_check_branch
    %23 = sbr.rel (0) target = $region9
  $region8: #{synthesizer_forward.31} parent=0 // pred_region
    _
  $region9: #{synthesizer_forward.31} parent=0 // pred_fallthru
    _
  // Predicated region
  $region10: #{synthesizer_forward.31} parent=0 // pred_check
    _
  $region11: #{synthesizer_forward.31} parent=0 // pred_check_branch
    %25 = sbr.rel (0) target = $region13
  $region12: #{synthesizer_forward.31} parent=0 // pred_region
    _
  $region13: #{synthesizer_forward.31} parent=0 // pred_fallthru
    _
  // Predicated region
  $region14: #{synthesizer_forward.31} parent=0 // pred_check
    _
  $region15: #{synthesizer_forward.31} parent=0 // pred_check_branch
    %27 = sbr.rel (0) target = $region17
  $region16: #{synthesizer_forward.31} parent=0 // pred_region
    _
  $region17: #{synthesizer_forward.31} parent=0 // pred_fallthru
    _
  // Predicated region
  $region18: #{synthesizer_forward.31} parent=0 // pred_check
    _
  $region19: #{synthesizer_forward.31} parent=0 // pred_check_branch
    %29 = sbr.rel (0) target = $region21
  $region20: #{synthesizer_forward.31} parent=0 // pred_region
    _
  $region21: #{synthesizer_forward.31} parent=0 // pred_fallthru
    _
  // Predicated region
  $region22: #{synthesizer_forward.31} parent=0 // pred_check
    _
  $region23: #{synthesizer_forward.31} parent=0 // pred_check_branch
    %31 = sbr.rel (0) target = $region25
  $region24: #{synthesizer_forward.31} parent=0 // pred_region
    _
  $region25: #{synthesizer_forward.31} parent=0 // pred_fallthru
    _
  // Predicated region
  $region26: #{synthesizer_forward.31} parent=0 // pred_check
    _
  $region27: #{synthesizer_forward.31} parent=0 // pred_check_branch
    %33 = sbr.rel (0) target = $region29
  $region28: #{synthesizer_forward.31} parent=0 // pred_region
    _
  $region29: #{synthesizer_forward.31} parent=0 // pred_fallthru
    _
  // Predicated region
  $region30: #{synthesizer_forward.31} parent=0 // pred_check
    _
  $region31: #{synthesizer_forward.31} parent=0 // pred_check_branch
    %35 = sbr.rel (0) target = $region33
  $region32: #{synthesizer_forward.31} parent=0 // pred_region
    _
  $region33: #{synthesizer_forward.31} parent=0 // pred_fallthru
    _
  // Predicated region
  $region34: #{synthesizer_forward.31} parent=0 // pred_check
    _
  $region35: #{synthesizer_forward.31} parent=0 // pred_check_branch
    %37 = sbr.rel (0) target = $region37
  $region36: #{synthesizer_forward.31} parent=0 // pred_region
    _
  $region37: #{synthesizer_forward.31} parent=0 // pred_fallthru
    _
  // Predicated region
  $region38: #{synthesizer_forward.31} parent=0 // pred_check
    _
  $region39: #{synthesizer_forward.31} parent=0 // pred_check_branch
    %39 = sbr.rel (0) target = $region41
  $region40: #{synthesizer_forward.31} parent=0 // pred_region
    _
  $region41: #{synthesizer_forward.31} parent=0 // pred_fallthru
    _
  // Predicated region
  $region42: #{synthesizer_forward.31} parent=0 // pred_check
    _
  $region43: #{synthesizer_forward.31} parent=0 // pred_check_branch
    %41 = sbr.rel (0) target = $region45
  $region44: #{synthesizer_forward.31} parent=0 // pred_region
    _
  $region45: #{synthesizer_forward.31} parent=0 // pred_fallthru
    _
  // Predicated region
  $region46: #{synthesizer_forward.31} parent=0 // pred_check
    _
  $region47: #{synthesizer_forward.31} parent=0 // pred_check_branch
    %43 = sbr.rel (0) target = $region49
  $region48: #{synthesizer_forward.31} parent=0 // pred_region
    _
  $region49: #{synthesizer_forward.31} parent=0 // pred_fallthru
    _
  // Predicated region
  $region50: #{synthesizer_forward.31} parent=0 // pred_check
    _
  $region51: #{synthesizer_forward.31} parent=0 // pred_check_branch
    %45 = sbr.rel (0) target = $region53
  $region52: #{synthesizer_forward.31} parent=0 // pred_region
    _
  $region53: #{synthesizer_forward.31} parent=0 // pred_fallthru
    _
  // Predicated region
  $region54: #{synthesizer_forward.31} parent=0 // pred_check
    _
  $region55: #{synthesizer_forward.31} parent=0 // pred_check_branch
    %47 = sbr.rel (0) target = $region57
  $region56: #{synthesizer_forward.31} parent=0 // pred_region
    _
  $region57: #{synthesizer_forward.31} parent=0 // pred_fallthru
    _
  // Predicated region
  $region58: #{synthesizer_forward.31} parent=0 // pred_check
    _
  $region59: #{synthesizer_forward.31} parent=0 // pred_check_branch
    %49 = sbr.rel (0) target = $region61
  $region60: #{synthesizer_forward.31} parent=0 // pred_region
    _
  $region61: #{synthesizer_forward.31} parent=0 // pred_fallthru
    _
  %v51 = vld [vmem:[%s0] sm:$0xff]
  %v52 = vld [vmem:[%s0 + $0x8] sm:$0xff]
  %v53 = vld [vmem:[%s1] sm:$0xff]
  %v54 = vld [vmem:[%s1 + $0x8] sm:$0xff]
  %v55 = vld [vmem:[%s2] sm:$0x1]
  %v56 = vld [vmem:[%s2 + $0x1] sm:$0x1]
  %v57 = vpack.c.bf16 %v52, %v51
  %v58 = vld [vmem:[%s3] sm:$0xf]
  %v59 = vld [vmem:[%s3 + $0x4] sm:$0xf]
  %v60 = vld [vmem:[%s3 + $0x8] sm:$0xf]
  %v61 = vld [vmem:[%s3 + $0xc] sm:$0xf]
  %v62 = vld [vmem:[%s4] sm:$0x1]
  %v64 = vperm.slane %v62, 0
  %v70 = vunpack.c.l.b16 %v58
  %v71 = vunpack.c.l.b16 %v59
  %v72 = vunpack.c.l.b16 %v60
  %v73 = vunpack.c.l.b16 %v61
  %v74 = vpack.c.b16 %v71, %v70
  %v75 = vpack.c.b16 %v73, %v72
  %vm78 = vcmask 261120
  %v80 = vsel %vm78, %v57, 0
  %82 = vmatpush.bf16.msra.mxu0 0
  %83 = vmatpush.bf16.msra.mxu0 0
  %84 = vmatpush.bf16.msra.mxu0 0
  %85 = vmatpush.bf16.msra.mxu0 0
  %86 = vmatpush.bf16.msra.mxu0 0
  %87 = vmatpush.bf16.msra.mxu0 0
  %88 = vmatpush.bf16.msra.mxu0 %v75
  %89 = vmatpush.bf16.msra.mxu0 %v74
  %90 = vmatmul.bf16.gmra.mxu0 %v80
  %v91 = vpop.f32.mrf.mxu0
  %v92 = vadd.f32 %v64, %v91
  %v93 = vpop.f32.mrf.mxu0
  %v94 = vadd.f32 %v64, %v93
  %95 = vdwg.mxu0
  %v96 = vpack.c.bf16 %v92, %v92
  %v97 = vpack.c.bf16 %v94, %v94
  %v99 = vunpack.c.l.b16 %v96
  %v100 = vpack.c.b16 %v99, %v99
  %101 = vrot.lane.b32.xlu0 %v100, 96
  %v102 = vpop.permute.xlu0 %101
  %vm103 = vcmask 130048
  %v105 = vsel %vm103, %v96, 0
  %v108 = vsel %vm103, %v102, 0
  %110 = vmatpush.bf16.xpose.msra.mxu0 0
  %111 = vmatpush.bf16.xpose.msra.mxu0 0
  %112 = vmatpush.bf16.xpose.msra.mxu0 0
  %113 = vmatpush.bf16.xpose.msra.mxu0 0
  %114 = vmatpush.bf16.xpose.msra.mxu0 0
  %115 = vmatpush.bf16.xpose.msra.mxu0 0
  %116 = vmatpush.bf16.xpose.msra.mxu0 0
  %117 = vmatpush.bf16.xpose.msra.mxu0 %v108
  %118 = vmatmul.bf16.gmra.mxu0 %v105
  %v119 = vpop.f32.mrf.mxu0
  %v120 = vadd.f32 0.0, %v119
  %v121 = vpop.f32.mrf.mxu0
  %122 = vdwg.mxu0
  %v124 = vunpack.c.l.b16 %v97
  %v125 = vpack.c.b16 %v124, %v124
  %126 = vrot.lane.b32.xlu0 %v125, 96
  %v127 = vpop.permute.xlu0 %126
  %v129 = vsel %vm103, %v97, 0
  %v132 = vsel %vm103, %v127, 0
  %134 = vmatpush.bf16.xpose.msra.mxu0 0
  %135 = vmatpush.bf16.xpose.msra.mxu0 0
  %136 = vmatpush.bf16.xpose.msra.mxu0 0
  %137 = vmatpush.bf16.xpose.msra.mxu0 0
  %138 = vmatpush.bf16.xpose.msra.mxu0 0
  %139 = vmatpush.bf16.xpose.msra.mxu0 0
  %140 = vmatpush.bf16.xpose.msra.mxu0 0
  %141 = vmatpush.bf16.xpose.msra.mxu0 %v132
  %142 = vmatmul.bf16.gmra.mxu0 %v129
  %v143 = vpop.f32.mrf.mxu0
  %v144 = vadd.f32 0.0, %v143
  %v145 = vpop.f32.mrf.mxu0
  %146 = vdwg.mxu0
  %v147 = vmul.f32 %v120, 0.25
  %v148 = vmul.f32 %v144, 0.25
  %vm149 = vcmp.gt.f32.partialorder %v55, 0.0
  %vm150 = vcmp.gt.f32.partialorder %v56, 0.0
  %v151 = vsel %vm149, 1, 0
  %v152 = vsel %vm150, 1, 0
  %v153 = vperm.slane %v151, 0
  %v154 = vperm.slane %v152, 0
  %vm155 = vcmp.eq.s32.totalorder %v153, 1
  %vm156 = vcmp.eq.s32.totalorder %v154, 1
  %v157 = vsel %vm155, %v147, -10000.0
  %v158 = vsel %vm156, %v148, -10000.0
  %vm159 = vcmask 64512
  %v160 = vsel %vm159, %v157, -inf
  %161 = vmax.xlane.f32.xlu0 %v160
  %v162 = vpop.xlane.xlu0 %161
  %v163 = vsel %vm159, %v158, -inf
  %164 = vmax.xlane.f32.xlu0 %v163
  %v165 = vpop.xlane.xlu0 %164
  %v166 = vsub.f32 %v157, %v162
  %v167 = vsub.f32 %v158, %v165
  %v168 = vmul.f32 %v166, 1.442695
  %v169 = vpow.pop %v168
  %v170 = vmul.f32 %v167, 1.442695
  %v171 = vpow.pop %v170
  %v172 = vsel %vm159, %v169, 0.0
  %173 = vadd.xlane.f32.xlu0 %v172
  %v174 = vpop.xlane.xlu0 %173
  %v175 = vsel %vm159, %v171, 0.0
  %176 = vadd.xlane.f32.xlu0 %v175
  %v177 = vpop.xlane.xlu0 %176
  %v178 = vrcp.pop %v174
  %v179 = vrcp.pop %v177
  %v180 = vmul.f32 %v169, %v178
  %v181 = vmul.f32 %v171, %v179
  %v182 = vpack.c.bf16 %v180, %v180
  %v183 = vpack.c.bf16 %v181, %v181
  %184 = vrot.lane.b32.xlu0 %v100, 64
  %v185 = vpop.permute.xlu0 %184
  %v187 = vsel %vm159, %v182, 0
  %vm189 = vcmask 1043456
  %v191 = vsel %vm189, %v185, 0
  %193 = vmatpush.bf16.msra.mxu0 0
  %194 = vmatpush.bf16.msra.mxu0 0
  %195 = vmatpush.bf16.msra.mxu0 0
  %196 = vmatpush.bf16.msra.mxu0 0
  %197 = vmatpush.bf16.msra.mxu0 0
  %198 = vmatpush.bf16.msra.mxu0 0
  %199 = vmatpush.bf16.msra.mxu0 0
  %200 = vmatpush.bf16.msra.mxu0 %v191
  %201 = vmatmul.bf16.gmra.mxu0 %v187
  %v202 = vpop.f32.mrf.mxu0
  %v203 = vadd.f32 0.0, %v202
  %v204 = vpop.f32.mrf.mxu0
  %205 = vdwg.mxu0
  %206 = vrot.lane.b32.xlu0 %v125, 64
  %v207 = vpop.permute.xlu0 %206
  %v209 = vsel %vm159, %v183, 0
  %v212 = vsel %vm189, %v207, 0
  %214 = vmatpush.bf16.msra.mxu0 0
  %215 = vmatpush.bf16.msra.mxu0 0
  %216 = vmatpush.bf16.msra.mxu0 0
  %217 = vmatpush.bf16.msra.mxu0 0
  %218 = vmatpush.bf16.msra.mxu0 0
  %219 = vmatpush.bf16.msra.mxu0 0
  %220 = vmatpush.bf16.msra.mxu0 0
  %221 = vmatpush.bf16.msra.mxu0 %v212
  %222 = vmatmul.bf16.gmra.mxu0 %v209
  %v223 = vpop.f32.mrf.mxu0
  %v224 = vadd.f32 0.0, %v223
  %v225 = vpop.f32.mrf.mxu0
  %226 = vdwg.mxu0
  %227 = vrot.lane.b32.xlu0 %v100, 112
  %v228 = vpop.permute.xlu0 %227
  %229 = vrot.lane.b32.xlu0 %v100, 80
  %v230 = vpop.permute.xlu0 %229
  %v232 = vsel %vm103, %v228, 0
  %v235 = vsel %vm103, %v230, 0
  %237 = vmatpush.bf16.xpose.msra.mxu0 0
  %238 = vmatpush.bf16.xpose.msra.mxu0 0
  %239 = vmatpush.bf16.xpose.msra.mxu0 0
  %240 = vmatpush.bf16.xpose.msra.mxu0 0
  %241 = vmatpush.bf16.xpose.msra.mxu0 0
  %242 = vmatpush.bf16.xpose.msra.mxu0 0
  %243 = vmatpush.bf16.xpose.msra.mxu0 0
  %244 = vmatpush.bf16.xpose.msra.mxu0 %v235
  %245 = vmatmul.bf16.gmra.mxu0 %v232
  %v246 = vpop.f32.mrf.mxu0
  %v247 = vadd.f32 0.0, %v246
  %v248 = vpop.f32.mrf.mxu0
  %249 = vdwg.mxu0
  %250 = vrot.lane.b32.xlu0 %v125, 112
  %v251 = vpop.permute.xlu0 %250
  %252 = vrot.lane.b32.xlu0 %v125, 80
  %v253 = vpop.permute.xlu0 %252
  %v255 = vsel %vm103, %v251, 0
  %v258 = vsel %vm103, %v253, 0
  %260 = vmatpush.bf16.xpose.msra.mxu0 0
  %261 = vmatpush.bf16.xpose.msra.mxu0 0
  %262 = vmatpush.bf16.xpose.msra.mxu0 0
  %263 = vmatpush.bf16.xpose.msra.mxu0 0
  %264 = vmatpush.bf16.xpose.msra.mxu0 0
  %265 = vmatpush.bf16.xpose.msra.mxu0 0
  %266 = vmatpush.bf16.xpose.msra.mxu0 0
  %267 = vmatpush.bf16.xpose.msra.mxu0 %v258
  %268 = vmatmul.bf16.gmra.mxu0 %v255
  %v269 = vpop.f32.mrf.mxu0
  %v270 = vadd.f32 0.0, %v269
  %v271 = vpop.f32.mrf.mxu0
  %272 = vdwg.mxu0
  %v273 = vmul.f32 %v247, 0.25
  %v274 = vmul.f32 %v270, 0.25
  %v275 = vsel %vm155, %v273, -10000.0
  %v276 = vsel %vm156, %v274, -10000.0
  %v277 = vsel %vm159, %v275, -inf
  %278 = vmax.xlane.f32.xlu0 %v277
  %v279 = vpop.xlane.xlu0 %278
  %v280 = vsel %vm159, %v276, -inf
  %281 = vmax.xlane.f32.xlu0 %v280
  %v282 = vpop.xlane.xlu0 %281
  %v283 = vsub.f32 %v275, %v279
  %v284 = vsub.f32 %v276, %v282
  %v285 = vmul.f32 %v283, 1.442695
  %v286 = vpow.pop %v285
  %v287 = vmul.f32 %v284, 1.442695
  %v288 = vpow.pop %v287
  %v289 = vsel %vm159, %v286, 0.0
  %290 = vadd.xlane.f32.xlu0 %v289
  %v291 = vpop.xlane.xlu0 %290
  %v292 = vsel %vm159, %v288, 0.0
  %293 = vadd.xlane.f32.xlu0 %v292
  %v294 = vpop.xlane.xlu0 %293
  %v295 = vrcp.pop %v291
  %v296 = vrcp.pop %v294
  %v297 = vmul.f32 %v286, %v295
  %v298 = vmul.f32 %v288, %v296
  %v299 = vpack.c.bf16 %v297, %v297
  %v300 = vpack.c.bf16 %v298, %v298
  %301 = vrot.lane.b32.xlu0 %v100, 48
  %v302 = vpop.permute.xlu0 %301
  %v304 = vsel %vm159, %v299, 0
  %v307 = vsel %vm189, %v302, 0
  %309 = vmatpush.bf16.msra.mxu0 0
  %310 = vmatpush.bf16.msra.mxu0 0
  %311 = vmatpush.bf16.msra.mxu0 0
  %312 = vmatpush.bf16.msra.mxu0 0
  %313 = vmatpush.bf16.msra.mxu0 0
  %314 = vmatpush.bf16.msra.mxu0 0
  %315 = vmatpush.bf16.msra.mxu0 0
  %316 = vmatpush.bf16.msra.mxu0 %v307
  %317 = vmatmul.bf16.gmra.mxu0 %v304
  %v318 = vpop.f32.mrf.mxu0
  %v319 = vadd.f32 0.0, %v318
  %v320 = vpop.f32.mrf.mxu0
  %321 = vdwg.mxu0
  %322 = vrot.lane.b32.xlu0 %v125, 48
  %v323 = vpop.permute.xlu0 %322
  %v325 = vsel %vm159, %v300, 0
  %v328 = vsel %vm189, %v323, 0
  %330 = vmatpush.bf16.msra.mxu0 0
  %331 = vmatpush.bf16.msra.mxu0 0
  %332 = vmatpush.bf16.msra.mxu0 0
  %333 = vmatpush.bf16.msra.mxu0 0
  %334 = vmatpush.bf16.msra.mxu0 0
  %335 = vmatpush.bf16.msra.mxu0 0
  %336 = vmatpush.bf16.msra.mxu0 0
  %337 = vmatpush.bf16.msra.mxu0 %v328
  %338 = vmatmul.bf16.gmra.mxu0 %v325
  %v339 = vpop.f32.mrf.mxu0
  %v340 = vadd.f32 0.0, %v339
  %v341 = vpop.f32.mrf.mxu0
  %342 = vdwg.mxu0
  %345 = vrot.lane.b32.xlu0 %v319, 16
  %v346 = vpop.permute.xlu0 %345
  %347 = vrot.lane.b32.xlu0 %v340, 16
  %v348 = vpop.permute.xlu0 %347
  %v351 = vsel %vm103, %v203, %v346
  %v352 = vsel %vm103, %v224, %v348
  %v353 = vpack.c.bf16 %v352, %v351
  %v354 = vld [vmem:[%s5] sm:$0xf]
  %v355 = vld [vmem:[%s5 + $0x4] sm:$0xf]
  %v356 = vld [vmem:[%s5 + $0x8] sm:$0xf]
  %v357 = vld [vmem:[%s5 + $0xc] sm:$0xf]
  %v358 = vld [vmem:[%s6] sm:$0x1]
  %v360 = vperm.slane %v358, 0
  %v366 = vunpack.c.l.b16 %v354
  %v367 = vunpack.c.l.b16 %v355
  %v368 = vunpack.c.l.b16 %v356
  %v369 = vunpack.c.l.b16 %v357
  %v370 = vpack.c.b16 %v367, %v366
  %v371 = vpack.c.b16 %v369, %v368
  %v375 = vsel %vm78, %v353, 0
  %377 = vmatpush.bf16.msra.mxu0 0
  %378 = vmatpush.bf16.msra.mxu0 0
  %379 = vmatpush.bf16.msra.mxu0 0
  %380 = vmatpush.bf16.msra.mxu0 0
  %381 = vmatpush.bf16.msra.mxu0 0
  %382 = vmatpush.bf16.msra.mxu0 0
  %383 = vmatpush.bf16.msra.mxu0 %v371
  %384 = vmatpush.bf16.msra.mxu0 %v370
  %385 = vmatmul.bf16.gmra.mxu0 %v375
  %v386 = vpop.f32.mrf.mxu0
  %v387 = vadd.f32 %v360, %v386
  %v388 = vpop.f32.mrf.mxu0
  %v389 = vadd.f32 %v360, %v388
  %390 = vdwg.mxu0
  %v391 = vadd.f32 %v51, %v387
  %v392 = vadd.f32 %v52, %v389
  %v393 = vld [vmem:[%s7] sm:$0x1]
  %v394 = vld [vmem:[%s8] sm:$0x1]
  %v395 = vsel %vm78, %v391, 0.0
  %396 = vadd.xlane.f32.xlu0 %v395
  %v397 = vpop.xlane.xlu0 %396
  %v398 = vsel %vm78, %v392, 0.0
  %399 = vadd.xlane.f32.xlu0 %v398
  %v400 = vpop.xlane.xlu0 %399
  %v401 = vrcp.pop 32.0
  %v402 = vmul.f32 32.0, %v401
  %v403 = vsub.f32 1.0, %v402
  %v404 = vmul.f32 %v401, %v403
  %v405 = vadd.f32 %v401, %v404
  %vm406 = vweird.f32 %v401
  %v407 = vsel %vm406, %v401, %v405
  %v408 = vmul.f32 %v397, %v407
  %v409 = vmul.f32 %v400, %v407
  %v410 = vsub.f32 %v391, %v408
  %v411 = vsub.f32 %v392, %v409
  %v412 = vmul.f32 %v410, %v410
  %v413 = vmul.f32 %v411, %v411
  %v414 = vsel %vm78, %v412, 0.0
  %415 = vadd.xlane.f32.xlu0 %v414
  %v416 = vpop.xlane.xlu0 %415
  %v417 = vsel %vm78, %v413, 0.0
  %418 = vadd.xlane.f32.xlu0 %v417
  %v419 = vpop.xlane.xlu0 %418
  %v420 = vmul.f32 %v416, %v407
  %v421 = vmul.f32 %v419, %v407
  %v422 = vadd.f32 %v420, 1e-05
  %v423 = vadd.f32 %v421, 1e-05
  %v424 = vrsqrt.pop %v422
  %v425 = vmul.f32 %v424, %v422
  %v426 = vmul.f32 %v425, %v424
  %v427 = vmul.f32 0.5, %v426
  %v428 = vsub.f32 1.5, %v427
  %v429 = vmul.f32 %v424, %v428
  %vm430 = vweird.f32 %v422
  %vm431 = vweird.f32 %v424
  %vm432 = vmor %vm430, %vm431
  %v433 = vsel %vm432, %v424, %v429
  %v434 = vrsqrt.pop %v423
  %v435 = vmul.f32 %v434, %v423
  %v436 = vmul.f32 %v435, %v434
  %v437 = vmul.f32 0.5, %v436
  %v438 = vsub.f32 1.5, %v437
  %v439 = vmul.f32 %v434, %v438
  %vm440 = vweird.f32 %v423
  %vm441 = vweird.f32 %v434
  %vm442 = vmor %vm440, %vm441
  %v443 = vsel %vm442, %v434, %v439
  %v444 = vmul.f32 %v410, %v433
  %v445 = vmul.f32 %v411, %v443
  %v447 = vperm.slane %v393, 0
  %v449 = vmul.f32 %v444, %v447
  %v450 = vmul.f32 %v445, %v447
  %v452 = vperm.slane %v394, 0
  %v454 = vadd.f32 %v449, %v452
  %v455 = vadd.f32 %v450, %v452
  %457 = vset.pattern.permute.xlu0 0
  %458 = vperm.xlu0 %457, %v53
  %v459 = vpop.permute.xlu0 %458
  %462 = vset.pattern.permute.xlu0 0
  %463 = vperm.xlu0 %462, %v54
  %v464 = vpop.permute.xlu0 %463
  %v466 = vmul.f32 %v454, %v459
  %v467 = vmul.f32 %v455, %v464
  %v470 = vrot.slane %v466, 7
  %v471 = vrot.slane %v467, 7
  %vm474 = vcmask 1040384
  %v475 = vsel %vm474, 0.0, %v470
  %v476 = vsel %vm474, 0.0, %v471
  %v477 = vsel %vm474, %v470, 0.0
  %v478 = vsel %vm474, %v471, 0.0
  %vm483 = vcmask 1046528
  %v484 = vrot.slane %v475, 1
  %v485 = vrot.slane %v477, 1
  %v486 = vsel %vm483, %v484, %v485
  %v487 = vrot.slane %v476, 1
  %v488 = vrot.slane %v478, 1
  %v489 = vsel %vm483, %v487, %v488
  %490 = vrot.lane.b32.xlu0 %v486, 32
  %v491 = vpop.permute.xlu0 %490
  %492 = vrot.lane.b32.xlu0 %v489, 32
  %v493 = vpop.permute.xlu0 %492
  %vm496 = vcmask 1045504
  %v497 = vrot.slane %v475, 2
  %v498 = vrot.slane %v477, 2
  %v499 = vsel %vm496, %v497, %v498
  %v500 = vrot.slane %v476, 2
  %v501 = vrot.slane %v478, 2
  %v502 = vsel %vm496, %v500, %v501
  %503 = vrot.lane.b32.xlu0 %v499, 64
  %v504 = vpop.permute.xlu0 %503
  %505 = vrot.lane.b32.xlu0 %v502, 64
  %v506 = vpop.permute.xlu0 %505
  %v509 = vsel %vm78, %v475, %v491
  %v510 = vsel %vm78, %v476, %v493
  %vm511 = vcmask 523264
  %v512 = vsel %vm511, %v509, %v504
  %v513 = vsel %vm511, %v510, %v506
  %v514 = vpack.c.bf16 %v513, %v512
  %v515 = vld [vmem:[%s9] sm:$0xf]
  %v516 = vld [vmem:[%s9 + $0x4] sm:$0xf]
  %v517 = vld [vmem:[%s9 + $0x8] sm:$0xf]
  %v518 = vld [vmem:[%s9 + $0xc] sm:$0xf]
  %v519 = vld [vmem:[%s9 + $0x10] sm:$0xf]
  %v520 = vld [vmem:[%s9 + $0x14] sm:$0xf]
  %v521 = vld [vmem:[%s9 + $0x18] sm:$0xf]
  %v522 = vld [vmem:[%s9 + $0x1c] sm:$0xf]
  %v523 = vld [vmem:[%s9 + $0x20] sm:$0xf]
  %v524 = vld [vmem:[%s9 + $0x24] sm:$0xf]
  %v525 = vld [vmem:[%s9 + $0x28] sm:$0xf]
  %v526 = vld [vmem:[%s9 + $0x2c] sm:$0xf]
  %v527 = vld [vmem:[%s10] sm:$0x1]
  %v529 = vperm.slane %v527, 0
  %v543 = vunpack.c.l.b16 %v515
  %v544 = vunpack.c.l.b16 %v516
  %v545 = vunpack.c.l.b16 %v517
  %v546 = vunpack.c.l.b16 %v518
  %v547 = vunpack.c.l.b16 %v519
  %v548 = vunpack.c.l.b16 %v520
  %v549 = vunpack.c.l.b16 %v521
  %v550 = vunpack.c.l.b16 %v522
  %v551 = vunpack.c.l.b16 %v523
  %v552 = vunpack.c.l.b16 %v524
  %v553 = vunpack.c.l.b16 %v525
  %v554 = vunpack.c.l.b16 %v526
  %v555 = vpack.c.b16 %v544, %v543
  %v556 = vpack.c.b16 %v546, %v545
  %v557 = vpack.c.b16 %v548, %v547
  %v558 = vpack.c.b16 %v550, %v549
  %v559 = vpack.c.b16 %v552, %v551
  %v560 = vpack.c.b16 %v554, %v553
  %vm567 = vcmask 785408
  %v569 = vsel %vm567, %v514, 0
  %571 = vmatpush.bf16.msra.mxu0 0
  %572 = vmatpush.bf16.msra.mxu0 0
  %573 = vmatpush.bf16.msra.mxu0 %v560
  %574 = vmatpush.bf16.msra.mxu0 %v559
  %575 = vmatpush.bf16.msra.mxu0 %v558
  %576 = vmatpush.bf16.msra.mxu0 %v557
  %577 = vmatpush.bf16.msra.mxu0 %v556
  %578 = vmatpush.bf16.msra.mxu0 %v555
  %579 = vmatmul.bf16.gmra.mxu0 %v569
  %v580 = vpop.f32.mrf.mxu0
  %v581 = vadd.f32 %v529, %v580
  %v582 = vpop.f32.mrf.mxu0
  %v583 = vadd.f32 %v529, %v582
  %584 = vdwg.mxu0
  %v585 = vmax.f32 %v581, 0.0
  %v586 = vmax.f32 %v583, 0.0
  %v587 = vmul.f32 %v585, %v459
  %v588 = vmul.f32 %v586, %v464
  %v591 = vrot.slane %v587, 7
  %v592 = vrot.slane %v588, 7
  %v595 = vsel %vm474, 0.0, %v591
  %v596 = vsel %vm474, 0.0, %v592
  %v597 = vsel %vm474, %v591, 0.0
  %v598 = vsel %vm474, %v592, 0.0
  %v603 = vrot.slane %v595, 1
  %v604 = vrot.slane %v597, 1
  %v605 = vsel %vm483, %v603, %v604
  %v606 = vrot.slane %v596, 1
  %v607 = vrot.slane %v598, 1
  %v608 = vsel %vm483, %v606, %v607
  %609 = vrot.lane.b32.xlu0 %v605, 64
  %v610 = vpop.permute.xlu0 %609
  %611 = vrot.lane.b32.xlu0 %v608, 64
  %v612 = vpop.permute.xlu0 %611
  %v615 = vrot.slane %v595, 2
  %v616 = vrot.slane %v597, 2
  %v617 = vsel %vm496, %v615, %v616
  %v618 = vrot.slane %v596, 2
  %v619 = vrot.slane %v598, 2
  %v620 = vsel %vm496, %v618, %v619
  %v623 = vsel %vm511, %v595, %v610
  %v624 = vsel %vm511, %v596, %v612
  %v625 = vpack.c.bf16 %v624, %v623
  %v626 = vpack.c.bf16 %v620, %v617
  %v627 = vld [vmem:[%s11] sm:$0xf]
  %v628 = vld [vmem:[%s11 + $0x4] sm:$0xf]
  %v629 = vld [vmem:[%s11 + $0x8] sm:$0xf]
  %v630 = vld [vmem:[%s11 + $0xc] sm:$0xf]
  %v631 = vld [vmem:[%s11 + $0x10] sm:$0xf]
  %v632 = vld [vmem:[%s11 + $0x14] sm:$0xf]
  %v633 = vld [vmem:[%s11 + $0x18] sm:$0xf]
  %v634 = vld [vmem:[%s11 + $0x1c] sm:$0xf]
  %v635 = vld [vmem:[%s11 + $0x20] sm:$0xf]
  %v636 = vld [vmem:[%s11 + $0x24] sm:$0xf]
  %v637 = vld [vmem:[%s11 + $0x28] sm:$0xf]
  %v638 = vld [vmem:[%s11 + $0x2c] sm:$0xf]
  %v639 = vld [vmem:[%s11 + $0x30] sm:$0xf]
  %v640 = vld [vmem:[%s11 + $0x34] sm:$0xf]
  %v641 = vld [vmem:[%s11 + $0x38] sm:$0xf]
  %v642 = vld [vmem:[%s11 + $0x3c] sm:$0xf]
  %v643 = vld [vmem:[%s11 + $0x40] sm:$0xf]
  %v644 = vld [vmem:[%s11 + $0x44] sm:$0xf]
  %v645 = vld [vmem:[%s11 + $0x48] sm:$0xf]
  %v646 = vld [vmem:[%s11 + $0x4c] sm:$0xf]
  %v647 = vld [vmem:[%s11 + $0x50] sm:$0xf]
  %v648 = vld [vmem:[%s11 + $0x54] sm:$0xf]
  %v649 = vld [vmem:[%s11 + $0x58] sm:$0xf]
  %v650 = vld [vmem:[%s11 + $0x5c] sm:$0xf]
  %v651 = vld [vmem:[%s12] sm:$0x1]
  %v653 = vperm.slane %v651, 0
  %v679 = vunpack.c.l.b16 %v627
  %v680 = vunpack.c.l.b16 %v628
  %v681 = vunpack.c.l.b16 %v629
  %v682 = vunpack.c.l.b16 %v630
  %v683 = vunpack.c.l.b16 %v631
  %v684 = vunpack.c.l.b16 %v632
  %v685 = vunpack.c.l.b16 %v633
  %v686 = vunpack.c.l.b16 %v634
  %v687 = vunpack.c.l.b16 %v635
  %v688 = vunpack.c.l.b16 %v636
  %v689 = vunpack.c.l.b16 %v637
  %v690 = vunpack.c.l.b16 %v638
  %v691 = vunpack.c.l.b16 %v639
  %v692 = vunpack.c.l.b16 %v640
  %v693 = vunpack.c.l.b16 %v641
  %v694 = vunpack.c.l.b16 %v642
  %v695 = vunpack.c.l.b16 %v643
  %v696 = vunpack.c.l.b16 %v644
  %v697 = vunpack.c.l.b16 %v645
  %v698 = vunpack.c.l.b16 %v646
  %v699 = vunpack.c.l.b16 %v647
  %v700 = vunpack.c.l.b16 %v648
  %v701 = vunpack.c.l.b16 %v649
  %v702 = vunpack.c.l.b16 %v650
  %v703 = vpack.c.b16 %v680, %v679
  %v704 = vpack.c.b16 %v682, %v681
  %v705 = vpack.c.b16 %v684, %v683
  %v706 = vpack.c.b16 %v686, %v685
  %v707 = vpack.c.b16 %v688, %v687
  %v708 = vpack.c.b16 %v690, %v689
  %v709 = vpack.c.b16 %v692, %v691
  %v710 = vpack.c.b16 %v694, %v693
  %v711 = vpack.c.b16 %v696, %v695
  %v712 = vpack.c.b16 %v698, %v697
  %v713 = vpack.c.b16 %v700, %v699
  %v714 = vpack.c.b16 %v702, %v701
  %v728 = vsel %vm511, %v626, 0
  %730 = vmatpush.bf16.msra.mxu0 %v710
  %731 = vmatpush.bf16.msra.mxu0 %v709
  %732 = vmatpush.bf16.msra.mxu0 %v708
  %733 = vmatpush.bf16.msra.mxu0 %v707
  %734 = vmatpush.bf16.msra.mxu0 %v706
  %735 = vmatpush.bf16.msra.mxu0 %v705
  %736 = vmatpush.bf16.msra.mxu0 %v704
  %737 = vmatpush.bf16.msra.mxu0 %v703
  %738 = vmatmul.bf16.gmra.mxu0 %v625
  %v739 = vpop.f32.mrf.mxu0
  %v740 = vadd.f32 %v653, %v739
  %v741 = vpop.f32.mrf.mxu0
  %v742 = vadd.f32 %v653, %v741
  %743 = vdwg.mxu0
  %744 = vmatpush.bf16.msra.mxu0 0
  %745 = vmatpush.bf16.msra.mxu0 0
  %746 = vmatpush.bf16.msra.mxu0 0
  %747 = vmatpush.bf16.msra.mxu0 0
  %748 = vmatpush.bf16.msra.mxu0 %v714
  %749 = vmatpush.bf16.msra.mxu0 %v713
  %750 = vmatpush.bf16.msra.mxu0 %v712
  %751 = vmatpush.bf16.msra.mxu0 %v711
  %752 = vmatmul.bf16.gmra.mxu0 %v728
  %v753 = vpop.f32.mrf.mxu0
  %v754 = vadd.f32 %v740, %v753
  %v755 = vpop.f32.mrf.mxu0
  %v756 = vadd.f32 %v742, %v755
  %757 = vdwg.mxu0
  %v758 = vmul.f32 %v754, %v459
  %v759 = vmul.f32 %v756, %v464
  %v760 = vadd.f32 %v454, %v758
  %v761 = vadd.f32 %v455, %v759
  %v762 = vld [vmem:[%s13] sm:$0x1]
  %v763 = vld [vmem:[%s14] sm:$0x1]
  %v764 = vsel %vm78, %v760, 0.0
  %765 = vadd.xlane.f32.xlu0 %v764
  %v766 = vpop.xlane.xlu0 %765
  %v767 = vsel %vm78, %v761, 0.0
  %768 = vadd.xlane.f32.xlu0 %v767
  %v769 = vpop.xlane.xlu0 %768
  %v770 = vmul.f32 %v766, %v407
  %v771 = vmul.f32 %v769, %v407
  %v772 = vsub.f32 %v760, %v770
  %v773 = vsub.f32 %v761, %v771
  %v774 = vmul.f32 %v772, %v772
  %v775 = vmul.f32 %v773, %v773
  %v776 = vsel %vm78, %v774, 0.0
  %777 = vadd.xlane.f32.xlu0 %v776
  %v778 = vpop.xlane.xlu0 %777
  %v779 = vsel %vm78, %v775, 0.0
  %780 = vadd.xlane.f32.xlu0 %v779
  %v781 = vpop.xlane.xlu0 %780
  %v782 = vmul.f32 %v778, %v407
  %v783 = vmul.f32 %v781, %v407
  %v784 = vadd.f32 %v782, 1e-05
  %v785 = vadd.f32 %v783, 1e-05
  %v786 = vrsqrt.pop %v784
  %v787 = vmul.f32 %v786, %v784
  %v788 = vmul.f32 %v787, %v786
  %v789 = vmul.f32 0.5, %v788
  %v790 = vsub.f32 1.5, %v789
  %v791 = vmul.f32 %v786, %v790
  %vm792 = vweird.f32 %v784
  %vm793 = vweird.f32 %v786
  %vm794 = vmor %vm792, %vm793
  %v795 = vsel %vm794, %v786, %v791
  %v796 = vrsqrt.pop %v785
  %v797 = vmul.f32 %v796, %v785
  %v798 = vmul.f32 %v797, %v796
  %v799 = vmul.f32 0.5, %v798
  %v800 = vsub.f32 1.5, %v799
  %v801 = vmul.f32 %v796, %v800
  %vm802 = vweird.f32 %v785
  %vm803 = vweird.f32 %v796
  %vm804 = vmor %vm802, %vm803
  %v805 = vsel %vm804, %v796, %v801
  %v806 = vmul.f32 %v772, %v795
  %v807 = vmul.f32 %v773, %v805
  %v809 = vperm.slane %v762, 0
  %v811 = vmul.f32 %v806, %v809
  %v812 = vmul.f32 %v807, %v809
  %v814 = vperm.slane %v763, 0
  %v816 = vadd.f32 %v811, %v814
  %v817 = vadd.f32 %v812, %v814
  %818 = vst.msk [vmem:[%s15] sm:$0xff] %vm78, %v816
  %819 = vst.msk [vmem:[%s15 + $0x8] sm:$0xff] %vm78, %v817
  // Predicated region
  $region62: #{synthesizer_forward.31} parent=0 // pred_check
    _
  $region63: #{synthesizer_forward.31} parent=0 // pred_check_branch
    %821 = sbr.rel (0) target = $region65
  $region64: #{synthesizer_forward.31} parent=0 // pred_region
    _
  $region65: #{synthesizer_forward.31} parent=0 // pred_fallthru
    _
  // Predicated region
  $region66: #{synthesizer_forward.31} parent=0 // pred_check
    _
  $region67: #{synthesizer_forward.31} parent=0 // pred_check_branch
    %823 = sbr.rel (0) target = $region69
  $region68: #{synthesizer_forward.31} parent=0 // pred_region
    _
  $region69: #{synthesizer_forward.31} parent=0 // pred_fallthru
    _

</llo_original>
